<compile_context>
chip_gen: v7x
topology: tpu7x:2x2x1
jax: 0.10.0
libtpu: 0.0.40
codegen_flags: <defaults>
</compile_context>

<pallas_src>
import functools

import jax
import jax.numpy as jnp
from jax.experimental import pallas as pl
from jax.experimental.pallas import tpu as pltpu

# ----------------------------- model configuration (scaled down) ----------------------------
C_FEAT = 128          # conv feature-extractor channels       (512 in wav2vec2-base)
HIDDEN = 256          # transformer hidden size               (768 in wav2vec2-base)
N_HEADS = 2           # attention heads, head_dim = 128       (12 in wav2vec2-base)
FFN = 512             # feed-forward inner size               (3072 in wav2vec2-base)
N_LAYERS = 2          # encoder layers                        (12 in wav2vec2-base)
CONV_LAYERS = ((10, 5), (3, 2))   # (kernel, stride) per feature-extractor conv
POS_K = 4             # positional conv kernel (even -> SamePad drops last)   (128 real)
POS_G = 2             # positional conv groups, group size = 128              (16 real)

_F32 = jnp.float32
_BF16 = jnp.bfloat16


# --------------------------------------- in-kernel math --------------------------------------
def _gelu(x):
    # tanh-approximation GELU (exact erf-based GELU differs by <1e-3)
    return 0.5 * x * (1.0 + jnp.tanh(0.7978845608028654 * (x + 0.044715 * x * x * x)))


def _layer_norm(x, g, b, eps):
    mu = jnp.mean(x, axis=-1, keepdims=True)
    var = jnp.mean(jnp.square(x - mu), axis=-1, keepdims=True)
    return (x - mu) * jax.lax.rsqrt(var + eps) * g.astype(_F32) + b.astype(_F32)


def _mxu(a, b):
    # bf16 operands, float32 accumulation (v6e/v7x fast path, v5e-compatible)
    return jnp.dot(a.astype(_BF16), b.astype(_BF16), preferred_element_type=_F32)


# --------------------------------------- kernels ---------------------------------------------
def _rownorm_kernel(x_ref, o_ref, *, eps):
    # per-row zero-mean / unit-variance ("tokenizer" / feature-extractor normalization)
    x = x_ref[...].astype(_F32)
    mu = jnp.mean(x, axis=-1, keepdims=True)
    var = jnp.mean(jnp.square(x - mu), axis=-1, keepdims=True)
    o_ref[...] = ((x - mu) * jax.lax.rsqrt(var + eps)).astype(o_ref.dtype)


def _linear_kernel(x_ref, w_ref, b_ref, o_ref, *, activation):
    acc = _mxu(x_ref[...], w_ref[...]) + b_ref[...].astype(_F32)
    if activation == "gelu":
        acc = _gelu(acc)
    o_ref[...] = acc.astype(o_ref.dtype)


def _groupnorm_time_kernel(x_ref, g_ref, b_ref, o_ref, *, eps):
    # GroupNorm(num_groups=C, num_channels=C) on time-major (T, C): per-channel norm over time.
    x = x_ref[...].astype(_F32)
    mu = jnp.mean(x, axis=0, keepdims=True)
    var = jnp.mean(jnp.square(x - mu), axis=0, keepdims=True)
    y = (x - mu) * jax.lax.rsqrt(var + eps) * g_ref[...].astype(_F32) + b_ref[...].astype(_F32)
    o_ref[...] = _gelu(y).astype(o_ref.dtype)


def _ln_linear_kernel(x_ref, g_ref, b_ref, w_ref, wb_ref, o_ref, *, eps):
    # feature projection: LayerNorm(C) followed by Linear(C -> H), fused.
    y = _layer_norm(x_ref[...].astype(_F32), g_ref[...], b_ref[...], eps)
    o_ref[...] = (_mxu(y, w_ref[...]) + wb_ref[...].astype(_F32)).astype(o_ref.dtype)


def _group_conv_gelu_kernel(p_ref, w_ref, b_ref, o_ref):
    # one group of the positional Conv1d as an im2col matmul, GELU fused.
    acc = _mxu(p_ref[...], w_ref[...]) + b_ref[...].astype(_F32)
    o_ref[...] = _gelu(acc).astype(o_ref.dtype)


def _add_ln_kernel(x_ref, d_ref, g_ref, b_ref, o_ref, *, eps):
    # hidden + positional embedding, then encoder pre-LayerNorm, fused.
    y = x_ref[...].astype(_F32) + d_ref[...].astype(_F32)
    o_ref[...] = _layer_norm(y, g_ref[...], b_ref[...], eps).astype(o_ref.dtype)


def _encoder_layer_kernel(x_ref, qkv_w_ref, qkv_b_ref, o_w_ref, o_b_ref,
                          ln1_g_ref, ln1_b_ref, ff1_w_ref, ff1_b_ref,
                          ff2_w_ref, ff2_b_ref, ln2_g_ref, ln2_b_ref,
                          o_ref, *, heads, scale, eps):
    # One full post-norm transformer layer for one batch element, fully VMEM-resident.
    x = x_ref[...].astype(_F32)                         # (T, H)
    hid = x.shape[-1]
    dh = hid // heads

    # --- fused QKV projection: single (H, 3H) matmul ---
    qkv = _mxu(x, qkv_w_ref[...]) + qkv_b_ref[...].astype(_F32)      # (T, 3H)
    o_w = o_w_ref[...]                                               # (H, H) bf16

    # --- per-head attention (head_dim = 128 -> all slices are lane-tile aligned) ---
    attn = jnp.zeros_like(x)
    for h in range(heads):
        q = qkv[:, h * dh:(h + 1) * dh].astype(_BF16)
        k = qkv[:, hid + h * dh:hid + (h + 1) * dh].astype(_BF16)
        v = qkv[:, 2 * hid + h * dh:2 * hid + (h + 1) * dh].astype(_BF16)
        s = jax.lax.dot_general(q, k, (((1,), (1,)), ((), ())),
                                preferred_element_type=_F32) * scale          # (T, T)
        m = jnp.max(s, axis=-1, keepdims=True)
        p = jnp.exp(s - m)
        p = p * pl.reciprocal(jnp.sum(p, axis=-1, keepdims=True), approx=True)
        ctx_h = _mxu(p, v)                                                    # (T, dh)
        # out-projection accumulated per head (== concat(heads) @ o_w)
        attn = attn + _mxu(ctx_h, o_w[h * dh:(h + 1) * dh, :])
    attn = attn + o_b_ref[...].astype(_F32)

    # residual + post layer-norm (wav2vec2-base: do_stable_layer_norm=False)
    y = _layer_norm(x + attn, ln1_g_ref[...], ln1_b_ref[...], eps)

    # --- feed forward ---
    mid = _gelu(_mxu(y, ff1_w_ref[...]) + ff1_b_ref[...].astype(_F32))
    out = _mxu(mid, ff2_w_ref[...]) + ff2_b_ref[...].astype(_F32)
    y = _layer_norm(y + out, ln2_g_ref[...], ln2_b_ref[...], eps)
    o_ref[...] = y.astype(o_ref.dtype)


def _pool_linear_kernel(x_ref, w_ref, b_ref, o_ref):
    # torch.mean(embedding, dim=1) fused with Linear(H, 1)
    pooled = jnp.mean(x_ref[...].astype(_F32), axis=1)               # (B, H)
    out = _mxu(pooled, w_ref[...]) + b_ref[...].astype(_F32)         # (B, 1)
    o_ref[...] = out.astype(o_ref.dtype)


# ------------------------------------ pallas wrappers ----------------------------------------
def _full_spec(shape):
    zeros = (0,) * len(shape)
    return pl.BlockSpec(tuple(shape), lambda i, _z=zeros: _z)


_PARALLEL_1D = pltpu.CompilerParams(dimension_semantics=("parallel",))


def pallas_rownorm(x, eps):
    return pl.pallas_call(
        functools.partial(_rownorm_kernel, eps=eps),
        out_shape=jax.ShapeDtypeStruct(x.shape, x.dtype),
        grid=(1,),
        in_specs=[_full_spec(x.shape)],
        out_specs=_full_spec(x.shape),
    )(x)


def pallas_linear(x, w, b=None, activation=None):
    # x: (M, K) f32, w: (K, N) (cast to bf16), b: (N,) or None
    M, K = x.shape
    N = w.shape[1]
    b2 = jnp.zeros((1, N), _F32) if b is None else b.reshape(1, N).astype(_F32)
    return pl.pallas_call(
        functools.partial(_linear_kernel, activation=activation),
        out_shape=jax.ShapeDtypeStruct((M, N), x.dtype),
        grid=(1,),
        in_specs=[_full_spec((M, K)), _full_spec((K, N)), _full_spec((1, N))],
        out_specs=_full_spec((M, N)),
    )(x, w.astype(_BF16), b2)


def pallas_groupnorm_time(x, g, b, eps):
    # x: (B, T, C) time-major; per-channel norm over time, GELU fused.
    B, T, C = x.shape
    row_spec = pl.BlockSpec((None, T, C), lambda i: (i, 0, 0))
    return pl.pallas_call(
        functools.partial(_groupnorm_time_kernel, eps=eps),
        out_shape=jax.ShapeDtypeStruct((B, T, C), x.dtype),
        grid=(B,),
        in_specs=[row_spec, _full_spec((1, C)), _full_spec((1, C))],
        out_specs=row_spec,
        compiler_params=_PARALLEL_1D,
    )(x, g.reshape(1, C), b.reshape(1, C))


def pallas_ln_linear(x, g, b, w, wb, eps):
    M, K = x.shape
    N = w.shape[1]
    return pl.pallas_call(
        functools.partial(_ln_linear_kernel, eps=eps),
        out_shape=jax.ShapeDtypeStruct((M, N), x.dtype),
        grid=(1,),
        in_specs=[_full_spec((M, K)), _full_spec((1, K)), _full_spec((1, K)),
                  _full_spec((K, N)), _full_spec((1, N))],
        out_specs=_full_spec((M, N)),
    )(x, g.reshape(1, K), b.reshape(1, K), w.astype(_BF16), wb.reshape(1, N).astype(_F32))


def pallas_pos_conv(h3, pos_w, pos_b):
    # grouped positional Conv1d (SamePad, even kernel drops last output), GELU fused.
    # pos_w: (G, POS_K*gsz, gsz)  pos_b: (G, 1, gsz)
    B, T, H = h3.shape
    G = POS_G
    gsz = H // G
    pad = POS_K // 2
    hp = jnp.pad(h3, ((0, 0), (pad, pad), (0, 0)))
    idx = jnp.arange(T)[:, None] + jnp.arange(POS_K)[None, :]                # (T, K)
    pat = hp[:, idx, :]                                                      # (B, T, K, H)
    pat = pat.reshape(B, T, POS_K, G, gsz).transpose(3, 0, 1, 2, 4)          # (G, B, T, K, gsz)
    pat = pat.reshape(G, B * T, POS_K * gsz)

    out = pl.pallas_call(
        _group_conv_gelu_kernel,
        out_shape=jax.ShapeDtypeStruct((G, B * T, gsz), h3.dtype),
        grid=(G,),
        in_specs=[pl.BlockSpec((None, B * T, POS_K * gsz), lambda g: (g, 0, 0)),
                  pl.BlockSpec((None, POS_K * gsz, gsz), lambda g: (g, 0, 0)),
                  pl.BlockSpec((None, 1, gsz), lambda g: (g, 0, 0))],
        out_specs=pl.BlockSpec((None, B * T, gsz), lambda g: (g, 0, 0)),
        compiler_params=_PARALLEL_1D,
    )(pat, pos_w.astype(_BF16), pos_b)
    return out.transpose(1, 0, 2).reshape(B * T, H)                          # (B*T, H)


def pallas_add_ln(x, d, g, b, eps):
    M, H = x.shape
    return pl.pallas_call(
        functools.partial(_add_ln_kernel, eps=eps),
        out_shape=jax.ShapeDtypeStruct((M, H), x.dtype),
        grid=(1,),
        in_specs=[_full_spec((M, H)), _full_spec((M, H)),
                  _full_spec((1, H)), _full_spec((1, H))],
        out_specs=_full_spec((M, H)),
    )(x, d, g.reshape(1, H), b.reshape(1, H))


def pallas_encoder_layer(h3, lp):
    # one fused pallas_call per transformer layer; grid over batch, weights resident.
    B, T, H = h3.shape
    kernel = functools.partial(_encoder_layer_kernel, heads=N_HEADS,
                               scale=(H // N_HEADS) ** -0.5, eps=1e-5)

    def wspec(shape):
        zeros = (0,) * len(shape)
        return pl.BlockSpec(tuple(shape), lambda b, _z=zeros: _z)

    x_spec = pl.BlockSpec((None, T, H), lambda b: (b, 0, 0))
    return pl.pallas_call(
        kernel,
        out_shape=jax.ShapeDtypeStruct((B, T, H), h3.dtype),
        grid=(B,),
        in_specs=[x_spec,
                  wspec((H, 3 * H)), wspec((1, 3 * H)),
                  wspec((H, H)), wspec((1, H)),
                  wspec((1, H)), wspec((1, H)),
                  wspec((H, FFN)), wspec((1, FFN)),
                  wspec((FFN, H)), wspec((1, H)),
                  wspec((1, H)), wspec((1, H))],
        out_specs=x_spec,
        compiler_params=_PARALLEL_1D,
    )(h3,
      lp["qkv_w"].astype(_BF16), lp["qkv_b"].reshape(1, 3 * H),
      lp["o_w"].astype(_BF16), lp["o_b"].reshape(1, H),
      lp["ln1_g"].reshape(1, H), lp["ln1_b"].reshape(1, H),
      lp["ff1_w"].astype(_BF16), lp["ff1_b"].reshape(1, FFN),
      lp["ff2_w"].astype(_BF16), lp["ff2_b"].reshape(1, H),
      lp["ln2_g"].reshape(1, H), lp["ln2_b"].reshape(1, H))


def pallas_pool_linear(h3, w, b):
    B, T, H = h3.shape
    return pl.pallas_call(
        _pool_linear_kernel,
        out_shape=jax.ShapeDtypeStruct((B, 1), h3.dtype),
        grid=(1,),
        in_specs=[_full_spec((B, T, H)), _full_spec((H, 1)), _full_spec((1, 1))],
        out_specs=_full_spec((B, 1)),
    )(h3, w.astype(_BF16), b.reshape(1, 1).astype(_F32))


# ------------------------------------- model forward -----------------------------------------
def covid_wav2vec_forward(params, raw):
    # raw: (B, L) float32 raw audio
    B, L = raw.shape
    C, H = C_FEAT, HIDDEN
    (k0, s0), (k1, s1) = CONV_LAYERS

    # --- "tokenizer": per-utterance zero-mean / unit-variance normalization (eps=1e-7 as HF) ---
    x = pallas_rownorm(raw, eps=1e-7)

    # --- conv feature extractor (time-major im2col + MXU matmuls) ---
    T1 = (L - k0) // s0 + 1
    idx0 = jnp.arange(T1)[:, None] * s0 + jnp.arange(k0)[None, :]
    pat0 = x[:, idx0].reshape(B * T1, k0)                                   # (B*T1, K0)
    w0 = params["conv0_w"].reshape(C, k0).T                                 # (K0, C)
    y = pallas_linear(pat0, w0, None).reshape(B, T1, C)                     # (B, T1, C)

    y = pallas_groupnorm_time(y, params["gn_g"], params["gn_b"], eps=1e-5)  # GN + GELU

    T2 = (T1 - k1) // s1 + 1
    idx1 = jnp.arange(T2)[:, None] * s1 + jnp.arange(k1)[None, :]
    pat1 = y[:, idx1, :].reshape(B * T2, k1 * C)                            # (B*T2, K1*C)
    w1 = params["conv1_w"].transpose(2, 1, 0).reshape(k1 * C, C)            # [k, c_in] major
    y = pallas_linear(pat1, w1, None, activation="gelu")                    # (B*T2, C)
    T = T2

    # --- feature projection: LayerNorm(C) + Linear(C -> H), fused ---
    h = pallas_ln_linear(y, params["fp_ln_g"], params["fp_ln_b"],
                         params["fp_w"], params["fp_b"], eps=1e-5)          # (B*T, H)

    # --- encoder: grouped pos-conv embedding (+GELU), add + pre-layer-norm (fused) ---
    pos = pallas_pos_conv(h.reshape(B, T, H), params["pos_w"], params["pos_b"])
    h = pallas_add_ln(h, pos, params["enc_ln_g"], params["enc_ln_b"], eps=1e-5)

    # --- transformer layers: one fused pallas_call per layer ---
    h3 = h.reshape(B, T, H)
    for lp in params["layers"]:
        h3 = pallas_encoder_layer(h3, lp)

    # --- torch.mean(embedding, dim=1) fused with Linear(H, 1) ---
    return pallas_pool_linear(h3, params["lin_w"], params["lin_b"])         # (B, 1)


# -------------------------------------- parameters -------------------------------------------
def init_params(key):
    keys = iter(jax.random.split(key, 32))

    def nrm(shape, scale=0.02):
        return scale * jax.random.normal(next(keys), shape, dtype=_F32)

    C, H, G = C_FEAT, HIDDEN, POS_G
    gsz = H // G
    p = {
        "conv0_w": nrm((C, 1, CONV_LAYERS[0][0]), 0.1),        # torch layout (C_out, C_in, K)
        "gn_g": jnp.ones((C,), _F32),
        "gn_b": jnp.zeros((C,), _F32),
        "conv1_w": nrm((C, C, CONV_LAYERS[1][0]), 0.1),
        "fp_ln_g": jnp.ones((C,), _F32),
        "fp_ln_b": jnp.zeros((C,), _F32),
        "fp_w": nrm((C, H)),
        "fp_b": jnp.zeros((H,), _F32),
        # grouped positional conv, per-group weight (G, POS_K*gsz, gsz) with [k, c_in] row order
        # (torch (H, H//G, K) layout maps via per-group transpose(2, 1, 0).reshape)
        "pos_w": nrm((G, POS_K * gsz, gsz), 0.05),
        "pos_b": jnp.zeros((G, 1, gsz), _F32),
        "enc_ln_g": jnp.ones((H,), _F32),
        "enc_ln_b": jnp.zeros((H,), _F32),
        "lin_w": nrm((H, 1)),
        "lin_b": jnp.zeros((1,), _F32),
    }

    layers = []
    for _ in range(N_LAYERS):
        layers.append({
            "qkv_w": nrm((H, 3 * H)), "qkv_b": jnp.zeros((3 * H,), _F32),   # fused q|k|v
            "o_w": nrm((H, H)), "o_b": jnp.zeros((H,), _F32),
            "ln1_g": jnp.ones((H,), _F32), "ln1_b": jnp.zeros((H,), _F32),
            "ff1_w": nrm((H, FFN)), "ff1_b": jnp.zeros((FFN,), _F32),
            "ff2_w": nrm((FFN, H)), "ff2_b": jnp.zeros((H,), _F32),
            "ln2_g": jnp.ones((H,), _F32), "ln2_b": jnp.zeros((H,), _F32),
        })
    p["layers"] = layers
    return p


# ----------------------------------------- main ----------------------------------------------
if __name__ == "__main__":
    key = jax.random.PRNGKey(0)
    k_params, k_input = jax.random.split(key)

    B, L = 2, 490                         # 2 raw-audio clips, 490 samples -> T=48 encoder steps
    raw_audio = jax.random.normal(k_input, (B, L), dtype=jnp.float32)
    params = init_params(k_params)

    fwd = jax.jit(covid_wav2vec_forward)
    out = fwd(params, raw_audio)
    out = jax.block_until_ready(out)

    assert out.shape == (B, 1), out.shape
    assert bool(jnp.all(jnp.isfinite(out)))
    print("KERNEL_OK")
</pallas_src>

<mosaic_0001>
module attributes {stable_mosaic.version = 11 : i64} {
  func.func @_rownorm_kernel(%arg0: i32, %arg1: memref<2x490xf32, #tpu.memory_space<vmem>>, %arg2: memref<2x490xf32, #tpu.memory_space<vmem>>) attributes {dimension_semantics = [#tpu.dimension_semantics<arbitrary>], iteration_bounds = array<i64: 1>, scalar_prefetch = 0 : i64, scratch_operands = 0 : i64, tpu.core_type = #tpu.core_type<tc>, window_params = [{pipeline_mode = #tpu.pipeline_mode<synchronous>, transform_indices = @transform_0, window_bounds = array<i64: 2, 490>}, {pipeline_mode = #tpu.pipeline_mode<synchronous>, transform_indices = @transform_1, window_bounds = array<i64: 2, 490>}]} {
    %c0 = arith.constant 0 : index
    %c0_0 = arith.constant 0 : index
    %0 = vector.load %arg1[%c0, %c0_0] : memref<2x490xf32, #tpu.memory_space<vmem>>, vector<2x490xf32>
    %cst = arith.constant dense<0.000000e+00> : vector<2xf32>
    %1 = vector.multi_reduction <add>, %0, %cst [1] : vector<2x490xf32> to vector<2xf32>
    %2 = vector.shape_cast %1 : vector<2xf32> to vector<2x1xf32>
    %cst_1 = arith.constant 4.900000e+02 : f32
    %3 = vector.broadcast %cst_1 : f32 to vector<2x1xf32>
    %4 = arith.divf %2, %3 : vector<2x1xf32>
    %5 = vector.broadcast %4 : vector<2x1xf32> to vector<2x490xf32>
    %6 = arith.subf %0, %5 : vector<2x490xf32>
    %7 = arith.mulf %6, %6 : vector<2x490xf32>
    %cst_2 = arith.constant dense<0.000000e+00> : vector<2xf32>
    %8 = vector.multi_reduction <add>, %7, %cst_2 [1] : vector<2x490xf32> to vector<2xf32>
    %9 = vector.shape_cast %8 : vector<2xf32> to vector<2x1xf32>
    %cst_3 = arith.constant 4.900000e+02 : f32
    %10 = vector.broadcast %cst_3 : f32 to vector<2x1xf32>
    %11 = arith.divf %9, %10 : vector<2x1xf32>
    %12 = vector.broadcast %4 : vector<2x1xf32> to vector<2x490xf32>
    %13 = arith.subf %0, %12 : vector<2x490xf32>
    %cst_4 = arith.constant 1.000000e-07 : f32
    %14 = vector.broadcast %cst_4 : f32 to vector<2x1xf32>
    %15 = arith.addf %11, %14 : vector<2x1xf32>
    %16 = math.rsqrt %15 : vector<2x1xf32>
    %17 = vector.broadcast %16 : vector<2x1xf32> to vector<2x490xf32>
    %18 = arith.mulf %13, %17 : vector<2x490xf32>
    %c0_5 = arith.constant 0 : index
    %c0_6 = arith.constant 0 : index
    %19 = vector.load %arg2[%c0_5, %c0_6] : memref<2x490xf32, #tpu.memory_space<vmem>>, vector<2x490xf32>
    tpu.vector_store %arg2[%c0_5, %c0_6], %18 {strides = array<i32>} : memref<2x490xf32, #tpu.memory_space<vmem>>, vector<2x490xf32>,
    return
  }
  func.func @transform_0(%arg0: i32) -> (i32, i32) {
    %c0_i32 = arith.constant 0 : i32
    %c0_i32_0 = arith.constant 0 : i32
    %c0_i32_1 = arith.constant 0 : i32
    return %c0_i32, %c0_i32_0 : i32, i32
  }
  func.func @transform_1(%arg0: i32) -> (i32, i32) {
    %c0_i32 = arith.constant 0 : i32
    %c0_i32_0 = arith.constant 0 : i32
    %c0_i32_1 = arith.constant 0 : i32
    return %c0_i32, %c0_i32_0 : i32, i32
  }
}

module attributes {stable_mosaic.version = 11 : i64} {
  func.func @_linear_kernel(%arg0: i32, %arg1: memref<194x10xf32, #tpu.memory_space<vmem>>, %arg2: memref<10x128xbf16, #tpu.memory_space<vmem>>, %arg3: memref<1x128xf32, #tpu.memory_space<vmem>>, %arg4: memref<194x128xf32, #tpu.memory_space<vmem>>) attributes {dimension_semantics = [#tpu.dimension_semantics<arbitrary>], iteration_bounds = array<i64: 1>, scalar_prefetch = 0 : i64, scratch_operands = 0 : i64, tpu.core_type = #tpu.core_type<tc>, window_params = [{pipeline_mode = #tpu.pipeline_mode<synchronous>, transform_indices = @transform_0, window_bounds = array<i64: 194, 10>}, {pipeline_mode = #tpu.pipeline_mode<synchronous>, transform_indices = @transform_1, window_bounds = array<i64: 10, 128>}, {pipeline_mode = #tpu.pipeline_mode<synchronous>, transform_indices = @transform_2, window_bounds = array<i64: 1, 128>}, {pipeline_mode = #tpu.pipeline_mode<synchronous>, transform_indices = @transform_3, window_bounds = array<i64: 194, 128>}]} {
    %c0 = arith.constant 0 : index
    %c0_0 = arith.constant 0 : index
    %0 = vector.load %arg1[%c0, %c0_0] : memref<194x10xf32, #tpu.memory_space<vmem>>, vector<194x10xf32>
    %c0_1 = arith.constant 0 : index
    %c0_2 = arith.constant 0 : index
    %1 = vector.load %arg2[%c0_1, %c0_2] : memref<10x128xbf16, #tpu.memory_space<vmem>>, vector<10x128xbf16>
    %2 = arith.truncf %0 : vector<194x10xf32> to vector<194x10xbf16>
    %cst = arith.constant dense<0.000000e+00> : vector<194x128xf32>
    %3 = tpu.matmul %2, %1, %cst {dimension_numbers = #tpu.dot_dimension_numbers<[1], [0], [0], [1], [0, 0, 1, 1], [], []>} : vector<194x10xbf16>, vector<10x128xbf16>, vector<194x128xf32> -> vector<194x128xf32>
    %c0_3 = arith.constant 0 : index
    %c0_4 = arith.constant 0 : index
    %4 = vector.load %arg3[%c0_3, %c0_4] : memref<1x128xf32, #tpu.memory_space<vmem>>, vector<1x128xf32>
    %5 = vector.broadcast %4 : vector<1x128xf32> to vector<194x128xf32>
    %6 = arith.addf %3, %5 : vector<194x128xf32>
    %c0_5 = arith.constant 0 : index
    %c0_6 = arith.constant 0 : index
    %7 = vector.load %arg4[%c0_5, %c0_6] : memref<194x128xf32, #tpu.memory_space<vmem>>, vector<194x128xf32>
    tpu.vector_store %arg4[%c0_5, %c0_6], %6 {strides = array<i32>} : memref<194x128xf32, #tpu.memory_space<vmem>>, vector<194x128xf32>,
    return
  }
  func.func @transform_0(%arg0: i32) -> (i32, i32) {
    %c0_i32 = arith.constant 0 : i32
    %c0_i32_0 = arith.constant 0 : i32
    %c0_i32_1 = arith.constant 0 : i32
    return %c0_i32, %c0_i32_0 : i32, i32
  }
  func.func @transform_1(%arg0: i32) -> (i32, i32) {
    %c0_i32 = arith.constant 0 : i32
    %c0_i32_0 = arith.constant 0 : i32
    %c0_i32_1 = arith.constant 0 : i32
    return %c0_i32, %c0_i32_0 : i32, i32
  }
  func.func @transform_2(%arg0: i32) -> (i32, i32) {
    %c0_i32 = arith.constant 0 : i32
    %c0_i32_0 = arith.constant 0 : i32
    %c0_i32_1 = arith.constant 0 : i32
    return %c0_i32, %c0_i32_0 : i32, i32
  }
  func.func @transform_3(%arg0: i32) -> (i32, i32) {
    %c0_i32 = arith.constant 0 : i32
    %c0_i32_0 = arith.constant 0 : i32
    %c0_i32_1 = arith.constant 0 : i32
    return %c0_i32, %c0_i32_0 : i32, i32
  }
}

module attributes {stable_mosaic.version = 11 : i64} {
  func.func @_groupnorm_time_kernel(%arg0: i32, %arg1: memref<1x97x128xf32, #tpu.memory_space<vmem>>, %arg2: memref<1x128xf32, #tpu.memory_space<vmem>>, %arg3: memref<1x128xf32, #tpu.memory_space<vmem>>, %arg4: memref<1x97x128xf32, #tpu.memory_space<vmem>>) attributes {dimension_semantics = [#tpu.dimension_semantics<parallel>], iteration_bounds = array<i64: 2>, scalar_prefetch = 0 : i64, scratch_operands = 0 : i64, tpu.core_type = #tpu.core_type<tc>, window_params = [{transform_indices = @transform_0, window_bounds = array<i64: 1, 97, 128>}, {pipeline_mode = #tpu.pipeline_mode<synchronous>, transform_indices = @transform_1, window_bounds = array<i64: 1, 128>}, {pipeline_mode = #tpu.pipeline_mode<synchronous>, transform_indices = @transform_2, window_bounds = array<i64: 1, 128>}, {transform_indices = @transform_3, window_bounds = array<i64: 1, 97, 128>}]} {
    %c0 = arith.constant 0 : index
    %c0_0 = arith.constant 0 : index
    %c0_1 = arith.constant 0 : index
    %0 = vector.load %arg1[%c0, %c0_0, %c0_1] : memref<1x97x128xf32, #tpu.memory_space<vmem>>, vector<1x97x128xf32>
    %1 = vector.shape_cast %0 : vector<1x97x128xf32> to vector<97x128xf32>
    %cst = arith.constant dense<0.000000e+00> : vector<128xf32>
    %2 = vector.multi_reduction <add>, %1, %cst [0] : vector<97x128xf32> to vector<128xf32>
    %3 = vector.shape_cast %2 : vector<128xf32> to vector<1x128xf32>
    %cst_2 = arith.constant 9.700000e+01 : f32
    %4 = vector.broadcast %cst_2 : f32 to vector<1x128xf32>
    %5 = arith.divf %3, %4 : vector<1x128xf32>
    %6 = vector.broadcast %5 : vector<1x128xf32> to vector<97x128xf32>
    %7 = arith.subf %1, %6 : vector<97x128xf32>
    %8 = arith.mulf %7, %7 : vector<97x128xf32>
    %cst_3 = arith.constant dense<0.000000e+00> : vector<128xf32>
    %9 = vector.multi_reduction <add>, %8, %cst_3 [0] : vector<97x128xf32> to vector<128xf32>
    %10 = vector.shape_cast %9 : vector<128xf32> to vector<1x128xf32>
    %cst_4 = arith.constant 9.700000e+01 : f32
    %11 = vector.broadcast %cst_4 : f32 to vector<1x128xf32>
    %12 = arith.divf %10, %11 : vector<1x128xf32>
    %13 = vector.broadcast %5 : vector<1x128xf32> to vector<97x128xf32>
    %14 = arith.subf %1, %13 : vector<97x128xf32>
    %cst_5 = arith.constant 9.99999974E-6 : f32
    %15 = vector.broadcast %cst_5 : f32 to vector<1x128xf32>
    %16 = arith.addf %12, %15 : vector<1x128xf32>
    %17 = math.rsqrt %16 : vector<1x128xf32>
    %18 = vector.broadcast %17 : vector<1x128xf32> to vector<97x128xf32>
    %19 = arith.mulf %14, %18 : vector<97x128xf32>
    %c0_6 = arith.constant 0 : index
    %c0_7 = arith.constant 0 : index
    %20 = vector.load %arg2[%c0_6, %c0_7] : memref<1x128xf32, #tpu.memory_space<vmem>>, vector<1x128xf32>
    %21 = vector.broadcast %20 : vector<1x128xf32> to vector<97x128xf32>
    %22 = arith.mulf %19, %21 : vector<97x128xf32>
    %c0_8 = arith.constant 0 : index
    %c0_9 = arith.constant 0 : index
    %23 = vector.load %arg3[%c0_8, %c0_9] : memref<1x128xf32, #tpu.memory_space<vmem>>, vector<1x128xf32>
    %24 = vector.broadcast %23 : vector<1x128xf32> to vector<97x128xf32>
    %25 = arith.addf %22, %24 : vector<97x128xf32>
    %cst_10 = arith.constant 5.000000e-01 : f32
    %26 = vector.broadcast %cst_10 : f32 to vector<97x128xf32>
    %27 = arith.mulf %26, %25 : vector<97x128xf32>
    %cst_11 = arith.constant 4.471500e-02 : f32
    %28 = vector.broadcast %cst_11 : f32 to vector<97x128xf32>
    %29 = arith.mulf %28, %25 : vector<97x128xf32>
    %30 = arith.mulf %29, %25 : vector<97x128xf32>
    %31 = arith.mulf %30, %25 : vector<97x128xf32>
    %32 = arith.addf %25, %31 : vector<97x128xf32>
    %cst_12 = arith.constant 0.797884583 : f32
    %33 = vector.broadcast %cst_12 : f32 to vector<97x128xf32>
    %34 = arith.mulf %33, %32 : vector<97x128xf32>
    %35 = math.tanh %34 : vector<97x128xf32>
    %cst_13 = arith.constant 1.000000e+00 : f32
    %36 = vector.broadcast %cst_13 : f32 to vector<97x128xf32>
    %37 = arith.addf %36, %35 : vector<97x128xf32>
    %38 = arith.mulf %27, %37 : vector<97x128xf32>
    %c0_14 = arith.constant 0 : index
    %c0_15 = arith.constant 0 : index
    %c0_16 = arith.constant 0 : index
    %39 = vector.load %arg4[%c0_14, %c0_15, %c0_16] : memref<1x97x128xf32, #tpu.memory_space<vmem>>, vector<1x97x128xf32>
    %40 = vector.shape_cast %39 : vector<1x97x128xf32> to vector<97x128xf32>
    %41 = vector.shape_cast %38 : vector<97x128xf32> to vector<1x97x128xf32>
    tpu.vector_store %arg4[%c0_14, %c0_15, %c0_16], %41 {strides = array<i32>} : memref<1x97x128xf32, #tpu.memory_space<vmem>>, vector<1x97x128xf32>,
    return
  }
  func.func @transform_0(%arg0: i32) -> (i32, i32, i32) {
    %c0_i32 = arith.constant 0 : i32
    %c0_i32_0 = arith.constant 0 : i32
    %c0_i32_1 = arith.constant 0 : i32
    return %arg0, %c0_i32, %c0_i32_0 : i32, i32, i32
  }
  func.func @transform_1(%arg0: i32) -> (i32, i32) {
    %c0_i32 = arith.constant 0 : i32
    %c0_i32_0 = arith.constant 0 : i32
    %c0_i32_1 = arith.constant 0 : i32
    return %c0_i32, %c0_i32_0 : i32, i32
  }
  func.func @transform_2(%arg0: i32) -> (i32, i32) {
    %c0_i32 = arith.constant 0 : i32
    %c0_i32_0 = arith.constant 0 : i32
    %c0_i32_1 = arith.constant 0 : i32
    return %c0_i32, %c0_i32_0 : i32, i32
  }
  func.func @transform_3(%arg0: i32) -> (i32, i32, i32) {
    %c0_i32 = arith.constant 0 : i32
    %c0_i32_0 = arith.constant 0 : i32
    %c0_i32_1 = arith.constant 0 : i32
    return %arg0, %c0_i32, %c0_i32_0 : i32, i32, i32
  }
}

module attributes {stable_mosaic.version = 11 : i64} {
  func.func @_linear_kernel(%arg0: i32, %arg1: memref<96x384xf32, #tpu.memory_space<vmem>>, %arg2: memref<384x128xbf16, #tpu.memory_space<vmem>>, %arg3: memref<1x128xf32, #tpu.memory_space<vmem>>, %arg4: memref<96x128xf32, #tpu.memory_space<vmem>>) attributes {dimension_semantics = [#tpu.dimension_semantics<arbitrary>], iteration_bounds = array<i64: 1>, scalar_prefetch = 0 : i64, scratch_operands = 0 : i64, tpu.core_type = #tpu.core_type<tc>, window_params = [{pipeline_mode = #tpu.pipeline_mode<synchronous>, transform_indices = @transform_0, window_bounds = array<i64: 96, 384>}, {pipeline_mode = #tpu.pipeline_mode<synchronous>, transform_indices = @transform_1, window_bounds = array<i64: 384, 128>}, {pipeline_mode = #tpu.pipeline_mode<synchronous>, transform_indices = @transform_2, window_bounds = array<i64: 1, 128>}, {pipeline_mode = #tpu.pipeline_mode<synchronous>, transform_indices = @transform_3, window_bounds = array<i64: 96, 128>}]} {
    %c0 = arith.constant 0 : index
    %c0_0 = arith.constant 0 : index
    %0 = vector.load %arg1[%c0, %c0_0] : memref<96x384xf32, #tpu.memory_space<vmem>>, vector<96x384xf32>
    %c0_1 = arith.constant 0 : index
    %c0_2 = arith.constant 0 : index
    %1 = vector.load %arg2[%c0_1, %c0_2] : memref<384x128xbf16, #tpu.memory_space<vmem>>, vector<384x128xbf16>
    %2 = arith.truncf %0 : vector<96x384xf32> to vector<96x384xbf16>
    %cst = arith.constant dense<0.000000e+00> : vector<96x128xf32>
    %3 = tpu.matmul %2, %1, %cst {dimension_numbers = #tpu.dot_dimension_numbers<[1], [0], [0], [1], [0, 0, 1, 1], [], []>} : vector<96x384xbf16>, vector<384x128xbf16>, vector<96x128xf32> -> vector<96x128xf32>
    %c0_3 = arith.constant 0 : index
    %c0_4 = arith.constant 0 : index
    %4 = vector.load %arg3[%c0_3, %c0_4] : memref<1x128xf32, #tpu.memory_space<vmem>>, vector<1x128xf32>
    %5 = vector.broadcast %4 : vector<1x128xf32> to vector<96x128xf32>
    %6 = arith.addf %3, %5 : vector<96x128xf32>
    %cst_5 = arith.constant 5.000000e-01 : f32
    %7 = vector.broadcast %cst_5 : f32 to vector<96x128xf32>
    %8 = arith.mulf %7, %6 : vector<96x128xf32>
    %cst_6 = arith.constant 4.471500e-02 : f32
    %9 = vector.broadcast %cst_6 : f32 to vector<96x128xf32>
    %10 = arith.mulf %9, %6 : vector<96x128xf32>
    %11 = arith.mulf %10, %6 : vector<96x128xf32>
    %12 = arith.mulf %11, %6 : vector<96x128xf32>
    %13 = arith.addf %6, %12 : vector<96x128xf32>
    %cst_7 = arith.constant 0.797884583 : f32
    %14 = vector.broadcast %cst_7 : f32 to vector<96x128xf32>
    %15 = arith.mulf %14, %13 : vector<96x128xf32>
    %16 = math.tanh %15 : vector<96x128xf32>
    %cst_8 = arith.constant 1.000000e+00 : f32
    %17 = vector.broadcast %cst_8 : f32 to vector<96x128xf32>
    %18 = arith.addf %17, %16 : vector<96x128xf32>
    %19 = arith.mulf %8, %18 : vector<96x128xf32>
    %c0_9 = arith.constant 0 : index
    %c0_10 = arith.constant 0 : index
    %20 = vector.load %arg4[%c0_9, %c0_10] : memref<96x128xf32, #tpu.memory_space<vmem>>, vector<96x128xf32>
    tpu.vector_store %arg4[%c0_9, %c0_10], %19 {strides = array<i32>} : memref<96x128xf32, #tpu.memory_space<vmem>>, vector<96x128xf32>,
    return
  }
  func.func @transform_0(%arg0: i32) -> (i32, i32) {
    %c0_i32 = arith.constant 0 : i32
    %c0_i32_0 = arith.constant 0 : i32
    %c0_i32_1 = arith.constant 0 : i32
    return %c0_i32, %c0_i32_0 : i32, i32
  }
  func.func @transform_1(%arg0: i32) -> (i32, i32) {
    %c0_i32 = arith.constant 0 : i32
    %c0_i32_0 = arith.constant 0 : i32
    %c0_i32_1 = arith.constant 0 : i32
    return %c0_i32, %c0_i32_0 : i32, i32
  }
  func.func @transform_2(%arg0: i32) -> (i32, i32) {
    %c0_i32 = arith.constant 0 : i32
    %c0_i32_0 = arith.constant 0 : i32
    %c0_i32_1 = arith.constant 0 : i32
    return %c0_i32, %c0_i32_0 : i32, i32
  }
  func.func @transform_3(%arg0: i32) -> (i32, i32) {
    %c0_i32 = arith.constant 0 : i32
    %c0_i32_0 = arith.constant 0 : i32
    %c0_i32_1 = arith.constant 0 : i32
    return %c0_i32, %c0_i32_0 : i32, i32
  }
}

module attributes {stable_mosaic.version = 11 : i64} {
  func.func @_ln_linear_kernel(%arg0: i32, %arg1: memref<96x128xf32, #tpu.memory_space<vmem>>, %arg2: memref<1x128xf32, #tpu.memory_space<vmem>>, %arg3: memref<1x128xf32, #tpu.memory_space<vmem>>, %arg4: memref<128x256xbf16, #tpu.memory_space<vmem>>, %arg5: memref<1x256xf32, #tpu.memory_space<vmem>>, %arg6: memref<96x256xf32, #tpu.memory_space<vmem>>) attributes {dimension_semantics = [#tpu.dimension_semantics<arbitrary>], iteration_bounds = array<i64: 1>, scalar_prefetch = 0 : i64, scratch_operands = 0 : i64, tpu.core_type = #tpu.core_type<tc>, window_params = [{pipeline_mode = #tpu.pipeline_mode<synchronous>, transform_indices = @transform_0, window_bounds = array<i64: 96, 128>}, {pipeline_mode = #tpu.pipeline_mode<synchronous>, transform_indices = @transform_1, window_bounds = array<i64: 1, 128>}, {pipeline_mode = #tpu.pipeline_mode<synchronous>, transform_indices = @transform_2, window_bounds = array<i64: 1, 128>}, {pipeline_mode = #tpu.pipeline_mode<synchronous>, transform_indices = @transform_3, window_bounds = array<i64: 128, 256>}, {pipeline_mode = #tpu.pipeline_mode<synchronous>, transform_indices = @transform_4, window_bounds = array<i64: 1, 256>}, {pipeline_mode = #tpu.pipeline_mode<synchronous>, transform_indices = @transform_5, window_bounds = array<i64: 96, 256>}]} {
    %c0 = arith.constant 0 : index
    %c0_0 = arith.constant 0 : index
    %0 = vector.load %arg1[%c0, %c0_0] : memref<96x128xf32, #tpu.memory_space<vmem>>, vector<96x128xf32>
    %c0_1 = arith.constant 0 : index
    %c0_2 = arith.constant 0 : index
    %1 = vector.load %arg2[%c0_1, %c0_2] : memref<1x128xf32, #tpu.memory_space<vmem>>, vector<1x128xf32>
    %c0_3 = arith.constant 0 : index
    %c0_4 = arith.constant 0 : index
    %2 = vector.load %arg3[%c0_3, %c0_4] : memref<1x128xf32, #tpu.memory_space<vmem>>, vector<1x128xf32>
    %cst = arith.constant dense<0.000000e+00> : vector<96xf32>
    %3 = vector.multi_reduction <add>, %0, %cst [1] : vector<96x128xf32> to vector<96xf32>
    %4 = vector.shape_cast %3 : vector<96xf32> to vector<96x1xf32>
    %cst_5 = arith.constant 1.280000e+02 : f32
    %5 = vector.broadcast %cst_5 : f32 to vector<96x1xf32>
    %6 = arith.divf %4, %5 : vector<96x1xf32>
    %7 = vector.broadcast %6 : vector<96x1xf32> to vector<96x128xf32>
    %8 = arith.subf %0, %7 : vector<96x128xf32>
    %9 = arith.mulf %8, %8 : vector<96x128xf32>
    %cst_6 = arith.constant dense<0.000000e+00> : vector<96xf32>
    %10 = vector.multi_reduction <add>, %9, %cst_6 [1] : vector<96x128xf32> to vector<96xf32>
    %11 = vector.shape_cast %10 : vector<96xf32> to vector<96x1xf32>
    %cst_7 = arith.constant 1.280000e+02 : f32
    %12 = vector.broadcast %cst_7 : f32 to vector<96x1xf32>
    %13 = arith.divf %11, %12 : vector<96x1xf32>
    %14 = vector.broadcast %6 : vector<96x1xf32> to vector<96x128xf32>
    %15 = arith.subf %0, %14 : vector<96x128xf32>
    %cst_8 = arith.constant 9.99999974E-6 : f32
    %16 = vector.broadcast %cst_8 : f32 to vector<96x1xf32>
    %17 = arith.addf %13, %16 : vector<96x1xf32>
    %18 = math.rsqrt %17 : vector<96x1xf32>
    %19 = vector.broadcast %18 : vector<96x1xf32> to vector<96x128xf32>
    %20 = arith.mulf %15, %19 : vector<96x128xf32>
    %21 = vector.broadcast %1 : vector<1x128xf32> to vector<96x128xf32>
    %22 = arith.mulf %20, %21 : vector<96x128xf32>
    %23 = vector.broadcast %2 : vector<1x128xf32> to vector<96x128xf32>
    %24 = arith.addf %22, %23 : vector<96x128xf32>
    %c0_9 = arith.constant 0 : index
    %c0_10 = arith.constant 0 : index
    %25 = vector.load %arg4[%c0_9, %c0_10] : memref<128x256xbf16, #tpu.memory_space<vmem>>, vector<128x256xbf16>
    %26 = arith.truncf %24 : vector<96x128xf32> to vector<96x128xbf16>
    %cst_11 = arith.constant dense<0.000000e+00> : vector<96x256xf32>
    %27 = tpu.matmul %26, %25, %cst_11 {dimension_numbers = #tpu.dot_dimension_numbers<[1], [0], [0], [1], [0, 0, 1, 1], [], []>} : vector<96x128xbf16>, vector<128x256xbf16>, vector<96x256xf32> -> vector<96x256xf32>
    %c0_12 = arith.constant 0 : index
    %c0_13 = arith.constant 0 : index
    %28 = vector.load %arg5[%c0_12, %c0_13] : memref<1x256xf32, #tpu.memory_space<vmem>>, vector<1x256xf32>
    %29 = vector.broadcast %28 : vector<1x256xf32> to vector<96x256xf32>
    %30 = arith.addf %27, %29 : vector<96x256xf32>
    %c0_14 = arith.constant 0 : index
    %c0_15 = arith.constant 0 : index
    %31 = vector.load %arg6[%c0_14, %c0_15] : memref<96x256xf32, #tpu.memory_space<vmem>>, vector<96x256xf32>
    tpu.vector_store %arg6[%c0_14, %c0_15], %30 {strides = array<i32>} : memref<96x256xf32, #tpu.memory_space<vmem>>, vector<96x256xf32>,
    return
  }
  func.func @transform_0(%arg0: i32) -> (i32, i32) {
    %c0_i32 = arith.constant 0 : i32
    %c0_i32_0 = arith.constant 0 : i32
    %c0_i32_1 = arith.constant 0 : i32
    return %c0_i32, %c0_i32_0 : i32, i32
  }
  func.func @transform_1(%arg0: i32) -> (i32, i32) {
    %c0_i32 = arith.constant 0 : i32
    %c0_i32_0 = arith.constant 0 : i32
    %c0_i32_1 = arith.constant 0 : i32
    return %c0_i32, %c0_i32_0 : i32, i32
  }
  func.func @transform_2(%arg0: i32) -> (i32, i32) {
    %c0_i32 = arith.constant 0 : i32
    %c0_i32_0 = arith.constant 0 : i32
    %c0_i32_1 = arith.constant 0 : i32
    return %c0_i32, %c0_i32_0 : i32, i32
  }
  func.func @transform_3(%arg0: i32) -> (i32, i32) {
    %c0_i32 = arith.constant 0 : i32
    %c0_i32_0 = arith.constant 0 : i32
    %c0_i32_1 = arith.constant 0 : i32
    return %c0_i32, %c0_i32_0 : i32, i32
  }
  func.func @transform_4(%arg0: i32) -> (i32, i32) {
    %c0_i32 = arith.constant 0 : i32
    %c0_i32_0 = arith.constant 0 : i32
    %c0_i32_1 = arith.constant 0 : i32
    return %c0_i32, %c0_i32_0 : i32, i32
  }
  func.func @transform_5(%arg0: i32) -> (i32, i32) {
    %c0_i32 = arith.constant 0 : i32
    %c0_i32_0 = arith.constant 0 : i32
    %c0_i32_1 = arith.constant 0 : i32
    return %c0_i32, %c0_i32_0 : i32, i32
  }
}

module attributes {stable_mosaic.version = 11 : i64} {
  func.func @_group_conv_gelu_kernel(%arg0: i32, %arg1: memref<1x96x512xf32, #tpu.memory_space<vmem>>, %arg2: memref<1x512x128xbf16, #tpu.memory_space<vmem>>, %arg3: memref<1x1x128xf32, #tpu.memory_space<vmem>>, %arg4: memref<1x96x128xf32, #tpu.memory_space<vmem>>) attributes {dimension_semantics = [#tpu.dimension_semantics<parallel>], iteration_bounds = array<i64: 2>, scalar_prefetch = 0 : i64, scratch_operands = 0 : i64, tpu.core_type = #tpu.core_type<tc>, window_params = [{transform_indices = @transform_0, window_bounds = array<i64: 1, 96, 512>}, {transform_indices = @transform_1, window_bounds = array<i64: 1, 512, 128>}, {transform_indices = @transform_2, window_bounds = array<i64: 1, 1, 128>}, {transform_indices = @transform_3, window_bounds = array<i64: 1, 96, 128>}]} {
    %c0 = arith.constant 0 : index
    %c0_0 = arith.constant 0 : index
    %c0_1 = arith.constant 0 : index
    %0 = vector.load %arg1[%c0, %c0_0, %c0_1] : memref<1x96x512xf32, #tpu.memory_space<vmem>>, vector<1x96x512xf32>
    %1 = vector.shape_cast %0 : vector<1x96x512xf32> to vector<96x512xf32>
    %c0_2 = arith.constant 0 : index
    %c0_3 = arith.constant 0 : index
    %c0_4 = arith.constant 0 : index
    %2 = vector.load %arg2[%c0_2, %c0_3, %c0_4] : memref<1x512x128xbf16, #tpu.memory_space<vmem>>, vector<1x512x128xbf16>
    %3 = vector.shape_cast %2 : vector<1x512x128xbf16> to vector<512x128xbf16>
    %4 = arith.truncf %1 : vector<96x512xf32> to vector<96x512xbf16>
    %cst = arith.constant dense<0.000000e+00> : vector<96x128xf32>
    %5 = tpu.matmul %4, %3, %cst {dimension_numbers = #tpu.dot_dimension_numbers<[1], [0], [0], [1], [0, 0, 1, 1], [], []>} : vector<96x512xbf16>, vector<512x128xbf16>, vector<96x128xf32> -> vector<96x128xf32>
    %c0_5 = arith.constant 0 : index
    %c0_6 = arith.constant 0 : index
    %c0_7 = arith.constant 0 : index
    %6 = vector.load %arg3[%c0_5, %c0_6, %c0_7] : memref<1x1x128xf32, #tpu.memory_space<vmem>>, vector<1x1x128xf32>
    %7 = vector.shape_cast %6 : vector<1x1x128xf32> to vector<1x128xf32>
    %8 = vector.broadcast %7 : vector<1x128xf32> to vector<96x128xf32>
    %9 = arith.addf %5, %8 : vector<96x128xf32>
    %cst_8 = arith.constant 5.000000e-01 : f32
    %10 = vector.broadcast %cst_8 : f32 to vector<96x128xf32>
    %11 = arith.mulf %10, %9 : vector<96x128xf32>
    %cst_9 = arith.constant 4.471500e-02 : f32
    %12 = vector.broadcast %cst_9 : f32 to vector<96x128xf32>
    %13 = arith.mulf %12, %9 : vector<96x128xf32>
    %14 = arith.mulf %13, %9 : vector<96x128xf32>
    %15 = arith.mulf %14, %9 : vector<96x128xf32>
    %16 = arith.addf %9, %15 : vector<96x128xf32>
    %cst_10 = arith.constant 0.797884583 : f32
    %17 = vector.broadcast %cst_10 : f32 to vector<96x128xf32>
    %18 = arith.mulf %17, %16 : vector<96x128xf32>
    %19 = math.tanh %18 : vector<96x128xf32>
    %cst_11 = arith.constant 1.000000e+00 : f32
    %20 = vector.broadcast %cst_11 : f32 to vector<96x128xf32>
    %21 = arith.addf %20, %19 : vector<96x128xf32>
    %22 = arith.mulf %11, %21 : vector<96x128xf32>
    %c0_12 = arith.constant 0 : index
    %c0_13 = arith.constant 0 : index
    %c0_14 = arith.constant 0 : index
    %23 = vector.load %arg4[%c0_12, %c0_13, %c0_14] : memref<1x96x128xf32, #tpu.memory_space<vmem>>, vector<1x96x128xf32>
    %24 = vector.shape_cast %23 : vector<1x96x128xf32> to vector<96x128xf32>
    %25 = vector.shape_cast %22 : vector<96x128xf32> to vector<1x96x128xf32>
    tpu.vector_store %arg4[%c0_12, %c0_13, %c0_14], %25 {strides = array<i32>} : memref<1x96x128xf32, #tpu.memory_space<vmem>>, vector<1x96x128xf32>,
    return
  }
  func.func @transform_0(%arg0: i32) -> (i32, i32, i32) {
    %c0_i32 = arith.constant 0 : i32
    %c0_i32_0 = arith.constant 0 : i32
    %c0_i32_1 = arith.constant 0 : i32
    return %arg0, %c0_i32, %c0_i32_0 : i32, i32, i32
  }
  func.func @transform_1(%arg0: i32) -> (i32, i32, i32) {
    %c0_i32 = arith.constant 0 : i32
    %c0_i32_0 = arith.constant 0 : i32
    %c0_i32_1 = arith.constant 0 : i32
    return %arg0, %c0_i32, %c0_i32_0 : i32, i32, i32
  }
  func.func @transform_2(%arg0: i32) -> (i32, i32, i32) {
    %c0_i32 = arith.constant 0 : i32
    %c0_i32_0 = arith.constant 0 : i32
    %c0_i32_1 = arith.constant 0 : i32
    return %arg0, %c0_i32, %c0_i32_0 : i32, i32, i32
  }
  func.func @transform_3(%arg0: i32) -> (i32, i32, i32) {
    %c0_i32 = arith.constant 0 : i32
    %c0_i32_0 = arith.constant 0 : i32
    %c0_i32_1 = arith.constant 0 : i32
    return %arg0, %c0_i32, %c0_i32_0 : i32, i32, i32
  }
}

module attributes {stable_mosaic.version = 11 : i64} {
  func.func @_add_ln_kernel(%arg0: i32, %arg1: memref<96x256xf32, #tpu.memory_space<vmem>>, %arg2: memref<96x256xf32, #tpu.memory_space<vmem>>, %arg3: memref<1x256xf32, #tpu.memory_space<vmem>>, %arg4: memref<1x256xf32, #tpu.memory_space<vmem>>, %arg5: memref<96x256xf32, #tpu.memory_space<vmem>>) attributes {dimension_semantics = [#tpu.dimension_semantics<arbitrary>], iteration_bounds = array<i64: 1>, scalar_prefetch = 0 : i64, scratch_operands = 0 : i64, tpu.core_type = #tpu.core_type<tc>, window_params = [{pipeline_mode = #tpu.pipeline_mode<synchronous>, transform_indices = @transform_0, window_bounds = array<i64: 96, 256>}, {pipeline_mode = #tpu.pipeline_mode<synchronous>, transform_indices = @transform_1, window_bounds = array<i64: 96, 256>}, {pipeline_mode = #tpu.pipeline_mode<synchronous>, transform_indices = @transform_2, window_bounds = array<i64: 1, 256>}, {pipeline_mode = #tpu.pipeline_mode<synchronous>, transform_indices = @transform_3, window_bounds = array<i64: 1, 256>}, {pipeline_mode = #tpu.pipeline_mode<synchronous>, transform_indices = @transform_4, window_bounds = array<i64: 96, 256>}]} {
    %c0 = arith.constant 0 : index
    %c0_0 = arith.constant 0 : index
    %0 = vector.load %arg1[%c0, %c0_0] : memref<96x256xf32, #tpu.memory_space<vmem>>, vector<96x256xf32>
    %c0_1 = arith.constant 0 : index
    %c0_2 = arith.constant 0 : index
    %1 = vector.load %arg2[%c0_1, %c0_2] : memref<96x256xf32, #tpu.memory_space<vmem>>, vector<96x256xf32>
    %2 = arith.addf %0, %1 : vector<96x256xf32>
    %c0_3 = arith.constant 0 : index
    %c0_4 = arith.constant 0 : index
    %3 = vector.load %arg3[%c0_3, %c0_4] : memref<1x256xf32, #tpu.memory_space<vmem>>, vector<1x256xf32>
    %c0_5 = arith.constant 0 : index
    %c0_6 = arith.constant 0 : index
    %4 = vector.load %arg4[%c0_5, %c0_6] : memref<1x256xf32, #tpu.memory_space<vmem>>, vector<1x256xf32>
    %cst = arith.constant dense<0.000000e+00> : vector<96xf32>
    %5 = vector.multi_reduction <add>, %2, %cst [1] : vector<96x256xf32> to vector<96xf32>
    %6 = vector.shape_cast %5 : vector<96xf32> to vector<96x1xf32>
    %cst_7 = arith.constant 2.560000e+02 : f32
    %7 = vector.broadcast %cst_7 : f32 to vector<96x1xf32>
    %8 = arith.divf %6, %7 : vector<96x1xf32>
    %9 = vector.broadcast %8 : vector<96x1xf32> to vector<96x256xf32>
    %10 = arith.subf %2, %9 : vector<96x256xf32>
    %11 = arith.mulf %10, %10 : vector<96x256xf32>
    %cst_8 = arith.constant dense<0.000000e+00> : vector<96xf32>
    %12 = vector.multi_reduction <add>, %11, %cst_8 [1] : vector<96x256xf32> to vector<96xf32>
    %13 = vector.shape_cast %12 : vector<96xf32> to vector<96x1xf32>
    %cst_9 = arith.constant 2.560000e+02 : f32
    %14 = vector.broadcast %cst_9 : f32 to vector<96x1xf32>
    %15 = arith.divf %13, %14 : vector<96x1xf32>
    %16 = vector.broadcast %8 : vector<96x1xf32> to vector<96x256xf32>
    %17 = arith.subf %2, %16 : vector<96x256xf32>
    %cst_10 = arith.constant 9.99999974E-6 : f32
    %18 = vector.broadcast %cst_10 : f32 to vector<96x1xf32>
    %19 = arith.addf %15, %18 : vector<96x1xf32>
    %20 = math.rsqrt %19 : vector<96x1xf32>
    %21 = vector.broadcast %20 : vector<96x1xf32> to vector<96x256xf32>
    %22 = arith.mulf %17, %21 : vector<96x256xf32>
    %23 = vector.broadcast %3 : vector<1x256xf32> to vector<96x256xf32>
    %24 = arith.mulf %22, %23 : vector<96x256xf32>
    %25 = vector.broadcast %4 : vector<1x256xf32> to vector<96x256xf32>
    %26 = arith.addf %24, %25 : vector<96x256xf32>
    %c0_11 = arith.constant 0 : index
    %c0_12 = arith.constant 0 : index
    %27 = vector.load %arg5[%c0_11, %c0_12] : memref<96x256xf32, #tpu.memory_space<vmem>>, vector<96x256xf32>
    tpu.vector_store %arg5[%c0_11, %c0_12], %26 {strides = array<i32>} : memref<96x256xf32, #tpu.memory_space<vmem>>, vector<96x256xf32>,
    return
  }
  func.func @transform_0(%arg0: i32) -> (i32, i32) {
    %c0_i32 = arith.constant 0 : i32
    %c0_i32_0 = arith.constant 0 : i32
    %c0_i32_1 = arith.constant 0 : i32
    return %c0_i32, %c0_i32_0 : i32, i32
  }
  func.func @transform_1(%arg0: i32) -> (i32, i32) {
    %c0_i32 = arith.constant 0 : i32
    %c0_i32_0 = arith.constant 0 : i32
    %c0_i32_1 = arith.constant 0 : i32
    return %c0_i32, %c0_i32_0 : i32, i32
  }
  func.func @transform_2(%arg0: i32) -> (i32, i32) {
    %c0_i32 = arith.constant 0 : i32
    %c0_i32_0 = arith.constant 0 : i32
    %c0_i32_1 = arith.constant 0 : i32
    return %c0_i32, %c0_i32_0 : i32, i32
  }
  func.func @transform_3(%arg0: i32) -> (i32, i32) {
    %c0_i32 = arith.constant 0 : i32
    %c0_i32_0 = arith.constant 0 : i32
    %c0_i32_1 = arith.constant 0 : i32
    return %c0_i32, %c0_i32_0 : i32, i32
  }
  func.func @transform_4(%arg0: i32) -> (i32, i32) {
    %c0_i32 = arith.constant 0 : i32
    %c0_i32_0 = arith.constant 0 : i32
    %c0_i32_1 = arith.constant 0 : i32
    return %c0_i32, %c0_i32_0 : i32, i32
  }
}

module attributes {stable_mosaic.version = 11 : i64} {
  func.func @_encoder_layer_kernel(%arg0: i32, %arg1: memref<1x48x256xf32, #tpu.memory_space<vmem>>, %arg2: memref<256x768xbf16, #tpu.memory_space<vmem>>, %arg3: memref<1x768xf32, #tpu.memory_space<vmem>>, %arg4: memref<256x256xbf16, #tpu.memory_space<vmem>>, %arg5: memref<1x256xf32, #tpu.memory_space<vmem>>, %arg6: memref<1x256xf32, #tpu.memory_space<vmem>>, %arg7: memref<1x256xf32, #tpu.memory_space<vmem>>, %arg8: memref<256x512xbf16, #tpu.memory_space<vmem>>, %arg9: memref<1x512xf32, #tpu.memory_space<vmem>>, %arg10: memref<512x256xbf16, #tpu.memory_space<vmem>>, %arg11: memref<1x256xf32, #tpu.memory_space<vmem>>, %arg12: memref<1x256xf32, #tpu.memory_space<vmem>>, %arg13: memref<1x256xf32, #tpu.memory_space<vmem>>, %arg14: memref<1x48x256xf32, #tpu.memory_space<vmem>>) attributes {dimension_semantics = [#tpu.dimension_semantics<parallel>], iteration_bounds = array<i64: 2>, scalar_prefetch = 0 : i64, scratch_operands = 0 : i64, tpu.core_type = #tpu.core_type<tc>, window_params = [{transform_indices = @transform_0, window_bounds = array<i64: 1, 48, 256>}, {pipeline_mode = #tpu.pipeline_mode<synchronous>, transform_indices = @transform_1, window_bounds = array<i64: 256, 768>}, {pipeline_mode = #tpu.pipeline_mode<synchronous>, transform_indices = @transform_2, window_bounds = array<i64: 1, 768>}, {pipeline_mode = #tpu.pipeline_mode<synchronous>, transform_indices = @transform_3, window_bounds = array<i64: 256, 256>}, {pipeline_mode = #tpu.pipeline_mode<synchronous>, transform_indices = @transform_4, window_bounds = array<i64: 1, 256>}, {pipeline_mode = #tpu.pipeline_mode<synchronous>, transform_indices = @transform_5, window_bounds = array<i64: 1, 256>}, {pipeline_mode = #tpu.pipeline_mode<synchronous>, transform_indices = @transform_6, window_bounds = array<i64: 1, 256>}, {pipeline_mode = #tpu.pipeline_mode<synchronous>, transform_indices = @transform_7, window_bounds = array<i64: 256, 512>}, {pipeline_mode = #tpu.pipeline_mode<synchronous>, transform_indices = @transform_8, window_bounds = array<i64: 1, 512>}, {pipeline_mode = #tpu.pipeline_mode<synchronous>, transform_indices = @transform_9, window_bounds = array<i64: 512, 256>}, {pipeline_mode = #tpu.pipeline_mode<synchronous>, transform_indices = @transform_10, window_bounds = array<i64: 1, 256>}, {pipeline_mode = #tpu.pipeline_mode<synchronous>, transform_indices = @transform_11, window_bounds = array<i64: 1, 256>}, {pipeline_mode = #tpu.pipeline_mode<synchronous>, transform_indices = @transform_12, window_bounds = array<i64: 1, 256>}, {transform_indices = @transform_13, window_bounds = array<i64: 1, 48, 256>}]} {
    %c0 = arith.constant 0 : index
    %c0_0 = arith.constant 0 : index
    %c0_1 = arith.constant 0 : index
    %0 = vector.load %arg1[%c0, %c0_0, %c0_1] : memref<1x48x256xf32, #tpu.memory_space<vmem>>, vector<1x48x256xf32>
    %1 = vector.shape_cast %0 : vector<1x48x256xf32> to vector<48x256xf32>
    %c0_2 = arith.constant 0 : index
    %c0_3 = arith.constant 0 : index
    %2 = vector.load %arg2[%c0_2, %c0_3] : memref<256x768xbf16, #tpu.memory_space<vmem>>, vector<256x768xbf16>
    %3 = arith.truncf %1 : vector<48x256xf32> to vector<48x256xbf16>
    %cst = arith.constant dense<0.000000e+00> : vector<48x768xf32>
    %4 = tpu.matmul %3, %2, %cst {dimension_numbers = #tpu.dot_dimension_numbers<[1], [0], [0], [1], [0, 0, 1, 1], [], []>} : vector<48x256xbf16>, vector<256x768xbf16>, vector<48x768xf32> -> vector<48x768xf32>
    %c0_4 = arith.constant 0 : index
    %c0_5 = arith.constant 0 : index
    %5 = vector.load %arg3[%c0_4, %c0_5] : memref<1x768xf32, #tpu.memory_space<vmem>>, vector<1x768xf32>
    %6 = vector.broadcast %5 : vector<1x768xf32> to vector<48x768xf32>
    %7 = arith.addf %4, %6 : vector<48x768xf32>
    %c0_6 = arith.constant 0 : index
    %c0_7 = arith.constant 0 : index
    %8 = vector.load %arg4[%c0_6, %c0_7] : memref<256x256xbf16, #tpu.memory_space<vmem>>, vector<256x256xbf16>
    %cst_8 = arith.constant 0.000000e+00 : f32
    %9 = vector.broadcast %cst_8 : f32 to vector<48x256xf32>
    %10 = vector.extract_strided_slice %7 {offsets = [0, 0], sizes = [48, 128], strides = [1, 1]} : vector<48x768xf32> to vector<48x128xf32>
    %11 = arith.truncf %10 : vector<48x128xf32> to vector<48x128xbf16>
    %12 = vector.extract_strided_slice %7 {offsets = [0, 256], sizes = [48, 128], strides = [1, 1]} : vector<48x768xf32> to vector<48x128xf32>
    %13 = arith.truncf %12 : vector<48x128xf32> to vector<48x128xbf16>
    %14 = vector.extract_strided_slice %7 {offsets = [0, 512], sizes = [48, 128], strides = [1, 1]} : vector<48x768xf32> to vector<48x128xf32>
    %15 = arith.truncf %14 : vector<48x128xf32> to vector<48x128xbf16>
    %cst_9 = arith.constant dense<0.000000e+00> : vector<48x48xf32>
    %16 = tpu.matmul %11, %13, %cst_9 {dimension_numbers = #tpu.dot_dimension_numbers<[1], [1], [0], [0], [0, 0, 1, 0], [], []>} : vector<48x128xbf16>, vector<48x128xbf16>, vector<48x48xf32> -> vector<48x48xf32>
    %cst_10 = arith.constant 0.0883883461 : f32
    %17 = vector.broadcast %cst_10 : f32 to vector<48x48xf32>
    %18 = arith.mulf %16, %17 : vector<48x48xf32>
    %cst_11 = arith.constant dense<0xFF800000> : vector<48xf32>
    %19 = vector.multi_reduction <maximumf>, %18, %cst_11 [1] : vector<48x48xf32> to vector<48xf32>
    %20 = vector.shape_cast %19 : vector<48xf32> to vector<48x1xf32>
    %21 = vector.broadcast %20 : vector<48x1xf32> to vector<48x48xf32>
    %22 = arith.subf %18, %21 : vector<48x48xf32>
    %23 = math.exp %22 : vector<48x48xf32>
    %cst_12 = arith.constant dense<0.000000e+00> : vector<48xf32>
    %24 = vector.multi_reduction <add>, %23, %cst_12 [1] : vector<48x48xf32> to vector<48xf32>
    %25 = vector.shape_cast %24 : vector<48xf32> to vector<48x1xf32>
    %26 = tpu.reciprocal %25 {approx = true} : vector<48x1xf32> -> vector<48x1xf32>
    %27 = vector.broadcast %26 : vector<48x1xf32> to vector<48x48xf32>
    %28 = arith.mulf %23, %27 : vector<48x48xf32>
    %29 = arith.truncf %28 : vector<48x48xf32> to vector<48x48xbf16>
    %cst_13 = arith.constant dense<0.000000e+00> : vector<48x128xf32>
    %30 = tpu.matmul %29, %15, %cst_13 {dimension_numbers = #tpu.dot_dimension_numbers<[1], [0], [0], [1], [0, 0, 1, 1], [], []>} : vector<48x48xbf16>, vector<48x128xbf16>, vector<48x128xf32> -> vector<48x128xf32>
    %31 = vector.extract_strided_slice %8 {offsets = [0, 0], sizes = [128, 256], strides = [1, 1]} : vector<256x256xbf16> to vector<128x256xbf16>
    %32 = arith.truncf %30 : vector<48x128xf32> to vector<48x128xbf16>
    %cst_14 = arith.constant dense<0.000000e+00> : vector<48x256xf32>
    %33 = tpu.matmul %32, %31, %cst_14 {dimension_numbers = #tpu.dot_dimension_numbers<[1], [0], [0], [1], [0, 0, 1, 1], [], []>} : vector<48x128xbf16>, vector<128x256xbf16>, vector<48x256xf32> -> vector<48x256xf32>
    %34 = arith.addf %9, %33 : vector<48x256xf32>
    %35 = vector.extract_strided_slice %7 {offsets = [0, 128], sizes = [48, 128], strides = [1, 1]} : vector<48x768xf32> to vector<48x128xf32>
    %36 = arith.truncf %35 : vector<48x128xf32> to vector<48x128xbf16>
    %37 = vector.extract_strided_slice %7 {offsets = [0, 384], sizes = [48, 128], strides = [1, 1]} : vector<48x768xf32> to vector<48x128xf32>
    %38 = arith.truncf %37 : vector<48x128xf32> to vector<48x128xbf16>
    %39 = vector.extract_strided_slice %7 {offsets = [0, 640], sizes = [48, 128], strides = [1, 1]} : vector<48x768xf32> to vector<48x128xf32>
    %40 = arith.truncf %39 : vector<48x128xf32> to vector<48x128xbf16>
    %cst_15 = arith.constant dense<0.000000e+00> : vector<48x48xf32>
    %41 = tpu.matmul %36, %38, %cst_15 {dimension_numbers = #tpu.dot_dimension_numbers<[1], [1], [0], [0], [0, 0, 1, 0], [], []>} : vector<48x128xbf16>, vector<48x128xbf16>, vector<48x48xf32> -> vector<48x48xf32>
    %cst_16 = arith.constant 0.0883883461 : f32
    %42 = vector.broadcast %cst_16 : f32 to vector<48x48xf32>
    %43 = arith.mulf %41, %42 : vector<48x48xf32>
    %cst_17 = arith.constant dense<0xFF800000> : vector<48xf32>
    %44 = vector.multi_reduction <maximumf>, %43, %cst_17 [1] : vector<48x48xf32> to vector<48xf32>
    %45 = vector.shape_cast %44 : vector<48xf32> to vector<48x1xf32>
    %46 = vector.broadcast %45 : vector<48x1xf32> to vector<48x48xf32>
    %47 = arith.subf %43, %46 : vector<48x48xf32>
    %48 = math.exp %47 : vector<48x48xf32>
    %cst_18 = arith.constant dense<0.000000e+00> : vector<48xf32>
    %49 = vector.multi_reduction <add>, %48, %cst_18 [1] : vector<48x48xf32> to vector<48xf32>
    %50 = vector.shape_cast %49 : vector<48xf32> to vector<48x1xf32>
    %51 = tpu.reciprocal %50 {approx = true} : vector<48x1xf32> -> vector<48x1xf32>
    %52 = vector.broadcast %51 : vector<48x1xf32> to vector<48x48xf32>
    %53 = arith.mulf %48, %52 : vector<48x48xf32>
    %54 = arith.truncf %53 : vector<48x48xf32> to vector<48x48xbf16>
    %cst_19 = arith.constant dense<0.000000e+00> : vector<48x128xf32>
    %55 = tpu.matmul %54, %40, %cst_19 {dimension_numbers = #tpu.dot_dimension_numbers<[1], [0], [0], [1], [0, 0, 1, 1], [], []>} : vector<48x48xbf16>, vector<48x128xbf16>, vector<48x128xf32> -> vector<48x128xf32>
    %56 = vector.extract_strided_slice %8 {offsets = [128, 0], sizes = [128, 256], strides = [1, 1]} : vector<256x256xbf16> to vector<128x256xbf16>
    %57 = arith.truncf %55 : vector<48x128xf32> to vector<48x128xbf16>
    %cst_20 = arith.constant dense<0.000000e+00> : vector<48x256xf32>
    %58 = tpu.matmul %57, %56, %cst_20 {dimension_numbers = #tpu.dot_dimension_numbers<[1], [0], [0], [1], [0, 0, 1, 1], [], []>} : vector<48x128xbf16>, vector<128x256xbf16>, vector<48x256xf32> -> vector<48x256xf32>
    %59 = arith.addf %34, %58 : vector<48x256xf32>
    %c0_21 = arith.constant 0 : index
    %c0_22 = arith.constant 0 : index
    %60 = vector.load %arg5[%c0_21, %c0_22] : memref<1x256xf32, #tpu.memory_space<vmem>>, vector<1x256xf32>
    %61 = vector.broadcast %60 : vector<1x256xf32> to vector<48x256xf32>
    %62 = arith.addf %59, %61 : vector<48x256xf32>
    %63 = arith.addf %1, %62 : vector<48x256xf32>
    %c0_23 = arith.constant 0 : index
    %c0_24 = arith.constant 0 : index
    %64 = vector.load %arg6[%c0_23, %c0_24] : memref<1x256xf32, #tpu.memory_space<vmem>>, vector<1x256xf32>
    %c0_25 = arith.constant 0 : index
    %c0_26 = arith.constant 0 : index
    %65 = vector.load %arg7[%c0_25, %c0_26] : memref<1x256xf32, #tpu.memory_space<vmem>>, vector<1x256xf32>
    %cst_27 = arith.constant dense<0.000000e+00> : vector<48xf32>
    %66 = vector.multi_reduction <add>, %63, %cst_27 [1] : vector<48x256xf32> to vector<48xf32>
    %67 = vector.shape_cast %66 : vector<48xf32> to vector<48x1xf32>
    %cst_28 = arith.constant 2.560000e+02 : f32
    %68 = vector.broadcast %cst_28 : f32 to vector<48x1xf32>
    %69 = arith.divf %67, %68 : vector<48x1xf32>
    %70 = vector.broadcast %69 : vector<48x1xf32> to vector<48x256xf32>
    %71 = arith.subf %63, %70 : vector<48x256xf32>
    %72 = arith.mulf %71, %71 : vector<48x256xf32>
    %cst_29 = arith.constant dense<0.000000e+00> : vector<48xf32>
    %73 = vector.multi_reduction <add>, %72, %cst_29 [1] : vector<48x256xf32> to vector<48xf32>
    %74 = vector.shape_cast %73 : vector<48xf32> to vector<48x1xf32>
    %cst_30 = arith.constant 2.560000e+02 : f32
    %75 = vector.broadcast %cst_30 : f32 to vector<48x1xf32>
    %76 = arith.divf %74, %75 : vector<48x1xf32>
    %77 = vector.broadcast %69 : vector<48x1xf32> to vector<48x256xf32>
    %78 = arith.subf %63, %77 : vector<48x256xf32>
    %cst_31 = arith.constant 9.99999974E-6 : f32
    %79 = vector.broadcast %cst_31 : f32 to vector<48x1xf32>
    %80 = arith.addf %76, %79 : vector<48x1xf32>
    %81 = math.rsqrt %80 : vector<48x1xf32>
    %82 = vector.broadcast %81 : vector<48x1xf32> to vector<48x256xf32>
    %83 = arith.mulf %78, %82 : vector<48x256xf32>
    %84 = vector.broadcast %64 : vector<1x256xf32> to vector<48x256xf32>
    %85 = arith.mulf %83, %84 : vector<48x256xf32>
    %86 = vector.broadcast %65 : vector<1x256xf32> to vector<48x256xf32>
    %87 = arith.addf %85, %86 : vector<48x256xf32>
    %c0_32 = arith.constant 0 : index
    %c0_33 = arith.constant 0 : index
    %88 = vector.load %arg8[%c0_32, %c0_33] : memref<256x512xbf16, #tpu.memory_space<vmem>>, vector<256x512xbf16>
    %89 = arith.truncf %87 : vector<48x256xf32> to vector<48x256xbf16>
    %cst_34 = arith.constant dense<0.000000e+00> : vector<48x512xf32>
    %90 = tpu.matmul %89, %88, %cst_34 {dimension_numbers = #tpu.dot_dimension_numbers<[1], [0], [0], [1], [0, 0, 1, 1], [], []>} : vector<48x256xbf16>, vector<256x512xbf16>, vector<48x512xf32> -> vector<48x512xf32>
    %c0_35 = arith.constant 0 : index
    %c0_36 = arith.constant 0 : index
    %91 = vector.load %arg9[%c0_35, %c0_36] : memref<1x512xf32, #tpu.memory_space<vmem>>, vector<1x512xf32>
    %92 = vector.broadcast %91 : vector<1x512xf32> to vector<48x512xf32>
    %93 = arith.addf %90, %92 : vector<48x512xf32>
    %cst_37 = arith.constant 5.000000e-01 : f32
    %94 = vector.broadcast %cst_37 : f32 to vector<48x512xf32>
    %95 = arith.mulf %94, %93 : vector<48x512xf32>
    %cst_38 = arith.constant 4.471500e-02 : f32
    %96 = vector.broadcast %cst_38 : f32 to vector<48x512xf32>
    %97 = arith.mulf %96, %93 : vector<48x512xf32>
    %98 = arith.mulf %97, %93 : vector<48x512xf32>
    %99 = arith.mulf %98, %93 : vector<48x512xf32>
    %100 = arith.addf %93, %99 : vector<48x512xf32>
    %cst_39 = arith.constant 0.797884583 : f32
    %101 = vector.broadcast %cst_39 : f32 to vector<48x512xf32>
    %102 = arith.mulf %101, %100 : vector<48x512xf32>
    %103 = math.tanh %102 : vector<48x512xf32>
    %cst_40 = arith.constant 1.000000e+00 : f32
    %104 = vector.broadcast %cst_40 : f32 to vector<48x512xf32>
    %105 = arith.addf %104, %103 : vector<48x512xf32>
    %106 = arith.mulf %95, %105 : vector<48x512xf32>
    %c0_41 = arith.constant 0 : index
    %c0_42 = arith.constant 0 : index
    %107 = vector.load %arg10[%c0_41, %c0_42] : memref<512x256xbf16, #tpu.memory_space<vmem>>, vector<512x256xbf16>
    %108 = arith.truncf %106 : vector<48x512xf32> to vector<48x512xbf16>
    %cst_43 = arith.constant dense<0.000000e+00> : vector<48x256xf32>
    %109 = tpu.matmul %108, %107, %cst_43 {dimension_numbers = #tpu.dot_dimension_numbers<[1], [0], [0], [1], [0, 0, 1, 1], [], []>} : vector<48x512xbf16>, vector<512x256xbf16>, vector<48x256xf32> -> vector<48x256xf32>
    %c0_44 = arith.constant 0 : index
    %c0_45 = arith.constant 0 : index
    %110 = vector.load %arg11[%c0_44, %c0_45] : memref<1x256xf32, #tpu.memory_space<vmem>>, vector<1x256xf32>
    %111 = vector.broadcast %110 : vector<1x256xf32> to vector<48x256xf32>
    %112 = arith.addf %109, %111 : vector<48x256xf32>
    %113 = arith.addf %87, %112 : vector<48x256xf32>
    %c0_46 = arith.constant 0 : index
    %c0_47 = arith.constant 0 : index
    %114 = vector.load %arg12[%c0_46, %c0_47] : memref<1x256xf32, #tpu.memory_space<vmem>>, vector<1x256xf32>
    %c0_48 = arith.constant 0 : index
    %c0_49 = arith.constant 0 : index
    %115 = vector.load %arg13[%c0_48, %c0_49] : memref<1x256xf32, #tpu.memory_space<vmem>>, vector<1x256xf32>
    %cst_50 = arith.constant dense<0.000000e+00> : vector<48xf32>
    %116 = vector.multi_reduction <add>, %113, %cst_50 [1] : vector<48x256xf32> to vector<48xf32>
    %117 = vector.shape_cast %116 : vector<48xf32> to vector<48x1xf32>
    %cst_51 = arith.constant 2.560000e+02 : f32
    %118 = vector.broadcast %cst_51 : f32 to vector<48x1xf32>
    %119 = arith.divf %117, %118 : vector<48x1xf32>
    %120 = vector.broadcast %119 : vector<48x1xf32> to vector<48x256xf32>
    %121 = arith.subf %113, %120 : vector<48x256xf32>
    %122 = arith.mulf %121, %121 : vector<48x256xf32>
    %cst_52 = arith.constant dense<0.000000e+00> : vector<48xf32>
    %123 = vector.multi_reduction <add>, %122, %cst_52 [1] : vector<48x256xf32> to vector<48xf32>
    %124 = vector.shape_cast %123 : vector<48xf32> to vector<48x1xf32>
    %cst_53 = arith.constant 2.560000e+02 : f32
    %125 = vector.broadcast %cst_53 : f32 to vector<48x1xf32>
    %126 = arith.divf %124, %125 : vector<48x1xf32>
    %127 = vector.broadcast %119 : vector<48x1xf32> to vector<48x256xf32>
    %128 = arith.subf %113, %127 : vector<48x256xf32>
    %cst_54 = arith.constant 9.99999974E-6 : f32
    %129 = vector.broadcast %cst_54 : f32 to vector<48x1xf32>
    %130 = arith.addf %126, %129 : vector<48x1xf32>
    %131 = math.rsqrt %130 : vector<48x1xf32>
    %132 = vector.broadcast %131 : vector<48x1xf32> to vector<48x256xf32>
    %133 = arith.mulf %128, %132 : vector<48x256xf32>
    %134 = vector.broadcast %114 : vector<1x256xf32> to vector<48x256xf32>
    %135 = arith.mulf %133, %134 : vector<48x256xf32>
    %136 = vector.broadcast %115 : vector<1x256xf32> to vector<48x256xf32>
    %137 = arith.addf %135, %136 : vector<48x256xf32>
    %c0_55 = arith.constant 0 : index
    %c0_56 = arith.constant 0 : index
    %c0_57 = arith.constant 0 : index
    %138 = vector.load %arg14[%c0_55, %c0_56, %c0_57] : memref<1x48x256xf32, #tpu.memory_space<vmem>>, vector<1x48x256xf32>
    %139 = vector.shape_cast %138 : vector<1x48x256xf32> to vector<48x256xf32>
    %140 = vector.shape_cast %137 : vector<48x256xf32> to vector<1x48x256xf32>
    tpu.vector_store %arg14[%c0_55, %c0_56, %c0_57], %140 {strides = array<i32>} : memref<1x48x256xf32, #tpu.memory_space<vmem>>, vector<1x48x256xf32>,
    return
  }
  func.func @transform_0(%arg0: i32) -> (i32, i32, i32) {
    %c0_i32 = arith.constant 0 : i32
    %c0_i32_0 = arith.constant 0 : i32
    %c0_i32_1 = arith.constant 0 : i32
    return %arg0, %c0_i32, %c0_i32_0 : i32, i32, i32
  }
  func.func @transform_1(%arg0: i32) -> (i32, i32) {
    %c0_i32 = arith.constant 0 : i32
    %c0_i32_0 = arith.constant 0 : i32
    %c0_i32_1 = arith.constant 0 : i32
    return %c0_i32, %c0_i32_0 : i32, i32
  }
  func.func @transform_2(%arg0: i32) -> (i32, i32) {
    %c0_i32 = arith.constant 0 : i32
    %c0_i32_0 = arith.constant 0 : i32
    %c0_i32_1 = arith.constant 0 : i32
    return %c0_i32, %c0_i32_0 : i32, i32
  }
  func.func @transform_3(%arg0: i32) -> (i32, i32) {
    %c0_i32 = arith.constant 0 : i32
    %c0_i32_0 = arith.constant 0 : i32
    %c0_i32_1 = arith.constant 0 : i32
    return %c0_i32, %c0_i32_0 : i32, i32
  }
  func.func @transform_4(%arg0: i32) -> (i32, i32) {
    %c0_i32 = arith.constant 0 : i32
    %c0_i32_0 = arith.constant 0 : i32
    %c0_i32_1 = arith.constant 0 : i32
    return %c0_i32, %c0_i32_0 : i32, i32
  }
  func.func @transform_5(%arg0: i32) -> (i32, i32) {
    %c0_i32 = arith.constant 0 : i32
    %c0_i32_0 = arith.constant 0 : i32
    %c0_i32_1 = arith.constant 0 : i32
    return %c0_i32, %c0_i32_0 : i32, i32
  }
  func.func @transform_6(%arg0: i32) -> (i32, i32) {
    %c0_i32 = arith.constant 0 : i32
    %c0_i32_0 = arith.constant 0 : i32
    %c0_i32_1 = arith.constant 0 : i32
    return %c0_i32, %c0_i32_0 : i32, i32
  }
  func.func @transform_7(%arg0: i32) -> (i32, i32) {
    %c0_i32 = arith.constant 0 : i32
    %c0_i32_0 = arith.constant 0 : i32
    %c0_i32_1 = arith.constant 0 : i32
    return %c0_i32, %c0_i32_0 : i32, i32
  }
  func.func @transform_8(%arg0: i32) -> (i32, i32) {
    %c0_i32 = arith.constant 0 : i32
    %c0_i32_0 = arith.constant 0 : i32
    %c0_i32_1 = arith.constant 0 : i32
    return %c0_i32, %c0_i32_0 : i32, i32
  }
  func.func @transform_9(%arg0: i32) -> (i32, i32) {
    %c0_i32 = arith.constant 0 : i32
    %c0_i32_0 = arith.constant 0 : i32
    %c0_i32_1 = arith.constant 0 : i32
    return %c0_i32, %c0_i32_0 : i32, i32
  }
  func.func @transform_10(%arg0: i32) -> (i32, i32) {
    %c0_i32 = arith.constant 0 : i32
    %c0_i32_0 = arith.constant 0 : i32
    %c0_i32_1 = arith.constant 0 : i32
    return %c0_i32, %c0_i32_0 : i32, i32
  }
  func.func @transform_11(%arg0: i32) -> (i32, i32) {
    %c0_i32 = arith.constant 0 : i32
    %c0_i32_0 = arith.constant 0 : i32
    %c0_i32_1 = arith.constant 0 : i32
    return %c0_i32, %c0_i32_0 : i32, i32
  }
  func.func @transform_12(%arg0: i32) -> (i32, i32) {
    %c0_i32 = arith.constant 0 : i32
    %c0_i32_0 = arith.constant 0 : i32
    %c0_i32_1 = arith.constant 0 : i32
    return %c0_i32, %c0_i32_0 : i32, i32
  }
  func.func @transform_13(%arg0: i32) -> (i32, i32, i32) {
    %c0_i32 = arith.constant 0 : i32
    %c0_i32_0 = arith.constant 0 : i32
    %c0_i32_1 = arith.constant 0 : i32
    return %arg0, %c0_i32, %c0_i32_0 : i32, i32, i32
  }
}

module attributes {stable_mosaic.version = 11 : i64} {
  func.func @_pool_linear_kernel(%arg0: i32, %arg1: memref<2x48x256xf32, #tpu.memory_space<vmem>>, %arg2: memref<256x1xbf16, #tpu.memory_space<vmem>>, %arg3: memref<1x1xf32, #tpu.memory_space<vmem>>, %arg4: memref<2x1xf32, #tpu.memory_space<vmem>>) attributes {dimension_semantics = [#tpu.dimension_semantics<arbitrary>], iteration_bounds = array<i64: 1>, scalar_prefetch = 0 : i64, scratch_operands = 0 : i64, tpu.core_type = #tpu.core_type<tc>, window_params = [{pipeline_mode = #tpu.pipeline_mode<synchronous>, transform_indices = @transform_0, window_bounds = array<i64: 2, 48, 256>}, {pipeline_mode = #tpu.pipeline_mode<synchronous>, transform_indices = @transform_1, window_bounds = array<i64: 256, 1>}, {pipeline_mode = #tpu.pipeline_mode<synchronous>, transform_indices = @transform_2, window_bounds = array<i64: 1, 1>}, {pipeline_mode = #tpu.pipeline_mode<synchronous>, transform_indices = @transform_3, window_bounds = array<i64: 2, 1>}]} {
    %c0 = arith.constant 0 : index
    %c0_0 = arith.constant 0 : index
    %c0_1 = arith.constant 0 : index
    %0 = vector.load %arg1[%c0, %c0_0, %c0_1] : memref<2x48x256xf32, #tpu.memory_space<vmem>>, vector<2x48x256xf32>
    %cst = arith.constant dense<0.000000e+00> : vector<2x256xf32>
    %1 = vector.multi_reduction <add>, %0, %cst [1] : vector<2x48x256xf32> to vector<2x256xf32>
    %cst_2 = arith.constant 4.800000e+01 : f32
    %2 = vector.broadcast %cst_2 : f32 to vector<2x256xf32>
    %3 = arith.divf %1, %2 : vector<2x256xf32>
    %c0_3 = arith.constant 0 : index
    %c0_4 = arith.constant 0 : index
    %4 = vector.load %arg2[%c0_3, %c0_4] : memref<256x1xbf16, #tpu.memory_space<vmem>>, vector<256x1xbf16>
    %5 = arith.truncf %3 : vector<2x256xf32> to vector<2x256xbf16>
    %cst_5 = arith.constant dense<0.000000e+00> : vector<2x1xf32>
    %6 = tpu.matmul %5, %4, %cst_5 {dimension_numbers = #tpu.dot_dimension_numbers<[1], [0], [0], [1], [0, 0, 1, 1], [], []>} : vector<2x256xbf16>, vector<256x1xbf16>, vector<2x1xf32> -> vector<2x1xf32>
    %c0_6 = arith.constant 0 : index
    %c0_7 = arith.constant 0 : index
    %7 = vector.load %arg3[%c0_6, %c0_7] : memref<1x1xf32, #tpu.memory_space<vmem>>, vector<1x1xf32>
    %8 = vector.broadcast %7 : vector<1x1xf32> to vector<2x1xf32>
    %9 = arith.addf %6, %8 : vector<2x1xf32>
    %c0_8 = arith.constant 0 : index
    %c0_9 = arith.constant 0 : index
    %10 = vector.load %arg4[%c0_8, %c0_9] : memref<2x1xf32, #tpu.memory_space<vmem>>, vector<2x1xf32>
    tpu.vector_store %arg4[%c0_8, %c0_9], %9 {strides = array<i32>} : memref<2x1xf32, #tpu.memory_space<vmem>>, vector<2x1xf32>,
    return
  }
  func.func @transform_0(%arg0: i32) -> (i32, i32, i32) {
    %c0_i32 = arith.constant 0 : i32
    %c0_i32_0 = arith.constant 0 : i32
    %c0_i32_1 = arith.constant 0 : i32
    %c0_i32_2 = arith.constant 0 : i32
    return %c0_i32, %c0_i32_0, %c0_i32_1 : i32, i32, i32
  }
  func.func @transform_1(%arg0: i32) -> (i32, i32) {
    %c0_i32 = arith.constant 0 : i32
    %c0_i32_0 = arith.constant 0 : i32
    %c0_i32_1 = arith.constant 0 : i32
    return %c0_i32, %c0_i32_0 : i32, i32
  }
  func.func @transform_2(%arg0: i32) -> (i32, i32) {
    %c0_i32 = arith.constant 0 : i32
    %c0_i32_0 = arith.constant 0 : i32
    %c0_i32_1 = arith.constant 0 : i32
    return %c0_i32, %c0_i32_0 : i32, i32
  }
  func.func @transform_3(%arg0: i32) -> (i32, i32) {
    %c0_i32 = arith.constant 0 : i32
    %c0_i32_0 = arith.constant 0 : i32
    %c0_i32_1 = arith.constant 0 : i32
    return %c0_i32, %c0_i32_0 : i32, i32
  }
}

</mosaic_0001>

<llo_original>
// kernel: covid_wav2vec_forward.10
$region0: #{covid_wav2vec_forward.10}
  #allocation0 [shape = 'u32[]', space=smem, size = 0x4, offset = 0x4, fixed_abs, tag = 'smem constant byte address 0x4 - core index']
  #allocation1 [shape = 'u32[144,128]{1,0:T(1,128)}', space=vmem, size = 0x12000, scoped, tag = 'internal scratch']
  %s0 = inlined_call_operand.vmem [shape: f32[2,490], index: 0, kind: input, shape index: {}]
  %s1 = inlined_call_operand.vmem [shape: f32[2,490], index: 1, kind: output, shape index: {}]
  %s2 = sld [smem:[#allocation0]]
  $region14: #{covid_wav2vec_forward.10} parent=0
    _
  %s4 = ssub.s32 1, %s2
  %s5 = scalar_select 0, %s4, %s2
  // Predicated region
  $region2: #{covid_wav2vec_forward.10} parent=0 // pred_check
    _
  $region3: #{covid_wav2vec_forward.10} parent=0 // pred_check_branch
    %7 = sbr.rel (0) target = $region5
  $region4: #{covid_wav2vec_forward.10} parent=0 // pred_region
    _
  $region5: #{covid_wav2vec_forward.10} parent=0 // pred_fallthru
    _
  %v8 = vld [vmem:[%s0] sm:$0xff]
  %v10 = vcombine.high %v8, %v8
  %v12 = vunpack.c.l.s4 1983009808
  %v13 = vunpack.c.0.s8 %v12
  %v14 = vlaneseq
  %v15 = vshrl.u32 %v14, 7
  %v16 = vsub.s32 %v13, %v15
  %v17 = vrot.slane %v8, %v16
  %v19 = vunpack.c.l.s4 1983009808
  %v20 = vunpack.c.0.s8 %v19
  %v21 = vlaneseq
  %v22 = vshrl.u32 %v21, 7
  %v23 = vsub.s32 %v20, %v22
  %v24 = vrot.slane %v10, %v23
  %v25 = vcombine.high %v17, %v17
  %v26 = vcombine.high %v24, %v24
  %vm31 = vcmask 1041408
  %v32 = vsel %vm31, %v17, 0.0
  %v33 = vsel %vm31, %v25, 0.0
  %v34 = vadd.f32 %v32, %v33
  %v35 = vsel %vm31, %v24, 0.0
  %v36 = vadd.f32 %v34, %v35
  %vm37 = vcmask 861184
  %v38 = vsel %vm37, %v26, 0.0
  %v39 = vadd.f32 %v36, %v38
  %40 = vadd.xlane.f32.xlu0 %v39
  %v41 = vpop.xlane.xlu0 %40
  %v42 = vrcp.pop 490.0
  %v43 = vmul.f32 %v41, %v42
  %v46 = vunpack.c.l.s4 269488144
  %v47 = vunpack.c.0.s8 %v46
  %v48 = vlaneseq
  %v49 = vshrl.u32 %v48, 7
  %v50 = vsub.s32 %v47, %v49
  %v51 = vrot.slane %v43, %v50
  %v53 = vsub.f32 %v8, %v51
  %v54 = vmul.f32 %v53, %v53
  %v56 = vcombine.high %v54, %v54
  %v58 = vunpack.c.l.s4 1983009808
  %v59 = vunpack.c.0.s8 %v58
  %v60 = vlaneseq
  %v61 = vshrl.u32 %v60, 7
  %v62 = vsub.s32 %v59, %v61
  %v63 = vrot.slane %v54, %v62
  %v65 = vunpack.c.l.s4 1983009808
  %v66 = vunpack.c.0.s8 %v65
  %v67 = vlaneseq
  %v68 = vshrl.u32 %v67, 7
  %v69 = vsub.s32 %v66, %v68
  %v70 = vrot.slane %v56, %v69
  %v71 = vcombine.high %v63, %v63
  %v72 = vcombine.high %v70, %v70
  %v77 = vsel %vm31, %v63, 0.0
  %v78 = vsel %vm31, %v71, 0.0
  %v79 = vadd.f32 %v77, %v78
  %v80 = vsel %vm31, %v70, 0.0
  %v81 = vadd.f32 %v79, %v80
  %v82 = vsel %vm37, %v72, 0.0
  %v83 = vadd.f32 %v81, %v82
  %84 = vadd.xlane.f32.xlu0 %v83
  %v85 = vpop.xlane.xlu0 %84
  %v86 = vmul.f32 %v85, %v42
  %v87 = vadd.f32 %v86, 1e-07
  %v88 = vrsqrt.pop %v87
  %v91 = vunpack.c.l.s4 269488144
  %v92 = vunpack.c.0.s8 %v91
  %v93 = vlaneseq
  %v94 = vshrl.u32 %v93, 7
  %v95 = vsub.s32 %v92, %v94
  %v96 = vrot.slane %v88, %v95
  %v98 = vmul.f32 %v53, %v96
  %vm99 = vcmask 1043458
  %vm100 = vmor %vm99, %vm31
  %vm101 = vcmask 1045508
  %vm102 = vmor %vm101, %vm100
  %vm103 = vcmask 867334
  %vm104 = vmor %vm103, %vm102
  %105 = vst.msk [vmem:[%s1] sm:$0xff] %vm104, %v98
  // Predicated region
  $region6: #{covid_wav2vec_forward.10} parent=0 // pred_check
    _
  $region7: #{covid_wav2vec_forward.10} parent=0 // pred_check_branch
    %107 = sbr.rel (0) target = $region9
  $region8: #{covid_wav2vec_forward.10} parent=0 // pred_region
    _
  $region9: #{covid_wav2vec_forward.10} parent=0 // pred_fallthru
    _
  // Predicated region
  $region10: #{covid_wav2vec_forward.10} parent=0 // pred_check
    _
  $region11: #{covid_wav2vec_forward.10} parent=0 // pred_check_branch
    %109 = sbr.rel (0) target = $region13
  $region12: #{covid_wav2vec_forward.10} parent=0 // pred_region
    _
  $region13: #{covid_wav2vec_forward.10} parent=0 // pred_fallthru
    _

// kernel: covid_wav2vec_forward.11
$region0: #{covid_wav2vec_forward.11}
  #allocation0 [shape = 'u32[]', space=smem, size = 0x4, offset = 0x4, fixed_abs, tag = 'smem constant byte address 0x4 - core index']
  #allocation1 [shape = 'u32[144,128]{1,0:T(1,128)}', space=vmem, size = 0x12000, scoped, tag = 'internal scratch']
  %s0 = inlined_call_operand.vmem [shape: f32[194,10], index: 0, kind: input, shape index: {}]
  %s1 = inlined_call_operand.vmem [shape: bf16[10,128], index: 1, kind: input, shape index: {}]
  %s2 = inlined_call_operand.vmem [shape: f32[1,128], index: 2, kind: input, shape index: {}]
  %s3 = inlined_call_operand.vmem [shape: f32[194,128], index: 3, kind: output, shape index: {}]
  %s4 = sld [smem:[#allocation0]]
  $region22: #{covid_wav2vec_forward.11} parent=0
    _
  %s6 = ssub.s32 1, %s4
  %s7 = scalar_select 0, %s6, %s4
  // Predicated region
  $region2: #{covid_wav2vec_forward.11} parent=0 // pred_check
    _
  $region3: #{covid_wav2vec_forward.11} parent=0 // pred_check_branch
    %9 = sbr.rel (0) target = $region5
  $region4: #{covid_wav2vec_forward.11} parent=0 // pred_region
    _
  $region5: #{covid_wav2vec_forward.11} parent=0 // pred_fallthru
    _
  // Predicated region
  $region6: #{covid_wav2vec_forward.11} parent=0 // pred_check
    _
  $region7: #{covid_wav2vec_forward.11} parent=0 // pred_check_branch
    %11 = sbr.rel (0) target = $region9
  $region8: #{covid_wav2vec_forward.11} parent=0 // pred_region
    _
  $region9: #{covid_wav2vec_forward.11} parent=0 // pred_fallthru
    _
  // Predicated region
  $region10: #{covid_wav2vec_forward.11} parent=0 // pred_check
    _
  $region11: #{covid_wav2vec_forward.11} parent=0 // pred_check_branch
    %13 = sbr.rel (0) target = $region13
  $region12: #{covid_wav2vec_forward.11} parent=0 // pred_region
    _
  $region13: #{covid_wav2vec_forward.11} parent=0 // pred_fallthru
    _
  %v15 = vld [vmem:[%s0] sm:$0xff]
  %v16 = vld [vmem:[%s0 + $0x8] sm:$0xff]
  %v17 = vld [vmem:[%s0 + $0x10] sm:$0xff]
  %v18 = vld [vmem:[%s0 + $0x18] sm:$0xff]
  %v19 = vld [vmem:[%s0 + $0x20] sm:$0xff]
  %v20 = vld [vmem:[%s0 + $0x28] sm:$0xff]
  %v21 = vld [vmem:[%s0 + $0x30] sm:$0xff]
  %v22 = vld [vmem:[%s0 + $0x38] sm:$0xff]
  %v23 = vld [vmem:[%s0 + $0x40] sm:$0xff]
  %v24 = vld [vmem:[%s0 + $0x48] sm:$0xff]
  %v25 = vld [vmem:[%s0 + $0x50] sm:$0xff]
  %v26 = vld [vmem:[%s0 + $0x58] sm:$0xff]
  %v27 = vld [vmem:[%s0 + $0x60] sm:$0xff]
  %v28 = vld [vmem:[%s0 + $0x68] sm:$0xff]
  %v29 = vld [vmem:[%s0 + $0x70] sm:$0xff]
  %v30 = vld [vmem:[%s0 + $0x78] sm:$0xff]
  %v31 = vld [vmem:[%s0 + $0x80] sm:$0xff]
  %v32 = vld [vmem:[%s0 + $0x88] sm:$0xff]
  %v33 = vld [vmem:[%s0 + $0x90] sm:$0xff]
  %v34 = vld [vmem:[%s0 + $0x98] sm:$0xff]
  %v35 = vld [vmem:[%s0 + $0xa0] sm:$0xff]
  %v36 = vld [vmem:[%s0 + $0xa8] sm:$0xff]
  %v37 = vld [vmem:[%s0 + $0xb0] sm:$0xff]
  %v38 = vld [vmem:[%s0 + $0xb8] sm:$0xff]
  %v39 = vld [vmem:[%s0 + $0xc0] sm:$0x3]
  %v40 = vld [vmem:[%s1] sm:$0xf]
  %v41 = vld [vmem:[%s1 + $0x4] sm:$0x1]
  %v42 = vpack.c.bf16 %v16, %v15
  %v43 = vpack.c.bf16 %v18, %v17
  %v44 = vpack.c.bf16 %v20, %v19
  %v45 = vpack.c.bf16 %v22, %v21
  %v46 = vpack.c.bf16 %v24, %v23
  %v47 = vpack.c.bf16 %v26, %v25
  %v48 = vpack.c.bf16 %v28, %v27
  %v49 = vpack.c.bf16 %v30, %v29
  %v50 = vpack.c.bf16 %v32, %v31
  %v51 = vpack.c.bf16 %v34, %v33
  %v52 = vpack.c.bf16 %v36, %v35
  %v53 = vpack.c.bf16 %v38, %v37
  %v54 = vpack.c.bf16 %v39, %v39
  %v55 = vld [vmem:[%s2] sm:$0x1]
  %v57 = vlaneseq
  %v58 = vshrl.u32 %v57, 7
  %v59 = vsub.s32 0, %v58
  %v60 = vrot.slane %v55, %v59
  %v64 = vunpack.c.l.b16 %v40
  %v65 = vunpack.c.l.b16 %v41
  %v66 = vpack.c.b16 %v65, %v64
  %vm67 = vcmask 80896
  %v69 = vsel %vm67, %v42, 0
  %v72 = vsel %vm67, %v43, 0
  %v75 = vsel %vm67, %v44, 0
  %v78 = vsel %vm67, %v45, 0
  %v81 = vsel %vm67, %v46, 0
  %v84 = vsel %vm67, %v47, 0
  %v87 = vsel %vm67, %v48, 0
  %v90 = vsel %vm67, %v49, 0
  %v93 = vsel %vm67, %v50, 0
  %v96 = vsel %vm67, %v51, 0
  %v99 = vsel %vm67, %v52, 0
  %v102 = vsel %vm67, %v53, 0
  %v105 = vsel %vm67, %v54, 0
  %vm107 = vcmask 1044480
  %v109 = vsel %vm107, %v66, 0
  %111 = vmatprep.subr.bf16.mxu0 0
  %112 = vmatpush1.bf16.msra.mxu0 %v109
  %113 = vmatprep.subr.bf16.mxu0 0
  %114 = vmatpush1.bf16.msra.mxu0 0
  %115 = vmatprep.subr.bf16.mxu0 0
  %116 = vmatpush1.bf16.msra.mxu0 0
  %117 = vmatprep.subr.bf16.mxu0 0
  %118 = vmatpush1.bf16.msra.mxu0 0
  %119 = vmatprep.subr.bf16.mxu0 0
  %120 = vmatpush1.bf16.msra.mxu0 0
  %121 = vmatprep.subr.bf16.mxu0 0
  %122 = vmatpush1.bf16.msra.mxu0 0
  %123 = vmatprep.subr.bf16.mxu0 0
  %124 = vmatpush1.bf16.msra.mxu0 0
  %125 = vmatprep.subr.bf16.mxu0 0
  %126 = vmatpush1.bf16.msra.mxu0 0
  %127 = vmatprep.subr.bf16.mxu0 0
  %128 = vmatpush1.bf16.msra.mxu0 0
  %129 = vmatprep.subr.bf16.mxu0 0
  %130 = vmatpush1.bf16.msra.mxu0 0
  %131 = vmatprep.subr.bf16.mxu0 0
  %132 = vmatpush1.bf16.msra.mxu0 0
  %133 = vmatprep.subr.bf16.mxu0 0
  %134 = vmatpush1.bf16.msra.mxu0 0
  %135 = vmatprep.subr.bf16.mxu0 0
  %136 = vmatpush1.bf16.msra.mxu0 0
  %137 = vmatprep.subr.bf16.mxu0 0
  %138 = vmatpush1.bf16.msra.mxu0 0
  %139 = vmatprep.subr.bf16.mxu0 0
  %140 = vmatpush1.bf16.msra.mxu0 0
  %141 = vmatprep.subr.bf16.mxu0 0
  %142 = vmatpush1.bf16.msra.mxu0 0
  %143 = vmatprep.mubr.bf16.mxu0 0
  %144 = vmatmul.mubr.bf16.gmra.mrb[0].mxu0 %v69
  %v145 = vpop.f32.mrb[0].mxu0
  %v146 = vadd.f32 %v60, %v145
  %v147 = vpop.f32.mrb[0].mxu0
  %v148 = vpop.f32.mrb[0].mxu0
  %v149 = vadd.f32 %v60, %v148
  %v150 = vpop.f32.mrb[0].mxu0
  %151 = vmatprep.mubr.bf16.mxu0 0
  %152 = vmatmul.mubr.bf16.gmra.mrb[0].mxu0 %v72
  %v153 = vpop.f32.mrb[0].mxu0
  %v154 = vadd.f32 %v60, %v153
  %v155 = vpop.f32.mrb[0].mxu0
  %v156 = vpop.f32.mrb[0].mxu0
  %v157 = vadd.f32 %v60, %v156
  %v158 = vpop.f32.mrb[0].mxu0
  %159 = vmatprep.mubr.bf16.mxu0 0
  %160 = vmatmul.mubr.bf16.gmra.mrb[0].mxu0 %v75
  %v161 = vpop.f32.mrb[0].mxu0
  %v162 = vadd.f32 %v60, %v161
  %v163 = vpop.f32.mrb[0].mxu0
  %v164 = vpop.f32.mrb[0].mxu0
  %v165 = vadd.f32 %v60, %v164
  %v166 = vpop.f32.mrb[0].mxu0
  %167 = vmatprep.mubr.bf16.mxu0 0
  %168 = vmatmul.mubr.bf16.gmra.mrb[0].mxu0 %v78
  %v169 = vpop.f32.mrb[0].mxu0
  %v170 = vadd.f32 %v60, %v169
  %v171 = vpop.f32.mrb[0].mxu0
  %v172 = vpop.f32.mrb[0].mxu0
  %v173 = vadd.f32 %v60, %v172
  %v174 = vpop.f32.mrb[0].mxu0
  %175 = vmatprep.mubr.bf16.mxu0 0
  %176 = vmatmul.mubr.bf16.gmra.mrb[0].mxu0 %v81
  %v177 = vpop.f32.mrb[0].mxu0
  %v178 = vadd.f32 %v60, %v177
  %v179 = vpop.f32.mrb[0].mxu0
  %v180 = vpop.f32.mrb[0].mxu0
  %v181 = vadd.f32 %v60, %v180
  %v182 = vpop.f32.mrb[0].mxu0
  %183 = vmatprep.mubr.bf16.mxu0 0
  %184 = vmatmul.mubr.bf16.gmra.mrb[0].mxu0 %v84
  %v185 = vpop.f32.mrb[0].mxu0
  %v186 = vadd.f32 %v60, %v185
  %v187 = vpop.f32.mrb[0].mxu0
  %v188 = vpop.f32.mrb[0].mxu0
  %v189 = vadd.f32 %v60, %v188
  %v190 = vpop.f32.mrb[0].mxu0
  %191 = vmatprep.mubr.bf16.mxu0 0
  %192 = vmatmul.mubr.bf16.gmra.mrb[0].mxu0 %v87
  %v193 = vpop.f32.mrb[0].mxu0
  %v194 = vadd.f32 %v60, %v193
  %v195 = vpop.f32.mrb[0].mxu0
  %v196 = vpop.f32.mrb[0].mxu0
  %v197 = vadd.f32 %v60, %v196
  %v198 = vpop.f32.mrb[0].mxu0
  %199 = vmatprep.mubr.bf16.mxu0 0
  %200 = vmatmul.mubr.bf16.gmra.mrb[0].mxu0 %v90
  %v201 = vpop.f32.mrb[0].mxu0
  %v202 = vadd.f32 %v60, %v201
  %v203 = vpop.f32.mrb[0].mxu0
  %v204 = vpop.f32.mrb[0].mxu0
  %v205 = vadd.f32 %v60, %v204
  %v206 = vpop.f32.mrb[0].mxu0
  %207 = vmatprep.mubr.bf16.mxu0 0
  %208 = vmatmul.mubr.bf16.gmra.mrb[0].mxu0 %v93
  %v209 = vpop.f32.mrb[0].mxu0
  %v210 = vadd.f32 %v60, %v209
  %v211 = vpop.f32.mrb[0].mxu0
  %v212 = vpop.f32.mrb[0].mxu0
  %v213 = vadd.f32 %v60, %v212
  %v214 = vpop.f32.mrb[0].mxu0
  %215 = vmatprep.mubr.bf16.mxu0 0
  %216 = vmatmul.mubr.bf16.gmra.mrb[0].mxu0 %v96
  %v217 = vpop.f32.mrb[0].mxu0
  %v218 = vadd.f32 %v60, %v217
  %v219 = vpop.f32.mrb[0].mxu0
  %v220 = vpop.f32.mrb[0].mxu0
  %v221 = vadd.f32 %v60, %v220
  %v222 = vpop.f32.mrb[0].mxu0
  %223 = vmatprep.mubr.bf16.mxu0 0
  %224 = vmatmul.mubr.bf16.gmra.mrb[0].mxu0 %v99
  %v225 = vpop.f32.mrb[0].mxu0
  %v226 = vadd.f32 %v60, %v225
  %v227 = vpop.f32.mrb[0].mxu0
  %v228 = vpop.f32.mrb[0].mxu0
  %v229 = vadd.f32 %v60, %v228
  %v230 = vpop.f32.mrb[0].mxu0
  %231 = vmatprep.mubr.bf16.mxu0 0
  %232 = vmatmul.mubr.bf16.gmra.mrb[0].mxu0 %v102
  %v233 = vpop.f32.mrb[0].mxu0
  %v234 = vadd.f32 %v60, %v233
  %v235 = vpop.f32.mrb[0].mxu0
  %v236 = vpop.f32.mrb[0].mxu0
  %v237 = vadd.f32 %v60, %v236
  %v238 = vpop.f32.mrb[0].mxu0
  %239 = vmatprep.mubr.bf16.mxu0 0
  %240 = vmatmul.mubr.bf16.gmra.mrb[0].mxu0 %v105
  %v241 = vpop.f32.mrb[0].mxu0
  %v242 = vadd.f32 %v60, %v241
  %v243 = vpop.f32.mrb[0].mxu0
  %v244 = vpop.f32.mrb[0].mxu0
  %v245 = vpop.f32.mrb[0].mxu0
  %246 = vdwg.mxu0
  %247 = vst [vmem:[%s3] sm:$0xff] %v146
  %248 = vst [vmem:[%s3 + $0x8] sm:$0xff] %v149
  %249 = vst [vmem:[%s3 + $0x10] sm:$0xff] %v154
  %250 = vst [vmem:[%s3 + $0x18] sm:$0xff] %v157
  %251 = vst [vmem:[%s3 + $0x20] sm:$0xff] %v162
  %252 = vst [vmem:[%s3 + $0x28] sm:$0xff] %v165
  %253 = vst [vmem:[%s3 + $0x30] sm:$0xff] %v170
  %254 = vst [vmem:[%s3 + $0x38] sm:$0xff] %v173
  %255 = vst [vmem:[%s3 + $0x40] sm:$0xff] %v178
  %256 = vst [vmem:[%s3 + $0x48] sm:$0xff] %v181
  %257 = vst [vmem:[%s3 + $0x50] sm:$0xff] %v186
  %258 = vst [vmem:[%s3 + $0x58] sm:$0xff] %v189
  %259 = vst [vmem:[%s3 + $0x60] sm:$0xff] %v194
  %260 = vst [vmem:[%s3 + $0x68] sm:$0xff] %v197
  %261 = vst [vmem:[%s3 + $0x70] sm:$0xff] %v202
  %262 = vst [vmem:[%s3 + $0x78] sm:$0xff] %v205
  %263 = vst [vmem:[%s3 + $0x80] sm:$0xff] %v210
  %264 = vst [vmem:[%s3 + $0x88] sm:$0xff] %v213
  %265 = vst [vmem:[%s3 + $0x90] sm:$0xff] %v218
  %266 = vst [vmem:[%s3 + $0x98] sm:$0xff] %v221
  %267 = vst [vmem:[%s3 + $0xa0] sm:$0xff] %v226
  %268 = vst [vmem:[%s3 + $0xa8] sm:$0xff] %v229
  %269 = vst [vmem:[%s3 + $0xb0] sm:$0xff] %v234
  %270 = vst [vmem:[%s3 + $0xb8] sm:$0xff] %v237
  %271 = vst [vmem:[%s3 + $0xc0] sm:$0x3] %v242
  // Predicated region
  $region14: #{covid_wav2vec_forward.11} parent=0 // pred_check
    _
  $region15: #{covid_wav2vec_forward.11} parent=0 // pred_check_branch
    %273 = sbr.rel (0) target = $region17
  $region16: #{covid_wav2vec_forward.11} parent=0 // pred_region
    _
  $region17: #{covid_wav2vec_forward.11} parent=0 // pred_fallthru
    _
  // Predicated region
  $region18: #{covid_wav2vec_forward.11} parent=0 // pred_check
    _
  $region19: #{covid_wav2vec_forward.11} parent=0 // pred_check_branch
    %275 = sbr.rel (0) target = $region21
  $region20: #{covid_wav2vec_forward.11} parent=0 // pred_region
    _
  $region21: #{covid_wav2vec_forward.11} parent=0 // pred_fallthru
    _

// kernel: covid_wav2vec_forward.12
$region0: #{covid_wav2vec_forward.12}
  #allocation0 [shape = 'u32[]', space=smem, size = 0x4, offset = 0x4, fixed_abs, tag = 'smem constant byte address 0x4 - core index']
  #allocation1 [shape = 'u32[144,128]{1,0:T(1,128)}', space=vmem, size = 0x12000, scoped, tag = 'internal scratch']
  %s0 = inlined_call_operand.vmem [shape: f32[2,97,128], index: 0, kind: input, shape index: {}]
  %s1 = inlined_call_operand.vmem [shape: f32[1,128], index: 1, kind: input, shape index: {}]
  %s2 = inlined_call_operand.vmem [shape: f32[1,128], index: 2, kind: input, shape index: {}]
  %s3 = inlined_call_operand.vmem [shape: f32[2,97,128], index: 3, kind: output, shape index: {}]
  %s4 = sld [smem:[#allocation0]]
  $region45: #{covid_wav2vec_forward.12} parent=0
    _
  %s6 = ssub.s32 1, %s4
  %s7 = scalar_select 0, %s6, %s4
  loop: start=0, step=1, limit=4
  $region2: #{covid_wav2vec_forward.12} parent=0 // loop_pre_header
    _
  $region3: #{covid_wav2vec_forward.12} parent=0 // loop_header
    %s9 = sphi 0, %s13
    %p10 = scmp.ge.s32.totalorder %s9, 4
    %s19 = sphi 0, %s21
    %s22 = sphi 0, %s19
    %s23 = sphi 0, %s22
    %s39 = sphi 0, %s23
    %s43 = sphi 0, %s43
    %s45 = sphi 0, %s43
    %s46 = sphi 0, %s45
    %s60 = sphi 0, %s46
    %s64 = sphi 0, %s64
    %s66 = sphi 0, %s64
    %s67 = sphi 0, %s66
    %s81 = sphi 0, %s67
    %s87 = sphi 0, %s89
    %s90 = sphi 0, %s87
    %s91 = sphi 0, %s90
    %s107 = sphi 0, %s91
  $region4: #{covid_wav2vec_forward.12} parent=0 // loop_header_branch
    %12 = sbr.rel (%p10) target = $region8
  $region5: #{covid_wav2vec_forward.12} parent=0 // loop_body
    %s14 = ssub.s32 %s9, 1
    %s15 = ssub.s32 %s9, 2
    %s16 = sadd.s32 %s9, 1
    %s17 = ssub.s32 %s9, %s16
    %p18 = scmp.eq.s32.totalorder %s17, 0
    %s20 = sadd.s32 %s19, 1
    %s21 = scalar_select %p18, %s19, %s20
    %p24 = pneg %p18
    %p25 = scmp.eq.s32.totalorder %s9, 1
    %p26 = por %p24, %p25
    %p27 = scmp.ne.s32.totalorder %s19, %s22
    %p28 = scmp.eq.s32.totalorder %s9, 0
    %p29 = por %p27, %p28
    %p30 = scmp.ne.s32.totalorder %s19, %s22
    %p31 = scmp.eq.s32.totalorder %s14, 1
    %p32 = por %p30, %p31
    %p33 = scmp.ne.s32.totalorder %s22, %s23
    %p34 = scmp.eq.s32.totalorder %s14, 0
    %p35 = por %p33, %p34
    %p36 = scmp.ne.s32.totalorder %s22, %s23
    %p37 = scmp.eq.s32.totalorder %s15, 1
    %p38 = por %p36, %p37
    %p40 = scmp.ne.s32.totalorder %s23, %s39
    %p41 = scmp.eq.s32.totalorder %s15, 0
    %p42 = por %p40, %p41
    %s44 = sadd.s32 %s43, 1
    %p47 = scmp.eq.s32.totalorder %s9, 1
    %p48 = scmp.ne.s32.totalorder %s43, %s45
    %p49 = scmp.eq.s32.totalorder %s9, 0
    %p50 = por %p48, %p49
    %p51 = scmp.ne.s32.totalorder %s43, %s45
    %p52 = scmp.eq.s32.totalorder %s14, 1
    %p53 = por %p51, %p52
    %p54 = scmp.ne.s32.totalorder %s45, %s46
    %p55 = scmp.eq.s32.totalorder %s14, 0
    %p56 = por %p54, %p55
    %p57 = scmp.ne.s32.totalorder %s45, %s46
    %p58 = scmp.eq.s32.totalorder %s15, 1
    %p59 = por %p57, %p58
    %p61 = scmp.ne.s32.totalorder %s46, %s60
    %p62 = scmp.eq.s32.totalorder %s15, 0
    %p63 = por %p61, %p62
    %s65 = sadd.s32 %s64, 1
    %p68 = scmp.eq.s32.totalorder %s9, 1
    %p69 = scmp.ne.s32.totalorder %s64, %s66
    %p70 = scmp.eq.s32.totalorder %s9, 0
    %p71 = por %p69, %p70
    %p72 = scmp.ne.s32.totalorder %s64, %s66
    %p73 = scmp.eq.s32.totalorder %s14, 1
    %p74 = por %p72, %p73
    %p75 = scmp.ne.s32.totalorder %s66, %s67
    %p76 = scmp.eq.s32.totalorder %s14, 0
    %p77 = por %p75, %p76
    %p78 = scmp.ne.s32.totalorder %s66, %s67
    %p79 = scmp.eq.s32.totalorder %s15, 1
    %p80 = por %p78, %p79
    %p82 = scmp.ne.s32.totalorder %s67, %s81
    %p83 = scmp.eq.s32.totalorder %s15, 0
    %p84 = por %p82, %p83
    %s85 = ssub.s32 %s9, %s16
    %p86 = scmp.eq.s32.totalorder %s85, 0
    %s88 = sadd.s32 %s87, 1
    %s89 = scalar_select %p86, %s87, %s88
    %p92 = pneg %p86
    %p93 = scmp.eq.s32.totalorder %s9, 1
    %p94 = por %p92, %p93
    %p95 = scmp.ne.s32.totalorder %s87, %s90
    %p96 = scmp.eq.s32.totalorder %s9, 0
    %p97 = por %p95, %p96
    %p98 = scmp.ne.s32.totalorder %s87, %s90
    %p99 = scmp.eq.s32.totalorder %s14, 1
    %p100 = por %p98, %p99
    %p101 = scmp.ne.s32.totalorder %s90, %s91
    %p102 = scmp.eq.s32.totalorder %s14, 0
    %p103 = por %p101, %p102
    %p104 = scmp.ne.s32.totalorder %s90, %s91
    %p105 = scmp.eq.s32.totalorder %s15, 1
    %p106 = por %p104, %p105
    %p108 = scmp.ne.s32.totalorder %s91, %s107
    %p109 = scmp.eq.s32.totalorder %s15, 0
    %p110 = por %p108, %p109
    %p111 = scmp.le.s32.totalorder 1, %s9
    %p112 = scmp.lt.s32.totalorder %s9, 3
    %p113 = pnand %p111, %p112
    %p114 = pneg %p113
    // Predicated region
    $region9: #{covid_wav2vec_forward.12} parent=5 // pred_check
      _
    $region10: #{covid_wav2vec_forward.12} parent=5 // pred_check_branch
      %116 = sbr.rel (%p113) target = $region12
    $region11: #{covid_wav2vec_forward.12} parent=5 // pred_region
      %s117 = ssub.s32 %s9, 1
      // Predicated region
      $region13: #{covid_wav2vec_forward.12} parent=11 // pred_check
        %p118 = pneg %p56
      $region14: #{covid_wav2vec_forward.12} parent=11 // pred_check_branch
        %120 = sbr.rel (%p118) target = $region16
      $region15: #{covid_wav2vec_forward.12} parent=11 // pred_region
        _
      $region16: #{covid_wav2vec_forward.12} parent=11 // pred_fallthru
        _
      // Predicated region
      $region17: #{covid_wav2vec_forward.12} parent=11 // pred_check
        %p121 = pneg %p77
      $region18: #{covid_wav2vec_forward.12} parent=11 // pred_check_branch
        %123 = sbr.rel (%p121) target = $region20
      $region19: #{covid_wav2vec_forward.12} parent=11 // pred_region
        _
      $region20: #{covid_wav2vec_forward.12} parent=11 // pred_fallthru
        _
    $region12: #{covid_wav2vec_forward.12} parent=5 // pred_fallthru
      _
    %p124 = scmp.lt.s32.totalorder %s9, 2
    // Predicated region
    $region21: #{covid_wav2vec_forward.12} parent=5 // pred_check
      %p125 = pneg %p124
    $region22: #{covid_wav2vec_forward.12} parent=5 // pred_check_branch
      %127 = sbr.rel (%p125) target = $region24
    $region23: #{covid_wav2vec_forward.12} parent=5 // pred_region
      // Predicated region
      $region25: #{covid_wav2vec_forward.12} parent=23 // pred_check
        %p128 = pneg %p29
      $region26: #{covid_wav2vec_forward.12} parent=23 // pred_check_branch
        %130 = sbr.rel (%p128) target = $region28
      $region27: #{covid_wav2vec_forward.12} parent=23 // pred_region
        %p131 = scmp.lt.s32.totalorder %s9, 1
        %s132 = scalar_select %p131, %s9, 1
        %s133 = smul.addr %s132, 13
        %s134 = smul.addr %s133, 8
        %s135 = scalar_lea.vmem %s0, %s134
      $region28: #{covid_wav2vec_forward.12} parent=23 // pred_fallthru
        _
    $region24: #{covid_wav2vec_forward.12} parent=5 // pred_fallthru
      _
    %p136 = scmp.le.s32.totalorder 1, %s9
    %p137 = scmp.lt.s32.totalorder %s9, 3
    %p138 = pnand %p136, %p137
    %p139 = pneg %p138
    // Predicated region
    $region29: #{covid_wav2vec_forward.12} parent=5 // pred_check
      _
    $region30: #{covid_wav2vec_forward.12} parent=5 // pred_check_branch
      %141 = sbr.rel (%p138) target = $region32
    $region31: #{covid_wav2vec_forward.12} parent=5 // pred_region
      %s142 = ssub.s32 %s9, 1
      %p143 = scmp.lt.s32.totalorder %s14, 1
      %s144 = scalar_select %p143, %s14, 1
      %s145 = smul.addr %s144, 13
      %s146 = smul.addr %s145, 8
      %s147 = scalar_lea.vmem %s0, %s146
      %p148 = pneg %p35
      %p149 = pneg %p32
      %p150 = pneg %p56
      %p151 = pneg %p53
      %p152 = pneg %p77
      %p153 = pneg %p74
      %p154 = pneg %p103
      %p155 = pneg %p100
      %p156 = scmp.lt.s32.totalorder %s14, 1
      %s157 = scalar_select %p156, %s14, 1
      %s158 = smul.addr %s157, 13
      %s159 = smul.addr %s158, 8
      %s160 = scalar_lea.vmem %s3, %s159
      %p161 = scmp.lt.s32.totalorder %s14, 1
      %s162 = scalar_select %p161, %s14, 1
      %s163 = smul.addr %s162, 13
      %s164 = smul.addr %s163, 8
      %s165 = scalar_lea.vmem %s0, %s164
      %p166 = scmp.lt.s32.totalorder %s14, 1
      %s167 = scalar_select %p166, %s14, 1
      %s168 = smul.addr %s167, 13
      %s169 = smul.addr %s168, 8
      %s170 = scalar_lea.vmem %s3, %s169
      %v171 = vld [vmem:[%s165] sm:$0xff]
      %v172 = vld [vmem:[%s165 + $0x8] sm:$0xff]
      %v173 = vld [vmem:[%s165 + $0x10] sm:$0xff]
      %v174 = vld [vmem:[%s165 + $0x18] sm:$0xff]
      %v175 = vld [vmem:[%s165 + $0x20] sm:$0xff]
      %v176 = vld [vmem:[%s165 + $0x28] sm:$0xff]
      %v177 = vld [vmem:[%s165 + $0x30] sm:$0xff]
      %v178 = vld [vmem:[%s165 + $0x38] sm:$0xff]
      %v179 = vld [vmem:[%s165 + $0x40] sm:$0xff]
      %v180 = vld [vmem:[%s165 + $0x48] sm:$0xff]
      %v181 = vld [vmem:[%s165 + $0x50] sm:$0xff]
      %v182 = vld [vmem:[%s165 + $0x58] sm:$0xff]
      %v183 = vld [vmem:[%s165 + $0x60] sm:$0x1]
      %v184 = vadd.f32 %v171, %v172
      %v185 = vadd.f32 %v184, %v173
      %v186 = vadd.f32 %v185, %v174
      %v187 = vadd.f32 %v186, %v175
      %v188 = vadd.f32 %v187, %v176
      %v189 = vadd.f32 %v188, %v177
      %v190 = vadd.f32 %v189, %v178
      %v191 = vadd.f32 %v190, %v179
      %v192 = vadd.f32 %v191, %v180
      %v193 = vadd.f32 %v192, %v181
      %v194 = vadd.f32 %v193, %v182
      %vm195 = vcmask 1040384
      %v196 = vsel %vm195, %v183, 0.0
      %v197 = vadd.f32 %v194, %v196
      %v198 = vrot.slane %v197, 4
      %v199 = vadd.f32 %v197, %v198
      %v200 = vrot.slane %v199, 2
      %v201 = vadd.f32 %v199, %v200
      %v202 = vrot.slane %v201, 1
      %v203 = vadd.f32 %v201, %v202
      %v204 = vrcp.pop 97.0
      %v205 = vmul.f32 %v203, %v204
      %v206 = vsub.f32 %v171, %v205
      %v207 = vsub.f32 %v172, %v205
      %v208 = vsub.f32 %v173, %v205
      %v209 = vsub.f32 %v174, %v205
      %v210 = vsub.f32 %v175, %v205
      %v211 = vsub.f32 %v176, %v205
      %v212 = vsub.f32 %v177, %v205
      %v213 = vsub.f32 %v178, %v205
      %v214 = vsub.f32 %v179, %v205
      %v215 = vsub.f32 %v180, %v205
      %v216 = vsub.f32 %v181, %v205
      %v217 = vsub.f32 %v182, %v205
      %v218 = vsub.f32 %v183, %v205
      %v219 = vmul.f32 %v206, %v206
      %v220 = vmul.f32 %v207, %v207
      %v221 = vmul.f32 %v208, %v208
      %v222 = vmul.f32 %v209, %v209
      %v223 = vmul.f32 %v210, %v210
      %v224 = vmul.f32 %v211, %v211
      %v225 = vmul.f32 %v212, %v212
      %v226 = vmul.f32 %v213, %v213
      %v227 = vmul.f32 %v214, %v214
      %v228 = vmul.f32 %v215, %v215
      %v229 = vmul.f32 %v216, %v216
      %v230 = vmul.f32 %v217, %v217
      %v231 = vmul.f32 %v218, %v218
      %v232 = vadd.f32 %v219, %v220
      %v233 = vadd.f32 %v232, %v221
      %v234 = vadd.f32 %v233, %v222
      %v235 = vadd.f32 %v234, %v223
      %v236 = vadd.f32 %v235, %v224
      %v237 = vadd.f32 %v236, %v225
      %v238 = vadd.f32 %v237, %v226
      %v239 = vadd.f32 %v238, %v227
      %v240 = vadd.f32 %v239, %v228
      %v241 = vadd.f32 %v240, %v229
      %v242 = vadd.f32 %v241, %v230
      %v243 = vsel %vm195, %v231, 0.0
      %v244 = vadd.f32 %v242, %v243
      %v245 = vrot.slane %v244, 4
      %v246 = vadd.f32 %v244, %v245
      %v247 = vrot.slane %v246, 2
      %v248 = vadd.f32 %v246, %v247
      %v249 = vrot.slane %v248, 1
      %v250 = vadd.f32 %v248, %v249
      %v251 = vmul.f32 %v250, %v204
      %v252 = vadd.f32 %v251, 1e-05
      %v253 = vrsqrt.pop %v252
      %v254 = vmul.f32 %v206, %v253
      %v255 = vmul.f32 %v207, %v253
      %v256 = vmul.f32 %v208, %v253
      %v257 = vmul.f32 %v209, %v253
      %v258 = vmul.f32 %v210, %v253
      %v259 = vmul.f32 %v211, %v253
      %v260 = vmul.f32 %v212, %v253
      %v261 = vmul.f32 %v213, %v253
      %v262 = vmul.f32 %v214, %v253
      %v263 = vmul.f32 %v215, %v253
      %v264 = vmul.f32 %v216, %v253
      %v265 = vmul.f32 %v217, %v253
      %v266 = vmul.f32 %v218, %v253
      %v267 = vld [vmem:[%s1] sm:$0x1]
      %v269 = vlaneseq
      %v270 = vshrl.u32 %v269, 7
      %v271 = vsub.s32 0, %v270
      %v272 = vrot.slane %v267, %v271
      %v274 = vmul.f32 %v254, %v272
      %v275 = vmul.f32 %v255, %v272
      %v276 = vmul.f32 %v256, %v272
      %v277 = vmul.f32 %v257, %v272
      %v278 = vmul.f32 %v258, %v272
      %v279 = vmul.f32 %v259, %v272
      %v280 = vmul.f32 %v260, %v272
      %v281 = vmul.f32 %v261, %v272
      %v282 = vmul.f32 %v262, %v272
      %v283 = vmul.f32 %v263, %v272
      %v284 = vmul.f32 %v264, %v272
      %v285 = vmul.f32 %v265, %v272
      %v286 = vmul.f32 %v266, %v272
      %v287 = vld [vmem:[%s2] sm:$0x1]
      %v289 = vlaneseq
      %v290 = vshrl.u32 %v289, 7
      %v291 = vsub.s32 0, %v290
      %v292 = vrot.slane %v287, %v291
      %v294 = vadd.f32 %v274, %v292
      %v295 = vadd.f32 %v275, %v292
      %v296 = vadd.f32 %v276, %v292
      %v297 = vadd.f32 %v277, %v292
      %v298 = vadd.f32 %v278, %v292
      %v299 = vadd.f32 %v279, %v292
      %v300 = vadd.f32 %v280, %v292
      %v301 = vadd.f32 %v281, %v292
      %v302 = vadd.f32 %v282, %v292
      %v303 = vadd.f32 %v283, %v292
      %v304 = vadd.f32 %v284, %v292
      %v305 = vadd.f32 %v285, %v292
      %v306 = vadd.f32 %v286, %v292
      %v307 = vmul.f32 %v294, 0.5
      %v308 = vmul.f32 %v295, 0.5
      %v309 = vmul.f32 %v296, 0.5
      %v310 = vmul.f32 %v297, 0.5
      %v311 = vmul.f32 %v298, 0.5
      %v312 = vmul.f32 %v299, 0.5
      %v313 = vmul.f32 %v300, 0.5
      %v314 = vmul.f32 %v301, 0.5
      %v315 = vmul.f32 %v302, 0.5
      %v316 = vmul.f32 %v303, 0.5
      %v317 = vmul.f32 %v304, 0.5
      %v318 = vmul.f32 %v305, 0.5
      %v319 = vmul.f32 %v306, 0.5
      %v320 = vmul.f32 %v294, 0.044715
      %v321 = vmul.f32 %v295, 0.044715
      %v322 = vmul.f32 %v296, 0.044715
      %v323 = vmul.f32 %v297, 0.044715
      %v324 = vmul.f32 %v298, 0.044715
      %v325 = vmul.f32 %v299, 0.044715
      %v326 = vmul.f32 %v300, 0.044715
      %v327 = vmul.f32 %v301, 0.044715
      %v328 = vmul.f32 %v302, 0.044715
      %v329 = vmul.f32 %v303, 0.044715
      %v330 = vmul.f32 %v304, 0.044715
      %v331 = vmul.f32 %v305, 0.044715
      %v332 = vmul.f32 %v306, 0.044715
      %v333 = vmul.f32 %v320, %v294
      %v334 = vmul.f32 %v321, %v295
      %v335 = vmul.f32 %v322, %v296
      %v336 = vmul.f32 %v323, %v297
      %v337 = vmul.f32 %v324, %v298
      %v338 = vmul.f32 %v325, %v299
      %v339 = vmul.f32 %v326, %v300
      %v340 = vmul.f32 %v327, %v301
      %v341 = vmul.f32 %v328, %v302
      %v342 = vmul.f32 %v329, %v303
      %v343 = vmul.f32 %v330, %v304
      %v344 = vmul.f32 %v331, %v305
      %v345 = vmul.f32 %v332, %v306
      %v346 = vmul.f32 %v333, %v294
      %v347 = vmul.f32 %v334, %v295
      %v348 = vmul.f32 %v335, %v296
      %v349 = vmul.f32 %v336, %v297
      %v350 = vmul.f32 %v337, %v298
      %v351 = vmul.f32 %v338, %v299
      %v352 = vmul.f32 %v339, %v300
      %v353 = vmul.f32 %v340, %v301
      %v354 = vmul.f32 %v341, %v302
      %v355 = vmul.f32 %v342, %v303
      %v356 = vmul.f32 %v343, %v304
      %v357 = vmul.f32 %v344, %v305
      %v358 = vmul.f32 %v345, %v306
      %v359 = vadd.f32 %v294, %v346
      %v360 = vadd.f32 %v295, %v347
      %v361 = vadd.f32 %v296, %v348
      %v362 = vadd.f32 %v297, %v349
      %v363 = vadd.f32 %v298, %v350
      %v364 = vadd.f32 %v299, %v351
      %v365 = vadd.f32 %v300, %v352
      %v366 = vadd.f32 %v301, %v353
      %v367 = vadd.f32 %v302, %v354
      %v368 = vadd.f32 %v303, %v355
      %v369 = vadd.f32 %v304, %v356
      %v370 = vadd.f32 %v305, %v357
      %v371 = vadd.f32 %v306, %v358
      %v372 = vmul.f32 %v359, 0.7978846
      %v373 = vmul.f32 %v360, 0.7978846
      %v374 = vmul.f32 %v361, 0.7978846
      %v375 = vmul.f32 %v362, 0.7978846
      %v376 = vmul.f32 %v363, 0.7978846
      %v377 = vmul.f32 %v364, 0.7978846
      %v378 = vmul.f32 %v365, 0.7978846
      %v379 = vmul.f32 %v366, 0.7978846
      %v380 = vmul.f32 %v367, 0.7978846
      %v381 = vmul.f32 %v368, 0.7978846
      %v382 = vmul.f32 %v369, 0.7978846
      %v383 = vmul.f32 %v370, 0.7978846
      %v384 = vmul.f32 %v371, 0.7978846
      %v385 = vtanh.pop %v372
      %v386 = vtanh.pop %v373
      %v387 = vtanh.pop %v374
      %v388 = vtanh.pop %v375
      %v389 = vtanh.pop %v376
      %v390 = vtanh.pop %v377
      %v391 = vtanh.pop %v378
      %v392 = vtanh.pop %v379
      %v393 = vtanh.pop %v380
      %v394 = vtanh.pop %v381
      %v395 = vtanh.pop %v382
      %v396 = vtanh.pop %v383
      %v397 = vtanh.pop %v384
      %v398 = vadd.f32 %v385, 1.0
      %v399 = vadd.f32 %v386, 1.0
      %v400 = vadd.f32 %v387, 1.0
      %v401 = vadd.f32 %v388, 1.0
      %v402 = vadd.f32 %v389, 1.0
      %v403 = vadd.f32 %v390, 1.0
      %v404 = vadd.f32 %v391, 1.0
      %v405 = vadd.f32 %v392, 1.0
      %v406 = vadd.f32 %v393, 1.0
      %v407 = vadd.f32 %v394, 1.0
      %v408 = vadd.f32 %v395, 1.0
      %v409 = vadd.f32 %v396, 1.0
      %v410 = vadd.f32 %v397, 1.0
      %v411 = vmul.f32 %v307, %v398
      %v412 = vmul.f32 %v308, %v399
      %v413 = vmul.f32 %v309, %v400
      %v414 = vmul.f32 %v310, %v401
      %v415 = vmul.f32 %v311, %v402
      %v416 = vmul.f32 %v312, %v403
      %v417 = vmul.f32 %v313, %v404
      %v418 = vmul.f32 %v314, %v405
      %v419 = vmul.f32 %v315, %v406
      %v420 = vmul.f32 %v316, %v407
      %v421 = vmul.f32 %v317, %v408
      %v422 = vmul.f32 %v318, %v409
      %v423 = vmul.f32 %v319, %v410
      %424 = vst [vmem:[%s170] sm:$0xff] %v411
      %425 = vst [vmem:[%s170 + $0x8] sm:$0xff] %v412
      %426 = vst [vmem:[%s170 + $0x10] sm:$0xff] %v413
      %427 = vst [vmem:[%s170 + $0x18] sm:$0xff] %v414
      %428 = vst [vmem:[%s170 + $0x20] sm:$0xff] %v415
      %429 = vst [vmem:[%s170 + $0x28] sm:$0xff] %v416
      %430 = vst [vmem:[%s170 + $0x30] sm:$0xff] %v417
      %431 = vst [vmem:[%s170 + $0x38] sm:$0xff] %v418
      %432 = vst [vmem:[%s170 + $0x40] sm:$0xff] %v419
      %433 = vst [vmem:[%s170 + $0x48] sm:$0xff] %v420
      %434 = vst [vmem:[%s170 + $0x50] sm:$0xff] %v421
      %435 = vst [vmem:[%s170 + $0x58] sm:$0xff] %v422
      %436 = vst [vmem:[%s170 + $0x60] sm:$0x1] %v423
      %p437 = scmp.lt.s32.totalorder %s14, 1
      %s438 = scalar_select %p437, %s14, 1
      %s439 = smul.addr %s438, 13
      %s440 = smul.addr %s439, 8
      %s441 = scalar_lea.vmem %s3, %s440
      // Predicated region
      $region33: #{covid_wav2vec_forward.12} parent=31 // pred_check
        %p442 = pneg %p100
      $region34: #{covid_wav2vec_forward.12} parent=31 // pred_check_branch
        %444 = sbr.rel (%p442) target = $region36
      $region35: #{covid_wav2vec_forward.12} parent=31 // pred_region
        _
      $region36: #{covid_wav2vec_forward.12} parent=31 // pred_fallthru
        _
    $region32: #{covid_wav2vec_forward.12} parent=5 // pred_fallthru
      _
    %p445 = scmp.le.s32.totalorder 2, %s9
    // Predicated region
    $region37: #{covid_wav2vec_forward.12} parent=5 // pred_check
      %p446 = pneg %p445
    $region38: #{covid_wav2vec_forward.12} parent=5 // pred_check_branch
      %448 = sbr.rel (%p446) target = $region40
    $region39: #{covid_wav2vec_forward.12} parent=5 // pred_region
      %s449 = ssub.s32 %s9, 2
      // Predicated region
      $region41: #{covid_wav2vec_forward.12} parent=39 // pred_check
        %p450 = pneg %p106
      $region42: #{covid_wav2vec_forward.12} parent=39 // pred_check_branch
        %452 = sbr.rel (%p450) target = $region44
      $region43: #{covid_wav2vec_forward.12} parent=39 // pred_region
        %p453 = scmp.lt.s32.totalorder %s15, 1
        %s454 = scalar_select %p453, %s15, 1
        %s455 = smul.addr %s454, 13
        %s456 = smul.addr %s455, 8
        %s457 = scalar_lea.vmem %s3, %s456
      $region44: #{covid_wav2vec_forward.12} parent=39 // pred_fallthru
        _
    $region40: #{covid_wav2vec_forward.12} parent=5 // pred_fallthru
      _
  $region6: #{covid_wav2vec_forward.12} parent=0 // loop_footer
    %s13 = sadd.s32 1, %s9
  $region7: #{covid_wav2vec_forward.12} parent=0 // loop_footer_branch
    %8 = sbr.rel target = $region3
  $region8: #{covid_wav2vec_forward.12} parent=0 // loop_exit
    _

// kernel: covid_wav2vec_forward.13
$region0: #{covid_wav2vec_forward.13}
  #allocation0 [shape = 'u32[]', space=smem, size = 0x4, offset = 0x4, fixed_abs, tag = 'smem constant byte address 0x4 - core index']
  #allocation1 [shape = 'u32[144,128]{1,0:T(1,128)}', space=vmem, size = 0x12000, scoped, tag = 'internal scratch']
  %s0 = inlined_call_operand.vmem [shape: f32[96,384], index: 0, kind: input, shape index: {}]
  %s1 = inlined_call_operand.vmem [shape: bf16[384,128], index: 1, kind: input, shape index: {}]
  %s2 = inlined_call_operand.vmem [shape: f32[1,128], index: 2, kind: input, shape index: {}]
  %s3 = inlined_call_operand.vmem [shape: f32[96,128], index: 3, kind: output, shape index: {}]
  %s4 = sld [smem:[#allocation0]]
  $region22: #{covid_wav2vec_forward.13} parent=0
    _
  %s6 = ssub.s32 1, %s4
  %s7 = scalar_select 0, %s6, %s4
  // Predicated region
  $region2: #{covid_wav2vec_forward.13} parent=0 // pred_check
    _
  $region3: #{covid_wav2vec_forward.13} parent=0 // pred_check_branch
    %9 = sbr.rel (0) target = $region5
  $region4: #{covid_wav2vec_forward.13} parent=0 // pred_region
    _
  $region5: #{covid_wav2vec_forward.13} parent=0 // pred_fallthru
    _
  // Predicated region
  $region6: #{covid_wav2vec_forward.13} parent=0 // pred_check
    _
  $region7: #{covid_wav2vec_forward.13} parent=0 // pred_check_branch
    %11 = sbr.rel (0) target = $region9
  $region8: #{covid_wav2vec_forward.13} parent=0 // pred_region
    _
  $region9: #{covid_wav2vec_forward.13} parent=0 // pred_fallthru
    _
  // Predicated region
  $region10: #{covid_wav2vec_forward.13} parent=0 // pred_check
    _
  $region11: #{covid_wav2vec_forward.13} parent=0 // pred_check_branch
    %13 = sbr.rel (0) target = $region13
  $region12: #{covid_wav2vec_forward.13} parent=0 // pred_region
    _
  $region13: #{covid_wav2vec_forward.13} parent=0 // pred_fallthru
    _
  %v15 = vld [vmem:[%s0] sm:$0xff]
  %v16 = vld [vmem:[%s0 + $0x8] sm:$0xff]
  %v17 = vld [vmem:[%s0 + $0x10] sm:$0xff]
  %v18 = vld [vmem:[%s0 + $0x18] sm:$0xff]
  %v19 = vld [vmem:[%s0 + $0x20] sm:$0xff]
  %v20 = vld [vmem:[%s0 + $0x28] sm:$0xff]
  %v21 = vld [vmem:[%s0 + $0x30] sm:$0xff]
  %v22 = vld [vmem:[%s0 + $0x38] sm:$0xff]
  %v23 = vld [vmem:[%s0 + $0x40] sm:$0xff]
  %v24 = vld [vmem:[%s0 + $0x48] sm:$0xff]
  %v25 = vld [vmem:[%s0 + $0x50] sm:$0xff]
  %v26 = vld [vmem:[%s0 + $0x58] sm:$0xff]
  %v27 = vld [vmem:[%s0 + $0x60] sm:$0xff]
  %v28 = vld [vmem:[%s0 + $0x68] sm:$0xff]
  %v29 = vld [vmem:[%s0 + $0x70] sm:$0xff]
  %v30 = vld [vmem:[%s0 + $0x78] sm:$0xff]
  %v31 = vld [vmem:[%s0 + $0x80] sm:$0xff]
  %v32 = vld [vmem:[%s0 + $0x88] sm:$0xff]
  %v33 = vld [vmem:[%s0 + $0x90] sm:$0xff]
  %v34 = vld [vmem:[%s0 + $0x98] sm:$0xff]
  %v35 = vld [vmem:[%s0 + $0xa0] sm:$0xff]
  %v36 = vld [vmem:[%s0 + $0xa8] sm:$0xff]
  %v37 = vld [vmem:[%s0 + $0xb0] sm:$0xff]
  %v38 = vld [vmem:[%s0 + $0xb8] sm:$0xff]
  %v39 = vld [vmem:[%s0 + $0xc0] sm:$0xff]
  %v40 = vld [vmem:[%s0 + $0xc8] sm:$0xff]
  %v41 = vld [vmem:[%s0 + $0xd0] sm:$0xff]
  %v42 = vld [vmem:[%s0 + $0xd8] sm:$0xff]
  %v43 = vld [vmem:[%s0 + $0xe0] sm:$0xff]
  %v44 = vld [vmem:[%s0 + $0xe8] sm:$0xff]
  %v45 = vld [vmem:[%s0 + $0xf0] sm:$0xff]
  %v46 = vld [vmem:[%s0 + $0xf8] sm:$0xff]
  %v47 = vld [vmem:[%s0 + $0x100] sm:$0xff]
  %v48 = vld [vmem:[%s0 + $0x108] sm:$0xff]
  %v49 = vld [vmem:[%s0 + $0x110] sm:$0xff]
  %v50 = vld [vmem:[%s0 + $0x118] sm:$0xff]
  %v51 = vld [vmem:[%s1] sm:$0xf]
  %v52 = vld [vmem:[%s1 + $0x4] sm:$0xf]
  %v53 = vld [vmem:[%s1 + $0x8] sm:$0xf]
  %v54 = vld [vmem:[%s1 + $0xc] sm:$0xf]
  %v55 = vld [vmem:[%s1 + $0x10] sm:$0xf]
  %v56 = vld [vmem:[%s1 + $0x14] sm:$0xf]
  %v57 = vld [vmem:[%s1 + $0x18] sm:$0xf]
  %v58 = vld [vmem:[%s1 + $0x1c] sm:$0xf]
  %v59 = vld [vmem:[%s1 + $0x20] sm:$0xf]
  %v60 = vld [vmem:[%s1 + $0x24] sm:$0xf]
  %v61 = vld [vmem:[%s1 + $0x28] sm:$0xf]
  %v62 = vld [vmem:[%s1 + $0x2c] sm:$0xf]
  %v63 = vld [vmem:[%s1 + $0x30] sm:$0xf]
  %v64 = vld [vmem:[%s1 + $0x34] sm:$0xf]
  %v65 = vld [vmem:[%s1 + $0x38] sm:$0xf]
  %v66 = vld [vmem:[%s1 + $0x3c] sm:$0xf]
  %v67 = vld [vmem:[%s1 + $0x40] sm:$0xf]
  %v68 = vld [vmem:[%s1 + $0x44] sm:$0xf]
  %v69 = vld [vmem:[%s1 + $0x48] sm:$0xf]
  %v70 = vld [vmem:[%s1 + $0x4c] sm:$0xf]
  %v71 = vld [vmem:[%s1 + $0x50] sm:$0xf]
  %v72 = vld [vmem:[%s1 + $0x54] sm:$0xf]
  %v73 = vld [vmem:[%s1 + $0x58] sm:$0xf]
  %v74 = vld [vmem:[%s1 + $0x5c] sm:$0xf]
  %v75 = vld [vmem:[%s1 + $0x60] sm:$0xf]
  %v76 = vld [vmem:[%s1 + $0x64] sm:$0xf]
  %v77 = vld [vmem:[%s1 + $0x68] sm:$0xf]
  %v78 = vld [vmem:[%s1 + $0x6c] sm:$0xf]
  %v79 = vld [vmem:[%s1 + $0x70] sm:$0xf]
  %v80 = vld [vmem:[%s1 + $0x74] sm:$0xf]
  %v81 = vld [vmem:[%s1 + $0x78] sm:$0xf]
  %v82 = vld [vmem:[%s1 + $0x7c] sm:$0xf]
  %v83 = vld [vmem:[%s1 + $0x80] sm:$0xf]
  %v84 = vld [vmem:[%s1 + $0x84] sm:$0xf]
  %v85 = vld [vmem:[%s1 + $0x88] sm:$0xf]
  %v86 = vld [vmem:[%s1 + $0x8c] sm:$0xf]
  %v87 = vld [vmem:[%s1 + $0x90] sm:$0xf]
  %v88 = vld [vmem:[%s1 + $0x94] sm:$0xf]
  %v89 = vld [vmem:[%s1 + $0x98] sm:$0xf]
  %v90 = vld [vmem:[%s1 + $0x9c] sm:$0xf]
  %v91 = vld [vmem:[%s1 + $0xa0] sm:$0xf]
  %v92 = vld [vmem:[%s1 + $0xa4] sm:$0xf]
  %v93 = vld [vmem:[%s1 + $0xa8] sm:$0xf]
  %v94 = vld [vmem:[%s1 + $0xac] sm:$0xf]
  %v95 = vld [vmem:[%s1 + $0xb0] sm:$0xf]
  %v96 = vld [vmem:[%s1 + $0xb4] sm:$0xf]
  %v97 = vld [vmem:[%s1 + $0xb8] sm:$0xf]
  %v98 = vld [vmem:[%s1 + $0xbc] sm:$0xf]
  %v99 = vpack.c.bf16 %v18, %v15
  %v100 = vpack.c.bf16 %v19, %v16
  %v101 = vpack.c.bf16 %v20, %v17
  %v102 = vpack.c.bf16 %v24, %v21
  %v103 = vpack.c.bf16 %v25, %v22
  %v104 = vpack.c.bf16 %v26, %v23
  %v105 = vpack.c.bf16 %v30, %v27
  %v106 = vpack.c.bf16 %v31, %v28
  %v107 = vpack.c.bf16 %v32, %v29
  %v108 = vpack.c.bf16 %v36, %v33
  %v109 = vpack.c.bf16 %v37, %v34
  %v110 = vpack.c.bf16 %v38, %v35
  %v111 = vpack.c.bf16 %v42, %v39
  %v112 = vpack.c.bf16 %v43, %v40
  %v113 = vpack.c.bf16 %v44, %v41
  %v114 = vpack.c.bf16 %v48, %v45
  %v115 = vpack.c.bf16 %v49, %v46
  %v116 = vpack.c.bf16 %v50, %v47
  %v117 = vld [vmem:[%s2] sm:$0x1]
  %v119 = vlaneseq
  %v120 = vshrl.u32 %v119, 7
  %v121 = vsub.s32 0, %v120
  %v122 = vrot.slane %v117, %v121
  %v172 = vunpack.c.l.b16 %v51
  %v173 = vunpack.c.l.b16 %v52
  %v174 = vunpack.c.l.b16 %v53
  %v175 = vunpack.c.l.b16 %v54
  %v176 = vunpack.c.l.b16 %v55
  %v177 = vunpack.c.l.b16 %v56
  %v178 = vunpack.c.l.b16 %v57
  %v179 = vunpack.c.l.b16 %v58
  %v180 = vunpack.c.l.b16 %v59
  %v181 = vunpack.c.l.b16 %v60
  %v182 = vunpack.c.l.b16 %v61
  %v183 = vunpack.c.l.b16 %v62
  %v184 = vunpack.c.l.b16 %v63
  %v185 = vunpack.c.l.b16 %v64
  %v186 = vunpack.c.l.b16 %v65
  %v187 = vunpack.c.l.b16 %v66
  %v188 = vunpack.c.l.b16 %v67
  %v189 = vunpack.c.l.b16 %v68
  %v190 = vunpack.c.l.b16 %v69
  %v191 = vunpack.c.l.b16 %v70
  %v192 = vunpack.c.l.b16 %v71
  %v193 = vunpack.c.l.b16 %v72
  %v194 = vunpack.c.l.b16 %v73
  %v195 = vunpack.c.l.b16 %v74
  %v196 = vunpack.c.l.b16 %v75
  %v197 = vunpack.c.l.b16 %v76
  %v198 = vunpack.c.l.b16 %v77
  %v199 = vunpack.c.l.b16 %v78
  %v200 = vunpack.c.l.b16 %v79
  %v201 = vunpack.c.l.b16 %v80
  %v202 = vunpack.c.l.b16 %v81
  %v203 = vunpack.c.l.b16 %v82
  %v204 = vunpack.c.l.b16 %v83
  %v205 = vunpack.c.l.b16 %v84
  %v206 = vunpack.c.l.b16 %v85
  %v207 = vunpack.c.l.b16 %v86
  %v208 = vunpack.c.l.b16 %v87
  %v209 = vunpack.c.l.b16 %v88
  %v210 = vunpack.c.l.b16 %v89
  %v211 = vunpack.c.l.b16 %v90
  %v212 = vunpack.c.l.b16 %v91
  %v213 = vunpack.c.l.b16 %v92
  %v214 = vunpack.c.l.b16 %v93
  %v215 = vunpack.c.l.b16 %v94
  %v216 = vunpack.c.l.b16 %v95
  %v217 = vunpack.c.l.b16 %v96
  %v218 = vunpack.c.l.b16 %v97
  %v219 = vunpack.c.l.b16 %v98
  %v220 = vpack.c.b16 %v173, %v172
  %v221 = vpack.c.b16 %v175, %v174
  %v222 = vpack.c.b16 %v177, %v176
  %v223 = vpack.c.b16 %v179, %v178
  %v224 = vpack.c.b16 %v181, %v180
  %v225 = vpack.c.b16 %v183, %v182
  %v226 = vpack.c.b16 %v185, %v184
  %v227 = vpack.c.b16 %v187, %v186
  %v228 = vpack.c.b16 %v189, %v188
  %v229 = vpack.c.b16 %v191, %v190
  %v230 = vpack.c.b16 %v193, %v192
  %v231 = vpack.c.b16 %v195, %v194
  %v232 = vpack.c.b16 %v197, %v196
  %v233 = vpack.c.b16 %v199, %v198
  %v234 = vpack.c.b16 %v201, %v200
  %v235 = vpack.c.b16 %v203, %v202
  %v236 = vpack.c.b16 %v205, %v204
  %v237 = vpack.c.b16 %v207, %v206
  %v238 = vpack.c.b16 %v209, %v208
  %v239 = vpack.c.b16 %v211, %v210
  %v240 = vpack.c.b16 %v213, %v212
  %v241 = vpack.c.b16 %v215, %v214
  %v242 = vpack.c.b16 %v217, %v216
  %v243 = vpack.c.b16 %v219, %v218
  %268 = vmatprep.subr.bf16.mxu0 0
  %269 = vmatpush1.bf16.msra.mxu0 %v220
  %270 = vmatprep.subr.bf16.mxu0 0
  %271 = vmatpush1.bf16.msra.mxu0 %v221
  %272 = vmatprep.subr.bf16.mxu0 0
  %273 = vmatpush1.bf16.msra.mxu0 %v222
  %274 = vmatprep.subr.bf16.mxu0 0
  %275 = vmatpush1.bf16.msra.mxu0 %v223
  %276 = vmatprep.subr.bf16.mxu0 0
  %277 = vmatpush1.bf16.msra.mxu0 %v224
  %278 = vmatprep.subr.bf16.mxu0 0
  %279 = vmatpush1.bf16.msra.mxu0 %v225
  %280 = vmatprep.subr.bf16.mxu0 0
  %281 = vmatpush1.bf16.msra.mxu0 %v226
  %282 = vmatprep.subr.bf16.mxu0 0
  %283 = vmatpush1.bf16.msra.mxu0 %v227
  %284 = vmatprep.subr.bf16.mxu0 0
  %285 = vmatpush1.bf16.msra.mxu0 %v228
  %286 = vmatprep.subr.bf16.mxu0 0
  %287 = vmatpush1.bf16.msra.mxu0 %v229
  %288 = vmatprep.subr.bf16.mxu0 0
  %289 = vmatpush1.bf16.msra.mxu0 %v230
  %290 = vmatprep.subr.bf16.mxu0 0
  %291 = vmatpush1.bf16.msra.mxu0 %v231
  %292 = vmatprep.subr.bf16.mxu0 0
  %293 = vmatpush1.bf16.msra.mxu0 %v232
  %294 = vmatprep.subr.bf16.mxu0 0
  %295 = vmatpush1.bf16.msra.mxu0 %v233
  %296 = vmatprep.subr.bf16.mxu0 0
  %297 = vmatpush1.bf16.msra.mxu0 %v234
  %298 = vmatprep.subr.bf16.mxu0 0
  %299 = vmatpush1.bf16.msra.mxu0 %v235
  %300 = vmatprep.mubr.bf16.mxu0 %v100
  %301 = vmatmul.mubr.bf16.gmra.mrb[0].mxu0 %v99
  %v302 = vpop.f32.mrb[0].mxu0
  %v303 = vadd.f32 %v122, %v302
  %v304 = vpop.f32.mrb[0].mxu0
  %v305 = vpop.f32.mrb[0].mxu0
  %v306 = vadd.f32 %v122, %v305
  %v307 = vpop.f32.mrb[0].mxu0
  %308 = vmatprep.mubr.bf16.mxu0 %v103
  %309 = vmatmul.mubr.bf16.gmra.mrb[0].mxu0 %v102
  %v310 = vpop.f32.mrb[0].mxu0
  %v311 = vadd.f32 %v122, %v310
  %v312 = vpop.f32.mrb[0].mxu0
  %v313 = vpop.f32.mrb[0].mxu0
  %v314 = vadd.f32 %v122, %v313
  %v315 = vpop.f32.mrb[0].mxu0
  %316 = vmatprep.mubr.bf16.mxu0 %v106
  %317 = vmatmul.mubr.bf16.gmra.mrb[0].mxu0 %v105
  %v318 = vpop.f32.mrb[0].mxu0
  %v319 = vadd.f32 %v122, %v318
  %v320 = vpop.f32.mrb[0].mxu0
  %v321 = vpop.f32.mrb[0].mxu0
  %v322 = vadd.f32 %v122, %v321
  %v323 = vpop.f32.mrb[0].mxu0
  %324 = vmatprep.mubr.bf16.mxu0 %v109
  %325 = vmatmul.mubr.bf16.gmra.mrb[0].mxu0 %v108
  %v326 = vpop.f32.mrb[0].mxu0
  %v327 = vadd.f32 %v122, %v326
  %v328 = vpop.f32.mrb[0].mxu0
  %v329 = vpop.f32.mrb[0].mxu0
  %v330 = vadd.f32 %v122, %v329
  %v331 = vpop.f32.mrb[0].mxu0
  %332 = vmatprep.mubr.bf16.mxu0 %v112
  %333 = vmatmul.mubr.bf16.gmra.mrb[0].mxu0 %v111
  %v334 = vpop.f32.mrb[0].mxu0
  %v335 = vadd.f32 %v122, %v334
  %v336 = vpop.f32.mrb[0].mxu0
  %v337 = vpop.f32.mrb[0].mxu0
  %v338 = vadd.f32 %v122, %v337
  %v339 = vpop.f32.mrb[0].mxu0
  %340 = vmatprep.mubr.bf16.mxu0 %v115
  %341 = vmatmul.mubr.bf16.gmra.mrb[0].mxu0 %v114
  %v342 = vpop.f32.mrb[0].mxu0
  %v343 = vadd.f32 %v122, %v342
  %v344 = vpop.f32.mrb[0].mxu0
  %v345 = vpop.f32.mrb[0].mxu0
  %v346 = vadd.f32 %v122, %v345
  %v347 = vpop.f32.mrb[0].mxu0
  %348 = vdwg.mxu0
  %349 = vmatprep.subr.bf16.mxu0 0
  %350 = vmatpush1.bf16.msra.mxu0 %v236
  %351 = vmatprep.subr.bf16.mxu0 0
  %352 = vmatpush1.bf16.msra.mxu0 %v237
  %353 = vmatprep.subr.bf16.mxu0 0
  %354 = vmatpush1.bf16.msra.mxu0 %v238
  %355 = vmatprep.subr.bf16.mxu0 0
  %356 = vmatpush1.bf16.msra.mxu0 %v239
  %357 = vmatprep.subr.bf16.mxu0 0
  %358 = vmatpush1.bf16.msra.mxu0 %v240
  %359 = vmatprep.subr.bf16.mxu0 0
  %360 = vmatpush1.bf16.msra.mxu0 %v241
  %361 = vmatprep.subr.bf16.mxu0 0
  %362 = vmatpush1.bf16.msra.mxu0 %v242
  %363 = vmatprep.subr.bf16.mxu0 0
  %364 = vmatpush1.bf16.msra.mxu0 %v243
  %365 = vmatprep.subr.bf16.mxu0 0
  %366 = vmatpush1.bf16.msra.mxu0 0
  %367 = vmatprep.subr.bf16.mxu0 0
  %368 = vmatpush1.bf16.msra.mxu0 0
  %369 = vmatprep.subr.bf16.mxu0 0
  %370 = vmatpush1.bf16.msra.mxu0 0
  %371 = vmatprep.subr.bf16.mxu0 0
  %372 = vmatpush1.bf16.msra.mxu0 0
  %373 = vmatprep.subr.bf16.mxu0 0
  %374 = vmatpush1.bf16.msra.mxu0 0
  %375 = vmatprep.subr.bf16.mxu0 0
  %376 = vmatpush1.bf16.msra.mxu0 0
  %377 = vmatprep.subr.bf16.mxu0 0
  %378 = vmatpush1.bf16.msra.mxu0 0
  %379 = vmatprep.subr.bf16.mxu0 0
  %380 = vmatpush1.bf16.msra.mxu0 0
  %381 = vmatprep.mubr.bf16.mxu0 0
  %382 = vmatmul.mubr.bf16.gmra.mrb[0].mxu0 %v101
  %v383 = vpop.f32.mrb[0].mxu0
  %v384 = vadd.f32 %v303, %v383
  %v385 = vpop.f32.mrb[0].mxu0
  %v386 = vpop.f32.mrb[0].mxu0
  %v387 = vadd.f32 %v306, %v386
  %v388 = vpop.f32.mrb[0].mxu0
  %389 = vmatprep.mubr.bf16.mxu0 0
  %390 = vmatmul.mubr.bf16.gmra.mrb[0].mxu0 %v104
  %v391 = vpop.f32.mrb[0].mxu0
  %v392 = vadd.f32 %v311, %v391
  %v393 = vpop.f32.mrb[0].mxu0
  %v394 = vpop.f32.mrb[0].mxu0
  %v395 = vadd.f32 %v314, %v394
  %v396 = vpop.f32.mrb[0].mxu0
  %397 = vmatprep.mubr.bf16.mxu0 0
  %398 = vmatmul.mubr.bf16.gmra.mrb[0].mxu0 %v107
  %v399 = vpop.f32.mrb[0].mxu0
  %v400 = vadd.f32 %v319, %v399
  %v401 = vpop.f32.mrb[0].mxu0
  %v402 = vpop.f32.mrb[0].mxu0
  %v403 = vadd.f32 %v322, %v402
  %v404 = vpop.f32.mrb[0].mxu0
  %405 = vmatprep.mubr.bf16.mxu0 0
  %406 = vmatmul.mubr.bf16.gmra.mrb[0].mxu0 %v110
  %v407 = vpop.f32.mrb[0].mxu0
  %v408 = vadd.f32 %v327, %v407
  %v409 = vpop.f32.mrb[0].mxu0
  %v410 = vpop.f32.mrb[0].mxu0
  %v411 = vadd.f32 %v330, %v410
  %v412 = vpop.f32.mrb[0].mxu0
  %413 = vmatprep.mubr.bf16.mxu0 0
  %414 = vmatmul.mubr.bf16.gmra.mrb[0].mxu0 %v113
  %v415 = vpop.f32.mrb[0].mxu0
  %v416 = vadd.f32 %v335, %v415
  %v417 = vpop.f32.mrb[0].mxu0
  %v418 = vpop.f32.mrb[0].mxu0
  %v419 = vadd.f32 %v338, %v418
  %v420 = vpop.f32.mrb[0].mxu0
  %421 = vmatprep.mubr.bf16.mxu0 0
  %422 = vmatmul.mubr.bf16.gmra.mrb[0].mxu0 %v116
  %v423 = vpop.f32.mrb[0].mxu0
  %v424 = vadd.f32 %v343, %v423
  %v425 = vpop.f32.mrb[0].mxu0
  %v426 = vpop.f32.mrb[0].mxu0
  %v427 = vadd.f32 %v346, %v426
  %v428 = vpop.f32.mrb[0].mxu0
  %429 = vdwg.mxu0
  %v430 = vmul.f32 %v384, 0.5
  %v431 = vmul.f32 %v387, 0.5
  %v432 = vmul.f32 %v392, 0.5
  %v433 = vmul.f32 %v395, 0.5
  %v434 = vmul.f32 %v400, 0.5
  %v435 = vmul.f32 %v403, 0.5
  %v436 = vmul.f32 %v408, 0.5
  %v437 = vmul.f32 %v411, 0.5
  %v438 = vmul.f32 %v416, 0.5
  %v439 = vmul.f32 %v419, 0.5
  %v440 = vmul.f32 %v424, 0.5
  %v441 = vmul.f32 %v427, 0.5
  %v442 = vmul.f32 %v384, 0.044715
  %v443 = vmul.f32 %v387, 0.044715
  %v444 = vmul.f32 %v392, 0.044715
  %v445 = vmul.f32 %v395, 0.044715
  %v446 = vmul.f32 %v400, 0.044715
  %v447 = vmul.f32 %v403, 0.044715
  %v448 = vmul.f32 %v408, 0.044715
  %v449 = vmul.f32 %v411, 0.044715
  %v450 = vmul.f32 %v416, 0.044715
  %v451 = vmul.f32 %v419, 0.044715
  %v452 = vmul.f32 %v424, 0.044715
  %v453 = vmul.f32 %v427, 0.044715
  %v454 = vmul.f32 %v442, %v384
  %v455 = vmul.f32 %v443, %v387
  %v456 = vmul.f32 %v444, %v392
  %v457 = vmul.f32 %v445, %v395
  %v458 = vmul.f32 %v446, %v400
  %v459 = vmul.f32 %v447, %v403
  %v460 = vmul.f32 %v448, %v408
  %v461 = vmul.f32 %v449, %v411
  %v462 = vmul.f32 %v450, %v416
  %v463 = vmul.f32 %v451, %v419
  %v464 = vmul.f32 %v452, %v424
  %v465 = vmul.f32 %v453, %v427
  %v466 = vmul.f32 %v454, %v384
  %v467 = vmul.f32 %v455, %v387
  %v468 = vmul.f32 %v456, %v392
  %v469 = vmul.f32 %v457, %v395
  %v470 = vmul.f32 %v458, %v400
  %v471 = vmul.f32 %v459, %v403
  %v472 = vmul.f32 %v460, %v408
  %v473 = vmul.f32 %v461, %v411
  %v474 = vmul.f32 %v462, %v416
  %v475 = vmul.f32 %v463, %v419
  %v476 = vmul.f32 %v464, %v424
  %v477 = vmul.f32 %v465, %v427
  %v478 = vadd.f32 %v384, %v466
  %v479 = vadd.f32 %v387, %v467
  %v480 = vadd.f32 %v392, %v468
  %v481 = vadd.f32 %v395, %v469
  %v482 = vadd.f32 %v400, %v470
  %v483 = vadd.f32 %v403, %v471
  %v484 = vadd.f32 %v408, %v472
  %v485 = vadd.f32 %v411, %v473
  %v486 = vadd.f32 %v416, %v474
  %v487 = vadd.f32 %v419, %v475
  %v488 = vadd.f32 %v424, %v476
  %v489 = vadd.f32 %v427, %v477
  %v490 = vmul.f32 %v478, 0.7978846
  %v491 = vmul.f32 %v479, 0.7978846
  %v492 = vmul.f32 %v480, 0.7978846
  %v493 = vmul.f32 %v481, 0.7978846
  %v494 = vmul.f32 %v482, 0.7978846
  %v495 = vmul.f32 %v483, 0.7978846
  %v496 = vmul.f32 %v484, 0.7978846
  %v497 = vmul.f32 %v485, 0.7978846
  %v498 = vmul.f32 %v486, 0.7978846
  %v499 = vmul.f32 %v487, 0.7978846
  %v500 = vmul.f32 %v488, 0.7978846
  %v501 = vmul.f32 %v489, 0.7978846
  %v502 = vtanh.pop %v490
  %v503 = vtanh.pop %v491
  %v504 = vtanh.pop %v492
  %v505 = vtanh.pop %v493
  %v506 = vtanh.pop %v494
  %v507 = vtanh.pop %v495
  %v508 = vtanh.pop %v496
  %v509 = vtanh.pop %v497
  %v510 = vtanh.pop %v498
  %v511 = vtanh.pop %v499
  %v512 = vtanh.pop %v500
  %v513 = vtanh.pop %v501
  %v514 = vadd.f32 %v502, 1.0
  %v515 = vadd.f32 %v503, 1.0
  %v516 = vadd.f32 %v504, 1.0
  %v517 = vadd.f32 %v505, 1.0
  %v518 = vadd.f32 %v506, 1.0
  %v519 = vadd.f32 %v507, 1.0
  %v520 = vadd.f32 %v508, 1.0
  %v521 = vadd.f32 %v509, 1.0
  %v522 = vadd.f32 %v510, 1.0
  %v523 = vadd.f32 %v511, 1.0
  %v524 = vadd.f32 %v512, 1.0
  %v525 = vadd.f32 %v513, 1.0
  %v526 = vmul.f32 %v430, %v514
  %v527 = vmul.f32 %v431, %v515
  %v528 = vmul.f32 %v432, %v516
  %v529 = vmul.f32 %v433, %v517
  %v530 = vmul.f32 %v434, %v518
  %v531 = vmul.f32 %v435, %v519
  %v532 = vmul.f32 %v436, %v520
  %v533 = vmul.f32 %v437, %v521
  %v534 = vmul.f32 %v438, %v522
  %v535 = vmul.f32 %v439, %v523
  %v536 = vmul.f32 %v440, %v524
  %v537 = vmul.f32 %v441, %v525
  %538 = vst [vmem:[%s3] sm:$0xff] %v526
  %539 = vst [vmem:[%s3 + $0x8] sm:$0xff] %v527
  %540 = vst [vmem:[%s3 + $0x10] sm:$0xff] %v528
  %541 = vst [vmem:[%s3 + $0x18] sm:$0xff] %v529
  %542 = vst [vmem:[%s3 + $0x20] sm:$0xff] %v530
  %543 = vst [vmem:[%s3 + $0x28] sm:$0xff] %v531
  %544 = vst [vmem:[%s3 + $0x30] sm:$0xff] %v532
  %545 = vst [vmem:[%s3 + $0x38] sm:$0xff] %v533
  %546 = vst [vmem:[%s3 + $0x40] sm:$0xff] %v534
  %547 = vst [vmem:[%s3 + $0x48] sm:$0xff] %v535
  %548 = vst [vmem:[%s3 + $0x50] sm:$0xff] %v536
  %549 = vst [vmem:[%s3 + $0x58] sm:$0xff] %v537
  // Predicated region
  $region14: #{covid_wav2vec_forward.13} parent=0 // pred_check
    _
  $region15: #{covid_wav2vec_forward.13} parent=0 // pred_check_branch
    %551 = sbr.rel (0) target = $region17
  $region16: #{covid_wav2vec_forward.13} parent=0 // pred_region
    _
  $region17: #{covid_wav2vec_forward.13} parent=0 // pred_fallthru
    _
  // Predicated region
  $region18: #{covid_wav2vec_forward.13} parent=0 // pred_check
    _
  $region19: #{covid_wav2vec_forward.13} parent=0 // pred_check_branch
    %553 = sbr.rel (0) target = $region21
  $region20: #{covid_wav2vec_forward.13} parent=0 // pred_region
    _
  $region21: #{covid_wav2vec_forward.13} parent=0 // pred_fallthru
    _

// kernel: covid_wav2vec_forward.14
$region0: #{covid_wav2vec_forward.14}
  #allocation0 [shape = 'u32[]', space=smem, size = 0x4, offset = 0x4, fixed_abs, tag = 'smem constant byte address 0x4 - core index']
  #allocation1 [shape = 'u32[144,128]{1,0:T(1,128)}', space=vmem, size = 0x12000, scoped, tag = 'internal scratch']
  %s0 = inlined_call_operand.vmem [shape: f32[96,128], index: 0, kind: input, shape index: {}]
  %s1 = inlined_call_operand.vmem [shape: f32[1,128], index: 1, kind: input, shape index: {}]
  %s2 = inlined_call_operand.vmem [shape: f32[1,128], index: 2, kind: input, shape index: {}]
  %s3 = inlined_call_operand.vmem [shape: bf16[128,256], index: 3, kind: input, shape index: {}]
  %s4 = inlined_call_operand.vmem [shape: f32[1,256], index: 4, kind: input, shape index: {}]
  %s5 = inlined_call_operand.vmem [shape: f32[96,256], index: 5, kind: output, shape index: {}]
  %s6 = sld [smem:[#allocation0]]
  $region30: #{covid_wav2vec_forward.14} parent=0
    _
  %s8 = ssub.s32 1, %s6
  %s9 = scalar_select 0, %s8, %s6
  // Predicated region
  $region2: #{covid_wav2vec_forward.14} parent=0 // pred_check
    _
  $region3: #{covid_wav2vec_forward.14} parent=0 // pred_check_branch
    %11 = sbr.rel (0) target = $region5
  $region4: #{covid_wav2vec_forward.14} parent=0 // pred_region
    _
  $region5: #{covid_wav2vec_forward.14} parent=0 // pred_fallthru
    _
  // Predicated region
  $region6: #{covid_wav2vec_forward.14} parent=0 // pred_check
    _
  $region7: #{covid_wav2vec_forward.14} parent=0 // pred_check_branch
    %13 = sbr.rel (0) target = $region9
  $region8: #{covid_wav2vec_forward.14} parent=0 // pred_region
    _
  $region9: #{covid_wav2vec_forward.14} parent=0 // pred_fallthru
    _
  // Predicated region
  $region10: #{covid_wav2vec_forward.14} parent=0 // pred_check
    _
  $region11: #{covid_wav2vec_forward.14} parent=0 // pred_check_branch
    %15 = sbr.rel (0) target = $region13
  $region12: #{covid_wav2vec_forward.14} parent=0 // pred_region
    _
  $region13: #{covid_wav2vec_forward.14} parent=0 // pred_fallthru
    _
  // Predicated region
  $region14: #{covid_wav2vec_forward.14} parent=0 // pred_check
    _
  $region15: #{covid_wav2vec_forward.14} parent=0 // pred_check_branch
    %17 = sbr.rel (0) target = $region17
  $region16: #{covid_wav2vec_forward.14} parent=0 // pred_region
    _
  $region17: #{covid_wav2vec_forward.14} parent=0 // pred_fallthru
    _
  // Predicated region
  $region18: #{covid_wav2vec_forward.14} parent=0 // pred_check
    _
  $region19: #{covid_wav2vec_forward.14} parent=0 // pred_check_branch
    %19 = sbr.rel (0) target = $region21
  $region20: #{covid_wav2vec_forward.14} parent=0 // pred_region
    _
  $region21: #{covid_wav2vec_forward.14} parent=0 // pred_fallthru
    _
  %v21 = vld [vmem:[%s0] sm:$0xff]
  %v22 = vld [vmem:[%s0 + $0x8] sm:$0xff]
  %v23 = vld [vmem:[%s0 + $0x10] sm:$0xff]
  %v24 = vld [vmem:[%s0 + $0x18] sm:$0xff]
  %v25 = vld [vmem:[%s0 + $0x20] sm:$0xff]
  %v26 = vld [vmem:[%s0 + $0x28] sm:$0xff]
  %v27 = vld [vmem:[%s0 + $0x30] sm:$0xff]
  %v28 = vld [vmem:[%s0 + $0x38] sm:$0xff]
  %v29 = vld [vmem:[%s0 + $0x40] sm:$0xff]
  %v30 = vld [vmem:[%s0 + $0x48] sm:$0xff]
  %v31 = vld [vmem:[%s0 + $0x50] sm:$0xff]
  %v32 = vld [vmem:[%s0 + $0x58] sm:$0xff]
  %v33 = vld [vmem:[%s1] sm:$0x1]
  %v34 = vld [vmem:[%s2] sm:$0x1]
  %35 = vadd.xlane.f32.xlu0 %v21
  %v36 = vpop.xlane.xlu0 %35
  %37 = vadd.xlane.f32.xlu0 %v22
  %v38 = vpop.xlane.xlu0 %37
  %39 = vadd.xlane.f32.xlu0 %v23
  %v40 = vpop.xlane.xlu0 %39
  %41 = vadd.xlane.f32.xlu0 %v24
  %v42 = vpop.xlane.xlu0 %41
  %43 = vadd.xlane.f32.xlu0 %v25
  %v44 = vpop.xlane.xlu0 %43
  %45 = vadd.xlane.f32.xlu0 %v26
  %v46 = vpop.xlane.xlu0 %45
  %47 = vadd.xlane.f32.xlu0 %v27
  %v48 = vpop.xlane.xlu0 %47
  %49 = vadd.xlane.f32.xlu0 %v28
  %v50 = vpop.xlane.xlu0 %49
  %51 = vadd.xlane.f32.xlu0 %v29
  %v52 = vpop.xlane.xlu0 %51
  %53 = vadd.xlane.f32.xlu0 %v30
  %v54 = vpop.xlane.xlu0 %53
  %55 = vadd.xlane.f32.xlu0 %v31
  %v56 = vpop.xlane.xlu0 %55
  %57 = vadd.xlane.f32.xlu0 %v32
  %v58 = vpop.xlane.xlu0 %57
  %v59 = vrcp.pop 128.0
  %v60 = vmul.f32 %v36, %v59
  %v61 = vmul.f32 %v38, %v59
  %v62 = vmul.f32 %v40, %v59
  %v63 = vmul.f32 %v42, %v59
  %v64 = vmul.f32 %v44, %v59
  %v65 = vmul.f32 %v46, %v59
  %v66 = vmul.f32 %v48, %v59
  %v67 = vmul.f32 %v50, %v59
  %v68 = vmul.f32 %v52, %v59
  %v69 = vmul.f32 %v54, %v59
  %v70 = vmul.f32 %v56, %v59
  %v71 = vmul.f32 %v58, %v59
  %v72 = vsub.f32 %v21, %v60
  %v73 = vsub.f32 %v22, %v61
  %v74 = vsub.f32 %v23, %v62
  %v75 = vsub.f32 %v24, %v63
  %v76 = vsub.f32 %v25, %v64
  %v77 = vsub.f32 %v26, %v65
  %v78 = vsub.f32 %v27, %v66
  %v79 = vsub.f32 %v28, %v67
  %v80 = vsub.f32 %v29, %v68
  %v81 = vsub.f32 %v30, %v69
  %v82 = vsub.f32 %v31, %v70
  %v83 = vsub.f32 %v32, %v71
  %v84 = vmul.f32 %v72, %v72
  %v85 = vmul.f32 %v73, %v73
  %v86 = vmul.f32 %v74, %v74
  %v87 = vmul.f32 %v75, %v75
  %v88 = vmul.f32 %v76, %v76
  %v89 = vmul.f32 %v77, %v77
  %v90 = vmul.f32 %v78, %v78
  %v91 = vmul.f32 %v79, %v79
  %v92 = vmul.f32 %v80, %v80
  %v93 = vmul.f32 %v81, %v81
  %v94 = vmul.f32 %v82, %v82
  %v95 = vmul.f32 %v83, %v83
  %96 = vadd.xlane.f32.xlu0 %v84
  %v97 = vpop.xlane.xlu0 %96
  %98 = vadd.xlane.f32.xlu0 %v85
  %v99 = vpop.xlane.xlu0 %98
  %100 = vadd.xlane.f32.xlu0 %v86
  %v101 = vpop.xlane.xlu0 %100
  %102 = vadd.xlane.f32.xlu0 %v87
  %v103 = vpop.xlane.xlu0 %102
  %104 = vadd.xlane.f32.xlu0 %v88
  %v105 = vpop.xlane.xlu0 %104
  %106 = vadd.xlane.f32.xlu0 %v89
  %v107 = vpop.xlane.xlu0 %106
  %108 = vadd.xlane.f32.xlu0 %v90
  %v109 = vpop.xlane.xlu0 %108
  %110 = vadd.xlane.f32.xlu0 %v91
  %v111 = vpop.xlane.xlu0 %110
  %112 = vadd.xlane.f32.xlu0 %v92
  %v113 = vpop.xlane.xlu0 %112
  %114 = vadd.xlane.f32.xlu0 %v93
  %v115 = vpop.xlane.xlu0 %114
  %116 = vadd.xlane.f32.xlu0 %v94
  %v117 = vpop.xlane.xlu0 %116
  %118 = vadd.xlane.f32.xlu0 %v95
  %v119 = vpop.xlane.xlu0 %118
  %v120 = vmul.f32 %v97, %v59
  %v121 = vmul.f32 %v99, %v59
  %v122 = vmul.f32 %v101, %v59
  %v123 = vmul.f32 %v103, %v59
  %v124 = vmul.f32 %v105, %v59
  %v125 = vmul.f32 %v107, %v59
  %v126 = vmul.f32 %v109, %v59
  %v127 = vmul.f32 %v111, %v59
  %v128 = vmul.f32 %v113, %v59
  %v129 = vmul.f32 %v115, %v59
  %v130 = vmul.f32 %v117, %v59
  %v131 = vmul.f32 %v119, %v59
  %v132 = vadd.f32 %v120, 1e-05
  %v133 = vadd.f32 %v121, 1e-05
  %v134 = vadd.f32 %v122, 1e-05
  %v135 = vadd.f32 %v123, 1e-05
  %v136 = vadd.f32 %v124, 1e-05
  %v137 = vadd.f32 %v125, 1e-05
  %v138 = vadd.f32 %v126, 1e-05
  %v139 = vadd.f32 %v127, 1e-05
  %v140 = vadd.f32 %v128, 1e-05
  %v141 = vadd.f32 %v129, 1e-05
  %v142 = vadd.f32 %v130, 1e-05
  %v143 = vadd.f32 %v131, 1e-05
  %v144 = vrsqrt.pop %v132
  %v145 = vrsqrt.pop %v133
  %v146 = vrsqrt.pop %v134
  %v147 = vrsqrt.pop %v135
  %v148 = vrsqrt.pop %v136
  %v149 = vrsqrt.pop %v137
  %v150 = vrsqrt.pop %v138
  %v151 = vrsqrt.pop %v139
  %v152 = vrsqrt.pop %v140
  %v153 = vrsqrt.pop %v141
  %v154 = vrsqrt.pop %v142
  %v155 = vrsqrt.pop %v143
  %v156 = vmul.f32 %v72, %v144
  %v157 = vmul.f32 %v73, %v145
  %v158 = vmul.f32 %v74, %v146
  %v159 = vmul.f32 %v75, %v147
  %v160 = vmul.f32 %v76, %v148
  %v161 = vmul.f32 %v77, %v149
  %v162 = vmul.f32 %v78, %v150
  %v163 = vmul.f32 %v79, %v151
  %v164 = vmul.f32 %v80, %v152
  %v165 = vmul.f32 %v81, %v153
  %v166 = vmul.f32 %v82, %v154
  %v167 = vmul.f32 %v83, %v155
  %v169 = vlaneseq
  %v170 = vshrl.u32 %v169, 7
  %v171 = vsub.s32 0, %v170
  %v172 = vrot.slane %v33, %v171
  %v174 = vmul.f32 %v156, %v172
  %v175 = vmul.f32 %v157, %v172
  %v176 = vmul.f32 %v158, %v172
  %v177 = vmul.f32 %v159, %v172
  %v178 = vmul.f32 %v160, %v172
  %v179 = vmul.f32 %v161, %v172
  %v180 = vmul.f32 %v162, %v172
  %v181 = vmul.f32 %v163, %v172
  %v182 = vmul.f32 %v164, %v172
  %v183 = vmul.f32 %v165, %v172
  %v184 = vmul.f32 %v166, %v172
  %v185 = vmul.f32 %v167, %v172
  %v187 = vlaneseq
  %v188 = vshrl.u32 %v187, 7
  %v189 = vsub.s32 0, %v188
  %v190 = vrot.slane %v34, %v189
  %v192 = vadd.f32 %v174, %v190
  %v193 = vadd.f32 %v175, %v190
  %v194 = vadd.f32 %v176, %v190
  %v195 = vadd.f32 %v177, %v190
  %v196 = vadd.f32 %v178, %v190
  %v197 = vadd.f32 %v179, %v190
  %v198 = vadd.f32 %v180, %v190
  %v199 = vadd.f32 %v181, %v190
  %v200 = vadd.f32 %v182, %v190
  %v201 = vadd.f32 %v183, %v190
  %v202 = vadd.f32 %v184, %v190
  %v203 = vadd.f32 %v185, %v190
  %v204 = vld [vmem:[%s3] sm:$0xff]
  %v205 = vld [vmem:[%s3 + $0x8] sm:$0xff]
  %v206 = vld [vmem:[%s3 + $0x10] sm:$0xff]
  %v207 = vld [vmem:[%s3 + $0x18] sm:$0xff]
  %v208 = vld [vmem:[%s3 + $0x20] sm:$0xff]
  %v209 = vld [vmem:[%s3 + $0x28] sm:$0xff]
  %v210 = vld [vmem:[%s3 + $0x30] sm:$0xff]
  %v211 = vld [vmem:[%s3 + $0x38] sm:$0xff]
  %v212 = vld [vmem:[%s3 + $0x40] sm:$0xff]
  %v213 = vld [vmem:[%s3 + $0x48] sm:$0xff]
  %v214 = vld [vmem:[%s3 + $0x50] sm:$0xff]
  %v215 = vld [vmem:[%s3 + $0x58] sm:$0xff]
  %v216 = vld [vmem:[%s3 + $0x60] sm:$0xff]
  %v217 = vld [vmem:[%s3 + $0x68] sm:$0xff]
  %v218 = vld [vmem:[%s3 + $0x70] sm:$0xff]
  %v219 = vld [vmem:[%s3 + $0x78] sm:$0xff]
  %v220 = vpack.c.bf16 %v193, %v192
  %v221 = vpack.c.bf16 %v195, %v194
  %v222 = vpack.c.bf16 %v197, %v196
  %v223 = vpack.c.bf16 %v199, %v198
  %v224 = vpack.c.bf16 %v201, %v200
  %v225 = vpack.c.bf16 %v203, %v202
  %v226 = vld [vmem:[%s4] sm:$0x3]
  %v228 = vlaneseq
  %v229 = vshrl.u32 %v228, 7
  %v230 = vsub.s32 0, %v229
  %v231 = vrot.slane %v226, %v230
  %v232 = vlaneseq
  %v233 = vshrl.u32 %v232, 7
  %v234 = vsub.s32 1, %v233
  %v235 = vrot.slane %v226, %v234
  %v254 = vunpack.c.l.b16 %v204
  %v255 = vunpack.c.h.b16 %v204
  %v256 = vunpack.c.l.b16 %v205
  %v257 = vunpack.c.h.b16 %v205
  %v258 = vunpack.c.l.b16 %v206
  %v259 = vunpack.c.h.b16 %v206
  %v260 = vunpack.c.l.b16 %v207
  %v261 = vunpack.c.h.b16 %v207
  %v262 = vunpack.c.l.b16 %v208
  %v263 = vunpack.c.h.b16 %v208
  %v264 = vunpack.c.l.b16 %v209
  %v265 = vunpack.c.h.b16 %v209
  %v266 = vunpack.c.l.b16 %v210
  %v267 = vunpack.c.h.b16 %v210
  %v268 = vunpack.c.l.b16 %v211
  %v269 = vunpack.c.h.b16 %v211
  %v270 = vunpack.c.l.b16 %v212
  %v271 = vunpack.c.h.b16 %v212
  %v272 = vunpack.c.l.b16 %v213
  %v273 = vunpack.c.h.b16 %v213
  %v274 = vunpack.c.l.b16 %v214
  %v275 = vunpack.c.h.b16 %v214
  %v276 = vunpack.c.l.b16 %v215
  %v277 = vunpack.c.h.b16 %v215
  %v278 = vunpack.c.l.b16 %v216
  %v279 = vunpack.c.h.b16 %v216
  %v280 = vunpack.c.l.b16 %v217
  %v281 = vunpack.c.h.b16 %v217
  %v282 = vunpack.c.l.b16 %v218
  %v283 = vunpack.c.h.b16 %v218
  %v284 = vunpack.c.l.b16 %v219
  %v285 = vunpack.c.h.b16 %v219
  %v286 = vpack.c.b16 %v256, %v254
  %v287 = vpack.c.b16 %v257, %v255
  %v288 = vpack.c.b16 %v260, %v258
  %v289 = vpack.c.b16 %v261, %v259
  %v290 = vpack.c.b16 %v264, %v262
  %v291 = vpack.c.b16 %v265, %v263
  %v292 = vpack.c.b16 %v268, %v266
  %v293 = vpack.c.b16 %v269, %v267
  %v294 = vpack.c.b16 %v272, %v270
  %v295 = vpack.c.b16 %v273, %v271
  %v296 = vpack.c.b16 %v276, %v274
  %v297 = vpack.c.b16 %v277, %v275
  %v298 = vpack.c.b16 %v280, %v278
  %v299 = vpack.c.b16 %v281, %v279
  %v300 = vpack.c.b16 %v284, %v282
  %v301 = vpack.c.b16 %v285, %v283
  %318 = vmatprep.subr.bf16.mxu0 %v287
  %319 = vmatpush1.bf16.msra.mxu0 %v286
  %320 = vmatprep.subr.bf16.mxu0 %v289
  %321 = vmatpush1.bf16.msra.mxu0 %v288
  %322 = vmatprep.subr.bf16.mxu0 %v291
  %323 = vmatpush1.bf16.msra.mxu0 %v290
  %324 = vmatprep.subr.bf16.mxu0 %v293
  %325 = vmatpush1.bf16.msra.mxu0 %v292
  %326 = vmatprep.subr.bf16.mxu0 %v295
  %327 = vmatpush1.bf16.msra.mxu0 %v294
  %328 = vmatprep.subr.bf16.mxu0 %v297
  %329 = vmatpush1.bf16.msra.mxu0 %v296
  %330 = vmatprep.subr.bf16.mxu0 %v299
  %331 = vmatpush1.bf16.msra.mxu0 %v298
  %332 = vmatprep.subr.bf16.mxu0 %v301
  %333 = vmatpush1.bf16.msra.mxu0 %v300
  %334 = vmatprep.subr.bf16.mxu0 0
  %335 = vmatpush1.bf16.msra.mxu0 0
  %336 = vmatprep.subr.bf16.mxu0 0
  %337 = vmatpush1.bf16.msra.mxu0 0
  %338 = vmatprep.subr.bf16.mxu0 0
  %339 = vmatpush1.bf16.msra.mxu0 0
  %340 = vmatprep.subr.bf16.mxu0 0
  %341 = vmatpush1.bf16.msra.mxu0 0
  %342 = vmatprep.subr.bf16.mxu0 0
  %343 = vmatpush1.bf16.msra.mxu0 0
  %344 = vmatprep.subr.bf16.mxu0 0
  %345 = vmatpush1.bf16.msra.mxu0 0
  %346 = vmatprep.subr.bf16.mxu0 0
  %347 = vmatpush1.bf16.msra.mxu0 0
  %348 = vmatprep.subr.bf16.mxu0 0
  %349 = vmatpush1.bf16.msra.mxu0 0
  %350 = vmatprep.mubr.bf16.mxu0 0
  %351 = vmatmul.mubr.bf16.gmra.mrb[0].mxu0 %v220
  %v352 = vpop.f32.mrb[0].mxu0
  %v353 = vadd.f32 %v231, %v352
  %v354 = vpop.f32.mrb[0].mxu0
  %v355 = vadd.f32 %v235, %v354
  %v356 = vpop.f32.mrb[0].mxu0
  %v357 = vadd.f32 %v231, %v356
  %v358 = vpop.f32.mrb[0].mxu0
  %v359 = vadd.f32 %v235, %v358
  %360 = vmatprep.mubr.bf16.mxu0 0
  %361 = vmatmul.mubr.bf16.gmra.mrb[0].mxu0 %v221
  %v362 = vpop.f32.mrb[0].mxu0
  %v363 = vadd.f32 %v231, %v362
  %v364 = vpop.f32.mrb[0].mxu0
  %v365 = vadd.f32 %v235, %v364
  %v366 = vpop.f32.mrb[0].mxu0
  %v367 = vadd.f32 %v231, %v366
  %v368 = vpop.f32.mrb[0].mxu0
  %v369 = vadd.f32 %v235, %v368
  %370 = vmatprep.mubr.bf16.mxu0 0
  %371 = vmatmul.mubr.bf16.gmra.mrb[0].mxu0 %v222
  %v372 = vpop.f32.mrb[0].mxu0
  %v373 = vadd.f32 %v231, %v372
  %v374 = vpop.f32.mrb[0].mxu0
  %v375 = vadd.f32 %v235, %v374
  %v376 = vpop.f32.mrb[0].mxu0
  %v377 = vadd.f32 %v231, %v376
  %v378 = vpop.f32.mrb[0].mxu0
  %v379 = vadd.f32 %v235, %v378
  %380 = vmatprep.mubr.bf16.mxu0 0
  %381 = vmatmul.mubr.bf16.gmra.mrb[0].mxu0 %v223
  %v382 = vpop.f32.mrb[0].mxu0
  %v383 = vadd.f32 %v231, %v382
  %v384 = vpop.f32.mrb[0].mxu0
  %v385 = vadd.f32 %v235, %v384
  %v386 = vpop.f32.mrb[0].mxu0
  %v387 = vadd.f32 %v231, %v386
  %v388 = vpop.f32.mrb[0].mxu0
  %v389 = vadd.f32 %v235, %v388
  %390 = vmatprep.mubr.bf16.mxu0 0
  %391 = vmatmul.mubr.bf16.gmra.mrb[0].mxu0 %v224
  %v392 = vpop.f32.mrb[0].mxu0
  %v393 = vadd.f32 %v231, %v392
  %v394 = vpop.f32.mrb[0].mxu0
  %v395 = vadd.f32 %v235, %v394
  %v396 = vpop.f32.mrb[0].mxu0
  %v397 = vadd.f32 %v231, %v396
  %v398 = vpop.f32.mrb[0].mxu0
  %v399 = vadd.f32 %v235, %v398
  %400 = vmatprep.mubr.bf16.mxu0 0
  %401 = vmatmul.mubr.bf16.gmra.mrb[0].mxu0 %v225
  %v402 = vpop.f32.mrb[0].mxu0
  %v403 = vadd.f32 %v231, %v402
  %v404 = vpop.f32.mrb[0].mxu0
  %v405 = vadd.f32 %v235, %v404
  %v406 = vpop.f32.mrb[0].mxu0
  %v407 = vadd.f32 %v231, %v406
  %v408 = vpop.f32.mrb[0].mxu0
  %v409 = vadd.f32 %v235, %v408
  %410 = vdwg.mxu0
  %411 = vst [vmem:[%s5] sm:$0xff] %v353
  %412 = vst [vmem:[%s5 + $0x8] sm:$0xff] %v355
  %413 = vst [vmem:[%s5 + $0x10] sm:$0xff] %v357
  %414 = vst [vmem:[%s5 + $0x18] sm:$0xff] %v359
  %415 = vst [vmem:[%s5 + $0x20] sm:$0xff] %v363
  %416 = vst [vmem:[%s5 + $0x28] sm:$0xff] %v365
  %417 = vst [vmem:[%s5 + $0x30] sm:$0xff] %v367
  %418 = vst [vmem:[%s5 + $0x38] sm:$0xff] %v369
  %419 = vst [vmem:[%s5 + $0x40] sm:$0xff] %v373
  %420 = vst [vmem:[%s5 + $0x48] sm:$0xff] %v375
  %421 = vst [vmem:[%s5 + $0x50] sm:$0xff] %v377
  %422 = vst [vmem:[%s5 + $0x58] sm:$0xff] %v379
  %423 = vst [vmem:[%s5 + $0x60] sm:$0xff] %v383
  %424 = vst [vmem:[%s5 + $0x68] sm:$0xff] %v385
  %425 = vst [vmem:[%s5 + $0x70] sm:$0xff] %v387
  %426 = vst [vmem:[%s5 + $0x78] sm:$0xff] %v389
  %427 = vst [vmem:[%s5 + $0x80] sm:$0xff] %v393
  %428 = vst [vmem:[%s5 + $0x88] sm:$0xff] %v395
  %429 = vst [vmem:[%s5 + $0x90] sm:$0xff] %v397
  %430 = vst [vmem:[%s5 + $0x98] sm:$0xff] %v399
  %431 = vst [vmem:[%s5 + $0xa0] sm:$0xff] %v403
  %432 = vst [vmem:[%s5 + $0xa8] sm:$0xff] %v405
  %433 = vst [vmem:[%s5 + $0xb0] sm:$0xff] %v407
  %434 = vst [vmem:[%s5 + $0xb8] sm:$0xff] %v409
  // Predicated region
  $region22: #{covid_wav2vec_forward.14} parent=0 // pred_check
    _
  $region23: #{covid_wav2vec_forward.14} parent=0 // pred_check_branch
    %436 = sbr.rel (0) target = $region25
  $region24: #{covid_wav2vec_forward.14} parent=0 // pred_region
    _
  $region25: #{covid_wav2vec_forward.14} parent=0 // pred_fallthru
    _
  // Predicated region
  $region26: #{covid_wav2vec_forward.14} parent=0 // pred_check
    _
  $region27: #{covid_wav2vec_forward.14} parent=0 // pred_check_branch
    %438 = sbr.rel (0) target = $region29
  $region28: #{covid_wav2vec_forward.14} parent=0 // pred_region
    _
  $region29: #{covid_wav2vec_forward.14} parent=0 // pred_fallthru
    _

// kernel: covid_wav2vec_forward.15
$region0: #{covid_wav2vec_forward.15}
  #allocation0 [shape = 'u32[]', space=smem, size = 0x4, offset = 0x4, fixed_abs, tag = 'smem constant byte address 0x4 - core index']
  #allocation1 [shape = 'u32[144,128]{1,0:T(1,128)}', space=vmem, size = 0x12000, scoped, tag = 'internal scratch']
  %s0 = inlined_call_operand.vmem [shape: f32[2,96,512], index: 0, kind: input, shape index: {}]
  %s1 = inlined_call_operand.vmem [shape: bf16[2,512,128], index: 1, kind: input, shape index: {}]
  %s2 = inlined_call_operand.vmem [shape: f32[2,1,128], index: 2, kind: input, shape index: {}]
  %s3 = inlined_call_operand.vmem [shape: f32[2,96,128], index: 3, kind: output, shape index: {}]
  %s4 = sld [smem:[#allocation0]]
  $region45: #{covid_wav2vec_forward.15} parent=0
    _
  %s6 = ssub.s32 1, %s4
  %s7 = scalar_select 0, %s6, %s4
  loop: start=0, step=1, limit=4
  $region2: #{covid_wav2vec_forward.15} parent=0 // loop_pre_header
    _
  $region3: #{covid_wav2vec_forward.15} parent=0 // loop_header
    %s9 = sphi 0, %s13
    %p10 = scmp.ge.s32.totalorder %s9, 4
    %s19 = sphi 0, %s21
    %s22 = sphi 0, %s19
    %s23 = sphi 0, %s22
    %s39 = sphi 0, %s23
    %s45 = sphi 0, %s47
    %s48 = sphi 0, %s45
    %s49 = sphi 0, %s48
    %s65 = sphi 0, %s49
    %s71 = sphi 0, %s73
    %s74 = sphi 0, %s71
    %s75 = sphi 0, %s74
    %s91 = sphi 0, %s75
    %s97 = sphi 0, %s99
    %s100 = sphi 0, %s97
    %s101 = sphi 0, %s100
    %s117 = sphi 0, %s101
  $region4: #{covid_wav2vec_forward.15} parent=0 // loop_header_branch
    %12 = sbr.rel (%p10) target = $region8
  $region5: #{covid_wav2vec_forward.15} parent=0 // loop_body
    %s14 = ssub.s32 %s9, 1
    %s15 = ssub.s32 %s9, 2
    %s16 = sadd.s32 %s9, 1
    %s17 = ssub.s32 %s9, %s16
    %p18 = scmp.eq.s32.totalorder %s17, 0
    %s20 = sadd.s32 %s19, 1
    %s21 = scalar_select %p18, %s19, %s20
    %p24 = pneg %p18
    %p25 = scmp.eq.s32.totalorder %s9, 1
    %p26 = por %p24, %p25
    %p27 = scmp.ne.s32.totalorder %s19, %s22
    %p28 = scmp.eq.s32.totalorder %s9, 0
    %p29 = por %p27, %p28
    %p30 = scmp.ne.s32.totalorder %s19, %s22
    %p31 = scmp.eq.s32.totalorder %s14, 1
    %p32 = por %p30, %p31
    %p33 = scmp.ne.s32.totalorder %s22, %s23
    %p34 = scmp.eq.s32.totalorder %s14, 0
    %p35 = por %p33, %p34
    %p36 = scmp.ne.s32.totalorder %s22, %s23
    %p37 = scmp.eq.s32.totalorder %s15, 1
    %p38 = por %p36, %p37
    %p40 = scmp.ne.s32.totalorder %s23, %s39
    %p41 = scmp.eq.s32.totalorder %s15, 0
    %p42 = por %p40, %p41
    %s43 = ssub.s32 %s9, %s16
    %p44 = scmp.eq.s32.totalorder %s43, 0
    %s46 = sadd.s32 %s45, 1
    %s47 = scalar_select %p44, %s45, %s46
    %p50 = pneg %p44
    %p51 = scmp.eq.s32.totalorder %s9, 1
    %p52 = por %p50, %p51
    %p53 = scmp.ne.s32.totalorder %s45, %s48
    %p54 = scmp.eq.s32.totalorder %s9, 0
    %p55 = por %p53, %p54
    %p56 = scmp.ne.s32.totalorder %s45, %s48
    %p57 = scmp.eq.s32.totalorder %s14, 1
    %p58 = por %p56, %p57
    %p59 = scmp.ne.s32.totalorder %s48, %s49
    %p60 = scmp.eq.s32.totalorder %s14, 0
    %p61 = por %p59, %p60
    %p62 = scmp.ne.s32.totalorder %s48, %s49
    %p63 = scmp.eq.s32.totalorder %s15, 1
    %p64 = por %p62, %p63
    %p66 = scmp.ne.s32.totalorder %s49, %s65
    %p67 = scmp.eq.s32.totalorder %s15, 0
    %p68 = por %p66, %p67
    %s69 = ssub.s32 %s9, %s16
    %p70 = scmp.eq.s32.totalorder %s69, 0
    %s72 = sadd.s32 %s71, 1
    %s73 = scalar_select %p70, %s71, %s72
    %p76 = pneg %p70
    %p77 = scmp.eq.s32.totalorder %s9, 1
    %p78 = por %p76, %p77
    %p79 = scmp.ne.s32.totalorder %s71, %s74
    %p80 = scmp.eq.s32.totalorder %s9, 0
    %p81 = por %p79, %p80
    %p82 = scmp.ne.s32.totalorder %s71, %s74
    %p83 = scmp.eq.s32.totalorder %s14, 1
    %p84 = por %p82, %p83
    %p85 = scmp.ne.s32.totalorder %s74, %s75
    %p86 = scmp.eq.s32.totalorder %s14, 0
    %p87 = por %p85, %p86
    %p88 = scmp.ne.s32.totalorder %s74, %s75
    %p89 = scmp.eq.s32.totalorder %s15, 1
    %p90 = por %p88, %p89
    %p92 = scmp.ne.s32.totalorder %s75, %s91
    %p93 = scmp.eq.s32.totalorder %s15, 0
    %p94 = por %p92, %p93
    %s95 = ssub.s32 %s9, %s16
    %p96 = scmp.eq.s32.totalorder %s95, 0
    %s98 = sadd.s32 %s97, 1
    %s99 = scalar_select %p96, %s97, %s98
    %p102 = pneg %p96
    %p103 = scmp.eq.s32.totalorder %s9, 1
    %p104 = por %p102, %p103
    %p105 = scmp.ne.s32.totalorder %s97, %s100
    %p106 = scmp.eq.s32.totalorder %s9, 0
    %p107 = por %p105, %p106
    %p108 = scmp.ne.s32.totalorder %s97, %s100
    %p109 = scmp.eq.s32.totalorder %s14, 1
    %p110 = por %p108, %p109
    %p111 = scmp.ne.s32.totalorder %s100, %s101
    %p112 = scmp.eq.s32.totalorder %s14, 0
    %p113 = por %p111, %p112
    %p114 = scmp.ne.s32.totalorder %s100, %s101
    %p115 = scmp.eq.s32.totalorder %s15, 1
    %p116 = por %p114, %p115
    %p118 = scmp.ne.s32.totalorder %s101, %s117
    %p119 = scmp.eq.s32.totalorder %s15, 0
    %p120 = por %p118, %p119
    %p121 = scmp.le.s32.totalorder 1, %s9
    %p122 = scmp.lt.s32.totalorder %s9, 3
    %p123 = pnand %p121, %p122
    %p124 = pneg %p123
    // Predicated region
    $region9: #{covid_wav2vec_forward.15} parent=5 // pred_check
      _
    $region10: #{covid_wav2vec_forward.15} parent=5 // pred_check_branch
      %126 = sbr.rel (%p123) target = $region12
    $region11: #{covid_wav2vec_forward.15} parent=5 // pred_region
      %s127 = ssub.s32 %s9, 1
    $region12: #{covid_wav2vec_forward.15} parent=5 // pred_fallthru
      _
    %p128 = scmp.lt.s32.totalorder %s9, 2
    // Predicated region
    $region13: #{covid_wav2vec_forward.15} parent=5 // pred_check
      %p129 = pneg %p128
    $region14: #{covid_wav2vec_forward.15} parent=5 // pred_check_branch
      %131 = sbr.rel (%p129) target = $region16
    $region15: #{covid_wav2vec_forward.15} parent=5 // pred_region
      // Predicated region
      $region17: #{covid_wav2vec_forward.15} parent=15 // pred_check
        %p132 = pneg %p29
      $region18: #{covid_wav2vec_forward.15} parent=15 // pred_check_branch
        %134 = sbr.rel (%p132) target = $region20
      $region19: #{covid_wav2vec_forward.15} parent=15 // pred_region
        %p135 = scmp.lt.s32.totalorder %s9, 1
        %s136 = scalar_select %p135, %s9, 1
        %s137 = smul.addr %s136, 48
        %s138 = smul.addr %s137, 8
        %s139 = scalar_lea.vmem %s0, %s138
      $region20: #{covid_wav2vec_forward.15} parent=15 // pred_fallthru
        _
      // Predicated region
      $region21: #{covid_wav2vec_forward.15} parent=15 // pred_check
        %p140 = pneg %p55
      $region22: #{covid_wav2vec_forward.15} parent=15 // pred_check_branch
        %142 = sbr.rel (%p140) target = $region24
      $region23: #{covid_wav2vec_forward.15} parent=15 // pred_region
        %p143 = scmp.lt.s32.totalorder %s9, 1
        %s144 = scalar_select %p143, %s9, 1
        %s145 = smul.addr %s144, 64
        %s146 = smul.addr %s145, 4
        %s147 = scalar_lea.vmem %s1, %s146
      $region24: #{covid_wav2vec_forward.15} parent=15 // pred_fallthru
        _
      // Predicated region
      $region25: #{covid_wav2vec_forward.15} parent=15 // pred_check
        %p148 = pneg %p81
      $region26: #{covid_wav2vec_forward.15} parent=15 // pred_check_branch
        %150 = sbr.rel (%p148) target = $region28
      $region27: #{covid_wav2vec_forward.15} parent=15 // pred_region
        %p151 = scmp.lt.s32.totalorder %s9, 1
        %s152 = scalar_select %p151, %s9, 1
        %s153 = scalar_lea.vmem %s2, %s152
      $region28: #{covid_wav2vec_forward.15} parent=15 // pred_fallthru
        _
    $region16: #{covid_wav2vec_forward.15} parent=5 // pred_fallthru
      _
    %p154 = scmp.le.s32.totalorder 1, %s9
    %p155 = scmp.lt.s32.totalorder %s9, 3
    %p156 = pnand %p154, %p155
    %p157 = pneg %p156
    // Predicated region
    $region29: #{covid_wav2vec_forward.15} parent=5 // pred_check
      _
    $region30: #{covid_wav2vec_forward.15} parent=5 // pred_check_branch
      %159 = sbr.rel (%p156) target = $region32
    $region31: #{covid_wav2vec_forward.15} parent=5 // pred_region
      %s160 = ssub.s32 %s9, 1
      %p161 = scmp.lt.s32.totalorder %s14, 1
      %s162 = scalar_select %p161, %s14, 1
      %s163 = smul.addr %s162, 48
      %s164 = smul.addr %s163, 8
      %s165 = scalar_lea.vmem %s0, %s164
      %p166 = pneg %p35
      %p167 = pneg %p32
      %p168 = scmp.lt.s32.totalorder %s14, 1
      %s169 = scalar_select %p168, %s14, 1
      %s170 = smul.addr %s169, 64
      %s171 = smul.addr %s170, 4
      %s172 = scalar_lea.vmem %s1, %s171
      %p173 = pneg %p61
      %p174 = pneg %p58
      %p175 = scmp.lt.s32.totalorder %s14, 1
      %s176 = scalar_select %p175, %s14, 1
      %s177 = scalar_lea.vmem %s2, %s176
      %p178 = pneg %p87
      %p179 = pneg %p84
      %p180 = pneg %p113
      %p181 = pneg %p110
      %p182 = scmp.lt.s32.totalorder %s14, 1
      %s183 = scalar_select %p182, %s14, 1
      %s184 = smul.addr %s183, 12
      %s185 = smul.addr %s184, 8
      %s186 = scalar_lea.vmem %s3, %s185
      %p187 = scmp.lt.s32.totalorder %s14, 1
      %s188 = scalar_select %p187, %s14, 1
      %s189 = smul.addr %s188, 48
      %s190 = smul.addr %s189, 8
      %s191 = scalar_lea.vmem %s0, %s190
      %p192 = scmp.lt.s32.totalorder %s14, 1
      %s193 = scalar_select %p192, %s14, 1
      %s194 = smul.addr %s193, 64
      %s195 = smul.addr %s194, 4
      %s196 = scalar_lea.vmem %s1, %s195
      %p197 = scmp.lt.s32.totalorder %s14, 1
      %s198 = scalar_select %p197, %s14, 1
      %s199 = scalar_lea.vmem %s2, %s198
      %p200 = scmp.lt.s32.totalorder %s14, 1
      %s201 = scalar_select %p200, %s14, 1
      %s202 = smul.addr %s201, 12
      %s203 = smul.addr %s202, 8
      %s204 = scalar_lea.vmem %s3, %s203
      %v206 = vld [vmem:[%s191] sm:$0xff]
      %v207 = vld [vmem:[%s191 + $0x8] sm:$0xff]
      %v208 = vld [vmem:[%s191 + $0x10] sm:$0xff]
      %v209 = vld [vmem:[%s191 + $0x18] sm:$0xff]
      %v210 = vld [vmem:[%s191 + $0x20] sm:$0xff]
      %v211 = vld [vmem:[%s191 + $0x28] sm:$0xff]
      %v212 = vld [vmem:[%s191 + $0x30] sm:$0xff]
      %v213 = vld [vmem:[%s191 + $0x38] sm:$0xff]
      %v214 = vld [vmem:[%s191 + $0x40] sm:$0xff]
      %v215 = vld [vmem:[%s191 + $0x48] sm:$0xff]
      %v216 = vld [vmem:[%s191 + $0x50] sm:$0xff]
      %v217 = vld [vmem:[%s191 + $0x58] sm:$0xff]
      %v218 = vld [vmem:[%s191 + $0x60] sm:$0xff]
      %v219 = vld [vmem:[%s191 + $0x68] sm:$0xff]
      %v220 = vld [vmem:[%s191 + $0x70] sm:$0xff]
      %v221 = vld [vmem:[%s191 + $0x78] sm:$0xff]
      %v222 = vld [vmem:[%s191 + $0x80] sm:$0xff]
      %v223 = vld [vmem:[%s191 + $0x88] sm:$0xff]
      %v224 = vld [vmem:[%s191 + $0x90] sm:$0xff]
      %v225 = vld [vmem:[%s191 + $0x98] sm:$0xff]
      %v226 = vld [vmem:[%s191 + $0xa0] sm:$0xff]
      %v227 = vld [vmem:[%s191 + $0xa8] sm:$0xff]
      %v228 = vld [vmem:[%s191 + $0xb0] sm:$0xff]
      %v229 = vld [vmem:[%s191 + $0xb8] sm:$0xff]
      %v230 = vld [vmem:[%s191 + $0xc0] sm:$0xff]
      %v231 = vld [vmem:[%s191 + $0xc8] sm:$0xff]
      %v232 = vld [vmem:[%s191 + $0xd0] sm:$0xff]
      %v233 = vld [vmem:[%s191 + $0xd8] sm:$0xff]
      %v234 = vld [vmem:[%s191 + $0xe0] sm:$0xff]
      %v235 = vld [vmem:[%s191 + $0xe8] sm:$0xff]
      %v236 = vld [vmem:[%s191 + $0xf0] sm:$0xff]
      %v237 = vld [vmem:[%s191 + $0xf8] sm:$0xff]
      %v238 = vld [vmem:[%s191 + $0x100] sm:$0xff]
      %v239 = vld [vmem:[%s191 + $0x108] sm:$0xff]
      %v240 = vld [vmem:[%s191 + $0x110] sm:$0xff]
      %v241 = vld [vmem:[%s191 + $0x118] sm:$0xff]
      %v242 = vld [vmem:[%s191 + $0x120] sm:$0xff]
      %v243 = vld [vmem:[%s191 + $0x128] sm:$0xff]
      %v244 = vld [vmem:[%s191 + $0x130] sm:$0xff]
      %v245 = vld [vmem:[%s191 + $0x138] sm:$0xff]
      %v246 = vld [vmem:[%s191 + $0x140] sm:$0xff]
      %v247 = vld [vmem:[%s191 + $0x148] sm:$0xff]
      %v248 = vld [vmem:[%s191 + $0x150] sm:$0xff]
      %v249 = vld [vmem:[%s191 + $0x158] sm:$0xff]
      %v250 = vld [vmem:[%s191 + $0x160] sm:$0xff]
      %v251 = vld [vmem:[%s191 + $0x168] sm:$0xff]
      %v252 = vld [vmem:[%s191 + $0x170] sm:$0xff]
      %v253 = vld [vmem:[%s191 + $0x178] sm:$0xff]
      %v254 = vld [vmem:[%s196] sm:$0xf]
      %v255 = vld [vmem:[%s196 + $0x4] sm:$0xf]
      %v256 = vld [vmem:[%s196 + $0x8] sm:$0xf]
      %v257 = vld [vmem:[%s196 + $0xc] sm:$0xf]
      %v258 = vld [vmem:[%s196 + $0x10] sm:$0xf]
      %v259 = vld [vmem:[%s196 + $0x14] sm:$0xf]
      %v260 = vld [vmem:[%s196 + $0x18] sm:$0xf]
      %v261 = vld [vmem:[%s196 + $0x1c] sm:$0xf]
      %v262 = vld [vmem:[%s196 + $0x20] sm:$0xf]
      %v263 = vld [vmem:[%s196 + $0x24] sm:$0xf]
      %v264 = vld [vmem:[%s196 + $0x28] sm:$0xf]
      %v265 = vld [vmem:[%s196 + $0x2c] sm:$0xf]
      %v266 = vld [vmem:[%s196 + $0x30] sm:$0xf]
      %v267 = vld [vmem:[%s196 + $0x34] sm:$0xf]
      %v268 = vld [vmem:[%s196 + $0x38] sm:$0xf]
      %v269 = vld [vmem:[%s196 + $0x3c] sm:$0xf]
      %v270 = vld [vmem:[%s196 + $0x40] sm:$0xf]
      %v271 = vld [vmem:[%s196 + $0x44] sm:$0xf]
      %v272 = vld [vmem:[%s196 + $0x48] sm:$0xf]
      %v273 = vld [vmem:[%s196 + $0x4c] sm:$0xf]
      %v274 = vld [vmem:[%s196 + $0x50] sm:$0xf]
      %v275 = vld [vmem:[%s196 + $0x54] sm:$0xf]
      %v276 = vld [vmem:[%s196 + $0x58] sm:$0xf]
      %v277 = vld [vmem:[%s196 + $0x5c] sm:$0xf]
      %v278 = vld [vmem:[%s196 + $0x60] sm:$0xf]
      %v279 = vld [vmem:[%s196 + $0x64] sm:$0xf]
      %v280 = vld [vmem:[%s196 + $0x68] sm:$0xf]
      %v281 = vld [vmem:[%s196 + $0x6c] sm:$0xf]
      %v282 = vld [vmem:[%s196 + $0x70] sm:$0xf]
      %v283 = vld [vmem:[%s196 + $0x74] sm:$0xf]
      %v284 = vld [vmem:[%s196 + $0x78] sm:$0xf]
      %v285 = vld [vmem:[%s196 + $0x7c] sm:$0xf]
      %v286 = vld [vmem:[%s196 + $0x80] sm:$0xf]
      %v287 = vld [vmem:[%s196 + $0x84] sm:$0xf]
      %v288 = vld [vmem:[%s196 + $0x88] sm:$0xf]
      %v289 = vld [vmem:[%s196 + $0x8c] sm:$0xf]
      %v290 = vld [vmem:[%s196 + $0x90] sm:$0xf]
      %v291 = vld [vmem:[%s196 + $0x94] sm:$0xf]
      %v292 = vld [vmem:[%s196 + $0x98] sm:$0xf]
      %v293 = vld [vmem:[%s196 + $0x9c] sm:$0xf]
      %v294 = vld [vmem:[%s196 + $0xa0] sm:$0xf]
      %v295 = vld [vmem:[%s196 + $0xa4] sm:$0xf]
      %v296 = vld [vmem:[%s196 + $0xa8] sm:$0xf]
      %v297 = vld [vmem:[%s196 + $0xac] sm:$0xf]
      %v298 = vld [vmem:[%s196 + $0xb0] sm:$0xf]
      %v299 = vld [vmem:[%s196 + $0xb4] sm:$0xf]
      %v300 = vld [vmem:[%s196 + $0xb8] sm:$0xf]
      %v301 = vld [vmem:[%s196 + $0xbc] sm:$0xf]
      %v302 = vld [vmem:[%s196 + $0xc0] sm:$0xf]
      %v303 = vld [vmem:[%s196 + $0xc4] sm:$0xf]
      %v304 = vld [vmem:[%s196 + $0xc8] sm:$0xf]
      %v305 = vld [vmem:[%s196 + $0xcc] sm:$0xf]
      %v306 = vld [vmem:[%s196 + $0xd0] sm:$0xf]
      %v307 = vld [vmem:[%s196 + $0xd4] sm:$0xf]
      %v308 = vld [vmem:[%s196 + $0xd8] sm:$0xf]
      %v309 = vld [vmem:[%s196 + $0xdc] sm:$0xf]
      %v310 = vld [vmem:[%s196 + $0xe0] sm:$0xf]
      %v311 = vld [vmem:[%s196 + $0xe4] sm:$0xf]
      %v312 = vld [vmem:[%s196 + $0xe8] sm:$0xf]
      %v313 = vld [vmem:[%s196 + $0xec] sm:$0xf]
      %v314 = vld [vmem:[%s196 + $0xf0] sm:$0xf]
      %v315 = vld [vmem:[%s196 + $0xf4] sm:$0xf]
      %v316 = vld [vmem:[%s196 + $0xf8] sm:$0xf]
      %v317 = vld [vmem:[%s196 + $0xfc] sm:$0xf]
      %v318 = vpack.c.bf16 %v210, %v206
      %v319 = vpack.c.bf16 %v211, %v207
      %v320 = vpack.c.bf16 %v212, %v208
      %v321 = vpack.c.bf16 %v213, %v209
      %v322 = vpack.c.bf16 %v218, %v214
      %v323 = vpack.c.bf16 %v219, %v215
      %v324 = vpack.c.bf16 %v220, %v216
      %v325 = vpack.c.bf16 %v221, %v217
      %v326 = vpack.c.bf16 %v226, %v222
      %v327 = vpack.c.bf16 %v227, %v223
      %v328 = vpack.c.bf16 %v228, %v224
      %v329 = vpack.c.bf16 %v229, %v225
      %v330 = vpack.c.bf16 %v234, %v230
      %v331 = vpack.c.bf16 %v235, %v231
      %v332 = vpack.c.bf16 %v236, %v232
      %v333 = vpack.c.bf16 %v237, %v233
      %v334 = vpack.c.bf16 %v242, %v238
      %v335 = vpack.c.bf16 %v243, %v239
      %v336 = vpack.c.bf16 %v244, %v240
      %v337 = vpack.c.bf16 %v245, %v241
      %v338 = vpack.c.bf16 %v250, %v246
      %v339 = vpack.c.bf16 %v251, %v247
      %v340 = vpack.c.bf16 %v252, %v248
      %v341 = vpack.c.bf16 %v253, %v249
      %v342 = vld [vmem:[%s199] sm:$0x1]
      %v344 = vlaneseq
      %v345 = vshrl.u32 %v344, 7
      %v346 = vsub.s32 0, %v345
      %v347 = vrot.slane %v342, %v346
      %v413 = vunpack.c.l.b16 %v254
      %v414 = vunpack.c.l.b16 %v255
      %v415 = vunpack.c.l.b16 %v256
      %v416 = vunpack.c.l.b16 %v257
      %v417 = vunpack.c.l.b16 %v258
      %v418 = vunpack.c.l.b16 %v259
      %v419 = vunpack.c.l.b16 %v260
      %v420 = vunpack.c.l.b16 %v261
      %v421 = vunpack.c.l.b16 %v262
      %v422 = vunpack.c.l.b16 %v263
      %v423 = vunpack.c.l.b16 %v264
      %v424 = vunpack.c.l.b16 %v265
      %v425 = vunpack.c.l.b16 %v266
      %v426 = vunpack.c.l.b16 %v267
      %v427 = vunpack.c.l.b16 %v268
      %v428 = vunpack.c.l.b16 %v269
      %v429 = vunpack.c.l.b16 %v270
      %v430 = vunpack.c.l.b16 %v271
      %v431 = vunpack.c.l.b16 %v272
      %v432 = vunpack.c.l.b16 %v273
      %v433 = vunpack.c.l.b16 %v274
      %v434 = vunpack.c.l.b16 %v275
      %v435 = vunpack.c.l.b16 %v276
      %v436 = vunpack.c.l.b16 %v277
      %v437 = vunpack.c.l.b16 %v278
      %v438 = vunpack.c.l.b16 %v279
      %v439 = vunpack.c.l.b16 %v280
      %v440 = vunpack.c.l.b16 %v281
      %v441 = vunpack.c.l.b16 %v282
      %v442 = vunpack.c.l.b16 %v283
      %v443 = vunpack.c.l.b16 %v284
      %v444 = vunpack.c.l.b16 %v285
      %v445 = vunpack.c.l.b16 %v286
      %v446 = vunpack.c.l.b16 %v287
      %v447 = vunpack.c.l.b16 %v288
      %v448 = vunpack.c.l.b16 %v289
      %v449 = vunpack.c.l.b16 %v290
      %v450 = vunpack.c.l.b16 %v291
      %v451 = vunpack.c.l.b16 %v292
      %v452 = vunpack.c.l.b16 %v293
      %v453 = vunpack.c.l.b16 %v294
      %v454 = vunpack.c.l.b16 %v295
      %v455 = vunpack.c.l.b16 %v296
      %v456 = vunpack.c.l.b16 %v297
      %v457 = vunpack.c.l.b16 %v298
      %v458 = vunpack.c.l.b16 %v299
      %v459 = vunpack.c.l.b16 %v300
      %v460 = vunpack.c.l.b16 %v301
      %v461 = vunpack.c.l.b16 %v302
      %v462 = vunpack.c.l.b16 %v303
      %v463 = vunpack.c.l.b16 %v304
      %v464 = vunpack.c.l.b16 %v305
      %v465 = vunpack.c.l.b16 %v306
      %v466 = vunpack.c.l.b16 %v307
      %v467 = vunpack.c.l.b16 %v308
      %v468 = vunpack.c.l.b16 %v309
      %v469 = vunpack.c.l.b16 %v310
      %v470 = vunpack.c.l.b16 %v311
      %v471 = vunpack.c.l.b16 %v312
      %v472 = vunpack.c.l.b16 %v313
      %v473 = vunpack.c.l.b16 %v314
      %v474 = vunpack.c.l.b16 %v315
      %v475 = vunpack.c.l.b16 %v316
      %v476 = vunpack.c.l.b16 %v317
      %v477 = vpack.c.b16 %v414, %v413
      %v478 = vpack.c.b16 %v416, %v415
      %v479 = vpack.c.b16 %v418, %v417
      %v480 = vpack.c.b16 %v420, %v419
      %v481 = vpack.c.b16 %v422, %v421
      %v482 = vpack.c.b16 %v424, %v423
      %v483 = vpack.c.b16 %v426, %v425
      %v484 = vpack.c.b16 %v428, %v427
      %v485 = vpack.c.b16 %v430, %v429
      %v486 = vpack.c.b16 %v432, %v431
      %v487 = vpack.c.b16 %v434, %v433
      %v488 = vpack.c.b16 %v436, %v435
      %v489 = vpack.c.b16 %v438, %v437
      %v490 = vpack.c.b16 %v440, %v439
      %v491 = vpack.c.b16 %v442, %v441
      %v492 = vpack.c.b16 %v444, %v443
      %v493 = vpack.c.b16 %v446, %v445
      %v494 = vpack.c.b16 %v448, %v447
      %v495 = vpack.c.b16 %v450, %v449
      %v496 = vpack.c.b16 %v452, %v451
      %v497 = vpack.c.b16 %v454, %v453
      %v498 = vpack.c.b16 %v456, %v455
      %v499 = vpack.c.b16 %v458, %v457
      %v500 = vpack.c.b16 %v460, %v459
      %v501 = vpack.c.b16 %v462, %v461
      %v502 = vpack.c.b16 %v464, %v463
      %v503 = vpack.c.b16 %v466, %v465
      %v504 = vpack.c.b16 %v468, %v467
      %v505 = vpack.c.b16 %v470, %v469
      %v506 = vpack.c.b16 %v472, %v471
      %v507 = vpack.c.b16 %v474, %v473
      %v508 = vpack.c.b16 %v476, %v475
      %541 = vmatprep.subr.bf16.mxu0 0
      %542 = vmatpush1.bf16.msra.mxu0 %v477
      %543 = vmatprep.subr.bf16.mxu0 0
      %544 = vmatpush1.bf16.msra.mxu0 %v478
      %545 = vmatprep.subr.bf16.mxu0 0
      %546 = vmatpush1.bf16.msra.mxu0 %v479
      %547 = vmatprep.subr.bf16.mxu0 0
      %548 = vmatpush1.bf16.msra.mxu0 %v480
      %549 = vmatprep.subr.bf16.mxu0 0
      %550 = vmatpush1.bf16.msra.mxu0 %v481
      %551 = vmatprep.subr.bf16.mxu0 0
      %552 = vmatpush1.bf16.msra.mxu0 %v482
      %553 = vmatprep.subr.bf16.mxu0 0
      %554 = vmatpush1.bf16.msra.mxu0 %v483
      %555 = vmatprep.subr.bf16.mxu0 0
      %556 = vmatpush1.bf16.msra.mxu0 %v484
      %557 = vmatprep.subr.bf16.mxu0 0
      %558 = vmatpush1.bf16.msra.mxu0 %v485
      %559 = vmatprep.subr.bf16.mxu0 0
      %560 = vmatpush1.bf16.msra.mxu0 %v486
      %561 = vmatprep.subr.bf16.mxu0 0
      %562 = vmatpush1.bf16.msra.mxu0 %v487
      %563 = vmatprep.subr.bf16.mxu0 0
      %564 = vmatpush1.bf16.msra.mxu0 %v488
      %565 = vmatprep.subr.bf16.mxu0 0
      %566 = vmatpush1.bf16.msra.mxu0 %v489
      %567 = vmatprep.subr.bf16.mxu0 0
      %568 = vmatpush1.bf16.msra.mxu0 %v490
      %569 = vmatprep.subr.bf16.mxu0 0
      %570 = vmatpush1.bf16.msra.mxu0 %v491
      %571 = vmatprep.subr.bf16.mxu0 0
      %572 = vmatpush1.bf16.msra.mxu0 %v492
      %573 = vmatprep.mubr.bf16.mxu0 %v319
      %574 = vmatmul.mubr.bf16.gmra.mrb[0].mxu0 %v318
      %v575 = vpop.f32.mrb[0].mxu0
      %v576 = vadd.f32 %v347, %v575
      %v577 = vpop.f32.mrb[0].mxu0
      %v578 = vpop.f32.mrb[0].mxu0
      %v579 = vadd.f32 %v347, %v578
      %v580 = vpop.f32.mrb[0].mxu0
      %581 = vmatprep.mubr.bf16.mxu0 %v323
      %582 = vmatmul.mubr.bf16.gmra.mrb[0].mxu0 %v322
      %v583 = vpop.f32.mrb[0].mxu0
      %v584 = vadd.f32 %v347, %v583
      %v585 = vpop.f32.mrb[0].mxu0
      %v586 = vpop.f32.mrb[0].mxu0
      %v587 = vadd.f32 %v347, %v586
      %v588 = vpop.f32.mrb[0].mxu0
      %589 = vmatprep.mubr.bf16.mxu0 %v327
      %590 = vmatmul.mubr.bf16.gmra.mrb[0].mxu0 %v326
      %v591 = vpop.f32.mrb[0].mxu0
      %v592 = vadd.f32 %v347, %v591
      %v593 = vpop.f32.mrb[0].mxu0
      %v594 = vpop.f32.mrb[0].mxu0
      %v595 = vadd.f32 %v347, %v594
      %v596 = vpop.f32.mrb[0].mxu0
      %597 = vmatprep.mubr.bf16.mxu0 %v331
      %598 = vmatmul.mubr.bf16.gmra.mrb[0].mxu0 %v330
      %v599 = vpop.f32.mrb[0].mxu0
      %v600 = vadd.f32 %v347, %v599
      %v601 = vpop.f32.mrb[0].mxu0
      %v602 = vpop.f32.mrb[0].mxu0
      %v603 = vadd.f32 %v347, %v602
      %v604 = vpop.f32.mrb[0].mxu0
      %605 = vmatprep.mubr.bf16.mxu0 %v335
      %606 = vmatmul.mubr.bf16.gmra.mrb[0].mxu0 %v334
      %v607 = vpop.f32.mrb[0].mxu0
      %v608 = vadd.f32 %v347, %v607
      %v609 = vpop.f32.mrb[0].mxu0
      %v610 = vpop.f32.mrb[0].mxu0
      %v611 = vadd.f32 %v347, %v610
      %v612 = vpop.f32.mrb[0].mxu0
      %613 = vmatprep.mubr.bf16.mxu0 %v339
      %614 = vmatmul.mubr.bf16.gmra.mrb[0].mxu0 %v338
      %v615 = vpop.f32.mrb[0].mxu0
      %v616 = vadd.f32 %v347, %v615
      %v617 = vpop.f32.mrb[0].mxu0
      %v618 = vpop.f32.mrb[0].mxu0
      %v619 = vadd.f32 %v347, %v618
      %v620 = vpop.f32.mrb[0].mxu0
      %621 = vdwg.mxu0
      %622 = vmatprep.subr.bf16.mxu0 0
      %623 = vmatpush1.bf16.msra.mxu0 %v493
      %624 = vmatprep.subr.bf16.mxu0 0
      %625 = vmatpush1.bf16.msra.mxu0 %v494
      %626 = vmatprep.subr.bf16.mxu0 0
      %627 = vmatpush1.bf16.msra.mxu0 %v495
      %628 = vmatprep.subr.bf16.mxu0 0
      %629 = vmatpush1.bf16.msra.mxu0 %v496
      %630 = vmatprep.subr.bf16.mxu0 0
      %631 = vmatpush1.bf16.msra.mxu0 %v497
      %632 = vmatprep.subr.bf16.mxu0 0
      %633 = vmatpush1.bf16.msra.mxu0 %v498
      %634 = vmatprep.subr.bf16.mxu0 0
      %635 = vmatpush1.bf16.msra.mxu0 %v499
      %636 = vmatprep.subr.bf16.mxu0 0
      %637 = vmatpush1.bf16.msra.mxu0 %v500
      %638 = vmatprep.subr.bf16.mxu0 0
      %639 = vmatpush1.bf16.msra.mxu0 %v501
      %640 = vmatprep.subr.bf16.mxu0 0
      %641 = vmatpush1.bf16.msra.mxu0 %v502
      %642 = vmatprep.subr.bf16.mxu0 0
      %643 = vmatpush1.bf16.msra.mxu0 %v503
      %644 = vmatprep.subr.bf16.mxu0 0
      %645 = vmatpush1.bf16.msra.mxu0 %v504
      %646 = vmatprep.subr.bf16.mxu0 0
      %647 = vmatpush1.bf16.msra.mxu0 %v505
      %648 = vmatprep.subr.bf16.mxu0 0
      %649 = vmatpush1.bf16.msra.mxu0 %v506
      %650 = vmatprep.subr.bf16.mxu0 0
      %651 = vmatpush1.bf16.msra.mxu0 %v507
      %652 = vmatprep.subr.bf16.mxu0 0
      %653 = vmatpush1.bf16.msra.mxu0 %v508
      %654 = vmatprep.mubr.bf16.mxu0 %v321
      %655 = vmatmul.mubr.bf16.gmra.mrb[0].mxu0 %v320
      %v656 = vpop.f32.mrb[0].mxu0
      %v657 = vadd.f32 %v576, %v656
      %v658 = vpop.f32.mrb[0].mxu0
      %v659 = vpop.f32.mrb[0].mxu0
      %v660 = vadd.f32 %v579, %v659
      %v661 = vpop.f32.mrb[0].mxu0
      %662 = vmatprep.mubr.bf16.mxu0 %v325
      %663 = vmatmul.mubr.bf16.gmra.mrb[0].mxu0 %v324
      %v664 = vpop.f32.mrb[0].mxu0
      %v665 = vadd.f32 %v584, %v664
      %v666 = vpop.f32.mrb[0].mxu0
      %v667 = vpop.f32.mrb[0].mxu0
      %v668 = vadd.f32 %v587, %v667
      %v669 = vpop.f32.mrb[0].mxu0
      %670 = vmatprep.mubr.bf16.mxu0 %v329
      %671 = vmatmul.mubr.bf16.gmra.mrb[0].mxu0 %v328
      %v672 = vpop.f32.mrb[0].mxu0
      %v673 = vadd.f32 %v592, %v672
      %v674 = vpop.f32.mrb[0].mxu0
      %v675 = vpop.f32.mrb[0].mxu0
      %v676 = vadd.f32 %v595, %v675
      %v677 = vpop.f32.mrb[0].mxu0
      %678 = vmatprep.mubr.bf16.mxu0 %v333
      %679 = vmatmul.mubr.bf16.gmra.mrb[0].mxu0 %v332
      %v680 = vpop.f32.mrb[0].mxu0
      %v681 = vadd.f32 %v600, %v680
      %v682 = vpop.f32.mrb[0].mxu0
      %v683 = vpop.f32.mrb[0].mxu0
      %v684 = vadd.f32 %v603, %v683
      %v685 = vpop.f32.mrb[0].mxu0
      %686 = vmatprep.mubr.bf16.mxu0 %v337
      %687 = vmatmul.mubr.bf16.gmra.mrb[0].mxu0 %v336
      %v688 = vpop.f32.mrb[0].mxu0
      %v689 = vadd.f32 %v608, %v688
      %v690 = vpop.f32.mrb[0].mxu0
      %v691 = vpop.f32.mrb[0].mxu0
      %v692 = vadd.f32 %v611, %v691
      %v693 = vpop.f32.mrb[0].mxu0
      %694 = vmatprep.mubr.bf16.mxu0 %v341
      %695 = vmatmul.mubr.bf16.gmra.mrb[0].mxu0 %v340
      %v696 = vpop.f32.mrb[0].mxu0
      %v697 = vadd.f32 %v616, %v696
      %v698 = vpop.f32.mrb[0].mxu0
      %v699 = vpop.f32.mrb[0].mxu0
      %v700 = vadd.f32 %v619, %v699
      %v701 = vpop.f32.mrb[0].mxu0
      %702 = vdwg.mxu0
      %v703 = vmul.f32 %v657, 0.5
      %v704 = vmul.f32 %v660, 0.5
      %v705 = vmul.f32 %v665, 0.5
      %v706 = vmul.f32 %v668, 0.5
      %v707 = vmul.f32 %v673, 0.5
      %v708 = vmul.f32 %v676, 0.5
      %v709 = vmul.f32 %v681, 0.5
      %v710 = vmul.f32 %v684, 0.5
      %v711 = vmul.f32 %v689, 0.5
      %v712 = vmul.f32 %v692, 0.5
      %v713 = vmul.f32 %v697, 0.5
      %v714 = vmul.f32 %v700, 0.5
      %v715 = vmul.f32 %v657, 0.044715
      %v716 = vmul.f32 %v660, 0.044715
      %v717 = vmul.f32 %v665, 0.044715
      %v718 = vmul.f32 %v668, 0.044715
      %v719 = vmul.f32 %v673, 0.044715
      %v720 = vmul.f32 %v676, 0.044715
      %v721 = vmul.f32 %v681, 0.044715
      %v722 = vmul.f32 %v684, 0.044715
      %v723 = vmul.f32 %v689, 0.044715
      %v724 = vmul.f32 %v692, 0.044715
      %v725 = vmul.f32 %v697, 0.044715
      %v726 = vmul.f32 %v700, 0.044715
      %v727 = vmul.f32 %v715, %v657
      %v728 = vmul.f32 %v716, %v660
      %v729 = vmul.f32 %v717, %v665
      %v730 = vmul.f32 %v718, %v668
      %v731 = vmul.f32 %v719, %v673
      %v732 = vmul.f32 %v720, %v676
      %v733 = vmul.f32 %v721, %v681
      %v734 = vmul.f32 %v722, %v684
      %v735 = vmul.f32 %v723, %v689
      %v736 = vmul.f32 %v724, %v692
      %v737 = vmul.f32 %v725, %v697
      %v738 = vmul.f32 %v726, %v700
      %v739 = vmul.f32 %v727, %v657
      %v740 = vmul.f32 %v728, %v660
      %v741 = vmul.f32 %v729, %v665
      %v742 = vmul.f32 %v730, %v668
      %v743 = vmul.f32 %v731, %v673
      %v744 = vmul.f32 %v732, %v676
      %v745 = vmul.f32 %v733, %v681
      %v746 = vmul.f32 %v734, %v684
      %v747 = vmul.f32 %v735, %v689
      %v748 = vmul.f32 %v736, %v692
      %v749 = vmul.f32 %v737, %v697
      %v750 = vmul.f32 %v738, %v700
      %v751 = vadd.f32 %v657, %v739
      %v752 = vadd.f32 %v660, %v740
      %v753 = vadd.f32 %v665, %v741
      %v754 = vadd.f32 %v668, %v742
      %v755 = vadd.f32 %v673, %v743
      %v756 = vadd.f32 %v676, %v744
      %v757 = vadd.f32 %v681, %v745
      %v758 = vadd.f32 %v684, %v746
      %v759 = vadd.f32 %v689, %v747
      %v760 = vadd.f32 %v692, %v748
      %v761 = vadd.f32 %v697, %v749
      %v762 = vadd.f32 %v700, %v750
      %v763 = vmul.f32 %v751, 0.7978846
      %v764 = vmul.f32 %v752, 0.7978846
      %v765 = vmul.f32 %v753, 0.7978846
      %v766 = vmul.f32 %v754, 0.7978846
      %v767 = vmul.f32 %v755, 0.7978846
      %v768 = vmul.f32 %v756, 0.7978846
      %v769 = vmul.f32 %v757, 0.7978846
      %v770 = vmul.f32 %v758, 0.7978846
      %v771 = vmul.f32 %v759, 0.7978846
      %v772 = vmul.f32 %v760, 0.7978846
      %v773 = vmul.f32 %v761, 0.7978846
      %v774 = vmul.f32 %v762, 0.7978846
      %v775 = vtanh.pop %v763
      %v776 = vtanh.pop %v764
      %v777 = vtanh.pop %v765
      %v778 = vtanh.pop %v766
      %v779 = vtanh.pop %v767
      %v780 = vtanh.pop %v768
      %v781 = vtanh.pop %v769
      %v782 = vtanh.pop %v770
      %v783 = vtanh.pop %v771
      %v784 = vtanh.pop %v772
      %v785 = vtanh.pop %v773
      %v786 = vtanh.pop %v774
      %v787 = vadd.f32 %v775, 1.0
      %v788 = vadd.f32 %v776, 1.0
      %v789 = vadd.f32 %v777, 1.0
      %v790 = vadd.f32 %v778, 1.0
      %v791 = vadd.f32 %v779, 1.0
      %v792 = vadd.f32 %v780, 1.0
      %v793 = vadd.f32 %v781, 1.0
      %v794 = vadd.f32 %v782, 1.0
      %v795 = vadd.f32 %v783, 1.0
      %v796 = vadd.f32 %v784, 1.0
      %v797 = vadd.f32 %v785, 1.0
      %v798 = vadd.f32 %v786, 1.0
      %v799 = vmul.f32 %v703, %v787
      %v800 = vmul.f32 %v704, %v788
      %v801 = vmul.f32 %v705, %v789
      %v802 = vmul.f32 %v706, %v790
      %v803 = vmul.f32 %v707, %v791
      %v804 = vmul.f32 %v708, %v792
      %v805 = vmul.f32 %v709, %v793
      %v806 = vmul.f32 %v710, %v794
      %v807 = vmul.f32 %v711, %v795
      %v808 = vmul.f32 %v712, %v796
      %v809 = vmul.f32 %v713, %v797
      %v810 = vmul.f32 %v714, %v798
      %811 = vst [vmem:[%s204] sm:$0xff] %v799
      %812 = vst [vmem:[%s204 + $0x8] sm:$0xff] %v800
      %813 = vst [vmem:[%s204 + $0x10] sm:$0xff] %v801
      %814 = vst [vmem:[%s204 + $0x18] sm:$0xff] %v802
      %815 = vst [vmem:[%s204 + $0x20] sm:$0xff] %v803
      %816 = vst [vmem:[%s204 + $0x28] sm:$0xff] %v804
      %817 = vst [vmem:[%s204 + $0x30] sm:$0xff] %v805
      %818 = vst [vmem:[%s204 + $0x38] sm:$0xff] %v806
      %819 = vst [vmem:[%s204 + $0x40] sm:$0xff] %v807
      %820 = vst [vmem:[%s204 + $0x48] sm:$0xff] %v808
      %821 = vst [vmem:[%s204 + $0x50] sm:$0xff] %v809
      %822 = vst [vmem:[%s204 + $0x58] sm:$0xff] %v810
      %p823 = scmp.lt.s32.totalorder %s14, 1
      %s824 = scalar_select %p823, %s14, 1
      %s825 = smul.addr %s824, 12
      %s826 = smul.addr %s825, 8
      %s827 = scalar_lea.vmem %s3, %s826
      // Predicated region
      $region33: #{covid_wav2vec_forward.15} parent=31 // pred_check
        %p828 = pneg %p110
      $region34: #{covid_wav2vec_forward.15} parent=31 // pred_check_branch
        %830 = sbr.rel (%p828) target = $region36
      $region35: #{covid_wav2vec_forward.15} parent=31 // pred_region
        _
      $region36: #{covid_wav2vec_forward.15} parent=31 // pred_fallthru
        _
    $region32: #{covid_wav2vec_forward.15} parent=5 // pred_fallthru
      _
    %p831 = scmp.le.s32.totalorder 2, %s9
    // Predicated region
    $region37: #{covid_wav2vec_forward.15} parent=5 // pred_check
      %p832 = pneg %p831
    $region38: #{covid_wav2vec_forward.15} parent=5 // pred_check_branch
      %834 = sbr.rel (%p832) target = $region40
    $region39: #{covid_wav2vec_forward.15} parent=5 // pred_region
      %s835 = ssub.s32 %s9, 2
      // Predicated region
      $region41: #{covid_wav2vec_forward.15} parent=39 // pred_check
        %p836 = pneg %p116
      $region42: #{covid_wav2vec_forward.15} parent=39 // pred_check_branch
        %838 = sbr.rel (%p836) target = $region44
      $region43: #{covid_wav2vec_forward.15} parent=39 // pred_region
        %p839 = scmp.lt.s32.totalorder %s15, 1
        %s840 = scalar_select %p839, %s15, 1
        %s841 = smul.addr %s840, 12
        %s842 = smul.addr %s841, 8
        %s843 = scalar_lea.vmem %s3, %s842
      $region44: #{covid_wav2vec_forward.15} parent=39 // pred_fallthru
        _
    $region40: #{covid_wav2vec_forward.15} parent=5 // pred_fallthru
      _
  $region6: #{covid_wav2vec_forward.15} parent=0 // loop_footer
    %s13 = sadd.s32 1, %s9
  $region7: #{covid_wav2vec_forward.15} parent=0 // loop_footer_branch
    %8 = sbr.rel target = $region3
  $region8: #{covid_wav2vec_forward.15} parent=0 // loop_exit
    _

// kernel: covid_wav2vec_forward.16
$region0: #{covid_wav2vec_forward.16}
  #allocation0 [shape = 'u32[]', space=smem, size = 0x4, offset = 0x4, fixed_abs, tag = 'smem constant byte address 0x4 - core index']
  #allocation1 [shape = 'u32[144,128]{1,0:T(1,128)}', space=vmem, size = 0x12000, scoped, tag = 'internal scratch']
  %s0 = inlined_call_operand.vmem [shape: f32[96,256], index: 0, kind: input, shape index: {}]
  %s1 = inlined_call_operand.vmem [shape: f32[96,256], index: 1, kind: input, shape index: {}]
  %s2 = inlined_call_operand.vmem [shape: f32[1,256], index: 2, kind: input, shape index: {}]
  %s3 = inlined_call_operand.vmem [shape: f32[1,256], index: 3, kind: input, shape index: {}]
  %s4 = inlined_call_operand.vmem [shape: f32[96,256], index: 4, kind: output, shape index: {}]
  %s5 = sld [smem:[#allocation0]]
  $region26: #{covid_wav2vec_forward.16} parent=0
    _
  %s7 = ssub.s32 1, %s5
  %s8 = scalar_select 0, %s7, %s5
  // Predicated region
  $region2: #{covid_wav2vec_forward.16} parent=0 // pred_check
    _
  $region3: #{covid_wav2vec_forward.16} parent=0 // pred_check_branch
    %10 = sbr.rel (0) target = $region5
  $region4: #{covid_wav2vec_forward.16} parent=0 // pred_region
    _
  $region5: #{covid_wav2vec_forward.16} parent=0 // pred_fallthru
    _
  // Predicated region
  $region6: #{covid_wav2vec_forward.16} parent=0 // pred_check
    _
  $region7: #{covid_wav2vec_forward.16} parent=0 // pred_check_branch
    %12 = sbr.rel (0) target = $region9
  $region8: #{covid_wav2vec_forward.16} parent=0 // pred_region
    _
  $region9: #{covid_wav2vec_forward.16} parent=0 // pred_fallthru
    _
  // Predicated region
  $region10: #{covid_wav2vec_forward.16} parent=0 // pred_check
    _
  $region11: #{covid_wav2vec_forward.16} parent=0 // pred_check_branch
    %14 = sbr.rel (0) target = $region13
  $region12: #{covid_wav2vec_forward.16} parent=0 // pred_region
    _
  $region13: #{covid_wav2vec_forward.16} parent=0 // pred_fallthru
    _
  // Predicated region
  $region14: #{covid_wav2vec_forward.16} parent=0 // pred_check
    _
  $region15: #{covid_wav2vec_forward.16} parent=0 // pred_check_branch
    %16 = sbr.rel (0) target = $region17
  $region16: #{covid_wav2vec_forward.16} parent=0 // pred_region
    _
  $region17: #{covid_wav2vec_forward.16} parent=0 // pred_fallthru
    _
  %v17 = vld [vmem:[%s0] sm:$0xff]
  %v18 = vld [vmem:[%s0 + $0x8] sm:$0xff]
  %v19 = vld [vmem:[%s0 + $0x10] sm:$0xff]
  %v20 = vld [vmem:[%s0 + $0x18] sm:$0xff]
  %v21 = vld [vmem:[%s0 + $0x20] sm:$0xff]
  %v22 = vld [vmem:[%s0 + $0x28] sm:$0xff]
  %v23 = vld [vmem:[%s0 + $0x30] sm:$0xff]
  %v24 = vld [vmem:[%s0 + $0x38] sm:$0xff]
  %v25 = vld [vmem:[%s0 + $0x40] sm:$0xff]
  %v26 = vld [vmem:[%s0 + $0x48] sm:$0xff]
  %v27 = vld [vmem:[%s0 + $0x50] sm:$0xff]
  %v28 = vld [vmem:[%s0 + $0x58] sm:$0xff]
  %v29 = vld [vmem:[%s0 + $0x60] sm:$0xff]
  %v30 = vld [vmem:[%s0 + $0x68] sm:$0xff]
  %v31 = vld [vmem:[%s0 + $0x70] sm:$0xff]
  %v32 = vld [vmem:[%s0 + $0x78] sm:$0xff]
  %v33 = vld [vmem:[%s0 + $0x80] sm:$0xff]
  %v34 = vld [vmem:[%s0 + $0x88] sm:$0xff]
  %v35 = vld [vmem:[%s0 + $0x90] sm:$0xff]
  %v36 = vld [vmem:[%s0 + $0x98] sm:$0xff]
  %v37 = vld [vmem:[%s0 + $0xa0] sm:$0xff]
  %v38 = vld [vmem:[%s0 + $0xa8] sm:$0xff]
  %v39 = vld [vmem:[%s0 + $0xb0] sm:$0xff]
  %v40 = vld [vmem:[%s0 + $0xb8] sm:$0xff]
  %v41 = vld [vmem:[%s1] sm:$0xff]
  %v42 = vld [vmem:[%s1 + $0x8] sm:$0xff]
  %v43 = vld [vmem:[%s1 + $0x10] sm:$0xff]
  %v44 = vld [vmem:[%s1 + $0x18] sm:$0xff]
  %v45 = vld [vmem:[%s1 + $0x20] sm:$0xff]
  %v46 = vld [vmem:[%s1 + $0x28] sm:$0xff]
  %v47 = vld [vmem:[%s1 + $0x30] sm:$0xff]
  %v48 = vld [vmem:[%s1 + $0x38] sm:$0xff]
  %v49 = vld [vmem:[%s1 + $0x40] sm:$0xff]
  %v50 = vld [vmem:[%s1 + $0x48] sm:$0xff]
  %v51 = vld [vmem:[%s1 + $0x50] sm:$0xff]
  %v52 = vld [vmem:[%s1 + $0x58] sm:$0xff]
  %v53 = vld [vmem:[%s1 + $0x60] sm:$0xff]
  %v54 = vld [vmem:[%s1 + $0x68] sm:$0xff]
  %v55 = vld [vmem:[%s1 + $0x70] sm:$0xff]
  %v56 = vld [vmem:[%s1 + $0x78] sm:$0xff]
  %v57 = vld [vmem:[%s1 + $0x80] sm:$0xff]
  %v58 = vld [vmem:[%s1 + $0x88] sm:$0xff]
  %v59 = vld [vmem:[%s1 + $0x90] sm:$0xff]
  %v60 = vld [vmem:[%s1 + $0x98] sm:$0xff]
  %v61 = vld [vmem:[%s1 + $0xa0] sm:$0xff]
  %v62 = vld [vmem:[%s1 + $0xa8] sm:$0xff]
  %v63 = vld [vmem:[%s1 + $0xb0] sm:$0xff]
  %v64 = vld [vmem:[%s1 + $0xb8] sm:$0xff]
  %v65 = vadd.f32 %v17, %v41
  %v66 = vadd.f32 %v18, %v42
  %v67 = vadd.f32 %v19, %v43
  %v68 = vadd.f32 %v20, %v44
  %v69 = vadd.f32 %v21, %v45
  %v70 = vadd.f32 %v22, %v46
  %v71 = vadd.f32 %v23, %v47
  %v72 = vadd.f32 %v24, %v48
  %v73 = vadd.f32 %v25, %v49
  %v74 = vadd.f32 %v26, %v50
  %v75 = vadd.f32 %v27, %v51
  %v76 = vadd.f32 %v28, %v52
  %v77 = vadd.f32 %v29, %v53
  %v78 = vadd.f32 %v30, %v54
  %v79 = vadd.f32 %v31, %v55
  %v80 = vadd.f32 %v32, %v56
  %v81 = vadd.f32 %v33, %v57
  %v82 = vadd.f32 %v34, %v58
  %v83 = vadd.f32 %v35, %v59
  %v84 = vadd.f32 %v36, %v60
  %v85 = vadd.f32 %v37, %v61
  %v86 = vadd.f32 %v38, %v62
  %v87 = vadd.f32 %v39, %v63
  %v88 = vadd.f32 %v40, %v64
  %v89 = vld [vmem:[%s2] sm:$0x3]
  %v90 = vld [vmem:[%s3] sm:$0x3]
  %v91 = vadd.f32 %v65, %v66
  %92 = vadd.xlane.f32.xlu0 %v91
  %v93 = vpop.xlane.xlu0 %92
  %v94 = vadd.f32 %v67, %v68
  %95 = vadd.xlane.f32.xlu0 %v94
  %v96 = vpop.xlane.xlu0 %95
  %v97 = vadd.f32 %v69, %v70
  %98 = vadd.xlane.f32.xlu0 %v97
  %v99 = vpop.xlane.xlu0 %98
  %v100 = vadd.f32 %v71, %v72
  %101 = vadd.xlane.f32.xlu0 %v100
  %v102 = vpop.xlane.xlu0 %101
  %v103 = vadd.f32 %v73, %v74
  %104 = vadd.xlane.f32.xlu0 %v103
  %v105 = vpop.xlane.xlu0 %104
  %v106 = vadd.f32 %v75, %v76
  %107 = vadd.xlane.f32.xlu0 %v106
  %v108 = vpop.xlane.xlu0 %107
  %v109 = vadd.f32 %v77, %v78
  %110 = vadd.xlane.f32.xlu0 %v109
  %v111 = vpop.xlane.xlu0 %110
  %v112 = vadd.f32 %v79, %v80
  %113 = vadd.xlane.f32.xlu0 %v112
  %v114 = vpop.xlane.xlu0 %113
  %v115 = vadd.f32 %v81, %v82
  %116 = vadd.xlane.f32.xlu0 %v115
  %v117 = vpop.xlane.xlu0 %116
  %v118 = vadd.f32 %v83, %v84
  %119 = vadd.xlane.f32.xlu0 %v118
  %v120 = vpop.xlane.xlu0 %119
  %v121 = vadd.f32 %v85, %v86
  %122 = vadd.xlane.f32.xlu0 %v121
  %v123 = vpop.xlane.xlu0 %122
  %v124 = vadd.f32 %v87, %v88
  %125 = vadd.xlane.f32.xlu0 %v124
  %v126 = vpop.xlane.xlu0 %125
  %v127 = vrcp.pop 256.0
  %v128 = vmul.f32 %v93, %v127
  %v129 = vmul.f32 %v96, %v127
  %v130 = vmul.f32 %v99, %v127
  %v131 = vmul.f32 %v102, %v127
  %v132 = vmul.f32 %v105, %v127
  %v133 = vmul.f32 %v108, %v127
  %v134 = vmul.f32 %v111, %v127
  %v135 = vmul.f32 %v114, %v127
  %v136 = vmul.f32 %v117, %v127
  %v137 = vmul.f32 %v120, %v127
  %v138 = vmul.f32 %v123, %v127
  %v139 = vmul.f32 %v126, %v127
  %v140 = vsub.f32 %v65, %v128
  %v141 = vsub.f32 %v66, %v128
  %v142 = vsub.f32 %v67, %v129
  %v143 = vsub.f32 %v68, %v129
  %v144 = vsub.f32 %v69, %v130
  %v145 = vsub.f32 %v70, %v130
  %v146 = vsub.f32 %v71, %v131
  %v147 = vsub.f32 %v72, %v131
  %v148 = vsub.f32 %v73, %v132
  %v149 = vsub.f32 %v74, %v132
  %v150 = vsub.f32 %v75, %v133
  %v151 = vsub.f32 %v76, %v133
  %v152 = vsub.f32 %v77, %v134
  %v153 = vsub.f32 %v78, %v134
  %v154 = vsub.f32 %v79, %v135
  %v155 = vsub.f32 %v80, %v135
  %v156 = vsub.f32 %v81, %v136
  %v157 = vsub.f32 %v82, %v136
  %v158 = vsub.f32 %v83, %v137
  %v159 = vsub.f32 %v84, %v137
  %v160 = vsub.f32 %v85, %v138
  %v161 = vsub.f32 %v86, %v138
  %v162 = vsub.f32 %v87, %v139
  %v163 = vsub.f32 %v88, %v139
  %v164 = vmul.f32 %v140, %v140
  %v165 = vmul.f32 %v141, %v141
  %v166 = vmul.f32 %v142, %v142
  %v167 = vmul.f32 %v143, %v143
  %v168 = vmul.f32 %v144, %v144
  %v169 = vmul.f32 %v145, %v145
  %v170 = vmul.f32 %v146, %v146
  %v171 = vmul.f32 %v147, %v147
  %v172 = vmul.f32 %v148, %v148
  %v173 = vmul.f32 %v149, %v149
  %v174 = vmul.f32 %v150, %v150
  %v175 = vmul.f32 %v151, %v151
  %v176 = vmul.f32 %v152, %v152
  %v177 = vmul.f32 %v153, %v153
  %v178 = vmul.f32 %v154, %v154
  %v179 = vmul.f32 %v155, %v155
  %v180 = vmul.f32 %v156, %v156
  %v181 = vmul.f32 %v157, %v157
  %v182 = vmul.f32 %v158, %v158
  %v183 = vmul.f32 %v159, %v159
  %v184 = vmul.f32 %v160, %v160
  %v185 = vmul.f32 %v161, %v161
  %v186 = vmul.f32 %v162, %v162
  %v187 = vmul.f32 %v163, %v163
  %v188 = vadd.f32 %v164, %v165
  %189 = vadd.xlane.f32.xlu0 %v188
  %v190 = vpop.xlane.xlu0 %189
  %v191 = vadd.f32 %v166, %v167
  %192 = vadd.xlane.f32.xlu0 %v191
  %v193 = vpop.xlane.xlu0 %192
  %v194 = vadd.f32 %v168, %v169
  %195 = vadd.xlane.f32.xlu0 %v194
  %v196 = vpop.xlane.xlu0 %195
  %v197 = vadd.f32 %v170, %v171
  %198 = vadd.xlane.f32.xlu0 %v197
  %v199 = vpop.xlane.xlu0 %198
  %v200 = vadd.f32 %v172, %v173
  %201 = vadd.xlane.f32.xlu0 %v200
  %v202 = vpop.xlane.xlu0 %201
  %v203 = vadd.f32 %v174, %v175
  %204 = vadd.xlane.f32.xlu0 %v203
  %v205 = vpop.xlane.xlu0 %204
  %v206 = vadd.f32 %v176, %v177
  %207 = vadd.xlane.f32.xlu0 %v206
  %v208 = vpop.xlane.xlu0 %207
  %v209 = vadd.f32 %v178, %v179
  %210 = vadd.xlane.f32.xlu0 %v209
  %v211 = vpop.xlane.xlu0 %210
  %v212 = vadd.f32 %v180, %v181
  %213 = vadd.xlane.f32.xlu0 %v212
  %v214 = vpop.xlane.xlu0 %213
  %v215 = vadd.f32 %v182, %v183
  %216 = vadd.xlane.f32.xlu0 %v215
  %v217 = vpop.xlane.xlu0 %216
  %v218 = vadd.f32 %v184, %v185
  %219 = vadd.xlane.f32.xlu0 %v218
  %v220 = vpop.xlane.xlu0 %219
  %v221 = vadd.f32 %v186, %v187
  %222 = vadd.xlane.f32.xlu0 %v221
  %v223 = vpop.xlane.xlu0 %222
  %v224 = vmul.f32 %v190, %v127
  %v225 = vmul.f32 %v193, %v127
  %v226 = vmul.f32 %v196, %v127
  %v227 = vmul.f32 %v199, %v127
  %v228 = vmul.f32 %v202, %v127
  %v229 = vmul.f32 %v205, %v127
  %v230 = vmul.f32 %v208, %v127
  %v231 = vmul.f32 %v211, %v127
  %v232 = vmul.f32 %v214, %v127
  %v233 = vmul.f32 %v217, %v127
  %v234 = vmul.f32 %v220, %v127
  %v235 = vmul.f32 %v223, %v127
  %v236 = vadd.f32 %v224, 1e-05
  %v237 = vadd.f32 %v225, 1e-05
  %v238 = vadd.f32 %v226, 1e-05
  %v239 = vadd.f32 %v227, 1e-05
  %v240 = vadd.f32 %v228, 1e-05
  %v241 = vadd.f32 %v229, 1e-05
  %v242 = vadd.f32 %v230, 1e-05
  %v243 = vadd.f32 %v231, 1e-05
  %v244 = vadd.f32 %v232, 1e-05
  %v245 = vadd.f32 %v233, 1e-05
  %v246 = vadd.f32 %v234, 1e-05
  %v247 = vadd.f32 %v235, 1e-05
  %v248 = vrsqrt.pop %v236
  %v249 = vrsqrt.pop %v237
  %v250 = vrsqrt.pop %v238
  %v251 = vrsqrt.pop %v239
  %v252 = vrsqrt.pop %v240
  %v253 = vrsqrt.pop %v241
  %v254 = vrsqrt.pop %v242
  %v255 = vrsqrt.pop %v243
  %v256 = vrsqrt.pop %v244
  %v257 = vrsqrt.pop %v245
  %v258 = vrsqrt.pop %v246
  %v259 = vrsqrt.pop %v247
  %v260 = vmul.f32 %v140, %v248
  %v261 = vmul.f32 %v141, %v248
  %v262 = vmul.f32 %v142, %v249
  %v263 = vmul.f32 %v143, %v249
  %v264 = vmul.f32 %v144, %v250
  %v265 = vmul.f32 %v145, %v250
  %v266 = vmul.f32 %v146, %v251
  %v267 = vmul.f32 %v147, %v251
  %v268 = vmul.f32 %v148, %v252
  %v269 = vmul.f32 %v149, %v252
  %v270 = vmul.f32 %v150, %v253
  %v271 = vmul.f32 %v151, %v253
  %v272 = vmul.f32 %v152, %v254
  %v273 = vmul.f32 %v153, %v254
  %v274 = vmul.f32 %v154, %v255
  %v275 = vmul.f32 %v155, %v255
  %v276 = vmul.f32 %v156, %v256
  %v277 = vmul.f32 %v157, %v256
  %v278 = vmul.f32 %v158, %v257
  %v279 = vmul.f32 %v159, %v257
  %v280 = vmul.f32 %v160, %v258
  %v281 = vmul.f32 %v161, %v258
  %v282 = vmul.f32 %v162, %v259
  %v283 = vmul.f32 %v163, %v259
  %v285 = vlaneseq
  %v286 = vshrl.u32 %v285, 7
  %v287 = vsub.s32 0, %v286
  %v288 = vrot.slane %v89, %v287
  %v289 = vlaneseq
  %v290 = vshrl.u32 %v289, 7
  %v291 = vsub.s32 1, %v290
  %v292 = vrot.slane %v89, %v291
  %v295 = vmul.f32 %v260, %v288
  %v296 = vmul.f32 %v261, %v292
  %v297 = vmul.f32 %v262, %v288
  %v298 = vmul.f32 %v263, %v292
  %v299 = vmul.f32 %v264, %v288
  %v300 = vmul.f32 %v265, %v292
  %v301 = vmul.f32 %v266, %v288
  %v302 = vmul.f32 %v267, %v292
  %v303 = vmul.f32 %v268, %v288
  %v304 = vmul.f32 %v269, %v292
  %v305 = vmul.f32 %v270, %v288
  %v306 = vmul.f32 %v271, %v292
  %v307 = vmul.f32 %v272, %v288
  %v308 = vmul.f32 %v273, %v292
  %v309 = vmul.f32 %v274, %v288
  %v310 = vmul.f32 %v275, %v292
  %v311 = vmul.f32 %v276, %v288
  %v312 = vmul.f32 %v277, %v292
  %v313 = vmul.f32 %v278, %v288
  %v314 = vmul.f32 %v279, %v292
  %v315 = vmul.f32 %v280, %v288
  %v316 = vmul.f32 %v281, %v292
  %v317 = vmul.f32 %v282, %v288
  %v318 = vmul.f32 %v283, %v292
  %v320 = vlaneseq
  %v321 = vshrl.u32 %v320, 7
  %v322 = vsub.s32 0, %v321
  %v323 = vrot.slane %v90, %v322
  %v324 = vlaneseq
  %v325 = vshrl.u32 %v324, 7
  %v326 = vsub.s32 1, %v325
  %v327 = vrot.slane %v90, %v326
  %v330 = vadd.f32 %v295, %v323
  %v331 = vadd.f32 %v296, %v327
  %v332 = vadd.f32 %v297, %v323
  %v333 = vadd.f32 %v298, %v327
  %v334 = vadd.f32 %v299, %v323
  %v335 = vadd.f32 %v300, %v327
  %v336 = vadd.f32 %v301, %v323
  %v337 = vadd.f32 %v302, %v327
  %v338 = vadd.f32 %v303, %v323
  %v339 = vadd.f32 %v304, %v327
  %v340 = vadd.f32 %v305, %v323
  %v341 = vadd.f32 %v306, %v327
  %v342 = vadd.f32 %v307, %v323
  %v343 = vadd.f32 %v308, %v327
  %v344 = vadd.f32 %v309, %v323
  %v345 = vadd.f32 %v310, %v327
  %v346 = vadd.f32 %v311, %v323
  %v347 = vadd.f32 %v312, %v327
  %v348 = vadd.f32 %v313, %v323
  %v349 = vadd.f32 %v314, %v327
  %v350 = vadd.f32 %v315, %v323
  %v351 = vadd.f32 %v316, %v327
  %v352 = vadd.f32 %v317, %v323
  %v353 = vadd.f32 %v318, %v327
  %354 = vst [vmem:[%s4] sm:$0xff] %v330
  %355 = vst [vmem:[%s4 + $0x8] sm:$0xff] %v331
  %356 = vst [vmem:[%s4 + $0x10] sm:$0xff] %v332
  %357 = vst [vmem:[%s4 + $0x18] sm:$0xff] %v333
  %358 = vst [vmem:[%s4 + $0x20] sm:$0xff] %v334
  %359 = vst [vmem:[%s4 + $0x28] sm:$0xff] %v335
  %360 = vst [vmem:[%s4 + $0x30] sm:$0xff] %v336
  %361 = vst [vmem:[%s4 + $0x38] sm:$0xff] %v337
  %362 = vst [vmem:[%s4 + $0x40] sm:$0xff] %v338
  %363 = vst [vmem:[%s4 + $0x48] sm:$0xff] %v339
  %364 = vst [vmem:[%s4 + $0x50] sm:$0xff] %v340
  %365 = vst [vmem:[%s4 + $0x58] sm:$0xff] %v341
  %366 = vst [vmem:[%s4 + $0x60] sm:$0xff] %v342
  %367 = vst [vmem:[%s4 + $0x68] sm:$0xff] %v343
  %368 = vst [vmem:[%s4 + $0x70] sm:$0xff] %v344
  %369 = vst [vmem:[%s4 + $0x78] sm:$0xff] %v345
  %370 = vst [vmem:[%s4 + $0x80] sm:$0xff] %v346
  %371 = vst [vmem:[%s4 + $0x88] sm:$0xff] %v347
  %372 = vst [vmem:[%s4 + $0x90] sm:$0xff] %v348
  %373 = vst [vmem:[%s4 + $0x98] sm:$0xff] %v349
  %374 = vst [vmem:[%s4 + $0xa0] sm:$0xff] %v350
  %375 = vst [vmem:[%s4 + $0xa8] sm:$0xff] %v351
  %376 = vst [vmem:[%s4 + $0xb0] sm:$0xff] %v352
  %377 = vst [vmem:[%s4 + $0xb8] sm:$0xff] %v353
  // Predicated region
  $region18: #{covid_wav2vec_forward.16} parent=0 // pred_check
    _
  $region19: #{covid_wav2vec_forward.16} parent=0 // pred_check_branch
    %379 = sbr.rel (0) target = $region21
  $region20: #{covid_wav2vec_forward.16} parent=0 // pred_region
    _
  $region21: #{covid_wav2vec_forward.16} parent=0 // pred_fallthru
    _
  // Predicated region
  $region22: #{covid_wav2vec_forward.16} parent=0 // pred_check
    _
  $region23: #{covid_wav2vec_forward.16} parent=0 // pred_check_branch
    %381 = sbr.rel (0) target = $region25
  $region24: #{covid_wav2vec_forward.16} parent=0 // pred_region
    _
  $region25: #{covid_wav2vec_forward.16} parent=0 // pred_fallthru
    _

// kernel: covid_wav2vec_forward.19
$region0: #{covid_wav2vec_forward.19}
  #allocation0 [shape = 'u32[]', space=smem, size = 0x4, offset = 0x4, fixed_abs, tag = 'smem constant byte address 0x4 - core index']
  #allocation1 [shape = 'u32[144,128]{1,0:T(1,128)}', space=vmem, size = 0x12000, scoped, tag = 'internal scratch']
  #allocation2 [shape = 'f32[1,1]{1,0:T(1,128)S(1)}', space=vmem, size = 0x200, scoped, tag = 'scoped memory for covid_wav2vec_forward.19']
  %s0 = inlined_call_operand.vmem [shape: f32[2,48,256], index: 0, kind: input, shape index: {}]
  %s1 = inlined_call_operand.vmem [shape: bf16[256,1], index: 1, kind: input, shape index: {}]
  %s2 = inlined_call_operand.<no memory space> [shape: f32[1,1], index: 2, kind: input, shape index: {}]
  %s3 = inlined_call_operand.vmem [shape: f32[2,1], index: 3, kind: output, shape index: {}]
  %s4 = sld [smem:[#allocation0]]
  $region22: #{covid_wav2vec_forward.19} parent=0
    _
  %s6 = ssub.s32 1, %s4
  %s7 = scalar_select 0, %s6, %s4
  %v8 = vstv %s2
  %9 = vst [vmem:[#allocation2] sm:$0x1] %v8
  // Predicated region
  $region2: #{covid_wav2vec_forward.19} parent=0 // pred_check
    _
  $region3: #{covid_wav2vec_forward.19} parent=0 // pred_check_branch
    %11 = sbr.rel (0) target = $region5
  $region4: #{covid_wav2vec_forward.19} parent=0 // pred_region
    _
  $region5: #{covid_wav2vec_forward.19} parent=0 // pred_fallthru
    _
  // Predicated region
  $region6: #{covid_wav2vec_forward.19} parent=0 // pred_check
    _
  $region7: #{covid_wav2vec_forward.19} parent=0 // pred_check_branch
    %13 = sbr.rel (0) target = $region9
  $region8: #{covid_wav2vec_forward.19} parent=0 // pred_region
    _
  $region9: #{covid_wav2vec_forward.19} parent=0 // pred_fallthru
    _
  // Predicated region
  $region10: #{covid_wav2vec_forward.19} parent=0 // pred_check
    _
  $region11: #{covid_wav2vec_forward.19} parent=0 // pred_check_branch
    %15 = sbr.rel (0) target = $region13
  $region12: #{covid_wav2vec_forward.19} parent=0 // pred_region
    _
  $region13: #{covid_wav2vec_forward.19} parent=0 // pred_fallthru
    _
  %v17 = vld [vmem:[%s0] sm:$0xff]
  %v18 = vld [vmem:[%s0 + $0x8] sm:$0xff]
  %v19 = vld [vmem:[%s0 + $0x10] sm:$0xff]
  %v20 = vld [vmem:[%s0 + $0x18] sm:$0xff]
  %v21 = vld [vmem:[%s0 + $0x20] sm:$0xff]
  %v22 = vld [vmem:[%s0 + $0x28] sm:$0xff]
  %v23 = vld [vmem:[%s0 + $0x30] sm:$0xff]
  %v24 = vld [vmem:[%s0 + $0x38] sm:$0xff]
  %v25 = vld [vmem:[%s0 + $0x40] sm:$0xff]
  %v26 = vld [vmem:[%s0 + $0x48] sm:$0xff]
  %v27 = vld [vmem:[%s0 + $0x50] sm:$0xff]
  %v28 = vld [vmem:[%s0 + $0x58] sm:$0xff]
  %v29 = vld [vmem:[%s0 + $0x60] sm:$0xff]
  %v30 = vld [vmem:[%s0 + $0x68] sm:$0xff]
  %v31 = vld [vmem:[%s0 + $0x70] sm:$0xff]
  %v32 = vld [vmem:[%s0 + $0x78] sm:$0xff]
  %v33 = vld [vmem:[%s0 + $0x80] sm:$0xff]
  %v34 = vld [vmem:[%s0 + $0x88] sm:$0xff]
  %v35 = vld [vmem:[%s0 + $0x90] sm:$0xff]
  %v36 = vld [vmem:[%s0 + $0x98] sm:$0xff]
  %v37 = vld [vmem:[%s0 + $0xa0] sm:$0xff]
  %v38 = vld [vmem:[%s0 + $0xa8] sm:$0xff]
  %v39 = vld [vmem:[%s0 + $0xb0] sm:$0xff]
  %v40 = vld [vmem:[%s0 + $0xb8] sm:$0xff]
  %v41 = vadd.f32 %v17, %v19
  %v42 = vadd.f32 %v41, %v21
  %v43 = vadd.f32 %v42, %v23
  %v44 = vadd.f32 %v43, %v25
  %v45 = vadd.f32 %v44, %v27
  %v46 = vrot.slane %v45, 4
  %v47 = vadd.f32 %v45, %v46
  %v48 = vrot.slane %v47, 2
  %v49 = vadd.f32 %v47, %v48
  %v50 = vrot.slane %v49, 1
  %v51 = vadd.f32 %v49, %v50
  %v52 = vadd.f32 %v18, %v20
  %v53 = vadd.f32 %v52, %v22
  %v54 = vadd.f32 %v53, %v24
  %v55 = vadd.f32 %v54, %v26
  %v56 = vadd.f32 %v55, %v28
  %v57 = vrot.slane %v56, 4
  %v58 = vadd.f32 %v56, %v57
  %v59 = vrot.slane %v58, 2
  %v60 = vadd.f32 %v58, %v59
  %v61 = vrot.slane %v60, 1
  %v62 = vadd.f32 %v60, %v61
  %v63 = vadd.f32 %v29, %v31
  %v64 = vadd.f32 %v63, %v33
  %v65 = vadd.f32 %v64, %v35
  %v66 = vadd.f32 %v65, %v37
  %v67 = vadd.f32 %v66, %v39
  %v68 = vrot.slane %v67, 4
  %v69 = vadd.f32 %v67, %v68
  %v70 = vrot.slane %v69, 2
  %v71 = vadd.f32 %v69, %v70
  %v72 = vrot.slane %v71, 1
  %v73 = vadd.f32 %v71, %v72
  %v74 = vadd.f32 %v30, %v32
  %v75 = vadd.f32 %v74, %v34
  %v76 = vadd.f32 %v75, %v36
  %v77 = vadd.f32 %v76, %v38
  %v78 = vadd.f32 %v77, %v40
  %v79 = vrot.slane %v78, 4
  %v80 = vadd.f32 %v78, %v79
  %v81 = vrot.slane %v80, 2
  %v82 = vadd.f32 %v80, %v81
  %v83 = vrot.slane %v82, 1
  %v84 = vadd.f32 %v82, %v83
  %v85 = vrcp.pop 48.0
  %v86 = vmul.f32 %v51, %v85
  %v87 = vmul.f32 %v62, %v85
  %v88 = vmul.f32 %v73, %v85
  %v89 = vmul.f32 %v84, %v85
  %v90 = vld [vmem:[%s1] sm:$0xf]
  %v91 = vld [vmem:[%s1 + $0x4] sm:$0xf]
  %v92 = vld [vmem:[%s1 + $0x8] sm:$0xf]
  %v93 = vld [vmem:[%s1 + $0xc] sm:$0xf]
  %v94 = vld [vmem:[%s1 + $0x10] sm:$0xf]
  %v95 = vld [vmem:[%s1 + $0x14] sm:$0xf]
  %v96 = vld [vmem:[%s1 + $0x18] sm:$0xf]
  %v97 = vld [vmem:[%s1 + $0x1c] sm:$0xf]
  %v98 = vld [vmem:[%s1 + $0x20] sm:$0xf]
  %v99 = vld [vmem:[%s1 + $0x24] sm:$0xf]
  %v100 = vld [vmem:[%s1 + $0x28] sm:$0xf]
  %v101 = vld [vmem:[%s1 + $0x2c] sm:$0xf]
  %v102 = vld [vmem:[%s1 + $0x30] sm:$0xf]
  %v103 = vld [vmem:[%s1 + $0x34] sm:$0xf]
  %v104 = vld [vmem:[%s1 + $0x38] sm:$0xf]
  %v105 = vld [vmem:[%s1 + $0x3c] sm:$0xf]
  %v106 = vld [vmem:[%s1 + $0x40] sm:$0xf]
  %v107 = vld [vmem:[%s1 + $0x44] sm:$0xf]
  %v108 = vld [vmem:[%s1 + $0x48] sm:$0xf]
  %v109 = vld [vmem:[%s1 + $0x4c] sm:$0xf]
  %v110 = vld [vmem:[%s1 + $0x50] sm:$0xf]
  %v111 = vld [vmem:[%s1 + $0x54] sm:$0xf]
  %v112 = vld [vmem:[%s1 + $0x58] sm:$0xf]
  %v113 = vld [vmem:[%s1 + $0x5c] sm:$0xf]
  %v114 = vld [vmem:[%s1 + $0x60] sm:$0xf]
  %v115 = vld [vmem:[%s1 + $0x64] sm:$0xf]
  %v116 = vld [vmem:[%s1 + $0x68] sm:$0xf]
  %v117 = vld [vmem:[%s1 + $0x6c] sm:$0xf]
  %v118 = vld [vmem:[%s1 + $0x70] sm:$0xf]
  %v119 = vld [vmem:[%s1 + $0x74] sm:$0xf]
  %v120 = vld [vmem:[%s1 + $0x78] sm:$0xf]
  %v121 = vld [vmem:[%s1 + $0x7c] sm:$0xf]
  %v122 = vpack.c.bf16 %v86, %v86
  %v123 = vpack.c.bf16 %v87, %v87
  %v124 = vpack.c.bf16 %v88, %v88
  %v125 = vpack.c.bf16 %v89, %v89
  %v126 = vld [vmem:[#allocation2] sm:$0x1]
  %v128 = vlaneseq
  %v129 = vshrl.u32 %v128, 7
  %v130 = vsub.s32 0, %v129
  %v131 = vrot.slane %v126, %v130
  %v137 = vunpack.c.l.b16 %v122
  %v138 = vunpack.c.l.b16 %v123
  %v139 = vunpack.c.l.b16 %v124
  %v140 = vunpack.c.l.b16 %v125
  %vm141 = vcmask 1041409
  %v142 = vsel %vm141, %v139, %v137
  %v143 = vsel %vm141, %v140, %v138
  %v144 = vpack.c.b16 %v142, %v142
  %v145 = vpack.c.b16 %v143, %v143
  %v180 = vunpack.c.l.b16 %v90
  %v181 = vunpack.c.l.b16 %v91
  %v182 = vunpack.c.l.b16 %v92
  %v183 = vunpack.c.l.b16 %v93
  %v184 = vunpack.c.l.b16 %v94
  %v185 = vunpack.c.l.b16 %v95
  %v186 = vunpack.c.l.b16 %v96
  %v187 = vunpack.c.l.b16 %v97
  %v188 = vunpack.c.l.b16 %v98
  %v189 = vunpack.c.l.b16 %v99
  %v190 = vunpack.c.l.b16 %v100
  %v191 = vunpack.c.l.b16 %v101
  %v192 = vunpack.c.l.b16 %v102
  %v193 = vunpack.c.l.b16 %v103
  %v194 = vunpack.c.l.b16 %v104
  %v195 = vunpack.c.l.b16 %v105
  %v196 = vunpack.c.l.b16 %v106
  %v197 = vunpack.c.l.b16 %v107
  %v198 = vunpack.c.l.b16 %v108
  %v199 = vunpack.c.l.b16 %v109
  %v200 = vunpack.c.l.b16 %v110
  %v201 = vunpack.c.l.b16 %v111
  %v202 = vunpack.c.l.b16 %v112
  %v203 = vunpack.c.l.b16 %v113
  %v204 = vunpack.c.l.b16 %v114
  %v205 = vunpack.c.l.b16 %v115
  %v206 = vunpack.c.l.b16 %v116
  %v207 = vunpack.c.l.b16 %v117
  %v208 = vunpack.c.l.b16 %v118
  %v209 = vunpack.c.l.b16 %v119
  %v210 = vunpack.c.l.b16 %v120
  %v211 = vunpack.c.l.b16 %v121
  %v212 = vpack.c.b16 %v181, %v180
  %v213 = vpack.c.b16 %v183, %v182
  %v214 = vpack.c.b16 %v185, %v184
  %v215 = vpack.c.b16 %v187, %v186
  %v216 = vpack.c.b16 %v189, %v188
  %v217 = vpack.c.b16 %v191, %v190
  %v218 = vpack.c.b16 %v193, %v192
  %v219 = vpack.c.b16 %v195, %v194
  %v220 = vpack.c.b16 %v197, %v196
  %v221 = vpack.c.b16 %v199, %v198
  %v222 = vpack.c.b16 %v201, %v200
  %v223 = vpack.c.b16 %v203, %v202
  %v224 = vpack.c.b16 %v205, %v204
  %v225 = vpack.c.b16 %v207, %v206
  %v226 = vpack.c.b16 %v209, %v208
  %v227 = vpack.c.b16 %v211, %v210
  %244 = vmatprep.subr.bf16.mxu0 0
  %245 = vmatpush1.bf16.msra.mxu0 %v212
  %246 = vmatprep.subr.bf16.mxu0 0
  %247 = vmatpush1.bf16.msra.mxu0 %v213
  %248 = vmatprep.subr.bf16.mxu0 0
  %249 = vmatpush1.bf16.msra.mxu0 %v214
  %250 = vmatprep.subr.bf16.mxu0 0
  %251 = vmatpush1.bf16.msra.mxu0 %v215
  %252 = vmatprep.subr.bf16.mxu0 0
  %253 = vmatpush1.bf16.msra.mxu0 %v216
  %254 = vmatprep.subr.bf16.mxu0 0
  %255 = vmatpush1.bf16.msra.mxu0 %v217
  %256 = vmatprep.subr.bf16.mxu0 0
  %257 = vmatpush1.bf16.msra.mxu0 %v218
  %258 = vmatprep.subr.bf16.mxu0 0
  %259 = vmatpush1.bf16.msra.mxu0 %v219
  %260 = vmatprep.subr.bf16.mxu0 0
  %261 = vmatpush1.bf16.msra.mxu0 %v220
  %262 = vmatprep.subr.bf16.mxu0 0
  %263 = vmatpush1.bf16.msra.mxu0 %v221
  %264 = vmatprep.subr.bf16.mxu0 0
  %265 = vmatpush1.bf16.msra.mxu0 %v222
  %266 = vmatprep.subr.bf16.mxu0 0
  %267 = vmatpush1.bf16.msra.mxu0 %v223
  %268 = vmatprep.subr.bf16.mxu0 0
  %269 = vmatpush1.bf16.msra.mxu0 %v224
  %270 = vmatprep.subr.bf16.mxu0 0
  %271 = vmatpush1.bf16.msra.mxu0 %v225
  %272 = vmatprep.subr.bf16.mxu0 0
  %273 = vmatpush1.bf16.msra.mxu0 %v226
  %274 = vmatprep.subr.bf16.mxu0 0
  %275 = vmatpush1.bf16.msra.mxu0 %v227
  %276 = vmatprep.mubr.bf16.mxu0 %v145
  %277 = vmatmul.mubr.bf16.gmra.mrb[0].mxu0 %v144
  %v278 = vpop.f32.mrb[0].mxu0
  %v279 = vadd.f32 %v131, %v278
  %v280 = vpop.f32.mrb[0].mxu0
  %v281 = vpop.f32.mrb[0].mxu0
  %v282 = vpop.f32.mrb[0].mxu0
  %283 = vdwg.mxu0
  %vm284 = vcmask 1024
  %285 = vst.msk [vmem:[%s3] sm:$0x3] %vm284, %v279
  // Predicated region
  $region14: #{covid_wav2vec_forward.19} parent=0 // pred_check
    _
  $region15: #{covid_wav2vec_forward.19} parent=0 // pred_check_branch
    %287 = sbr.rel (0) target = $region17
  $region16: #{covid_wav2vec_forward.19} parent=0 // pred_region
    _
  $region17: #{covid_wav2vec_forward.19} parent=0 // pred_fallthru
    _
  // Predicated region
  $region18: #{covid_wav2vec_forward.19} parent=0 // pred_check
    _
  $region19: #{covid_wav2vec_forward.19} parent=0 // pred_check_branch
    %289 = sbr.rel (0) target = $region21
  $region20: #{covid_wav2vec_forward.19} parent=0 // pred_region
    _
  $region21: #{covid_wav2vec_forward.19} parent=0 // pred_fallthru
    _

// kernel: covid_wav2vec_forward.17
$region0: #{covid_wav2vec_forward.17}
  #allocation0 [shape = 'u32[]', space=smem, size = 0x4, offset = 0x4, fixed_abs, tag = 'smem constant byte address 0x4 - core index']
  #allocation1 [shape = 'u32[144,128]{1,0:T(1,128)}', space=vmem, size = 0x12000, scoped, tag = 'internal scratch']
  %s0 = inlined_call_operand.vmem [shape: f32[2,48,256], index: 0, kind: input, shape index: {}]
  %s1 = inlined_call_operand.vmem [shape: bf16[256,768], index: 1, kind: input, shape index: {}]
  %s2 = inlined_call_operand.vmem [shape: f32[1,768], index: 2, kind: input, shape index: {}]
  %s3 = inlined_call_operand.vmem [shape: bf16[256,256], index: 3, kind: input, shape index: {}]
  %s4 = inlined_call_operand.vmem [shape: f32[1,256], index: 4, kind: input, shape index: {}]
  %s5 = inlined_call_operand.vmem [shape: f32[1,256], index: 5, kind: input, shape index: {}]
  %s6 = inlined_call_operand.vmem [shape: f32[1,256], index: 6, kind: input, shape index: {}]
  %s7 = inlined_call_operand.vmem [shape: bf16[256,512], index: 7, kind: input, shape index: {}]
  %s8 = inlined_call_operand.vmem [shape: f32[1,512], index: 8, kind: input, shape index: {}]
  %s9 = inlined_call_operand.vmem [shape: bf16[512,256], index: 9, kind: input, shape index: {}]
  %s10 = inlined_call_operand.vmem [shape: f32[1,256], index: 10, kind: input, shape index: {}]
  %s11 = inlined_call_operand.vmem [shape: f32[1,256], index: 11, kind: input, shape index: {}]
  %s12 = inlined_call_operand.vmem [shape: f32[1,256], index: 12, kind: input, shape index: {}]
  %s13 = inlined_call_operand.vmem [shape: f32[2,48,256], index: 13, kind: output, shape index: {}]
  %s14 = sld [smem:[#allocation0]]
  $region85: #{covid_wav2vec_forward.17} parent=0
    _
  %s16 = ssub.s32 1, %s14
  %s17 = scalar_select 0, %s16, %s14
  loop: start=0, step=1, limit=4
  $region2: #{covid_wav2vec_forward.17} parent=0 // loop_pre_header
    _
  $region3: #{covid_wav2vec_forward.17} parent=0 // loop_header
    %s19 = sphi 0, %s23
    %p20 = scmp.ge.s32.totalorder %s19, 4
    %s29 = sphi 0, %s31
    %s32 = sphi 0, %s29
    %s33 = sphi 0, %s32
    %s49 = sphi 0, %s33
    %s53 = sphi 0, %s53
    %s55 = sphi 0, %s53
    %s56 = sphi 0, %s55
    %s70 = sphi 0, %s56
    %s74 = sphi 0, %s74
    %s76 = sphi 0, %s74
    %s77 = sphi 0, %s76
    %s91 = sphi 0, %s77
    %s95 = sphi 0, %s95
    %s97 = sphi 0, %s95
    %s98 = sphi 0, %s97
    %s112 = sphi 0, %s98
    %s116 = sphi 0, %s116
    %s118 = sphi 0, %s116
    %s119 = sphi 0, %s118
    %s133 = sphi 0, %s119
    %s137 = sphi 0, %s137
    %s139 = sphi 0, %s137
    %s140 = sphi 0, %s139
    %s154 = sphi 0, %s140
    %s158 = sphi 0, %s158
    %s160 = sphi 0, %s158
    %s161 = sphi 0, %s160
    %s175 = sphi 0, %s161
    %s179 = sphi 0, %s179
    %s181 = sphi 0, %s179
    %s182 = sphi 0, %s181
    %s196 = sphi 0, %s182
    %s200 = sphi 0, %s200
    %s202 = sphi 0, %s200
    %s203 = sphi 0, %s202
    %s217 = sphi 0, %s203
    %s221 = sphi 0, %s221
    %s223 = sphi 0, %s221
    %s224 = sphi 0, %s223
    %s238 = sphi 0, %s224
    %s242 = sphi 0, %s242
    %s244 = sphi 0, %s242
    %s245 = sphi 0, %s244
    %s259 = sphi 0, %s245
    %s263 = sphi 0, %s263
    %s265 = sphi 0, %s263
    %s266 = sphi 0, %s265
    %s280 = sphi 0, %s266
    %s284 = sphi 0, %s284
    %s286 = sphi 0, %s284
    %s287 = sphi 0, %s286
    %s301 = sphi 0, %s287
    %s307 = sphi 0, %s309
    %s310 = sphi 0, %s307
    %s311 = sphi 0, %s310
    %s327 = sphi 0, %s311
  $region4: #{covid_wav2vec_forward.17} parent=0 // loop_header_branch
    %22 = sbr.rel (%p20) target = $region8
  $region5: #{covid_wav2vec_forward.17} parent=0 // loop_body
    %s24 = ssub.s32 %s19, 1
    %s25 = ssub.s32 %s19, 2
    %s26 = sadd.s32 %s19, 1
    %s27 = ssub.s32 %s19, %s26
    %p28 = scmp.eq.s32.totalorder %s27, 0
    %s30 = sadd.s32 %s29, 1
    %s31 = scalar_select %p28, %s29, %s30
    %p34 = pneg %p28
    %p35 = scmp.eq.s32.totalorder %s19, 1
    %p36 = por %p34, %p35
    %p37 = scmp.ne.s32.totalorder %s29, %s32
    %p38 = scmp.eq.s32.totalorder %s19, 0
    %p39 = por %p37, %p38
    %p40 = scmp.ne.s32.totalorder %s29, %s32
    %p41 = scmp.eq.s32.totalorder %s24, 1
    %p42 = por %p40, %p41
    %p43 = scmp.ne.s32.totalorder %s32, %s33
    %p44 = scmp.eq.s32.totalorder %s24, 0
    %p45 = por %p43, %p44
    %p46 = scmp.ne.s32.totalorder %s32, %s33
    %p47 = scmp.eq.s32.totalorder %s25, 1
    %p48 = por %p46, %p47
    %p50 = scmp.ne.s32.totalorder %s33, %s49
    %p51 = scmp.eq.s32.totalorder %s25, 0
    %p52 = por %p50, %p51
    %s54 = sadd.s32 %s53, 1
    %p57 = scmp.eq.s32.totalorder %s19, 1
    %p58 = scmp.ne.s32.totalorder %s53, %s55
    %p59 = scmp.eq.s32.totalorder %s19, 0
    %p60 = por %p58, %p59
    %p61 = scmp.ne.s32.totalorder %s53, %s55
    %p62 = scmp.eq.s32.totalorder %s24, 1
    %p63 = por %p61, %p62
    %p64 = scmp.ne.s32.totalorder %s55, %s56
    %p65 = scmp.eq.s32.totalorder %s24, 0
    %p66 = por %p64, %p65
    %p67 = scmp.ne.s32.totalorder %s55, %s56
    %p68 = scmp.eq.s32.totalorder %s25, 1
    %p69 = por %p67, %p68
    %p71 = scmp.ne.s32.totalorder %s56, %s70
    %p72 = scmp.eq.s32.totalorder %s25, 0
    %p73 = por %p71, %p72
    %s75 = sadd.s32 %s74, 1
    %p78 = scmp.eq.s32.totalorder %s19, 1
    %p79 = scmp.ne.s32.totalorder %s74, %s76
    %p80 = scmp.eq.s32.totalorder %s19, 0
    %p81 = por %p79, %p80
    %p82 = scmp.ne.s32.totalorder %s74, %s76
    %p83 = scmp.eq.s32.totalorder %s24, 1
    %p84 = por %p82, %p83
    %p85 = scmp.ne.s32.totalorder %s76, %s77
    %p86 = scmp.eq.s32.totalorder %s24, 0
    %p87 = por %p85, %p86
    %p88 = scmp.ne.s32.totalorder %s76, %s77
    %p89 = scmp.eq.s32.totalorder %s25, 1
    %p90 = por %p88, %p89
    %p92 = scmp.ne.s32.totalorder %s77, %s91
    %p93 = scmp.eq.s32.totalorder %s25, 0
    %p94 = por %p92, %p93
    %s96 = sadd.s32 %s95, 1
    %p99 = scmp.eq.s32.totalorder %s19, 1
    %p100 = scmp.ne.s32.totalorder %s95, %s97
    %p101 = scmp.eq.s32.totalorder %s19, 0
    %p102 = por %p100, %p101
    %p103 = scmp.ne.s32.totalorder %s95, %s97
    %p104 = scmp.eq.s32.totalorder %s24, 1
    %p105 = por %p103, %p104
    %p106 = scmp.ne.s32.totalorder %s97, %s98
    %p107 = scmp.eq.s32.totalorder %s24, 0
    %p108 = por %p106, %p107
    %p109 = scmp.ne.s32.totalorder %s97, %s98
    %p110 = scmp.eq.s32.totalorder %s25, 1
    %p111 = por %p109, %p110
    %p113 = scmp.ne.s32.totalorder %s98, %s112
    %p114 = scmp.eq.s32.totalorder %s25, 0
    %p115 = por %p113, %p114
    %s117 = sadd.s32 %s116, 1
    %p120 = scmp.eq.s32.totalorder %s19, 1
    %p121 = scmp.ne.s32.totalorder %s116, %s118
    %p122 = scmp.eq.s32.totalorder %s19, 0
    %p123 = por %p121, %p122
    %p124 = scmp.ne.s32.totalorder %s116, %s118
    %p125 = scmp.eq.s32.totalorder %s24, 1
    %p126 = por %p124, %p125
    %p127 = scmp.ne.s32.totalorder %s118, %s119
    %p128 = scmp.eq.s32.totalorder %s24, 0
    %p129 = por %p127, %p128
    %p130 = scmp.ne.s32.totalorder %s118, %s119
    %p131 = scmp.eq.s32.totalorder %s25, 1
    %p132 = por %p130, %p131
    %p134 = scmp.ne.s32.totalorder %s119, %s133
    %p135 = scmp.eq.s32.totalorder %s25, 0
    %p136 = por %p134, %p135
    %s138 = sadd.s32 %s137, 1
    %p141 = scmp.eq.s32.totalorder %s19, 1
    %p142 = scmp.ne.s32.totalorder %s137, %s139
    %p143 = scmp.eq.s32.totalorder %s19, 0
    %p144 = por %p142, %p143
    %p145 = scmp.ne.s32.totalorder %s137, %s139
    %p146 = scmp.eq.s32.totalorder %s24, 1
    %p147 = por %p145, %p146
    %p148 = scmp.ne.s32.totalorder %s139, %s140
    %p149 = scmp.eq.s32.totalorder %s24, 0
    %p150 = por %p148, %p149
    %p151 = scmp.ne.s32.totalorder %s139, %s140
    %p152 = scmp.eq.s32.totalorder %s25, 1
    %p153 = por %p151, %p152
    %p155 = scmp.ne.s32.totalorder %s140, %s154
    %p156 = scmp.eq.s32.totalorder %s25, 0
    %p157 = por %p155, %p156
    %s159 = sadd.s32 %s158, 1
    %p162 = scmp.eq.s32.totalorder %s19, 1
    %p163 = scmp.ne.s32.totalorder %s158, %s160
    %p164 = scmp.eq.s32.totalorder %s19, 0
    %p165 = por %p163, %p164
    %p166 = scmp.ne.s32.totalorder %s158, %s160
    %p167 = scmp.eq.s32.totalorder %s24, 1
    %p168 = por %p166, %p167
    %p169 = scmp.ne.s32.totalorder %s160, %s161
    %p170 = scmp.eq.s32.totalorder %s24, 0
    %p171 = por %p169, %p170
    %p172 = scmp.ne.s32.totalorder %s160, %s161
    %p173 = scmp.eq.s32.totalorder %s25, 1
    %p174 = por %p172, %p173
    %p176 = scmp.ne.s32.totalorder %s161, %s175
    %p177 = scmp.eq.s32.totalorder %s25, 0
    %p178 = por %p176, %p177
    %s180 = sadd.s32 %s179, 1
    %p183 = scmp.eq.s32.totalorder %s19, 1
    %p184 = scmp.ne.s32.totalorder %s179, %s181
    %p185 = scmp.eq.s32.totalorder %s19, 0
    %p186 = por %p184, %p185
    %p187 = scmp.ne.s32.totalorder %s179, %s181
    %p188 = scmp.eq.s32.totalorder %s24, 1
    %p189 = por %p187, %p188
    %p190 = scmp.ne.s32.totalorder %s181, %s182
    %p191 = scmp.eq.s32.totalorder %s24, 0
    %p192 = por %p190, %p191
    %p193 = scmp.ne.s32.totalorder %s181, %s182
    %p194 = scmp.eq.s32.totalorder %s25, 1
    %p195 = por %p193, %p194
    %p197 = scmp.ne.s32.totalorder %s182, %s196
    %p198 = scmp.eq.s32.totalorder %s25, 0
    %p199 = por %p197, %p198
    %s201 = sadd.s32 %s200, 1
    %p204 = scmp.eq.s32.totalorder %s19, 1
    %p205 = scmp.ne.s32.totalorder %s200, %s202
    %p206 = scmp.eq.s32.totalorder %s19, 0
    %p207 = por %p205, %p206
    %p208 = scmp.ne.s32.totalorder %s200, %s202
    %p209 = scmp.eq.s32.totalorder %s24, 1
    %p210 = por %p208, %p209
    %p211 = scmp.ne.s32.totalorder %s202, %s203
    %p212 = scmp.eq.s32.totalorder %s24, 0
    %p213 = por %p211, %p212
    %p214 = scmp.ne.s32.totalorder %s202, %s203
    %p215 = scmp.eq.s32.totalorder %s25, 1
    %p216 = por %p214, %p215
    %p218 = scmp.ne.s32.totalorder %s203, %s217
    %p219 = scmp.eq.s32.totalorder %s25, 0
    %p220 = por %p218, %p219
    %s222 = sadd.s32 %s221, 1
    %p225 = scmp.eq.s32.totalorder %s19, 1
    %p226 = scmp.ne.s32.totalorder %s221, %s223
    %p227 = scmp.eq.s32.totalorder %s19, 0
    %p228 = por %p226, %p227
    %p229 = scmp.ne.s32.totalorder %s221, %s223
    %p230 = scmp.eq.s32.totalorder %s24, 1
    %p231 = por %p229, %p230
    %p232 = scmp.ne.s32.totalorder %s223, %s224
    %p233 = scmp.eq.s32.totalorder %s24, 0
    %p234 = por %p232, %p233
    %p235 = scmp.ne.s32.totalorder %s223, %s224
    %p236 = scmp.eq.s32.totalorder %s25, 1
    %p237 = por %p235, %p236
    %p239 = scmp.ne.s32.totalorder %s224, %s238
    %p240 = scmp.eq.s32.totalorder %s25, 0
    %p241 = por %p239, %p240
    %s243 = sadd.s32 %s242, 1
    %p246 = scmp.eq.s32.totalorder %s19, 1
    %p247 = scmp.ne.s32.totalorder %s242, %s244
    %p248 = scmp.eq.s32.totalorder %s19, 0
    %p249 = por %p247, %p248
    %p250 = scmp.ne.s32.totalorder %s242, %s244
    %p251 = scmp.eq.s32.totalorder %s24, 1
    %p252 = por %p250, %p251
    %p253 = scmp.ne.s32.totalorder %s244, %s245
    %p254 = scmp.eq.s32.totalorder %s24, 0
    %p255 = por %p253, %p254
    %p256 = scmp.ne.s32.totalorder %s244, %s245
    %p257 = scmp.eq.s32.totalorder %s25, 1
    %p258 = por %p256, %p257
    %p260 = scmp.ne.s32.totalorder %s245, %s259
    %p261 = scmp.eq.s32.totalorder %s25, 0
    %p262 = por %p260, %p261
    %s264 = sadd.s32 %s263, 1
    %p267 = scmp.eq.s32.totalorder %s19, 1
    %p268 = scmp.ne.s32.totalorder %s263, %s265
    %p269 = scmp.eq.s32.totalorder %s19, 0
    %p270 = por %p268, %p269
    %p271 = scmp.ne.s32.totalorder %s263, %s265
    %p272 = scmp.eq.s32.totalorder %s24, 1
    %p273 = por %p271, %p272
    %p274 = scmp.ne.s32.totalorder %s265, %s266
    %p275 = scmp.eq.s32.totalorder %s24, 0
    %p276 = por %p274, %p275
    %p277 = scmp.ne.s32.totalorder %s265, %s266
    %p278 = scmp.eq.s32.totalorder %s25, 1
    %p279 = por %p277, %p278
    %p281 = scmp.ne.s32.totalorder %s266, %s280
    %p282 = scmp.eq.s32.totalorder %s25, 0
    %p283 = por %p281, %p282
    %s285 = sadd.s32 %s284, 1
    %p288 = scmp.eq.s32.totalorder %s19, 1
    %p289 = scmp.ne.s32.totalorder %s284, %s286
    %p290 = scmp.eq.s32.totalorder %s19, 0
    %p291 = por %p289, %p290
    %p292 = scmp.ne.s32.totalorder %s284, %s286
    %p293 = scmp.eq.s32.totalorder %s24, 1
    %p294 = por %p292, %p293
    %p295 = scmp.ne.s32.totalorder %s286, %s287
    %p296 = scmp.eq.s32.totalorder %s24, 0
    %p297 = por %p295, %p296
    %p298 = scmp.ne.s32.totalorder %s286, %s287
    %p299 = scmp.eq.s32.totalorder %s25, 1
    %p300 = por %p298, %p299
    %p302 = scmp.ne.s32.totalorder %s287, %s301
    %p303 = scmp.eq.s32.totalorder %s25, 0
    %p304 = por %p302, %p303
    %s305 = ssub.s32 %s19, %s26
    %p306 = scmp.eq.s32.totalorder %s305, 0
    %s308 = sadd.s32 %s307, 1
    %s309 = scalar_select %p306, %s307, %s308
    %p312 = pneg %p306
    %p313 = scmp.eq.s32.totalorder %s19, 1
    %p314 = por %p312, %p313
    %p315 = scmp.ne.s32.totalorder %s307, %s310
    %p316 = scmp.eq.s32.totalorder %s19, 0
    %p317 = por %p315, %p316
    %p318 = scmp.ne.s32.totalorder %s307, %s310
    %p319 = scmp.eq.s32.totalorder %s24, 1
    %p320 = por %p318, %p319
    %p321 = scmp.ne.s32.totalorder %s310, %s311
    %p322 = scmp.eq.s32.totalorder %s24, 0
    %p323 = por %p321, %p322
    %p324 = scmp.ne.s32.totalorder %s310, %s311
    %p325 = scmp.eq.s32.totalorder %s25, 1
    %p326 = por %p324, %p325
    %p328 = scmp.ne.s32.totalorder %s311, %s327
    %p329 = scmp.eq.s32.totalorder %s25, 0
    %p330 = por %p328, %p329
    %p331 = scmp.le.s32.totalorder 1, %s19
    %p332 = scmp.lt.s32.totalorder %s19, 3
    %p333 = pnand %p331, %p332
    %p334 = pneg %p333
    // Predicated region
    $region9: #{covid_wav2vec_forward.17} parent=5 // pred_check
      _
    $region10: #{covid_wav2vec_forward.17} parent=5 // pred_check_branch
      %336 = sbr.rel (%p333) target = $region12
    $region11: #{covid_wav2vec_forward.17} parent=5 // pred_region
      %s337 = ssub.s32 %s19, 1
      // Predicated region
      $region13: #{covid_wav2vec_forward.17} parent=11 // pred_check
        %p338 = pneg %p66
      $region14: #{covid_wav2vec_forward.17} parent=11 // pred_check_branch
        %340 = sbr.rel (%p338) target = $region16
      $region15: #{covid_wav2vec_forward.17} parent=11 // pred_region
        _
      $region16: #{covid_wav2vec_forward.17} parent=11 // pred_fallthru
        _
      // Predicated region
      $region17: #{covid_wav2vec_forward.17} parent=11 // pred_check
        %p341 = pneg %p87
      $region18: #{covid_wav2vec_forward.17} parent=11 // pred_check_branch
        %343 = sbr.rel (%p341) target = $region20
      $region19: #{covid_wav2vec_forward.17} parent=11 // pred_region
        _
      $region20: #{covid_wav2vec_forward.17} parent=11 // pred_fallthru
        _
      // Predicated region
      $region21: #{covid_wav2vec_forward.17} parent=11 // pred_check
        %p344 = pneg %p108
      $region22: #{covid_wav2vec_forward.17} parent=11 // pred_check_branch
        %346 = sbr.rel (%p344) target = $region24
      $region23: #{covid_wav2vec_forward.17} parent=11 // pred_region
        _
      $region24: #{covid_wav2vec_forward.17} parent=11 // pred_fallthru
        _
      // Predicated region
      $region25: #{covid_wav2vec_forward.17} parent=11 // pred_check
        %p347 = pneg %p129
      $region26: #{covid_wav2vec_forward.17} parent=11 // pred_check_branch
        %349 = sbr.rel (%p347) target = $region28
      $region27: #{covid_wav2vec_forward.17} parent=11 // pred_region
        _
      $region28: #{covid_wav2vec_forward.17} parent=11 // pred_fallthru
        _
      // Predicated region
      $region29: #{covid_wav2vec_forward.17} parent=11 // pred_check
        %p350 = pneg %p150
      $region30: #{covid_wav2vec_forward.17} parent=11 // pred_check_branch
        %352 = sbr.rel (%p350) target = $region32
      $region31: #{covid_wav2vec_forward.17} parent=11 // pred_region
        _
      $region32: #{covid_wav2vec_forward.17} parent=11 // pred_fallthru
        _
      // Predicated region
      $region33: #{covid_wav2vec_forward.17} parent=11 // pred_check
        %p353 = pneg %p171
      $region34: #{covid_wav2vec_forward.17} parent=11 // pred_check_branch
        %355 = sbr.rel (%p353) target = $region36
      $region35: #{covid_wav2vec_forward.17} parent=11 // pred_region
        _
      $region36: #{covid_wav2vec_forward.17} parent=11 // pred_fallthru
        _
      // Predicated region
      $region37: #{covid_wav2vec_forward.17} parent=11 // pred_check
        %p356 = pneg %p192
      $region38: #{covid_wav2vec_forward.17} parent=11 // pred_check_branch
        %358 = sbr.rel (%p356) target = $region40
      $region39: #{covid_wav2vec_forward.17} parent=11 // pred_region
        _
      $region40: #{covid_wav2vec_forward.17} parent=11 // pred_fallthru
        _
      // Predicated region
      $region41: #{covid_wav2vec_forward.17} parent=11 // pred_check
        %p359 = pneg %p213
      $region42: #{covid_wav2vec_forward.17} parent=11 // pred_check_branch
        %361 = sbr.rel (%p359) target = $region44
      $region43: #{covid_wav2vec_forward.17} parent=11 // pred_region
        _
      $region44: #{covid_wav2vec_forward.17} parent=11 // pred_fallthru
        _
      // Predicated region
      $region45: #{covid_wav2vec_forward.17} parent=11 // pred_check
        %p362 = pneg %p234
      $region46: #{covid_wav2vec_forward.17} parent=11 // pred_check_branch
        %364 = sbr.rel (%p362) target = $region48
      $region47: #{covid_wav2vec_forward.17} parent=11 // pred_region
        _
      $region48: #{covid_wav2vec_forward.17} parent=11 // pred_fallthru
        _
      // Predicated region
      $region49: #{covid_wav2vec_forward.17} parent=11 // pred_check
        %p365 = pneg %p255
      $region50: #{covid_wav2vec_forward.17} parent=11 // pred_check_branch
        %367 = sbr.rel (%p365) target = $region52
      $region51: #{covid_wav2vec_forward.17} parent=11 // pred_region
        _
      $region52: #{covid_wav2vec_forward.17} parent=11 // pred_fallthru
        _
      // Predicated region
      $region53: #{covid_wav2vec_forward.17} parent=11 // pred_check
        %p368 = pneg %p276
      $region54: #{covid_wav2vec_forward.17} parent=11 // pred_check_branch
        %370 = sbr.rel (%p368) target = $region56
      $region55: #{covid_wav2vec_forward.17} parent=11 // pred_region
        _
      $region56: #{covid_wav2vec_forward.17} parent=11 // pred_fallthru
        _
      // Predicated region
      $region57: #{covid_wav2vec_forward.17} parent=11 // pred_check
        %p371 = pneg %p297
      $region58: #{covid_wav2vec_forward.17} parent=11 // pred_check_branch
        %373 = sbr.rel (%p371) target = $region60
      $region59: #{covid_wav2vec_forward.17} parent=11 // pred_region
        _
      $region60: #{covid_wav2vec_forward.17} parent=11 // pred_fallthru
        _
    $region12: #{covid_wav2vec_forward.17} parent=5 // pred_fallthru
      _
    %p374 = scmp.lt.s32.totalorder %s19, 2
    // Predicated region
    $region61: #{covid_wav2vec_forward.17} parent=5 // pred_check
      %p375 = pneg %p374
    $region62: #{covid_wav2vec_forward.17} parent=5 // pred_check_branch
      %377 = sbr.rel (%p375) target = $region64
    $region63: #{covid_wav2vec_forward.17} parent=5 // pred_region
      // Predicated region
      $region65: #{covid_wav2vec_forward.17} parent=63 // pred_check
        %p378 = pneg %p39
      $region66: #{covid_wav2vec_forward.17} parent=63 // pred_check_branch
        %380 = sbr.rel (%p378) target = $region68
      $region67: #{covid_wav2vec_forward.17} parent=63 // pred_region
        %p381 = scmp.lt.s32.totalorder %s19, 1
        %s382 = scalar_select %p381, %s19, 1
        %s383 = smul.addr %s382, 12
        %s384 = smul.addr %s383, 8
        %s385 = scalar_lea.vmem %s0, %s384
      $region68: #{covid_wav2vec_forward.17} parent=63 // pred_fallthru
        _
    $region64: #{covid_wav2vec_forward.17} parent=5 // pred_fallthru
      _
    %p386 = scmp.le.s32.totalorder 1, %s19
    %p387 = scmp.lt.s32.totalorder %s19, 3
    %p388 = pnand %p386, %p387
    %p389 = pneg %p388
    // Predicated region
    $region69: #{covid_wav2vec_forward.17} parent=5 // pred_check
      _
    $region70: #{covid_wav2vec_forward.17} parent=5 // pred_check_branch
      %391 = sbr.rel (%p388) target = $region72
    $region71: #{covid_wav2vec_forward.17} parent=5 // pred_region
      %s392 = ssub.s32 %s19, 1
      %p393 = scmp.lt.s32.totalorder %s24, 1
      %s394 = scalar_select %p393, %s24, 1
      %s395 = smul.addr %s394, 12
      %s396 = smul.addr %s395, 8
      %s397 = scalar_lea.vmem %s0, %s396
      %p398 = pneg %p45
      %p399 = pneg %p42
      %p400 = pneg %p66
      %p401 = pneg %p63
      %p402 = pneg %p87
      %p403 = pneg %p84
      %p404 = pneg %p108
      %p405 = pneg %p105
      %p406 = pneg %p129
      %p407 = pneg %p126
      %p408 = pneg %p150
      %p409 = pneg %p147
      %p410 = pneg %p171
      %p411 = pneg %p168
      %p412 = pneg %p192
      %p413 = pneg %p189
      %p414 = pneg %p213
      %p415 = pneg %p210
      %p416 = pneg %p234
      %p417 = pneg %p231
      %p418 = pneg %p255
      %p419 = pneg %p252
      %p420 = pneg %p276
      %p421 = pneg %p273
      %p422 = pneg %p297
      %p423 = pneg %p294
      %p424 = pneg %p323
      %p425 = pneg %p320
      %p426 = scmp.lt.s32.totalorder %s24, 1
      %s427 = scalar_select %p426, %s24, 1
      %s428 = smul.addr %s427, 12
      %s429 = smul.addr %s428, 8
      %s430 = scalar_lea.vmem %s13, %s429
      %p431 = scmp.lt.s32.totalorder %s24, 1
      %s432 = scalar_select %p431, %s24, 1
      %s433 = smul.addr %s432, 12
      %s434 = smul.addr %s433, 8
      %s435 = scalar_lea.vmem %s0, %s434
      %p436 = scmp.lt.s32.totalorder %s24, 1
      %s437 = scalar_select %p436, %s24, 1
      %s438 = smul.addr %s437, 12
      %s439 = smul.addr %s438, 8
      %s440 = scalar_lea.vmem %s13, %s439
      %v442 = vld [vmem:[%s435] sm:$0xff]
      %v443 = vld [vmem:[%s435 + $0x8] sm:$0xff]
      %v444 = vld [vmem:[%s435 + $0x10] sm:$0xff]
      %v445 = vld [vmem:[%s435 + $0x18] sm:$0xff]
      %v446 = vld [vmem:[%s435 + $0x20] sm:$0xff]
      %v447 = vld [vmem:[%s435 + $0x28] sm:$0xff]
      %v448 = vld [vmem:[%s435 + $0x30] sm:$0xff]
      %v449 = vld [vmem:[%s435 + $0x38] sm:$0xff]
      %v450 = vld [vmem:[%s435 + $0x40] sm:$0xff]
      %v451 = vld [vmem:[%s435 + $0x48] sm:$0xff]
      %v452 = vld [vmem:[%s435 + $0x50] sm:$0xff]
      %v453 = vld [vmem:[%s435 + $0x58] sm:$0xff]
      %v454 = vld [vmem:[%s1] sm:$0xff]
      %v455 = vld [vmem:[%s1 + $0x8] sm:$0xff]
      %v456 = vld [vmem:[%s1 + $0x10] sm:$0xff]
      %v457 = vld [vmem:[%s1 + $0x18] sm:$0xff]
      %v458 = vld [vmem:[%s1 + $0x20] sm:$0xff]
      %v459 = vld [vmem:[%s1 + $0x28] sm:$0xff]
      %v460 = vld [vmem:[%s1 + $0x30] sm:$0xff]
      %v461 = vld [vmem:[%s1 + $0x38] sm:$0xff]
      %v462 = vld [vmem:[%s1 + $0x40] sm:$0xff]
      %v463 = vld [vmem:[%s1 + $0x48] sm:$0xff]
      %v464 = vld [vmem:[%s1 + $0x50] sm:$0xff]
      %v465 = vld [vmem:[%s1 + $0x58] sm:$0xff]
      %v466 = vld [vmem:[%s1 + $0x60] sm:$0xff]
      %v467 = vld [vmem:[%s1 + $0x68] sm:$0xff]
      %v468 = vld [vmem:[%s1 + $0x70] sm:$0xff]
      %v469 = vld [vmem:[%s1 + $0x78] sm:$0xff]
      %v470 = vld [vmem:[%s1 + $0x80] sm:$0xff]
      %v471 = vld [vmem:[%s1 + $0x88] sm:$0xff]
      %v472 = vld [vmem:[%s1 + $0x90] sm:$0xff]
      %v473 = vld [vmem:[%s1 + $0x98] sm:$0xff]
      %v474 = vld [vmem:[%s1 + $0xa0] sm:$0xff]
      %v475 = vld [vmem:[%s1 + $0xa8] sm:$0xff]
      %v476 = vld [vmem:[%s1 + $0xb0] sm:$0xff]
      %v477 = vld [vmem:[%s1 + $0xb8] sm:$0xff]
      %v478 = vld [vmem:[%s1 + $0xc0] sm:$0xff]
      %v479 = vld [vmem:[%s1 + $0xc8] sm:$0xff]
      %v480 = vld [vmem:[%s1 + $0xd0] sm:$0xff]
      %v481 = vld [vmem:[%s1 + $0xd8] sm:$0xff]
      %v482 = vld [vmem:[%s1 + $0xe0] sm:$0xff]
      %v483 = vld [vmem:[%s1 + $0xe8] sm:$0xff]
      %v484 = vld [vmem:[%s1 + $0xf0] sm:$0xff]
      %v485 = vld [vmem:[%s1 + $0xf8] sm:$0xff]
      %v486 = vld [vmem:[%s1 + $0x100] sm:$0xff]
      %v487 = vld [vmem:[%s1 + $0x108] sm:$0xff]
      %v488 = vld [vmem:[%s1 + $0x110] sm:$0xff]
      %v489 = vld [vmem:[%s1 + $0x118] sm:$0xff]
      %v490 = vld [vmem:[%s1 + $0x120] sm:$0xff]
      %v491 = vld [vmem:[%s1 + $0x128] sm:$0xff]
      %v492 = vld [vmem:[%s1 + $0x130] sm:$0xff]
      %v493 = vld [vmem:[%s1 + $0x138] sm:$0xff]
      %v494 = vld [vmem:[%s1 + $0x140] sm:$0xff]
      %v495 = vld [vmem:[%s1 + $0x148] sm:$0xff]
      %v496 = vld [vmem:[%s1 + $0x150] sm:$0xff]
      %v497 = vld [vmem:[%s1 + $0x158] sm:$0xff]
      %v498 = vld [vmem:[%s1 + $0x160] sm:$0xff]
      %v499 = vld [vmem:[%s1 + $0x168] sm:$0xff]
      %v500 = vld [vmem:[%s1 + $0x170] sm:$0xff]
      %v501 = vld [vmem:[%s1 + $0x178] sm:$0xff]
      %v502 = vld [vmem:[%s1 + $0x180] sm:$0xff]
      %v503 = vld [vmem:[%s1 + $0x188] sm:$0xff]
      %v504 = vld [vmem:[%s1 + $0x190] sm:$0xff]
      %v505 = vld [vmem:[%s1 + $0x198] sm:$0xff]
      %v506 = vld [vmem:[%s1 + $0x1a0] sm:$0xff]
      %v507 = vld [vmem:[%s1 + $0x1a8] sm:$0xff]
      %v508 = vld [vmem:[%s1 + $0x1b0] sm:$0xff]
      %v509 = vld [vmem:[%s1 + $0x1b8] sm:$0xff]
      %v510 = vld [vmem:[%s1 + $0x1c0] sm:$0xff]
      %v511 = vld [vmem:[%s1 + $0x1c8] sm:$0xff]
      %v512 = vld [vmem:[%s1 + $0x1d0] sm:$0xff]
      %v513 = vld [vmem:[%s1 + $0x1d8] sm:$0xff]
      %v514 = vld [vmem:[%s1 + $0x1e0] sm:$0xff]
      %v515 = vld [vmem:[%s1 + $0x1e8] sm:$0xff]
      %v516 = vld [vmem:[%s1 + $0x1f0] sm:$0xff]
      %v517 = vld [vmem:[%s1 + $0x1f8] sm:$0xff]
      %v518 = vld [vmem:[%s1 + $0x200] sm:$0xff]
      %v519 = vld [vmem:[%s1 + $0x208] sm:$0xff]
      %v520 = vld [vmem:[%s1 + $0x210] sm:$0xff]
      %v521 = vld [vmem:[%s1 + $0x218] sm:$0xff]
      %v522 = vld [vmem:[%s1 + $0x220] sm:$0xff]
      %v523 = vld [vmem:[%s1 + $0x228] sm:$0xff]
      %v524 = vld [vmem:[%s1 + $0x230] sm:$0xff]
      %v525 = vld [vmem:[%s1 + $0x238] sm:$0xff]
      %v526 = vld [vmem:[%s1 + $0x240] sm:$0xff]
      %v527 = vld [vmem:[%s1 + $0x248] sm:$0xff]
      %v528 = vld [vmem:[%s1 + $0x250] sm:$0xff]
      %v529 = vld [vmem:[%s1 + $0x258] sm:$0xff]
      %v530 = vld [vmem:[%s1 + $0x260] sm:$0xff]
      %v531 = vld [vmem:[%s1 + $0x268] sm:$0xff]
      %v532 = vld [vmem:[%s1 + $0x270] sm:$0xff]
      %v533 = vld [vmem:[%s1 + $0x278] sm:$0xff]
      %v534 = vld [vmem:[%s1 + $0x280] sm:$0xff]
      %v535 = vld [vmem:[%s1 + $0x288] sm:$0xff]
      %v536 = vld [vmem:[%s1 + $0x290] sm:$0xff]
      %v537 = vld [vmem:[%s1 + $0x298] sm:$0xff]
      %v538 = vld [vmem:[%s1 + $0x2a0] sm:$0xff]
      %v539 = vld [vmem:[%s1 + $0x2a8] sm:$0xff]
      %v540 = vld [vmem:[%s1 + $0x2b0] sm:$0xff]
      %v541 = vld [vmem:[%s1 + $0x2b8] sm:$0xff]
      %v542 = vld [vmem:[%s1 + $0x2c0] sm:$0xff]
      %v543 = vld [vmem:[%s1 + $0x2c8] sm:$0xff]
      %v544 = vld [vmem:[%s1 + $0x2d0] sm:$0xff]
      %v545 = vld [vmem:[%s1 + $0x2d8] sm:$0xff]
      %v546 = vld [vmem:[%s1 + $0x2e0] sm:$0xff]
      %v547 = vld [vmem:[%s1 + $0x2e8] sm:$0xff]
      %v548 = vld [vmem:[%s1 + $0x2f0] sm:$0xff]
      %v549 = vld [vmem:[%s1 + $0x2f8] sm:$0xff]
      %v550 = vpack.c.bf16 %v444, %v442
      %v551 = vpack.c.bf16 %v445, %v443
      %v552 = vpack.c.bf16 %v448, %v446
      %v553 = vpack.c.bf16 %v449, %v447
      %v554 = vpack.c.bf16 %v452, %v450
      %v555 = vpack.c.bf16 %v453, %v451
      %v556 = vld [vmem:[%s2] sm:$0x3f]
      %v558 = vlaneseq
      %v559 = vshrl.u32 %v558, 7
      %v560 = vsub.s32 0, %v559
      %v561 = vrot.slane %v556, %v560
      %v562 = vlaneseq
      %v563 = vshrl.u32 %v562, 7
      %v564 = vsub.s32 1, %v563
      %v565 = vrot.slane %v556, %v564
      %v566 = vlaneseq
      %v567 = vshrl.u32 %v566, 7
      %v568 = vsub.s32 2, %v567
      %v569 = vrot.slane %v556, %v568
      %v570 = vlaneseq
      %v571 = vshrl.u32 %v570, 7
      %v572 = vsub.s32 3, %v571
      %v573 = vrot.slane %v556, %v572
      %v574 = vlaneseq
      %v575 = vshrl.u32 %v574, 7
      %v576 = vsub.s32 4, %v575
      %v577 = vrot.slane %v556, %v576
      %v578 = vlaneseq
      %v579 = vshrl.u32 %v578, 7
      %v580 = vsub.s32 5, %v579
      %v581 = vrot.slane %v556, %v580
      %v684 = vunpack.c.l.b16 %v454
      %v685 = vunpack.c.h.b16 %v454
      %v686 = vunpack.c.l.b16 %v455
      %v687 = vunpack.c.h.b16 %v455
      %v688 = vunpack.c.l.b16 %v456
      %v689 = vunpack.c.h.b16 %v456
      %v690 = vunpack.c.l.b16 %v457
      %v691 = vunpack.c.h.b16 %v457
      %v692 = vunpack.c.l.b16 %v458
      %v693 = vunpack.c.h.b16 %v458
      %v694 = vunpack.c.l.b16 %v459
      %v695 = vunpack.c.h.b16 %v459
      %v696 = vunpack.c.l.b16 %v460
      %v697 = vunpack.c.h.b16 %v460
      %v698 = vunpack.c.l.b16 %v461
      %v699 = vunpack.c.h.b16 %v461
      %v700 = vunpack.c.l.b16 %v462
      %v701 = vunpack.c.h.b16 %v462
      %v702 = vunpack.c.l.b16 %v463
      %v703 = vunpack.c.h.b16 %v463
      %v704 = vunpack.c.l.b16 %v464
      %v705 = vunpack.c.h.b16 %v464
      %v706 = vunpack.c.l.b16 %v465
      %v707 = vunpack.c.h.b16 %v465
      %v708 = vunpack.c.l.b16 %v466
      %v709 = vunpack.c.h.b16 %v466
      %v710 = vunpack.c.l.b16 %v467
      %v711 = vunpack.c.h.b16 %v467
      %v712 = vunpack.c.l.b16 %v468
      %v713 = vunpack.c.h.b16 %v468
      %v714 = vunpack.c.l.b16 %v469
      %v715 = vunpack.c.h.b16 %v469
      %v716 = vunpack.c.l.b16 %v470
      %v717 = vunpack.c.h.b16 %v470
      %v718 = vunpack.c.l.b16 %v471
      %v719 = vunpack.c.h.b16 %v471
      %v720 = vunpack.c.l.b16 %v472
      %v721 = vunpack.c.h.b16 %v472
      %v722 = vunpack.c.l.b16 %v473
      %v723 = vunpack.c.h.b16 %v473
      %v724 = vunpack.c.l.b16 %v474
      %v725 = vunpack.c.h.b16 %v474
      %v726 = vunpack.c.l.b16 %v475
      %v727 = vunpack.c.h.b16 %v475
      %v728 = vunpack.c.l.b16 %v476
      %v729 = vunpack.c.h.b16 %v476
      %v730 = vunpack.c.l.b16 %v477
      %v731 = vunpack.c.h.b16 %v477
      %v732 = vunpack.c.l.b16 %v478
      %v733 = vunpack.c.h.b16 %v478
      %v734 = vunpack.c.l.b16 %v479
      %v735 = vunpack.c.h.b16 %v479
      %v736 = vunpack.c.l.b16 %v480
      %v737 = vunpack.c.h.b16 %v480
      %v738 = vunpack.c.l.b16 %v481
      %v739 = vunpack.c.h.b16 %v481
      %v740 = vunpack.c.l.b16 %v482
      %v741 = vunpack.c.h.b16 %v482
      %v742 = vunpack.c.l.b16 %v483
      %v743 = vunpack.c.h.b16 %v483
      %v744 = vunpack.c.l.b16 %v484
      %v745 = vunpack.c.h.b16 %v484
      %v746 = vunpack.c.l.b16 %v485
      %v747 = vunpack.c.h.b16 %v485
      %v748 = vunpack.c.l.b16 %v486
      %v749 = vunpack.c.h.b16 %v486
      %v750 = vunpack.c.l.b16 %v487
      %v751 = vunpack.c.h.b16 %v487
      %v752 = vunpack.c.l.b16 %v488
      %v753 = vunpack.c.h.b16 %v488
      %v754 = vunpack.c.l.b16 %v489
      %v755 = vunpack.c.h.b16 %v489
      %v756 = vunpack.c.l.b16 %v490
      %v757 = vunpack.c.h.b16 %v490
      %v758 = vunpack.c.l.b16 %v491
      %v759 = vunpack.c.h.b16 %v491
      %v760 = vunpack.c.l.b16 %v492
      %v761 = vunpack.c.h.b16 %v492
      %v762 = vunpack.c.l.b16 %v493
      %v763 = vunpack.c.h.b16 %v493
      %v764 = vunpack.c.l.b16 %v494
      %v765 = vunpack.c.h.b16 %v494
      %v766 = vunpack.c.l.b16 %v495
      %v767 = vunpack.c.h.b16 %v495
      %v768 = vunpack.c.l.b16 %v496
      %v769 = vunpack.c.h.b16 %v496
      %v770 = vunpack.c.l.b16 %v497
      %v771 = vunpack.c.h.b16 %v497
      %v772 = vunpack.c.l.b16 %v498
      %v773 = vunpack.c.h.b16 %v498
      %v774 = vunpack.c.l.b16 %v499
      %v775 = vunpack.c.h.b16 %v499
      %v776 = vunpack.c.l.b16 %v500
      %v777 = vunpack.c.h.b16 %v500
      %v778 = vunpack.c.l.b16 %v501
      %v779 = vunpack.c.h.b16 %v501
      %v780 = vunpack.c.l.b16 %v502
      %v781 = vunpack.c.h.b16 %v502
      %v782 = vunpack.c.l.b16 %v503
      %v783 = vunpack.c.h.b16 %v503
      %v784 = vunpack.c.l.b16 %v504
      %v785 = vunpack.c.h.b16 %v504
      %v786 = vunpack.c.l.b16 %v505
      %v787 = vunpack.c.h.b16 %v505
      %v788 = vunpack.c.l.b16 %v506
      %v789 = vunpack.c.h.b16 %v506
      %v790 = vunpack.c.l.b16 %v507
      %v791 = vunpack.c.h.b16 %v507
      %v792 = vunpack.c.l.b16 %v508
      %v793 = vunpack.c.h.b16 %v508
      %v794 = vunpack.c.l.b16 %v509
      %v795 = vunpack.c.h.b16 %v509
      %v796 = vunpack.c.l.b16 %v510
      %v797 = vunpack.c.h.b16 %v510
      %v798 = vunpack.c.l.b16 %v511
      %v799 = vunpack.c.h.b16 %v511
      %v800 = vunpack.c.l.b16 %v512
      %v801 = vunpack.c.h.b16 %v512
      %v802 = vunpack.c.l.b16 %v513
      %v803 = vunpack.c.h.b16 %v513
      %v804 = vunpack.c.l.b16 %v514
      %v805 = vunpack.c.h.b16 %v514
      %v806 = vunpack.c.l.b16 %v515
      %v807 = vunpack.c.h.b16 %v515
      %v808 = vunpack.c.l.b16 %v516
      %v809 = vunpack.c.h.b16 %v516
      %v810 = vunpack.c.l.b16 %v517
      %v811 = vunpack.c.h.b16 %v517
      %v812 = vunpack.c.l.b16 %v518
      %v813 = vunpack.c.h.b16 %v518
      %v814 = vunpack.c.l.b16 %v519
      %v815 = vunpack.c.h.b16 %v519
      %v816 = vunpack.c.l.b16 %v520
      %v817 = vunpack.c.h.b16 %v520
      %v818 = vunpack.c.l.b16 %v521
      %v819 = vunpack.c.h.b16 %v521
      %v820 = vunpack.c.l.b16 %v522
      %v821 = vunpack.c.h.b16 %v522
      %v822 = vunpack.c.l.b16 %v523
      %v823 = vunpack.c.h.b16 %v523
      %v824 = vunpack.c.l.b16 %v524
      %v825 = vunpack.c.h.b16 %v524
      %v826 = vunpack.c.l.b16 %v525
      %v827 = vunpack.c.h.b16 %v525
      %v828 = vunpack.c.l.b16 %v526
      %v829 = vunpack.c.h.b16 %v526
      %v830 = vunpack.c.l.b16 %v527
      %v831 = vunpack.c.h.b16 %v527
      %v832 = vunpack.c.l.b16 %v528
      %v833 = vunpack.c.h.b16 %v528
      %v834 = vunpack.c.l.b16 %v529
      %v835 = vunpack.c.h.b16 %v529
      %v836 = vunpack.c.l.b16 %v530
      %v837 = vunpack.c.h.b16 %v530
      %v838 = vunpack.c.l.b16 %v531
      %v839 = vunpack.c.h.b16 %v531
      %v840 = vunpack.c.l.b16 %v532
      %v841 = vunpack.c.h.b16 %v532
      %v842 = vunpack.c.l.b16 %v533
      %v843 = vunpack.c.h.b16 %v533
      %v844 = vunpack.c.l.b16 %v534
      %v845 = vunpack.c.h.b16 %v534
      %v846 = vunpack.c.l.b16 %v535
      %v847 = vunpack.c.h.b16 %v535
      %v848 = vunpack.c.l.b16 %v536
      %v849 = vunpack.c.h.b16 %v536
      %v850 = vunpack.c.l.b16 %v537
      %v851 = vunpack.c.h.b16 %v537
      %v852 = vunpack.c.l.b16 %v538
      %v853 = vunpack.c.h.b16 %v538
      %v854 = vunpack.c.l.b16 %v539
      %v855 = vunpack.c.h.b16 %v539
      %v856 = vunpack.c.l.b16 %v540
      %v857 = vunpack.c.h.b16 %v540
      %v858 = vunpack.c.l.b16 %v541
      %v859 = vunpack.c.h.b16 %v541
      %v860 = vunpack.c.l.b16 %v542
      %v861 = vunpack.c.h.b16 %v542
      %v862 = vunpack.c.l.b16 %v543
      %v863 = vunpack.c.h.b16 %v543
      %v864 = vunpack.c.l.b16 %v544
      %v865 = vunpack.c.h.b16 %v544
      %v866 = vunpack.c.l.b16 %v545
      %v867 = vunpack.c.h.b16 %v545
      %v868 = vunpack.c.l.b16 %v546
      %v869 = vunpack.c.h.b16 %v546
      %v870 = vunpack.c.l.b16 %v547
      %v871 = vunpack.c.h.b16 %v547
      %v872 = vunpack.c.l.b16 %v548
      %v873 = vunpack.c.h.b16 %v548
      %v874 = vunpack.c.l.b16 %v549
      %v875 = vunpack.c.h.b16 %v549
      %v876 = vpack.c.b16 %v690, %v684
      %v877 = vpack.c.b16 %v691, %v685
      %v878 = vpack.c.b16 %v692, %v686
      %v879 = vpack.c.b16 %v693, %v687
      %v880 = vpack.c.b16 %v694, %v688
      %v881 = vpack.c.b16 %v695, %v689
      %v882 = vpack.c.b16 %v702, %v696
      %v883 = vpack.c.b16 %v703, %v697
      %v884 = vpack.c.b16 %v704, %v698
      %v885 = vpack.c.b16 %v705, %v699
      %v886 = vpack.c.b16 %v706, %v700
      %v887 = vpack.c.b16 %v707, %v701
      %v888 = vpack.c.b16 %v714, %v708
      %v889 = vpack.c.b16 %v715, %v709
      %v890 = vpack.c.b16 %v716, %v710
      %v891 = vpack.c.b16 %v717, %v711
      %v892 = vpack.c.b16 %v718, %v712
      %v893 = vpack.c.b16 %v719, %v713
      %v894 = vpack.c.b16 %v726, %v720
      %v895 = vpack.c.b16 %v727, %v721
      %v896 = vpack.c.b16 %v728, %v722
      %v897 = vpack.c.b16 %v729, %v723
      %v898 = vpack.c.b16 %v730, %v724
      %v899 = vpack.c.b16 %v731, %v725
      %v900 = vpack.c.b16 %v738, %v732
      %v901 = vpack.c.b16 %v739, %v733
      %v902 = vpack.c.b16 %v740, %v734
      %v903 = vpack.c.b16 %v741, %v735
      %v904 = vpack.c.b16 %v742, %v736
      %v905 = vpack.c.b16 %v743, %v737
      %v906 = vpack.c.b16 %v750, %v744
      %v907 = vpack.c.b16 %v751, %v745
      %v908 = vpack.c.b16 %v752, %v746
      %v909 = vpack.c.b16 %v753, %v747
      %v910 = vpack.c.b16 %v754, %v748
      %v911 = vpack.c.b16 %v755, %v749
      %v912 = vpack.c.b16 %v762, %v756
      %v913 = vpack.c.b16 %v763, %v757
      %v914 = vpack.c.b16 %v764, %v758
      %v915 = vpack.c.b16 %v765, %v759
      %v916 = vpack.c.b16 %v766, %v760
      %v917 = vpack.c.b16 %v767, %v761
      %v918 = vpack.c.b16 %v774, %v768
      %v919 = vpack.c.b16 %v775, %v769
      %v920 = vpack.c.b16 %v776, %v770
      %v921 = vpack.c.b16 %v777, %v771
      %v922 = vpack.c.b16 %v778, %v772
      %v923 = vpack.c.b16 %v779, %v773
      %v924 = vpack.c.b16 %v786, %v780
      %v925 = vpack.c.b16 %v787, %v781
      %v926 = vpack.c.b16 %v788, %v782
      %v927 = vpack.c.b16 %v789, %v783
      %v928 = vpack.c.b16 %v790, %v784
      %v929 = vpack.c.b16 %v791, %v785
      %v930 = vpack.c.b16 %v798, %v792
      %v931 = vpack.c.b16 %v799, %v793
      %v932 = vpack.c.b16 %v800, %v794
      %v933 = vpack.c.b16 %v801, %v795
      %v934 = vpack.c.b16 %v802, %v796
      %v935 = vpack.c.b16 %v803, %v797
      %v936 = vpack.c.b16 %v810, %v804
      %v937 = vpack.c.b16 %v811, %v805
      %v938 = vpack.c.b16 %v812, %v806
      %v939 = vpack.c.b16 %v813, %v807
      %v940 = vpack.c.b16 %v814, %v808
      %v941 = vpack.c.b16 %v815, %v809
      %v942 = vpack.c.b16 %v822, %v816
      %v943 = vpack.c.b16 %v823, %v817
      %v944 = vpack.c.b16 %v824, %v818
      %v945 = vpack.c.b16 %v825, %v819
      %v946 = vpack.c.b16 %v826, %v820
      %v947 = vpack.c.b16 %v827, %v821
      %v948 = vpack.c.b16 %v834, %v828
      %v949 = vpack.c.b16 %v835, %v829
      %v950 = vpack.c.b16 %v836, %v830
      %v951 = vpack.c.b16 %v837, %v831
      %v952 = vpack.c.b16 %v838, %v832
      %v953 = vpack.c.b16 %v839, %v833
      %v954 = vpack.c.b16 %v846, %v840
      %v955 = vpack.c.b16 %v847, %v841
      %v956 = vpack.c.b16 %v848, %v842
      %v957 = vpack.c.b16 %v849, %v843
      %v958 = vpack.c.b16 %v850, %v844
      %v959 = vpack.c.b16 %v851, %v845
      %v960 = vpack.c.b16 %v858, %v852
      %v961 = vpack.c.b16 %v859, %v853
      %v962 = vpack.c.b16 %v860, %v854
      %v963 = vpack.c.b16 %v861, %v855
      %v964 = vpack.c.b16 %v862, %v856
      %v965 = vpack.c.b16 %v863, %v857
      %v966 = vpack.c.b16 %v870, %v864
      %v967 = vpack.c.b16 %v871, %v865
      %v968 = vpack.c.b16 %v872, %v866
      %v969 = vpack.c.b16 %v873, %v867
      %v970 = vpack.c.b16 %v874, %v868
      %v971 = vpack.c.b16 %v875, %v869
      %1068 = vmatprep.subr.bf16.mxu0 %v877
      %1069 = vmatpush1.bf16.msra.mxu0 %v876
      %1070 = vmatprep.subr.bf16.mxu0 %v883
      %1071 = vmatpush1.bf16.msra.mxu0 %v882
      %1072 = vmatprep.subr.bf16.mxu0 %v889
      %1073 = vmatpush1.bf16.msra.mxu0 %v888
      %1074 = vmatprep.subr.bf16.mxu0 %v895
      %1075 = vmatpush1.bf16.msra.mxu0 %v894
      %1076 = vmatprep.subr.bf16.mxu0 %v901
      %1077 = vmatpush1.bf16.msra.mxu0 %v900
      %1078 = vmatprep.subr.bf16.mxu0 %v907
      %1079 = vmatpush1.bf16.msra.mxu0 %v906
      %1080 = vmatprep.subr.bf16.mxu0 %v913
      %1081 = vmatpush1.bf16.msra.mxu0 %v912
      %1082 = vmatprep.subr.bf16.mxu0 %v919
      %1083 = vmatpush1.bf16.msra.mxu0 %v918
      %1084 = vmatprep.subr.bf16.mxu0 %v925
      %1085 = vmatpush1.bf16.msra.mxu0 %v924
      %1086 = vmatprep.subr.bf16.mxu0 %v931
      %1087 = vmatpush1.bf16.msra.mxu0 %v930
      %1088 = vmatprep.subr.bf16.mxu0 %v937
      %1089 = vmatpush1.bf16.msra.mxu0 %v936
      %1090 = vmatprep.subr.bf16.mxu0 %v943
      %1091 = vmatpush1.bf16.msra.mxu0 %v942
      %1092 = vmatprep.subr.bf16.mxu0 %v949
      %1093 = vmatpush1.bf16.msra.mxu0 %v948
      %1094 = vmatprep.subr.bf16.mxu0 %v955
      %1095 = vmatpush1.bf16.msra.mxu0 %v954
      %1096 = vmatprep.subr.bf16.mxu0 %v961
      %1097 = vmatpush1.bf16.msra.mxu0 %v960
      %1098 = vmatprep.subr.bf16.mxu0 %v967
      %1099 = vmatpush1.bf16.msra.mxu0 %v966
      %1100 = vmatprep.mubr.bf16.mxu0 %v551
      %1101 = vmatmul.mubr.bf16.gmra.mrb[0].mxu0 %v550
      %v1102 = vpop.f32.mrb[0].mxu0
      %v1103 = vadd.f32 %v561, %v1102
      %v1104 = vpop.f32.mrb[0].mxu0
      %v1105 = vadd.f32 %v565, %v1104
      %v1106 = vpop.f32.mrb[0].mxu0
      %v1107 = vadd.f32 %v561, %v1106
      %v1108 = vpop.f32.mrb[0].mxu0
      %v1109 = vadd.f32 %v565, %v1108
      %1110 = vmatprep.mubr.bf16.mxu0 %v553
      %1111 = vmatmul.mubr.bf16.gmra.mrb[0].mxu0 %v552
      %v1112 = vpop.f32.mrb[0].mxu0
      %v1113 = vadd.f32 %v561, %v1112
      %v1114 = vpop.f32.mrb[0].mxu0
      %v1115 = vadd.f32 %v565, %v1114
      %v1116 = vpop.f32.mrb[0].mxu0
      %v1117 = vadd.f32 %v561, %v1116
      %v1118 = vpop.f32.mrb[0].mxu0
      %v1119 = vadd.f32 %v565, %v1118
      %1120 = vmatprep.mubr.bf16.mxu0 %v555
      %1121 = vmatmul.mubr.bf16.gmra.mrb[0].mxu0 %v554
      %v1122 = vpop.f32.mrb[0].mxu0
      %v1123 = vadd.f32 %v561, %v1122
      %v1124 = vpop.f32.mrb[0].mxu0
      %v1125 = vadd.f32 %v565, %v1124
      %v1126 = vpop.f32.mrb[0].mxu0
      %v1127 = vadd.f32 %v561, %v1126
      %v1128 = vpop.f32.mrb[0].mxu0
      %v1129 = vadd.f32 %v565, %v1128
      %1130 = vdwg.mxu0
      %1131 = vmatprep.subr.bf16.mxu0 %v879
      %1132 = vmatpush1.bf16.msra.mxu0 %v878
      %1133 = vmatprep.subr.bf16.mxu0 %v885
      %1134 = vmatpush1.bf16.msra.mxu0 %v884
      %1135 = vmatprep.subr.bf16.mxu0 %v891
      %1136 = vmatpush1.bf16.msra.mxu0 %v890
      %1137 = vmatprep.subr.bf16.mxu0 %v897
      %1138 = vmatpush1.bf16.msra.mxu0 %v896
      %1139 = vmatprep.subr.bf16.mxu0 %v903
      %1140 = vmatpush1.bf16.msra.mxu0 %v902
      %1141 = vmatprep.subr.bf16.mxu0 %v909
      %1142 = vmatpush1.bf16.msra.mxu0 %v908
      %1143 = vmatprep.subr.bf16.mxu0 %v915
      %1144 = vmatpush1.bf16.msra.mxu0 %v914
      %1145 = vmatprep.subr.bf16.mxu0 %v921
      %1146 = vmatpush1.bf16.msra.mxu0 %v920
      %1147 = vmatprep.subr.bf16.mxu0 %v927
      %1148 = vmatpush1.bf16.msra.mxu0 %v926
      %1149 = vmatprep.subr.bf16.mxu0 %v933
      %1150 = vmatpush1.bf16.msra.mxu0 %v932
      %1151 = vmatprep.subr.bf16.mxu0 %v939
      %1152 = vmatpush1.bf16.msra.mxu0 %v938
      %1153 = vmatprep.subr.bf16.mxu0 %v945
      %1154 = vmatpush1.bf16.msra.mxu0 %v944
      %1155 = vmatprep.subr.bf16.mxu0 %v951
      %1156 = vmatpush1.bf16.msra.mxu0 %v950
      %1157 = vmatprep.subr.bf16.mxu0 %v957
      %1158 = vmatpush1.bf16.msra.mxu0 %v956
      %1159 = vmatprep.subr.bf16.mxu0 %v963
      %1160 = vmatpush1.bf16.msra.mxu0 %v962
      %1161 = vmatprep.subr.bf16.mxu0 %v969
      %1162 = vmatpush1.bf16.msra.mxu0 %v968
      %1163 = vmatprep.mubr.bf16.mxu0 %v551
      %1164 = vmatmul.mubr.bf16.gmra.mrb[0].mxu0 %v550
      %v1165 = vpop.f32.mrb[0].mxu0
      %v1166 = vadd.f32 %v569, %v1165
      %v1167 = vpop.f32.mrb[0].mxu0
      %v1168 = vadd.f32 %v573, %v1167
      %v1169 = vpop.f32.mrb[0].mxu0
      %v1170 = vadd.f32 %v569, %v1169
      %v1171 = vpop.f32.mrb[0].mxu0
      %v1172 = vadd.f32 %v573, %v1171
      %1173 = vmatprep.mubr.bf16.mxu0 %v553
      %1174 = vmatmul.mubr.bf16.gmra.mrb[0].mxu0 %v552
      %v1175 = vpop.f32.mrb[0].mxu0
      %v1176 = vadd.f32 %v569, %v1175
      %v1177 = vpop.f32.mrb[0].mxu0
      %v1178 = vadd.f32 %v573, %v1177
      %v1179 = vpop.f32.mrb[0].mxu0
      %v1180 = vadd.f32 %v569, %v1179
      %v1181 = vpop.f32.mrb[0].mxu0
      %v1182 = vadd.f32 %v573, %v1181
      %1183 = vmatprep.mubr.bf16.mxu0 %v555
      %1184 = vmatmul.mubr.bf16.gmra.mrb[0].mxu0 %v554
      %v1185 = vpop.f32.mrb[0].mxu0
      %v1186 = vadd.f32 %v569, %v1185
      %v1187 = vpop.f32.mrb[0].mxu0
      %v1188 = vadd.f32 %v573, %v1187
      %v1189 = vpop.f32.mrb[0].mxu0
      %v1190 = vadd.f32 %v569, %v1189
      %v1191 = vpop.f32.mrb[0].mxu0
      %v1192 = vadd.f32 %v573, %v1191
      %1193 = vdwg.mxu0
      %1194 = vmatprep.subr.bf16.mxu0 %v881
      %1195 = vmatpush1.bf16.msra.mxu0 %v880
      %1196 = vmatprep.subr.bf16.mxu0 %v887
      %1197 = vmatpush1.bf16.msra.mxu0 %v886
      %1198 = vmatprep.subr.bf16.mxu0 %v893
      %1199 = vmatpush1.bf16.msra.mxu0 %v892
      %1200 = vmatprep.subr.bf16.mxu0 %v899
      %1201 = vmatpush1.bf16.msra.mxu0 %v898
      %1202 = vmatprep.subr.bf16.mxu0 %v905
      %1203 = vmatpush1.bf16.msra.mxu0 %v904
      %1204 = vmatprep.subr.bf16.mxu0 %v911
      %1205 = vmatpush1.bf16.msra.mxu0 %v910
      %1206 = vmatprep.subr.bf16.mxu0 %v917
      %1207 = vmatpush1.bf16.msra.mxu0 %v916
      %1208 = vmatprep.subr.bf16.mxu0 %v923
      %1209 = vmatpush1.bf16.msra.mxu0 %v922
      %1210 = vmatprep.subr.bf16.mxu0 %v929
      %1211 = vmatpush1.bf16.msra.mxu0 %v928
      %1212 = vmatprep.subr.bf16.mxu0 %v935
      %1213 = vmatpush1.bf16.msra.mxu0 %v934
      %1214 = vmatprep.subr.bf16.mxu0 %v941
      %1215 = vmatpush1.bf16.msra.mxu0 %v940
      %1216 = vmatprep.subr.bf16.mxu0 %v947
      %1217 = vmatpush1.bf16.msra.mxu0 %v946
      %1218 = vmatprep.subr.bf16.mxu0 %v953
      %1219 = vmatpush1.bf16.msra.mxu0 %v952
      %1220 = vmatprep.subr.bf16.mxu0 %v959
      %1221 = vmatpush1.bf16.msra.mxu0 %v958
      %1222 = vmatprep.subr.bf16.mxu0 %v965
      %1223 = vmatpush1.bf16.msra.mxu0 %v964
      %1224 = vmatprep.subr.bf16.mxu0 %v971
      %1225 = vmatpush1.bf16.msra.mxu0 %v970
      %1226 = vmatprep.mubr.bf16.mxu0 %v551
      %1227 = vmatmul.mubr.bf16.gmra.mrb[0].mxu0 %v550
      %v1228 = vpop.f32.mrb[0].mxu0
      %v1229 = vadd.f32 %v577, %v1228
      %v1230 = vpop.f32.mrb[0].mxu0
      %v1231 = vadd.f32 %v581, %v1230
      %v1232 = vpop.f32.mrb[0].mxu0
      %v1233 = vadd.f32 %v577, %v1232
      %v1234 = vpop.f32.mrb[0].mxu0
      %v1235 = vadd.f32 %v581, %v1234
      %1236 = vmatprep.mubr.bf16.mxu0 %v553
      %1237 = vmatmul.mubr.bf16.gmra.mrb[0].mxu0 %v552
      %v1238 = vpop.f32.mrb[0].mxu0
      %v1239 = vadd.f32 %v577, %v1238
      %v1240 = vpop.f32.mrb[0].mxu0
      %v1241 = vadd.f32 %v581, %v1240
      %v1242 = vpop.f32.mrb[0].mxu0
      %v1243 = vadd.f32 %v577, %v1242
      %v1244 = vpop.f32.mrb[0].mxu0
      %v1245 = vadd.f32 %v581, %v1244
      %1246 = vmatprep.mubr.bf16.mxu0 %v555
      %1247 = vmatmul.mubr.bf16.gmra.mrb[0].mxu0 %v554
      %v1248 = vpop.f32.mrb[0].mxu0
      %v1249 = vadd.f32 %v577, %v1248
      %v1250 = vpop.f32.mrb[0].mxu0
      %v1251 = vadd.f32 %v581, %v1250
      %v1252 = vpop.f32.mrb[0].mxu0
      %v1253 = vadd.f32 %v577, %v1252
      %v1254 = vpop.f32.mrb[0].mxu0
      %v1255 = vadd.f32 %v581, %v1254
      %1256 = vdwg.mxu0
      %v1257 = vld [vmem:[%s3] sm:$0xff]
      %v1258 = vld [vmem:[%s3 + $0x8] sm:$0xff]
      %v1259 = vld [vmem:[%s3 + $0x10] sm:$0xff]
      %v1260 = vld [vmem:[%s3 + $0x18] sm:$0xff]
      %v1261 = vld [vmem:[%s3 + $0x20] sm:$0xff]
      %v1262 = vld [vmem:[%s3 + $0x28] sm:$0xff]
      %v1263 = vld [vmem:[%s3 + $0x30] sm:$0xff]
      %v1264 = vld [vmem:[%s3 + $0x38] sm:$0xff]
      %v1265 = vld [vmem:[%s3 + $0x40] sm:$0xff]
      %v1266 = vld [vmem:[%s3 + $0x48] sm:$0xff]
      %v1267 = vld [vmem:[%s3 + $0x50] sm:$0xff]
      %v1268 = vld [vmem:[%s3 + $0x58] sm:$0xff]
      %v1269 = vld [vmem:[%s3 + $0x60] sm:$0xff]
      %v1270 = vld [vmem:[%s3 + $0x68] sm:$0xff]
      %v1271 = vld [vmem:[%s3 + $0x70] sm:$0xff]
      %v1272 = vld [vmem:[%s3 + $0x78] sm:$0xff]
      %v1273 = vld [vmem:[%s3 + $0x80] sm:$0xff]
      %v1274 = vld [vmem:[%s3 + $0x88] sm:$0xff]
      %v1275 = vld [vmem:[%s3 + $0x90] sm:$0xff]
      %v1276 = vld [vmem:[%s3 + $0x98] sm:$0xff]
      %v1277 = vld [vmem:[%s3 + $0xa0] sm:$0xff]
      %v1278 = vld [vmem:[%s3 + $0xa8] sm:$0xff]
      %v1279 = vld [vmem:[%s3 + $0xb0] sm:$0xff]
      %v1280 = vld [vmem:[%s3 + $0xb8] sm:$0xff]
      %v1281 = vld [vmem:[%s3 + $0xc0] sm:$0xff]
      %v1282 = vld [vmem:[%s3 + $0xc8] sm:$0xff]
      %v1283 = vld [vmem:[%s3 + $0xd0] sm:$0xff]
      %v1284 = vld [vmem:[%s3 + $0xd8] sm:$0xff]
      %v1285 = vld [vmem:[%s3 + $0xe0] sm:$0xff]
      %v1286 = vld [vmem:[%s3 + $0xe8] sm:$0xff]
      %v1287 = vld [vmem:[%s3 + $0xf0] sm:$0xff]
      %v1288 = vld [vmem:[%s3 + $0xf8] sm:$0xff]
      %v1289 = vpack.c.bf16 %v1107, %v1103
      %v1290 = vpack.c.bf16 %v1117, %v1113
      %v1291 = vpack.c.bf16 %v1127, %v1123
      %v1292 = vpack.c.bf16 %v1170, %v1166
      %v1293 = vpack.c.bf16 %v1180, %v1176
      %v1294 = vpack.c.bf16 %v1190, %v1186
      %v1295 = vpack.c.bf16 %v1233, %v1229
      %v1296 = vpack.c.bf16 %v1243, %v1239
      %v1297 = vpack.c.bf16 %v1253, %v1249
      %1298 = vmatprep.subr.bf16.mxu0 0
      %1299 = vmatpush1.bf16.xpose.msra.mxu0 %v1292
      %1300 = vmatprep.subr.bf16.mxu0 0
      %1301 = vmatpush1.bf16.xpose.msra.mxu0 %v1293
      %1302 = vmatprep.subr.bf16.mxu0 0
      %1303 = vmatpush1.bf16.xpose.msra.mxu0 %v1294
      %1304 = vmatprep.subr.bf16.mxu0 0
      %1305 = vmatpush1.bf16.xpose.msra.mxu0 0
      %1306 = vmatprep.subr.bf16.mxu0 0
      %1307 = vmatpush1.bf16.xpose.msra.mxu0 0
      %1308 = vmatprep.subr.bf16.mxu0 0
      %1309 = vmatpush1.bf16.xpose.msra.mxu0 0
      %1310 = vmatprep.subr.bf16.mxu0 0
      %1311 = vmatpush1.bf16.xpose.msra.mxu0 0
      %1312 = vmatprep.subr.bf16.mxu0 0
      %1313 = vmatpush1.bf16.xpose.msra.mxu0 0
      %1314 = vmatprep.subr.bf16.mxu0 0
      %1315 = vmatpush1.bf16.xpose.msra.mxu0 0
      %1316 = vmatprep.subr.bf16.mxu0 0
      %1317 = vmatpush1.bf16.xpose.msra.mxu0 0
      %1318 = vmatprep.subr.bf16.mxu0 0
      %1319 = vmatpush1.bf16.xpose.msra.mxu0 0
      %1320 = vmatprep.subr.bf16.mxu0 0
      %1321 = vmatpush1.bf16.xpose.msra.mxu0 0
      %1322 = vmatprep.subr.bf16.mxu0 0
      %1323 = vmatpush1.bf16.xpose.msra.mxu0 0
      %1324 = vmatprep.subr.bf16.mxu0 0
      %1325 = vmatpush1.bf16.xpose.msra.mxu0 0
      %1326 = vmatprep.subr.bf16.mxu0 0
      %1327 = vmatpush1.bf16.xpose.msra.mxu0 0
      %1328 = vmatprep.subr.bf16.mxu0 0
      %1329 = vmatpush1.bf16.xpose.msra.mxu0 0
      %1330 = vmatprep.mubr.bf16.mxu0 0
      %1331 = vmatmul.mubr.bf16.gmra.mrb[0].mxu0 %v1289
      %v1332 = vpop.f32.mrb[0].mxu0
      %v1333 = vadd.f32 0.0, %v1332
      %v1334 = vpop.f32.mrb[0].mxu0
      %v1335 = vpop.f32.mrb[0].mxu0
      %v1336 = vadd.f32 0.0, %v1335
      %v1337 = vpop.f32.mrb[0].mxu0
      %1338 = vmatprep.mubr.bf16.mxu0 0
      %1339 = vmatmul.mubr.bf16.gmra.mrb[0].mxu0 %v1290
      %v1340 = vpop.f32.mrb[0].mxu0
      %v1341 = vadd.f32 0.0, %v1340
      %v1342 = vpop.f32.mrb[0].mxu0
      %v1343 = vpop.f32.mrb[0].mxu0
      %v1344 = vadd.f32 0.0, %v1343
      %v1345 = vpop.f32.mrb[0].mxu0
      %1346 = vmatprep.mubr.bf16.mxu0 0
      %1347 = vmatmul.mubr.bf16.gmra.mrb[0].mxu0 %v1291
      %v1348 = vpop.f32.mrb[0].mxu0
      %v1349 = vadd.f32 0.0, %v1348
      %v1350 = vpop.f32.mrb[0].mxu0
      %v1351 = vpop.f32.mrb[0].mxu0
      %v1352 = vadd.f32 0.0, %v1351
      %v1353 = vpop.f32.mrb[0].mxu0
      %1354 = vdwg.mxu0
      %v1355 = vmul.f32 %v1333, 0.088388346
      %v1356 = vmul.f32 %v1336, 0.088388346
      %v1357 = vmul.f32 %v1341, 0.088388346
      %v1358 = vmul.f32 %v1344, 0.088388346
      %v1359 = vmul.f32 %v1349, 0.088388346
      %v1360 = vmul.f32 %v1352, 0.088388346
      %vm1361 = vcmask 392192
      %v1362 = vsel %vm1361, %v1355, -inf
      %1363 = vmax.xlane.f32.xlu0 %v1362
      %v1364 = vpop.xlane.xlu0 %1363
      %v1365 = vsel %vm1361, %v1356, -inf
      %1366 = vmax.xlane.f32.xlu0 %v1365
      %v1367 = vpop.xlane.xlu0 %1366
      %v1368 = vsel %vm1361, %v1357, -inf
      %1369 = vmax.xlane.f32.xlu0 %v1368
      %v1370 = vpop.xlane.xlu0 %1369
      %v1371 = vsel %vm1361, %v1358, -inf
      %1372 = vmax.xlane.f32.xlu0 %v1371
      %v1373 = vpop.xlane.xlu0 %1372
      %v1374 = vsel %vm1361, %v1359, -inf
      %1375 = vmax.xlane.f32.xlu0 %v1374
      %v1376 = vpop.xlane.xlu0 %1375
      %v1377 = vsel %vm1361, %v1360, -inf
      %1378 = vmax.xlane.f32.xlu0 %v1377
      %v1379 = vpop.xlane.xlu0 %1378
      %v1380 = vsub.f32 %v1355, %v1364
      %v1381 = vsub.f32 %v1356, %v1367
      %v1382 = vsub.f32 %v1357, %v1370
      %v1383 = vsub.f32 %v1358, %v1373
      %v1384 = vsub.f32 %v1359, %v1376
      %v1385 = vsub.f32 %v1360, %v1379
      %v1386 = vmul.f32 %v1380, 1.442695
      %v1387 = vpow.pop %v1386
      %v1388 = vmul.f32 %v1381, 1.442695
      %v1389 = vpow.pop %v1388
      %v1390 = vmul.f32 %v1382, 1.442695
      %v1391 = vpow.pop %v1390
      %v1392 = vmul.f32 %v1383, 1.442695
      %v1393 = vpow.pop %v1392
      %v1394 = vmul.f32 %v1384, 1.442695
      %v1395 = vpow.pop %v1394
      %v1396 = vmul.f32 %v1385, 1.442695
      %v1397 = vpow.pop %v1396
      %v1398 = vsel %vm1361, %v1387, 0.0
      %1399 = vadd.xlane.f32.xlu0 %v1398
      %v1400 = vpop.xlane.xlu0 %1399
      %v1401 = vsel %vm1361, %v1389, 0.0
      %1402 = vadd.xlane.f32.xlu0 %v1401
      %v1403 = vpop.xlane.xlu0 %1402
      %v1404 = vsel %vm1361, %v1391, 0.0
      %1405 = vadd.xlane.f32.xlu0 %v1404
      %v1406 = vpop.xlane.xlu0 %1405
      %v1407 = vsel %vm1361, %v1393, 0.0
      %1408 = vadd.xlane.f32.xlu0 %v1407
      %v1409 = vpop.xlane.xlu0 %1408
      %v1410 = vsel %vm1361, %v1395, 0.0
      %1411 = vadd.xlane.f32.xlu0 %v1410
      %v1412 = vpop.xlane.xlu0 %1411
      %v1413 = vsel %vm1361, %v1397, 0.0
      %1414 = vadd.xlane.f32.xlu0 %v1413
      %v1415 = vpop.xlane.xlu0 %1414
      %v1416 = vrcp.pop %v1400
      %v1417 = vrcp.pop %v1403
      %v1418 = vrcp.pop %v1406
      %v1419 = vrcp.pop %v1409
      %v1420 = vrcp.pop %v1412
      %v1421 = vrcp.pop %v1415
      %v1422 = vmul.f32 %v1387, %v1416
      %v1423 = vmul.f32 %v1389, %v1417
      %v1424 = vmul.f32 %v1391, %v1418
      %v1425 = vmul.f32 %v1393, %v1419
      %v1426 = vmul.f32 %v1395, %v1420
      %v1427 = vmul.f32 %v1397, %v1421
      %v1428 = vpack.c.bf16 %v1423, %v1422
      %v1429 = vpack.c.bf16 %v1425, %v1424
      %v1430 = vpack.c.bf16 %v1427, %v1426
      %v1432 = vsel %vm1361, %v1428, 0
      %v1435 = vsel %vm1361, %v1429, 0
      %v1438 = vsel %vm1361, %v1430, 0
      %1440 = vmatprep.subr.bf16.mxu0 0
      %1441 = vmatpush1.bf16.msra.mxu0 %v1295
      %1442 = vmatprep.subr.bf16.mxu0 0
      %1443 = vmatpush1.bf16.msra.mxu0 %v1296
      %1444 = vmatprep.subr.bf16.mxu0 0
      %1445 = vmatpush1.bf16.msra.mxu0 %v1297
      %1446 = vmatprep.subr.bf16.mxu0 0
      %1447 = vmatpush1.bf16.msra.mxu0 0
      %1448 = vmatprep.subr.bf16.mxu0 0
      %1449 = vmatpush1.bf16.msra.mxu0 0
      %1450 = vmatprep.subr.bf16.mxu0 0
      %1451 = vmatpush1.bf16.msra.mxu0 0
      %1452 = vmatprep.subr.bf16.mxu0 0
      %1453 = vmatpush1.bf16.msra.mxu0 0
      %1454 = vmatprep.subr.bf16.mxu0 0
      %1455 = vmatpush1.bf16.msra.mxu0 0
      %1456 = vmatprep.subr.bf16.mxu0 0
      %1457 = vmatpush1.bf16.msra.mxu0 0
      %1458 = vmatprep.subr.bf16.mxu0 0
      %1459 = vmatpush1.bf16.msra.mxu0 0
      %1460 = vmatprep.subr.bf16.mxu0 0
      %1461 = vmatpush1.bf16.msra.mxu0 0
      %1462 = vmatprep.subr.bf16.mxu0 0
      %1463 = vmatpush1.bf16.msra.mxu0 0
      %1464 = vmatprep.subr.bf16.mxu0 0
      %1465 = vmatpush1.bf16.msra.mxu0 0
      %1466 = vmatprep.subr.bf16.mxu0 0
      %1467 = vmatpush1.bf16.msra.mxu0 0
      %1468 = vmatprep.subr.bf16.mxu0 0
      %1469 = vmatpush1.bf16.msra.mxu0 0
      %1470 = vmatprep.subr.bf16.mxu0 0
      %1471 = vmatpush1.bf16.msra.mxu0 0
      %1472 = vmatprep.mubr.bf16.mxu0 0
      %1473 = vmatmul.mubr.bf16.gmra.mrb[0].mxu0 %v1432
      %v1474 = vpop.f32.mrb[0].mxu0
      %v1475 = vadd.f32 0.0, %v1474
      %v1476 = vpop.f32.mrb[0].mxu0
      %v1477 = vpop.f32.mrb[0].mxu0
      %v1478 = vadd.f32 0.0, %v1477
      %v1479 = vpop.f32.mrb[0].mxu0
      %1480 = vmatprep.mubr.bf16.mxu0 0
      %1481 = vmatmul.mubr.bf16.gmra.mrb[0].mxu0 %v1435
      %v1482 = vpop.f32.mrb[0].mxu0
      %v1483 = vadd.f32 0.0, %v1482
      %v1484 = vpop.f32.mrb[0].mxu0
      %v1485 = vpop.f32.mrb[0].mxu0
      %v1486 = vadd.f32 0.0, %v1485
      %v1487 = vpop.f32.mrb[0].mxu0
      %1488 = vmatprep.mubr.bf16.mxu0 0
      %1489 = vmatmul.mubr.bf16.gmra.mrb[0].mxu0 %v1438
      %v1490 = vpop.f32.mrb[0].mxu0
      %v1491 = vadd.f32 0.0, %v1490
      %v1492 = vpop.f32.mrb[0].mxu0
      %v1493 = vpop.f32.mrb[0].mxu0
      %v1494 = vadd.f32 0.0, %v1493
      %v1495 = vpop.f32.mrb[0].mxu0
      %1496 = vdwg.mxu0
      %v1497 = vpack.c.bf16 %v1478, %v1475
      %v1498 = vpack.c.bf16 %v1486, %v1483
      %v1499 = vpack.c.bf16 %v1494, %v1491
      %v1500 = vpack.c.bf16 %v1109, %v1105
      %v1501 = vpack.c.bf16 %v1119, %v1115
      %v1502 = vpack.c.bf16 %v1129, %v1125
      %v1503 = vpack.c.bf16 %v1172, %v1168
      %v1504 = vpack.c.bf16 %v1182, %v1178
      %v1505 = vpack.c.bf16 %v1192, %v1188
      %v1506 = vpack.c.bf16 %v1235, %v1231
      %v1507 = vpack.c.bf16 %v1245, %v1241
      %v1508 = vpack.c.bf16 %v1255, %v1251
      %1509 = vmatprep.subr.bf16.mxu0 0
      %1510 = vmatpush1.bf16.xpose.msra.mxu0 %v1503
      %1511 = vmatprep.subr.bf16.mxu0 0
      %1512 = vmatpush1.bf16.xpose.msra.mxu0 %v1504
      %1513 = vmatprep.subr.bf16.mxu0 0
      %1514 = vmatpush1.bf16.xpose.msra.mxu0 %v1505
      %1515 = vmatprep.subr.bf16.mxu0 0
      %1516 = vmatpush1.bf16.xpose.msra.mxu0 0
      %1517 = vmatprep.subr.bf16.mxu0 0
      %1518 = vmatpush1.bf16.xpose.msra.mxu0 0
      %1519 = vmatprep.subr.bf16.mxu0 0
      %1520 = vmatpush1.bf16.xpose.msra.mxu0 0
      %1521 = vmatprep.subr.bf16.mxu0 0
      %1522 = vmatpush1.bf16.xpose.msra.mxu0 0
      %1523 = vmatprep.subr.bf16.mxu0 0
      %1524 = vmatpush1.bf16.xpose.msra.mxu0 0
      %1525 = vmatprep.subr.bf16.mxu0 0
      %1526 = vmatpush1.bf16.xpose.msra.mxu0 0
      %1527 = vmatprep.subr.bf16.mxu0 0
      %1528 = vmatpush1.bf16.xpose.msra.mxu0 0
      %1529 = vmatprep.subr.bf16.mxu0 0
      %1530 = vmatpush1.bf16.xpose.msra.mxu0 0
      %1531 = vmatprep.subr.bf16.mxu0 0
      %1532 = vmatpush1.bf16.xpose.msra.mxu0 0
      %1533 = vmatprep.subr.bf16.mxu0 0
      %1534 = vmatpush1.bf16.xpose.msra.mxu0 0
      %1535 = vmatprep.subr.bf16.mxu0 0
      %1536 = vmatpush1.bf16.xpose.msra.mxu0 0
      %1537 = vmatprep.subr.bf16.mxu0 0
      %1538 = vmatpush1.bf16.xpose.msra.mxu0 0
      %1539 = vmatprep.subr.bf16.mxu0 0
      %1540 = vmatpush1.bf16.xpose.msra.mxu0 0
      %1541 = vmatprep.mubr.bf16.mxu0 0
      %1542 = vmatmul.mubr.bf16.gmra.mrb[0].mxu0 %v1500
      %v1543 = vpop.f32.mrb[0].mxu0
      %v1544 = vadd.f32 0.0, %v1543
      %v1545 = vpop.f32.mrb[0].mxu0
      %v1546 = vpop.f32.mrb[0].mxu0
      %v1547 = vadd.f32 0.0, %v1546
      %v1548 = vpop.f32.mrb[0].mxu0
      %1549 = vmatprep.mubr.bf16.mxu0 0
      %1550 = vmatmul.mubr.bf16.gmra.mrb[0].mxu0 %v1501
      %v1551 = vpop.f32.mrb[0].mxu0
      %v1552 = vadd.f32 0.0, %v1551
      %v1553 = vpop.f32.mrb[0].mxu0
      %v1554 = vpop.f32.mrb[0].mxu0
      %v1555 = vadd.f32 0.0, %v1554
      %v1556 = vpop.f32.mrb[0].mxu0
      %1557 = vmatprep.mubr.bf16.mxu0 0
      %1558 = vmatmul.mubr.bf16.gmra.mrb[0].mxu0 %v1502
      %v1559 = vpop.f32.mrb[0].mxu0
      %v1560 = vadd.f32 0.0, %v1559
      %v1561 = vpop.f32.mrb[0].mxu0
      %v1562 = vpop.f32.mrb[0].mxu0
      %v1563 = vadd.f32 0.0, %v1562
      %v1564 = vpop.f32.mrb[0].mxu0
      %1565 = vdwg.mxu0
      %v1566 = vmul.f32 %v1544, 0.088388346
      %v1567 = vmul.f32 %v1547, 0.088388346
      %v1568 = vmul.f32 %v1552, 0.088388346
      %v1569 = vmul.f32 %v1555, 0.088388346
      %v1570 = vmul.f32 %v1560, 0.088388346
      %v1571 = vmul.f32 %v1563, 0.088388346
      %v1572 = vsel %vm1361, %v1566, -inf
      %1573 = vmax.xlane.f32.xlu0 %v1572
      %v1574 = vpop.xlane.xlu0 %1573
      %v1575 = vsel %vm1361, %v1567, -inf
      %1576 = vmax.xlane.f32.xlu0 %v1575
      %v1577 = vpop.xlane.xlu0 %1576
      %v1578 = vsel %vm1361, %v1568, -inf
      %1579 = vmax.xlane.f32.xlu0 %v1578
      %v1580 = vpop.xlane.xlu0 %1579
      %v1581 = vsel %vm1361, %v1569, -inf
      %1582 = vmax.xlane.f32.xlu0 %v1581
      %v1583 = vpop.xlane.xlu0 %1582
      %v1584 = vsel %vm1361, %v1570, -inf
      %1585 = vmax.xlane.f32.xlu0 %v1584
      %v1586 = vpop.xlane.xlu0 %1585
      %v1587 = vsel %vm1361, %v1571, -inf
      %1588 = vmax.xlane.f32.xlu0 %v1587
      %v1589 = vpop.xlane.xlu0 %1588
      %v1590 = vsub.f32 %v1566, %v1574
      %v1591 = vsub.f32 %v1567, %v1577
      %v1592 = vsub.f32 %v1568, %v1580
      %v1593 = vsub.f32 %v1569, %v1583
      %v1594 = vsub.f32 %v1570, %v1586
      %v1595 = vsub.f32 %v1571, %v1589
      %v1596 = vmul.f32 %v1590, 1.442695
      %v1597 = vpow.pop %v1596
      %v1598 = vmul.f32 %v1591, 1.442695
      %v1599 = vpow.pop %v1598
      %v1600 = vmul.f32 %v1592, 1.442695
      %v1601 = vpow.pop %v1600
      %v1602 = vmul.f32 %v1593, 1.442695
      %v1603 = vpow.pop %v1602
      %v1604 = vmul.f32 %v1594, 1.442695
      %v1605 = vpow.pop %v1604
      %v1606 = vmul.f32 %v1595, 1.442695
      %v1607 = vpow.pop %v1606
      %v1608 = vsel %vm1361, %v1597, 0.0
      %1609 = vadd.xlane.f32.xlu0 %v1608
      %v1610 = vpop.xlane.xlu0 %1609
      %v1611 = vsel %vm1361, %v1599, 0.0
      %1612 = vadd.xlane.f32.xlu0 %v1611
      %v1613 = vpop.xlane.xlu0 %1612
      %v1614 = vsel %vm1361, %v1601, 0.0
      %1615 = vadd.xlane.f32.xlu0 %v1614
      %v1616 = vpop.xlane.xlu0 %1615
      %v1617 = vsel %vm1361, %v1603, 0.0
      %1618 = vadd.xlane.f32.xlu0 %v1617
      %v1619 = vpop.xlane.xlu0 %1618
      %v1620 = vsel %vm1361, %v1605, 0.0
      %1621 = vadd.xlane.f32.xlu0 %v1620
      %v1622 = vpop.xlane.xlu0 %1621
      %v1623 = vsel %vm1361, %v1607, 0.0
      %1624 = vadd.xlane.f32.xlu0 %v1623
      %v1625 = vpop.xlane.xlu0 %1624
      %v1626 = vrcp.pop %v1610
      %v1627 = vrcp.pop %v1613
      %v1628 = vrcp.pop %v1616
      %v1629 = vrcp.pop %v1619
      %v1630 = vrcp.pop %v1622
      %v1631 = vrcp.pop %v1625
      %v1632 = vmul.f32 %v1597, %v1626
      %v1633 = vmul.f32 %v1599, %v1627
      %v1634 = vmul.f32 %v1601, %v1628
      %v1635 = vmul.f32 %v1603, %v1629
      %v1636 = vmul.f32 %v1605, %v1630
      %v1637 = vmul.f32 %v1607, %v1631
      %v1638 = vpack.c.bf16 %v1633, %v1632
      %v1639 = vpack.c.bf16 %v1635, %v1634
      %v1640 = vpack.c.bf16 %v1637, %v1636
      %v1642 = vsel %vm1361, %v1638, 0
      %v1645 = vsel %vm1361, %v1639, 0
      %v1648 = vsel %vm1361, %v1640, 0
      %1650 = vmatprep.subr.bf16.mxu0 0
      %1651 = vmatpush1.bf16.msra.mxu0 %v1506
      %1652 = vmatprep.subr.bf16.mxu0 0
      %1653 = vmatpush1.bf16.msra.mxu0 %v1507
      %1654 = vmatprep.subr.bf16.mxu0 0
      %1655 = vmatpush1.bf16.msra.mxu0 %v1508
      %1656 = vmatprep.subr.bf16.mxu0 0
      %1657 = vmatpush1.bf16.msra.mxu0 0
      %1658 = vmatprep.subr.bf16.mxu0 0
      %1659 = vmatpush1.bf16.msra.mxu0 0
      %1660 = vmatprep.subr.bf16.mxu0 0
      %1661 = vmatpush1.bf16.msra.mxu0 0
      %1662 = vmatprep.subr.bf16.mxu0 0
      %1663 = vmatpush1.bf16.msra.mxu0 0
      %1664 = vmatprep.subr.bf16.mxu0 0
      %1665 = vmatpush1.bf16.msra.mxu0 0
      %1666 = vmatprep.subr.bf16.mxu0 0
      %1667 = vmatpush1.bf16.msra.mxu0 0
      %1668 = vmatprep.subr.bf16.mxu0 0
      %1669 = vmatpush1.bf16.msra.mxu0 0
      %1670 = vmatprep.subr.bf16.mxu0 0
      %1671 = vmatpush1.bf16.msra.mxu0 0
      %1672 = vmatprep.subr.bf16.mxu0 0
      %1673 = vmatpush1.bf16.msra.mxu0 0
      %1674 = vmatprep.subr.bf16.mxu0 0
      %1675 = vmatpush1.bf16.msra.mxu0 0
      %1676 = vmatprep.subr.bf16.mxu0 0
      %1677 = vmatpush1.bf16.msra.mxu0 0
      %1678 = vmatprep.subr.bf16.mxu0 0
      %1679 = vmatpush1.bf16.msra.mxu0 0
      %1680 = vmatprep.subr.bf16.mxu0 0
      %1681 = vmatpush1.bf16.msra.mxu0 0
      %1682 = vmatprep.mubr.bf16.mxu0 0
      %1683 = vmatmul.mubr.bf16.gmra.mrb[0].mxu0 %v1642
      %v1684 = vpop.f32.mrb[0].mxu0
      %v1685 = vadd.f32 0.0, %v1684
      %v1686 = vpop.f32.mrb[0].mxu0
      %v1687 = vpop.f32.mrb[0].mxu0
      %v1688 = vadd.f32 0.0, %v1687
      %v1689 = vpop.f32.mrb[0].mxu0
      %1690 = vmatprep.mubr.bf16.mxu0 0
      %1691 = vmatmul.mubr.bf16.gmra.mrb[0].mxu0 %v1645
      %v1692 = vpop.f32.mrb[0].mxu0
      %v1693 = vadd.f32 0.0, %v1692
      %v1694 = vpop.f32.mrb[0].mxu0
      %v1695 = vpop.f32.mrb[0].mxu0
      %v1696 = vadd.f32 0.0, %v1695
      %v1697 = vpop.f32.mrb[0].mxu0
      %1698 = vmatprep.mubr.bf16.mxu0 0
      %1699 = vmatmul.mubr.bf16.gmra.mrb[0].mxu0 %v1648
      %v1700 = vpop.f32.mrb[0].mxu0
      %v1701 = vadd.f32 0.0, %v1700
      %v1702 = vpop.f32.mrb[0].mxu0
      %v1703 = vpop.f32.mrb[0].mxu0
      %v1704 = vadd.f32 0.0, %v1703
      %v1705 = vpop.f32.mrb[0].mxu0
      %1706 = vdwg.mxu0
      %v1707 = vpack.c.bf16 %v1688, %v1685
      %v1708 = vpack.c.bf16 %v1696, %v1693
      %v1709 = vpack.c.bf16 %v1704, %v1701
      %v1726 = vunpack.c.l.b16 %v1273
      %v1727 = vunpack.c.h.b16 %v1273
      %v1728 = vunpack.c.l.b16 %v1274
      %v1729 = vunpack.c.h.b16 %v1274
      %v1730 = vunpack.c.l.b16 %v1275
      %v1731 = vunpack.c.h.b16 %v1275
      %v1732 = vunpack.c.l.b16 %v1276
      %v1733 = vunpack.c.h.b16 %v1276
      %v1734 = vunpack.c.l.b16 %v1277
      %v1735 = vunpack.c.h.b16 %v1277
      %v1736 = vunpack.c.l.b16 %v1278
      %v1737 = vunpack.c.h.b16 %v1278
      %v1738 = vunpack.c.l.b16 %v1279
      %v1739 = vunpack.c.h.b16 %v1279
      %v1740 = vunpack.c.l.b16 %v1280
      %v1741 = vunpack.c.h.b16 %v1280
      %v1742 = vunpack.c.l.b16 %v1281
      %v1743 = vunpack.c.h.b16 %v1281
      %v1744 = vunpack.c.l.b16 %v1282
      %v1745 = vunpack.c.h.b16 %v1282
      %v1746 = vunpack.c.l.b16 %v1283
      %v1747 = vunpack.c.h.b16 %v1283
      %v1748 = vunpack.c.l.b16 %v1284
      %v1749 = vunpack.c.h.b16 %v1284
      %v1750 = vunpack.c.l.b16 %v1285
      %v1751 = vunpack.c.h.b16 %v1285
      %v1752 = vunpack.c.l.b16 %v1286
      %v1753 = vunpack.c.h.b16 %v1286
      %v1754 = vunpack.c.l.b16 %v1287
      %v1755 = vunpack.c.h.b16 %v1287
      %v1756 = vunpack.c.l.b16 %v1288
      %v1757 = vunpack.c.h.b16 %v1288
      %v1758 = vpack.c.b16 %v1728, %v1726
      %v1759 = vpack.c.b16 %v1729, %v1727
      %v1760 = vpack.c.b16 %v1732, %v1730
      %v1761 = vpack.c.b16 %v1733, %v1731
      %v1762 = vpack.c.b16 %v1736, %v1734
      %v1763 = vpack.c.b16 %v1737, %v1735
      %v1764 = vpack.c.b16 %v1740, %v1738
      %v1765 = vpack.c.b16 %v1741, %v1739
      %v1766 = vpack.c.b16 %v1744, %v1742
      %v1767 = vpack.c.b16 %v1745, %v1743
      %v1768 = vpack.c.b16 %v1748, %v1746
      %v1769 = vpack.c.b16 %v1749, %v1747
      %v1770 = vpack.c.b16 %v1752, %v1750
      %v1771 = vpack.c.b16 %v1753, %v1751
      %v1772 = vpack.c.b16 %v1756, %v1754
      %v1773 = vpack.c.b16 %v1757, %v1755
      %1790 = vmatprep.subr.bf16.mxu0 %v1759
      %1791 = vmatpush1.bf16.msra.mxu0 %v1758
      %1792 = vmatprep.subr.bf16.mxu0 %v1761
      %1793 = vmatpush1.bf16.msra.mxu0 %v1760
      %1794 = vmatprep.subr.bf16.mxu0 %v1763
      %1795 = vmatpush1.bf16.msra.mxu0 %v1762
      %1796 = vmatprep.subr.bf16.mxu0 %v1765
      %1797 = vmatpush1.bf16.msra.mxu0 %v1764
      %1798 = vmatprep.subr.bf16.mxu0 %v1767
      %1799 = vmatpush1.bf16.msra.mxu0 %v1766
      %1800 = vmatprep.subr.bf16.mxu0 %v1769
      %1801 = vmatpush1.bf16.msra.mxu0 %v1768
      %1802 = vmatprep.subr.bf16.mxu0 %v1771
      %1803 = vmatpush1.bf16.msra.mxu0 %v1770
      %1804 = vmatprep.subr.bf16.mxu0 %v1773
      %1805 = vmatpush1.bf16.msra.mxu0 %v1772
      %1806 = vmatprep.subr.bf16.mxu0 0
      %1807 = vmatpush1.bf16.msra.mxu0 0
      %1808 = vmatprep.subr.bf16.mxu0 0
      %1809 = vmatpush1.bf16.msra.mxu0 0
      %1810 = vmatprep.subr.bf16.mxu0 0
      %1811 = vmatpush1.bf16.msra.mxu0 0
      %1812 = vmatprep.subr.bf16.mxu0 0
      %1813 = vmatpush1.bf16.msra.mxu0 0
      %1814 = vmatprep.subr.bf16.mxu0 0
      %1815 = vmatpush1.bf16.msra.mxu0 0
      %1816 = vmatprep.subr.bf16.mxu0 0
      %1817 = vmatpush1.bf16.msra.mxu0 0
      %1818 = vmatprep.subr.bf16.mxu0 0
      %1819 = vmatpush1.bf16.msra.mxu0 0
      %1820 = vmatprep.subr.bf16.mxu0 0
      %1821 = vmatpush1.bf16.msra.mxu0 0
      %1822 = vmatprep.mubr.bf16.mxu0 0
      %1823 = vmatmul.mubr.bf16.gmra.mrb[0].mxu0 %v1707
      %v1824 = vpop.f32.mrb[0].mxu0
      %v1825 = vadd.f32 0.0, %v1824
      %v1826 = vpop.f32.mrb[0].mxu0
      %v1827 = vadd.f32 0.0, %v1826
      %v1828 = vpop.f32.mrb[0].mxu0
      %v1829 = vadd.f32 0.0, %v1828
      %v1830 = vpop.f32.mrb[0].mxu0
      %v1831 = vadd.f32 0.0, %v1830
      %1832 = vmatprep.mubr.bf16.mxu0 0
      %1833 = vmatmul.mubr.bf16.gmra.mrb[0].mxu0 %v1708
      %v1834 = vpop.f32.mrb[0].mxu0
      %v1835 = vadd.f32 0.0, %v1834
      %v1836 = vpop.f32.mrb[0].mxu0
      %v1837 = vadd.f32 0.0, %v1836
      %v1838 = vpop.f32.mrb[0].mxu0
      %v1839 = vadd.f32 0.0, %v1838
      %v1840 = vpop.f32.mrb[0].mxu0
      %v1841 = vadd.f32 0.0, %v1840
      %1842 = vmatprep.mubr.bf16.mxu0 0
      %1843 = vmatmul.mubr.bf16.gmra.mrb[0].mxu0 %v1709
      %v1844 = vpop.f32.mrb[0].mxu0
      %v1845 = vadd.f32 0.0, %v1844
      %v1846 = vpop.f32.mrb[0].mxu0
      %v1847 = vadd.f32 0.0, %v1846
      %v1848 = vpop.f32.mrb[0].mxu0
      %v1849 = vadd.f32 0.0, %v1848
      %v1850 = vpop.f32.mrb[0].mxu0
      %v1851 = vadd.f32 0.0, %v1850
      %1852 = vdwg.mxu0
      %v1869 = vunpack.c.l.b16 %v1257
      %v1870 = vunpack.c.h.b16 %v1257
      %v1871 = vunpack.c.l.b16 %v1258
      %v1872 = vunpack.c.h.b16 %v1258
      %v1873 = vunpack.c.l.b16 %v1259
      %v1874 = vunpack.c.h.b16 %v1259
      %v1875 = vunpack.c.l.b16 %v1260
      %v1876 = vunpack.c.h.b16 %v1260
      %v1877 = vunpack.c.l.b16 %v1261
      %v1878 = vunpack.c.h.b16 %v1261
      %v1879 = vunpack.c.l.b16 %v1262
      %v1880 = vunpack.c.h.b16 %v1262
      %v1881 = vunpack.c.l.b16 %v1263
      %v1882 = vunpack.c.h.b16 %v1263
      %v1883 = vunpack.c.l.b16 %v1264
      %v1884 = vunpack.c.h.b16 %v1264
      %v1885 = vunpack.c.l.b16 %v1265
      %v1886 = vunpack.c.h.b16 %v1265
      %v1887 = vunpack.c.l.b16 %v1266
      %v1888 = vunpack.c.h.b16 %v1266
      %v1889 = vunpack.c.l.b16 %v1267
      %v1890 = vunpack.c.h.b16 %v1267
      %v1891 = vunpack.c.l.b16 %v1268
      %v1892 = vunpack.c.h.b16 %v1268
      %v1893 = vunpack.c.l.b16 %v1269
      %v1894 = vunpack.c.h.b16 %v1269
      %v1895 = vunpack.c.l.b16 %v1270
      %v1896 = vunpack.c.h.b16 %v1270
      %v1897 = vunpack.c.l.b16 %v1271
      %v1898 = vunpack.c.h.b16 %v1271
      %v1899 = vunpack.c.l.b16 %v1272
      %v1900 = vunpack.c.h.b16 %v1272
      %v1901 = vpack.c.b16 %v1871, %v1869
      %v1902 = vpack.c.b16 %v1872, %v1870
      %v1903 = vpack.c.b16 %v1875, %v1873
      %v1904 = vpack.c.b16 %v1876, %v1874
      %v1905 = vpack.c.b16 %v1879, %v1877
      %v1906 = vpack.c.b16 %v1880, %v1878
      %v1907 = vpack.c.b16 %v1883, %v1881
      %v1908 = vpack.c.b16 %v1884, %v1882
      %v1909 = vpack.c.b16 %v1887, %v1885
      %v1910 = vpack.c.b16 %v1888, %v1886
      %v1911 = vpack.c.b16 %v1891, %v1889
      %v1912 = vpack.c.b16 %v1892, %v1890
      %v1913 = vpack.c.b16 %v1895, %v1893
      %v1914 = vpack.c.b16 %v1896, %v1894
      %v1915 = vpack.c.b16 %v1899, %v1897
      %v1916 = vpack.c.b16 %v1900, %v1898
      %1933 = vmatprep.subr.bf16.mxu0 %v1902
      %1934 = vmatpush1.bf16.msra.mxu0 %v1901
      %1935 = vmatprep.subr.bf16.mxu0 %v1904
      %1936 = vmatpush1.bf16.msra.mxu0 %v1903
      %1937 = vmatprep.subr.bf16.mxu0 %v1906
      %1938 = vmatpush1.bf16.msra.mxu0 %v1905
      %1939 = vmatprep.subr.bf16.mxu0 %v1908
      %1940 = vmatpush1.bf16.msra.mxu0 %v1907
      %1941 = vmatprep.subr.bf16.mxu0 %v1910
      %1942 = vmatpush1.bf16.msra.mxu0 %v1909
      %1943 = vmatprep.subr.bf16.mxu0 %v1912
      %1944 = vmatpush1.bf16.msra.mxu0 %v1911
      %1945 = vmatprep.subr.bf16.mxu0 %v1914
      %1946 = vmatpush1.bf16.msra.mxu0 %v1913
      %1947 = vmatprep.subr.bf16.mxu0 %v1916
      %1948 = vmatpush1.bf16.msra.mxu0 %v1915
      %1949 = vmatprep.subr.bf16.mxu0 0
      %1950 = vmatpush1.bf16.msra.mxu0 0
      %1951 = vmatprep.subr.bf16.mxu0 0
      %1952 = vmatpush1.bf16.msra.mxu0 0
      %1953 = vmatprep.subr.bf16.mxu0 0
      %1954 = vmatpush1.bf16.msra.mxu0 0
      %1955 = vmatprep.subr.bf16.mxu0 0
      %1956 = vmatpush1.bf16.msra.mxu0 0
      %1957 = vmatprep.subr.bf16.mxu0 0
      %1958 = vmatpush1.bf16.msra.mxu0 0
      %1959 = vmatprep.subr.bf16.mxu0 0
      %1960 = vmatpush1.bf16.msra.mxu0 0
      %1961 = vmatprep.subr.bf16.mxu0 0
      %1962 = vmatpush1.bf16.msra.mxu0 0
      %1963 = vmatprep.subr.bf16.mxu0 0
      %1964 = vmatpush1.bf16.msra.mxu0 0
      %1965 = vmatprep.mubr.bf16.mxu0 0
      %1966 = vmatmul.mubr.bf16.gmra.mrb[0].mxu0 %v1497
      %v1967 = vpop.f32.mrb[0].mxu0
      %v1968 = vadd.f32 %v1825, %v1967
      %v1969 = vpop.f32.mrb[0].mxu0
      %v1970 = vadd.f32 %v1827, %v1969
      %v1971 = vpop.f32.mrb[0].mxu0
      %v1972 = vadd.f32 %v1829, %v1971
      %v1973 = vpop.f32.mrb[0].mxu0
      %v1974 = vadd.f32 %v1831, %v1973
      %1975 = vmatprep.mubr.bf16.mxu0 0
      %1976 = vmatmul.mubr.bf16.gmra.mrb[0].mxu0 %v1498
      %v1977 = vpop.f32.mrb[0].mxu0
      %v1978 = vadd.f32 %v1835, %v1977
      %v1979 = vpop.f32.mrb[0].mxu0
      %v1980 = vadd.f32 %v1837, %v1979
      %v1981 = vpop.f32.mrb[0].mxu0
      %v1982 = vadd.f32 %v1839, %v1981
      %v1983 = vpop.f32.mrb[0].mxu0
      %v1984 = vadd.f32 %v1841, %v1983
      %1985 = vmatprep.mubr.bf16.mxu0 0
      %1986 = vmatmul.mubr.bf16.gmra.mrb[0].mxu0 %v1499
      %v1987 = vpop.f32.mrb[0].mxu0
      %v1988 = vadd.f32 %v1845, %v1987
      %v1989 = vpop.f32.mrb[0].mxu0
      %v1990 = vadd.f32 %v1847, %v1989
      %v1991 = vpop.f32.mrb[0].mxu0
      %v1992 = vadd.f32 %v1849, %v1991
      %v1993 = vpop.f32.mrb[0].mxu0
      %v1994 = vadd.f32 %v1851, %v1993
      %1995 = vdwg.mxu0
      %v1996 = vld [vmem:[%s4] sm:$0x3]
      %v1998 = vlaneseq
      %v1999 = vshrl.u32 %v1998, 7
      %v2000 = vsub.s32 0, %v1999
      %v2001 = vrot.slane %v1996, %v2000
      %v2002 = vlaneseq
      %v2003 = vshrl.u32 %v2002, 7
      %v2004 = vsub.s32 1, %v2003
      %v2005 = vrot.slane %v1996, %v2004
      %v2008 = vadd.f32 %v1968, %v2001
      %v2009 = vadd.f32 %v1970, %v2005
      %v2010 = vadd.f32 %v1972, %v2001
      %v2011 = vadd.f32 %v1974, %v2005
      %v2012 = vadd.f32 %v1978, %v2001
      %v2013 = vadd.f32 %v1980, %v2005
      %v2014 = vadd.f32 %v1982, %v2001
      %v2015 = vadd.f32 %v1984, %v2005
      %v2016 = vadd.f32 %v1988, %v2001
      %v2017 = vadd.f32 %v1990, %v2005
      %v2018 = vadd.f32 %v1992, %v2001
      %v2019 = vadd.f32 %v1994, %v2005
      %v2020 = vadd.f32 %v442, %v2008
      %v2021 = vadd.f32 %v443, %v2009
      %v2022 = vadd.f32 %v444, %v2010
      %v2023 = vadd.f32 %v445, %v2011
      %v2024 = vadd.f32 %v446, %v2012
      %v2025 = vadd.f32 %v447, %v2013
      %v2026 = vadd.f32 %v448, %v2014
      %v2027 = vadd.f32 %v449, %v2015
      %v2028 = vadd.f32 %v450, %v2016
      %v2029 = vadd.f32 %v451, %v2017
      %v2030 = vadd.f32 %v452, %v2018
      %v2031 = vadd.f32 %v453, %v2019
      %v2032 = vld [vmem:[%s5] sm:$0x3]
      %v2033 = vld [vmem:[%s6] sm:$0x3]
      %v2034 = vadd.f32 %v2020, %v2021
      %2035 = vadd.xlane.f32.xlu0 %v2034
      %v2036 = vpop.xlane.xlu0 %2035
      %v2037 = vadd.f32 %v2022, %v2023
      %2038 = vadd.xlane.f32.xlu0 %v2037
      %v2039 = vpop.xlane.xlu0 %2038
      %v2040 = vadd.f32 %v2024, %v2025
      %2041 = vadd.xlane.f32.xlu0 %v2040
      %v2042 = vpop.xlane.xlu0 %2041
      %v2043 = vadd.f32 %v2026, %v2027
      %2044 = vadd.xlane.f32.xlu0 %v2043
      %v2045 = vpop.xlane.xlu0 %2044
      %v2046 = vadd.f32 %v2028, %v2029
      %2047 = vadd.xlane.f32.xlu0 %v2046
      %v2048 = vpop.xlane.xlu0 %2047
      %v2049 = vadd.f32 %v2030, %v2031
      %2050 = vadd.xlane.f32.xlu0 %v2049
      %v2051 = vpop.xlane.xlu0 %2050
      %v2052 = vrcp.pop 256.0
      %v2053 = vmul.f32 %v2036, %v2052
      %v2054 = vmul.f32 %v2039, %v2052
      %v2055 = vmul.f32 %v2042, %v2052
      %v2056 = vmul.f32 %v2045, %v2052
      %v2057 = vmul.f32 %v2048, %v2052
      %v2058 = vmul.f32 %v2051, %v2052
      %v2059 = vsub.f32 %v2020, %v2053
      %v2060 = vsub.f32 %v2021, %v2053
      %v2061 = vsub.f32 %v2022, %v2054
      %v2062 = vsub.f32 %v2023, %v2054
      %v2063 = vsub.f32 %v2024, %v2055
      %v2064 = vsub.f32 %v2025, %v2055
      %v2065 = vsub.f32 %v2026, %v2056
      %v2066 = vsub.f32 %v2027, %v2056
      %v2067 = vsub.f32 %v2028, %v2057
      %v2068 = vsub.f32 %v2029, %v2057
      %v2069 = vsub.f32 %v2030, %v2058
      %v2070 = vsub.f32 %v2031, %v2058
      %v2071 = vmul.f32 %v2059, %v2059
      %v2072 = vmul.f32 %v2060, %v2060
      %v2073 = vmul.f32 %v2061, %v2061
      %v2074 = vmul.f32 %v2062, %v2062
      %v2075 = vmul.f32 %v2063, %v2063
      %v2076 = vmul.f32 %v2064, %v2064
      %v2077 = vmul.f32 %v2065, %v2065
      %v2078 = vmul.f32 %v2066, %v2066
      %v2079 = vmul.f32 %v2067, %v2067
      %v2080 = vmul.f32 %v2068, %v2068
      %v2081 = vmul.f32 %v2069, %v2069
      %v2082 = vmul.f32 %v2070, %v2070
      %v2083 = vadd.f32 %v2071, %v2072
      %2084 = vadd.xlane.f32.xlu0 %v2083
      %v2085 = vpop.xlane.xlu0 %2084
      %v2086 = vadd.f32 %v2073, %v2074
      %2087 = vadd.xlane.f32.xlu0 %v2086
      %v2088 = vpop.xlane.xlu0 %2087
      %v2089 = vadd.f32 %v2075, %v2076
      %2090 = vadd.xlane.f32.xlu0 %v2089
      %v2091 = vpop.xlane.xlu0 %2090
      %v2092 = vadd.f32 %v2077, %v2078
      %2093 = vadd.xlane.f32.xlu0 %v2092
      %v2094 = vpop.xlane.xlu0 %2093
      %v2095 = vadd.f32 %v2079, %v2080
      %2096 = vadd.xlane.f32.xlu0 %v2095
      %v2097 = vpop.xlane.xlu0 %2096
      %v2098 = vadd.f32 %v2081, %v2082
      %2099 = vadd.xlane.f32.xlu0 %v2098
      %v2100 = vpop.xlane.xlu0 %2099
      %v2101 = vmul.f32 %v2085, %v2052
      %v2102 = vmul.f32 %v2088, %v2052
      %v2103 = vmul.f32 %v2091, %v2052
      %v2104 = vmul.f32 %v2094, %v2052
      %v2105 = vmul.f32 %v2097, %v2052
      %v2106 = vmul.f32 %v2100, %v2052
      %v2107 = vadd.f32 %v2101, 1e-05
      %v2108 = vadd.f32 %v2102, 1e-05
      %v2109 = vadd.f32 %v2103, 1e-05
      %v2110 = vadd.f32 %v2104, 1e-05
      %v2111 = vadd.f32 %v2105, 1e-05
      %v2112 = vadd.f32 %v2106, 1e-05
      %v2113 = vrsqrt.pop %v2107
      %v2114 = vrsqrt.pop %v2108
      %v2115 = vrsqrt.pop %v2109
      %v2116 = vrsqrt.pop %v2110
      %v2117 = vrsqrt.pop %v2111
      %v2118 = vrsqrt.pop %v2112
      %v2119 = vmul.f32 %v2059, %v2113
      %v2120 = vmul.f32 %v2060, %v2113
      %v2121 = vmul.f32 %v2061, %v2114
      %v2122 = vmul.f32 %v2062, %v2114
      %v2123 = vmul.f32 %v2063, %v2115
      %v2124 = vmul.f32 %v2064, %v2115
      %v2125 = vmul.f32 %v2065, %v2116
      %v2126 = vmul.f32 %v2066, %v2116
      %v2127 = vmul.f32 %v2067, %v2117
      %v2128 = vmul.f32 %v2068, %v2117
      %v2129 = vmul.f32 %v2069, %v2118
      %v2130 = vmul.f32 %v2070, %v2118
      %v2132 = vlaneseq
      %v2133 = vshrl.u32 %v2132, 7
      %v2134 = vsub.s32 0, %v2133
      %v2135 = vrot.slane %v2032, %v2134
      %v2136 = vlaneseq
      %v2137 = vshrl.u32 %v2136, 7
      %v2138 = vsub.s32 1, %v2137
      %v2139 = vrot.slane %v2032, %v2138
      %v2142 = vmul.f32 %v2119, %v2135
      %v2143 = vmul.f32 %v2120, %v2139
      %v2144 = vmul.f32 %v2121, %v2135
      %v2145 = vmul.f32 %v2122, %v2139
      %v2146 = vmul.f32 %v2123, %v2135
      %v2147 = vmul.f32 %v2124, %v2139
      %v2148 = vmul.f32 %v2125, %v2135
      %v2149 = vmul.f32 %v2126, %v2139
      %v2150 = vmul.f32 %v2127, %v2135
      %v2151 = vmul.f32 %v2128, %v2139
      %v2152 = vmul.f32 %v2129, %v2135
      %v2153 = vmul.f32 %v2130, %v2139
      %v2155 = vlaneseq
      %v2156 = vshrl.u32 %v2155, 7
      %v2157 = vsub.s32 0, %v2156
      %v2158 = vrot.slane %v2033, %v2157
      %v2159 = vlaneseq
      %v2160 = vshrl.u32 %v2159, 7
      %v2161 = vsub.s32 1, %v2160
      %v2162 = vrot.slane %v2033, %v2161
      %v2165 = vadd.f32 %v2142, %v2158
      %v2166 = vadd.f32 %v2143, %v2162
      %v2167 = vadd.f32 %v2144, %v2158
      %v2168 = vadd.f32 %v2145, %v2162
      %v2169 = vadd.f32 %v2146, %v2158
      %v2170 = vadd.f32 %v2147, %v2162
      %v2171 = vadd.f32 %v2148, %v2158
      %v2172 = vadd.f32 %v2149, %v2162
      %v2173 = vadd.f32 %v2150, %v2158
      %v2174 = vadd.f32 %v2151, %v2162
      %v2175 = vadd.f32 %v2152, %v2158
      %v2176 = vadd.f32 %v2153, %v2162
      %v2177 = vld [vmem:[%s7] sm:$0xff]
      %v2178 = vld [vmem:[%s7 + $0x8] sm:$0xff]
      %v2179 = vld [vmem:[%s7 + $0x10] sm:$0xff]
      %v2180 = vld [vmem:[%s7 + $0x18] sm:$0xff]
      %v2181 = vld [vmem:[%s7 + $0x20] sm:$0xff]
      %v2182 = vld [vmem:[%s7 + $0x28] sm:$0xff]
      %v2183 = vld [vmem:[%s7 + $0x30] sm:$0xff]
      %v2184 = vld [vmem:[%s7 + $0x38] sm:$0xff]
      %v2185 = vld [vmem:[%s7 + $0x40] sm:$0xff]
      %v2186 = vld [vmem:[%s7 + $0x48] sm:$0xff]
      %v2187 = vld [vmem:[%s7 + $0x50] sm:$0xff]
      %v2188 = vld [vmem:[%s7 + $0x58] sm:$0xff]
      %v2189 = vld [vmem:[%s7 + $0x60] sm:$0xff]
      %v2190 = vld [vmem:[%s7 + $0x68] sm:$0xff]
      %v2191 = vld [vmem:[%s7 + $0x70] sm:$0xff]
      %v2192 = vld [vmem:[%s7 + $0x78] sm:$0xff]
      %v2193 = vld [vmem:[%s7 + $0x80] sm:$0xff]
      %v2194 = vld [vmem:[%s7 + $0x88] sm:$0xff]
      %v2195 = vld [vmem:[%s7 + $0x90] sm:$0xff]
      %v2196 = vld [vmem:[%s7 + $0x98] sm:$0xff]
      %v2197 = vld [vmem:[%s7 + $0xa0] sm:$0xff]
      %v2198 = vld [vmem:[%s7 + $0xa8] sm:$0xff]
      %v2199 = vld [vmem:[%s7 + $0xb0] sm:$0xff]
      %v2200 = vld [vmem:[%s7 + $0xb8] sm:$0xff]
      %v2201 = vld [vmem:[%s7 + $0xc0] sm:$0xff]
      %v2202 = vld [vmem:[%s7 + $0xc8] sm:$0xff]
      %v2203 = vld [vmem:[%s7 + $0xd0] sm:$0xff]
      %v2204 = vld [vmem:[%s7 + $0xd8] sm:$0xff]
      %v2205 = vld [vmem:[%s7 + $0xe0] sm:$0xff]
      %v2206 = vld [vmem:[%s7 + $0xe8] sm:$0xff]
      %v2207 = vld [vmem:[%s7 + $0xf0] sm:$0xff]
      %v2208 = vld [vmem:[%s7 + $0xf8] sm:$0xff]
      %v2209 = vld [vmem:[%s7 + $0x100] sm:$0xff]
      %v2210 = vld [vmem:[%s7 + $0x108] sm:$0xff]
      %v2211 = vld [vmem:[%s7 + $0x110] sm:$0xff]
      %v2212 = vld [vmem:[%s7 + $0x118] sm:$0xff]
      %v2213 = vld [vmem:[%s7 + $0x120] sm:$0xff]
      %v2214 = vld [vmem:[%s7 + $0x128] sm:$0xff]
      %v2215 = vld [vmem:[%s7 + $0x130] sm:$0xff]
      %v2216 = vld [vmem:[%s7 + $0x138] sm:$0xff]
      %v2217 = vld [vmem:[%s7 + $0x140] sm:$0xff]
      %v2218 = vld [vmem:[%s7 + $0x148] sm:$0xff]
      %v2219 = vld [vmem:[%s7 + $0x150] sm:$0xff]
      %v2220 = vld [vmem:[%s7 + $0x158] sm:$0xff]
      %v2221 = vld [vmem:[%s7 + $0x160] sm:$0xff]
      %v2222 = vld [vmem:[%s7 + $0x168] sm:$0xff]
      %v2223 = vld [vmem:[%s7 + $0x170] sm:$0xff]
      %v2224 = vld [vmem:[%s7 + $0x178] sm:$0xff]
      %v2225 = vld [vmem:[%s7 + $0x180] sm:$0xff]
      %v2226 = vld [vmem:[%s7 + $0x188] sm:$0xff]
      %v2227 = vld [vmem:[%s7 + $0x190] sm:$0xff]
      %v2228 = vld [vmem:[%s7 + $0x198] sm:$0xff]
      %v2229 = vld [vmem:[%s7 + $0x1a0] sm:$0xff]
      %v2230 = vld [vmem:[%s7 + $0x1a8] sm:$0xff]
      %v2231 = vld [vmem:[%s7 + $0x1b0] sm:$0xff]
      %v2232 = vld [vmem:[%s7 + $0x1b8] sm:$0xff]
      %v2233 = vld [vmem:[%s7 + $0x1c0] sm:$0xff]
      %v2234 = vld [vmem:[%s7 + $0x1c8] sm:$0xff]
      %v2235 = vld [vmem:[%s7 + $0x1d0] sm:$0xff]
      %v2236 = vld [vmem:[%s7 + $0x1d8] sm:$0xff]
      %v2237 = vld [vmem:[%s7 + $0x1e0] sm:$0xff]
      %v2238 = vld [vmem:[%s7 + $0x1e8] sm:$0xff]
      %v2239 = vld [vmem:[%s7 + $0x1f0] sm:$0xff]
      %v2240 = vld [vmem:[%s7 + $0x1f8] sm:$0xff]
      %v2241 = vpack.c.bf16 %v2167, %v2165
      %v2242 = vpack.c.bf16 %v2168, %v2166
      %v2243 = vpack.c.bf16 %v2171, %v2169
      %v2244 = vpack.c.bf16 %v2172, %v2170
      %v2245 = vpack.c.bf16 %v2175, %v2173
      %v2246 = vpack.c.bf16 %v2176, %v2174
      %v2247 = vld [vmem:[%s8] sm:$0xf]
      %v2249 = vlaneseq
      %v2250 = vshrl.u32 %v2249, 7
      %v2251 = vsub.s32 0, %v2250
      %v2252 = vrot.slane %v2247, %v2251
      %v2253 = vlaneseq
      %v2254 = vshrl.u32 %v2253, 7
      %v2255 = vsub.s32 1, %v2254
      %v2256 = vrot.slane %v2247, %v2255
      %v2257 = vlaneseq
      %v2258 = vshrl.u32 %v2257, 7
      %v2259 = vsub.s32 2, %v2258
      %v2260 = vrot.slane %v2247, %v2259
      %v2261 = vlaneseq
      %v2262 = vshrl.u32 %v2261, 7
      %v2263 = vsub.s32 3, %v2262
      %v2264 = vrot.slane %v2247, %v2263
      %v2333 = vunpack.c.l.b16 %v2177
      %v2334 = vunpack.c.h.b16 %v2177
      %v2335 = vunpack.c.l.b16 %v2178
      %v2336 = vunpack.c.h.b16 %v2178
      %v2337 = vunpack.c.l.b16 %v2179
      %v2338 = vunpack.c.h.b16 %v2179
      %v2339 = vunpack.c.l.b16 %v2180
      %v2340 = vunpack.c.h.b16 %v2180
      %v2341 = vunpack.c.l.b16 %v2181
      %v2342 = vunpack.c.h.b16 %v2181
      %v2343 = vunpack.c.l.b16 %v2182
      %v2344 = vunpack.c.h.b16 %v2182
      %v2345 = vunpack.c.l.b16 %v2183
      %v2346 = vunpack.c.h.b16 %v2183
      %v2347 = vunpack.c.l.b16 %v2184
      %v2348 = vunpack.c.h.b16 %v2184
      %v2349 = vunpack.c.l.b16 %v2185
      %v2350 = vunpack.c.h.b16 %v2185
      %v2351 = vunpack.c.l.b16 %v2186
      %v2352 = vunpack.c.h.b16 %v2186
      %v2353 = vunpack.c.l.b16 %v2187
      %v2354 = vunpack.c.h.b16 %v2187
      %v2355 = vunpack.c.l.b16 %v2188
      %v2356 = vunpack.c.h.b16 %v2188
      %v2357 = vunpack.c.l.b16 %v2189
      %v2358 = vunpack.c.h.b16 %v2189
      %v2359 = vunpack.c.l.b16 %v2190
      %v2360 = vunpack.c.h.b16 %v2190
      %v2361 = vunpack.c.l.b16 %v2191
      %v2362 = vunpack.c.h.b16 %v2191
      %v2363 = vunpack.c.l.b16 %v2192
      %v2364 = vunpack.c.h.b16 %v2192
      %v2365 = vunpack.c.l.b16 %v2193
      %v2366 = vunpack.c.h.b16 %v2193
      %v2367 = vunpack.c.l.b16 %v2194
      %v2368 = vunpack.c.h.b16 %v2194
      %v2369 = vunpack.c.l.b16 %v2195
      %v2370 = vunpack.c.h.b16 %v2195
      %v2371 = vunpack.c.l.b16 %v2196
      %v2372 = vunpack.c.h.b16 %v2196
      %v2373 = vunpack.c.l.b16 %v2197
      %v2374 = vunpack.c.h.b16 %v2197
      %v2375 = vunpack.c.l.b16 %v2198
      %v2376 = vunpack.c.h.b16 %v2198
      %v2377 = vunpack.c.l.b16 %v2199
      %v2378 = vunpack.c.h.b16 %v2199
      %v2379 = vunpack.c.l.b16 %v2200
      %v2380 = vunpack.c.h.b16 %v2200
      %v2381 = vunpack.c.l.b16 %v2201
      %v2382 = vunpack.c.h.b16 %v2201
      %v2383 = vunpack.c.l.b16 %v2202
      %v2384 = vunpack.c.h.b16 %v2202
      %v2385 = vunpack.c.l.b16 %v2203
      %v2386 = vunpack.c.h.b16 %v2203
      %v2387 = vunpack.c.l.b16 %v2204
      %v2388 = vunpack.c.h.b16 %v2204
      %v2389 = vunpack.c.l.b16 %v2205
      %v2390 = vunpack.c.h.b16 %v2205
      %v2391 = vunpack.c.l.b16 %v2206
      %v2392 = vunpack.c.h.b16 %v2206
      %v2393 = vunpack.c.l.b16 %v2207
      %v2394 = vunpack.c.h.b16 %v2207
      %v2395 = vunpack.c.l.b16 %v2208
      %v2396 = vunpack.c.h.b16 %v2208
      %v2397 = vunpack.c.l.b16 %v2209
      %v2398 = vunpack.c.h.b16 %v2209
      %v2399 = vunpack.c.l.b16 %v2210
      %v2400 = vunpack.c.h.b16 %v2210
      %v2401 = vunpack.c.l.b16 %v2211
      %v2402 = vunpack.c.h.b16 %v2211
      %v2403 = vunpack.c.l.b16 %v2212
      %v2404 = vunpack.c.h.b16 %v2212
      %v2405 = vunpack.c.l.b16 %v2213
      %v2406 = vunpack.c.h.b16 %v2213
      %v2407 = vunpack.c.l.b16 %v2214
      %v2408 = vunpack.c.h.b16 %v2214
      %v2409 = vunpack.c.l.b16 %v2215
      %v2410 = vunpack.c.h.b16 %v2215
      %v2411 = vunpack.c.l.b16 %v2216
      %v2412 = vunpack.c.h.b16 %v2216
      %v2413 = vunpack.c.l.b16 %v2217
      %v2414 = vunpack.c.h.b16 %v2217
      %v2415 = vunpack.c.l.b16 %v2218
      %v2416 = vunpack.c.h.b16 %v2218
      %v2417 = vunpack.c.l.b16 %v2219
      %v2418 = vunpack.c.h.b16 %v2219
      %v2419 = vunpack.c.l.b16 %v2220
      %v2420 = vunpack.c.h.b16 %v2220
      %v2421 = vunpack.c.l.b16 %v2221
      %v2422 = vunpack.c.h.b16 %v2221
      %v2423 = vunpack.c.l.b16 %v2222
      %v2424 = vunpack.c.h.b16 %v2222
      %v2425 = vunpack.c.l.b16 %v2223
      %v2426 = vunpack.c.h.b16 %v2223
      %v2427 = vunpack.c.l.b16 %v2224
      %v2428 = vunpack.c.h.b16 %v2224
      %v2429 = vunpack.c.l.b16 %v2225
      %v2430 = vunpack.c.h.b16 %v2225
      %v2431 = vunpack.c.l.b16 %v2226
      %v2432 = vunpack.c.h.b16 %v2226
      %v2433 = vunpack.c.l.b16 %v2227
      %v2434 = vunpack.c.h.b16 %v2227
      %v2435 = vunpack.c.l.b16 %v2228
      %v2436 = vunpack.c.h.b16 %v2228
      %v2437 = vunpack.c.l.b16 %v2229
      %v2438 = vunpack.c.h.b16 %v2229
      %v2439 = vunpack.c.l.b16 %v2230
      %v2440 = vunpack.c.h.b16 %v2230
      %v2441 = vunpack.c.l.b16 %v2231
      %v2442 = vunpack.c.h.b16 %v2231
      %v2443 = vunpack.c.l.b16 %v2232
      %v2444 = vunpack.c.h.b16 %v2232
      %v2445 = vunpack.c.l.b16 %v2233
      %v2446 = vunpack.c.h.b16 %v2233
      %v2447 = vunpack.c.l.b16 %v2234
      %v2448 = vunpack.c.h.b16 %v2234
      %v2449 = vunpack.c.l.b16 %v2235
      %v2450 = vunpack.c.h.b16 %v2235
      %v2451 = vunpack.c.l.b16 %v2236
      %v2452 = vunpack.c.h.b16 %v2236
      %v2453 = vunpack.c.l.b16 %v2237
      %v2454 = vunpack.c.h.b16 %v2237
      %v2455 = vunpack.c.l.b16 %v2238
      %v2456 = vunpack.c.h.b16 %v2238
      %v2457 = vunpack.c.l.b16 %v2239
      %v2458 = vunpack.c.h.b16 %v2239
      %v2459 = vunpack.c.l.b16 %v2240
      %v2460 = vunpack.c.h.b16 %v2240
      %v2461 = vpack.c.b16 %v2337, %v2333
      %v2462 = vpack.c.b16 %v2338, %v2334
      %v2463 = vpack.c.b16 %v2339, %v2335
      %v2464 = vpack.c.b16 %v2340, %v2336
      %v2465 = vpack.c.b16 %v2345, %v2341
      %v2466 = vpack.c.b16 %v2346, %v2342
      %v2467 = vpack.c.b16 %v2347, %v2343
      %v2468 = vpack.c.b16 %v2348, %v2344
      %v2469 = vpack.c.b16 %v2353, %v2349
      %v2470 = vpack.c.b16 %v2354, %v2350
      %v2471 = vpack.c.b16 %v2355, %v2351
      %v2472 = vpack.c.b16 %v2356, %v2352
      %v2473 = vpack.c.b16 %v2361, %v2357
      %v2474 = vpack.c.b16 %v2362, %v2358
      %v2475 = vpack.c.b16 %v2363, %v2359
      %v2476 = vpack.c.b16 %v2364, %v2360
      %v2477 = vpack.c.b16 %v2369, %v2365
      %v2478 = vpack.c.b16 %v2370, %v2366
      %v2479 = vpack.c.b16 %v2371, %v2367
      %v2480 = vpack.c.b16 %v2372, %v2368
      %v2481 = vpack.c.b16 %v2377, %v2373
      %v2482 = vpack.c.b16 %v2378, %v2374
      %v2483 = vpack.c.b16 %v2379, %v2375
      %v2484 = vpack.c.b16 %v2380, %v2376
      %v2485 = vpack.c.b16 %v2385, %v2381
      %v2486 = vpack.c.b16 %v2386, %v2382
      %v2487 = vpack.c.b16 %v2387, %v2383
      %v2488 = vpack.c.b16 %v2388, %v2384
      %v2489 = vpack.c.b16 %v2393, %v2389
      %v2490 = vpack.c.b16 %v2394, %v2390
      %v2491 = vpack.c.b16 %v2395, %v2391
      %v2492 = vpack.c.b16 %v2396, %v2392
      %v2493 = vpack.c.b16 %v2401, %v2397
      %v2494 = vpack.c.b16 %v2402, %v2398
      %v2495 = vpack.c.b16 %v2403, %v2399
      %v2496 = vpack.c.b16 %v2404, %v2400
      %v2497 = vpack.c.b16 %v2409, %v2405
      %v2498 = vpack.c.b16 %v2410, %v2406
      %v2499 = vpack.c.b16 %v2411, %v2407
      %v2500 = vpack.c.b16 %v2412, %v2408
      %v2501 = vpack.c.b16 %v2417, %v2413
      %v2502 = vpack.c.b16 %v2418, %v2414
      %v2503 = vpack.c.b16 %v2419, %v2415
      %v2504 = vpack.c.b16 %v2420, %v2416
      %v2505 = vpack.c.b16 %v2425, %v2421
      %v2506 = vpack.c.b16 %v2426, %v2422
      %v2507 = vpack.c.b16 %v2427, %v2423
      %v2508 = vpack.c.b16 %v2428, %v2424
      %v2509 = vpack.c.b16 %v2433, %v2429
      %v2510 = vpack.c.b16 %v2434, %v2430
      %v2511 = vpack.c.b16 %v2435, %v2431
      %v2512 = vpack.c.b16 %v2436, %v2432
      %v2513 = vpack.c.b16 %v2441, %v2437
      %v2514 = vpack.c.b16 %v2442, %v2438
      %v2515 = vpack.c.b16 %v2443, %v2439
      %v2516 = vpack.c.b16 %v2444, %v2440
      %v2517 = vpack.c.b16 %v2449, %v2445
      %v2518 = vpack.c.b16 %v2450, %v2446
      %v2519 = vpack.c.b16 %v2451, %v2447
      %v2520 = vpack.c.b16 %v2452, %v2448
      %v2521 = vpack.c.b16 %v2457, %v2453
      %v2522 = vpack.c.b16 %v2458, %v2454
      %v2523 = vpack.c.b16 %v2459, %v2455
      %v2524 = vpack.c.b16 %v2460, %v2456
      %2589 = vmatprep.subr.bf16.mxu0 %v2462
      %2590 = vmatpush1.bf16.msra.mxu0 %v2461
      %2591 = vmatprep.subr.bf16.mxu0 %v2466
      %2592 = vmatpush1.bf16.msra.mxu0 %v2465
      %2593 = vmatprep.subr.bf16.mxu0 %v2470
      %2594 = vmatpush1.bf16.msra.mxu0 %v2469
      %2595 = vmatprep.subr.bf16.mxu0 %v2474
      %2596 = vmatpush1.bf16.msra.mxu0 %v2473
      %2597 = vmatprep.subr.bf16.mxu0 %v2478
      %2598 = vmatpush1.bf16.msra.mxu0 %v2477
      %2599 = vmatprep.subr.bf16.mxu0 %v2482
      %2600 = vmatpush1.bf16.msra.mxu0 %v2481
      %2601 = vmatprep.subr.bf16.mxu0 %v2486
      %2602 = vmatpush1.bf16.msra.mxu0 %v2485
      %2603 = vmatprep.subr.bf16.mxu0 %v2490
      %2604 = vmatpush1.bf16.msra.mxu0 %v2489
      %2605 = vmatprep.subr.bf16.mxu0 %v2494
      %2606 = vmatpush1.bf16.msra.mxu0 %v2493
      %2607 = vmatprep.subr.bf16.mxu0 %v2498
      %2608 = vmatpush1.bf16.msra.mxu0 %v2497
      %2609 = vmatprep.subr.bf16.mxu0 %v2502
      %2610 = vmatpush1.bf16.msra.mxu0 %v2501
      %2611 = vmatprep.subr.bf16.mxu0 %v2506
      %2612 = vmatpush1.bf16.msra.mxu0 %v2505
      %2613 = vmatprep.subr.bf16.mxu0 %v2510
      %2614 = vmatpush1.bf16.msra.mxu0 %v2509
      %2615 = vmatprep.subr.bf16.mxu0 %v2514
      %2616 = vmatpush1.bf16.msra.mxu0 %v2513
      %2617 = vmatprep.subr.bf16.mxu0 %v2518
      %2618 = vmatpush1.bf16.msra.mxu0 %v2517
      %2619 = vmatprep.subr.bf16.mxu0 %v2522
      %2620 = vmatpush1.bf16.msra.mxu0 %v2521
      %2621 = vmatprep.mubr.bf16.mxu0 %v2242
      %2622 = vmatmul.mubr.bf16.gmra.mrb[0].mxu0 %v2241
      %v2623 = vpop.f32.mrb[0].mxu0
      %v2624 = vadd.f32 %v2252, %v2623
      %v2625 = vpop.f32.mrb[0].mxu0
      %v2626 = vadd.f32 %v2256, %v2625
      %v2627 = vpop.f32.mrb[0].mxu0
      %v2628 = vadd.f32 %v2252, %v2627
      %v2629 = vpop.f32.mrb[0].mxu0
      %v2630 = vadd.f32 %v2256, %v2629
      %2631 = vmatprep.mubr.bf16.mxu0 %v2244
      %2632 = vmatmul.mubr.bf16.gmra.mrb[0].mxu0 %v2243
      %v2633 = vpop.f32.mrb[0].mxu0
      %v2634 = vadd.f32 %v2252, %v2633
      %v2635 = vpop.f32.mrb[0].mxu0
      %v2636 = vadd.f32 %v2256, %v2635
      %v2637 = vpop.f32.mrb[0].mxu0
      %v2638 = vadd.f32 %v2252, %v2637
      %v2639 = vpop.f32.mrb[0].mxu0
      %v2640 = vadd.f32 %v2256, %v2639
      %2641 = vmatprep.mubr.bf16.mxu0 %v2246
      %2642 = vmatmul.mubr.bf16.gmra.mrb[0].mxu0 %v2245
      %v2643 = vpop.f32.mrb[0].mxu0
      %v2644 = vadd.f32 %v2252, %v2643
      %v2645 = vpop.f32.mrb[0].mxu0
      %v2646 = vadd.f32 %v2256, %v2645
      %v2647 = vpop.f32.mrb[0].mxu0
      %v2648 = vadd.f32 %v2252, %v2647
      %v2649 = vpop.f32.mrb[0].mxu0
      %v2650 = vadd.f32 %v2256, %v2649
      %2651 = vdwg.mxu0
      %2652 = vmatprep.subr.bf16.mxu0 %v2464
      %2653 = vmatpush1.bf16.msra.mxu0 %v2463
      %2654 = vmatprep.subr.bf16.mxu0 %v2468
      %2655 = vmatpush1.bf16.msra.mxu0 %v2467
      %2656 = vmatprep.subr.bf16.mxu0 %v2472
      %2657 = vmatpush1.bf16.msra.mxu0 %v2471
      %2658 = vmatprep.subr.bf16.mxu0 %v2476
      %2659 = vmatpush1.bf16.msra.mxu0 %v2475
      %2660 = vmatprep.subr.bf16.mxu0 %v2480
      %2661 = vmatpush1.bf16.msra.mxu0 %v2479
      %2662 = vmatprep.subr.bf16.mxu0 %v2484
      %2663 = vmatpush1.bf16.msra.mxu0 %v2483
      %2664 = vmatprep.subr.bf16.mxu0 %v2488
      %2665 = vmatpush1.bf16.msra.mxu0 %v2487
      %2666 = vmatprep.subr.bf16.mxu0 %v2492
      %2667 = vmatpush1.bf16.msra.mxu0 %v2491
      %2668 = vmatprep.subr.bf16.mxu0 %v2496
      %2669 = vmatpush1.bf16.msra.mxu0 %v2495
      %2670 = vmatprep.subr.bf16.mxu0 %v2500
      %2671 = vmatpush1.bf16.msra.mxu0 %v2499
      %2672 = vmatprep.subr.bf16.mxu0 %v2504
      %2673 = vmatpush1.bf16.msra.mxu0 %v2503
      %2674 = vmatprep.subr.bf16.mxu0 %v2508
      %2675 = vmatpush1.bf16.msra.mxu0 %v2507
      %2676 = vmatprep.subr.bf16.mxu0 %v2512
      %2677 = vmatpush1.bf16.msra.mxu0 %v2511
      %2678 = vmatprep.subr.bf16.mxu0 %v2516
      %2679 = vmatpush1.bf16.msra.mxu0 %v2515
      %2680 = vmatprep.subr.bf16.mxu0 %v2520
      %2681 = vmatpush1.bf16.msra.mxu0 %v2519
      %2682 = vmatprep.subr.bf16.mxu0 %v2524
      %2683 = vmatpush1.bf16.msra.mxu0 %v2523
      %2684 = vmatprep.mubr.bf16.mxu0 %v2242
      %2685 = vmatmul.mubr.bf16.gmra.mrb[0].mxu0 %v2241
      %v2686 = vpop.f32.mrb[0].mxu0
      %v2687 = vadd.f32 %v2260, %v2686
      %v2688 = vpop.f32.mrb[0].mxu0
      %v2689 = vadd.f32 %v2264, %v2688
      %v2690 = vpop.f32.mrb[0].mxu0
      %v2691 = vadd.f32 %v2260, %v2690
      %v2692 = vpop.f32.mrb[0].mxu0
      %v2693 = vadd.f32 %v2264, %v2692
      %2694 = vmatprep.mubr.bf16.mxu0 %v2244
      %2695 = vmatmul.mubr.bf16.gmra.mrb[0].mxu0 %v2243
      %v2696 = vpop.f32.mrb[0].mxu0
      %v2697 = vadd.f32 %v2260, %v2696
      %v2698 = vpop.f32.mrb[0].mxu0
      %v2699 = vadd.f32 %v2264, %v2698
      %v2700 = vpop.f32.mrb[0].mxu0
      %v2701 = vadd.f32 %v2260, %v2700
      %v2702 = vpop.f32.mrb[0].mxu0
      %v2703 = vadd.f32 %v2264, %v2702
      %2704 = vmatprep.mubr.bf16.mxu0 %v2246
      %2705 = vmatmul.mubr.bf16.gmra.mrb[0].mxu0 %v2245
      %v2706 = vpop.f32.mrb[0].mxu0
      %v2707 = vadd.f32 %v2260, %v2706
      %v2708 = vpop.f32.mrb[0].mxu0
      %v2709 = vadd.f32 %v2264, %v2708
      %v2710 = vpop.f32.mrb[0].mxu0
      %v2711 = vadd.f32 %v2260, %v2710
      %v2712 = vpop.f32.mrb[0].mxu0
      %v2713 = vadd.f32 %v2264, %v2712
      %2714 = vdwg.mxu0
      %v2715 = vmul.f32 %v2624, 0.5
      %v2716 = vmul.f32 %v2626, 0.5
      %v2717 = vmul.f32 %v2687, 0.5
      %v2718 = vmul.f32 %v2689, 0.5
      %v2719 = vmul.f32 %v2628, 0.5
      %v2720 = vmul.f32 %v2630, 0.5
      %v2721 = vmul.f32 %v2691, 0.5
      %v2722 = vmul.f32 %v2693, 0.5
      %v2723 = vmul.f32 %v2634, 0.5
      %v2724 = vmul.f32 %v2636, 0.5
      %v2725 = vmul.f32 %v2697, 0.5
      %v2726 = vmul.f32 %v2699, 0.5
      %v2727 = vmul.f32 %v2638, 0.5
      %v2728 = vmul.f32 %v2640, 0.5
      %v2729 = vmul.f32 %v2701, 0.5
      %v2730 = vmul.f32 %v2703, 0.5
      %v2731 = vmul.f32 %v2644, 0.5
      %v2732 = vmul.f32 %v2646, 0.5
      %v2733 = vmul.f32 %v2707, 0.5
      %v2734 = vmul.f32 %v2709, 0.5
      %v2735 = vmul.f32 %v2648, 0.5
      %v2736 = vmul.f32 %v2650, 0.5
      %v2737 = vmul.f32 %v2711, 0.5
      %v2738 = vmul.f32 %v2713, 0.5
      %v2739 = vmul.f32 %v2624, 0.044715
      %v2740 = vmul.f32 %v2626, 0.044715
      %v2741 = vmul.f32 %v2687, 0.044715
      %v2742 = vmul.f32 %v2689, 0.044715
      %v2743 = vmul.f32 %v2628, 0.044715
      %v2744 = vmul.f32 %v2630, 0.044715
      %v2745 = vmul.f32 %v2691, 0.044715
      %v2746 = vmul.f32 %v2693, 0.044715
      %v2747 = vmul.f32 %v2634, 0.044715
      %v2748 = vmul.f32 %v2636, 0.044715
      %v2749 = vmul.f32 %v2697, 0.044715
      %v2750 = vmul.f32 %v2699, 0.044715
      %v2751 = vmul.f32 %v2638, 0.044715
      %v2752 = vmul.f32 %v2640, 0.044715
      %v2753 = vmul.f32 %v2701, 0.044715
      %v2754 = vmul.f32 %v2703, 0.044715
      %v2755 = vmul.f32 %v2644, 0.044715
      %v2756 = vmul.f32 %v2646, 0.044715
      %v2757 = vmul.f32 %v2707, 0.044715
      %v2758 = vmul.f32 %v2709, 0.044715
      %v2759 = vmul.f32 %v2648, 0.044715
      %v2760 = vmul.f32 %v2650, 0.044715
      %v2761 = vmul.f32 %v2711, 0.044715
      %v2762 = vmul.f32 %v2713, 0.044715
      %v2763 = vmul.f32 %v2739, %v2624
      %v2764 = vmul.f32 %v2740, %v2626
      %v2765 = vmul.f32 %v2741, %v2687
      %v2766 = vmul.f32 %v2742, %v2689
      %v2767 = vmul.f32 %v2743, %v2628
      %v2768 = vmul.f32 %v2744, %v2630
      %v2769 = vmul.f32 %v2745, %v2691
      %v2770 = vmul.f32 %v2746, %v2693
      %v2771 = vmul.f32 %v2747, %v2634
      %v2772 = vmul.f32 %v2748, %v2636
      %v2773 = vmul.f32 %v2749, %v2697
      %v2774 = vmul.f32 %v2750, %v2699
      %v2775 = vmul.f32 %v2751, %v2638
      %v2776 = vmul.f32 %v2752, %v2640
      %v2777 = vmul.f32 %v2753, %v2701
      %v2778 = vmul.f32 %v2754, %v2703
      %v2779 = vmul.f32 %v2755, %v2644
      %v2780 = vmul.f32 %v2756, %v2646
      %v2781 = vmul.f32 %v2757, %v2707
      %v2782 = vmul.f32 %v2758, %v2709
      %v2783 = vmul.f32 %v2759, %v2648
      %v2784 = vmul.f32 %v2760, %v2650
      %v2785 = vmul.f32 %v2761, %v2711
      %v2786 = vmul.f32 %v2762, %v2713
      %v2787 = vmul.f32 %v2763, %v2624
      %v2788 = vmul.f32 %v2764, %v2626
      %v2789 = vmul.f32 %v2765, %v2687
      %v2790 = vmul.f32 %v2766, %v2689
      %v2791 = vmul.f32 %v2767, %v2628
      %v2792 = vmul.f32 %v2768, %v2630
      %v2793 = vmul.f32 %v2769, %v2691
      %v2794 = vmul.f32 %v2770, %v2693
      %v2795 = vmul.f32 %v2771, %v2634
      %v2796 = vmul.f32 %v2772, %v2636
      %v2797 = vmul.f32 %v2773, %v2697
      %v2798 = vmul.f32 %v2774, %v2699
      %v2799 = vmul.f32 %v2775, %v2638
      %v2800 = vmul.f32 %v2776, %v2640
      %v2801 = vmul.f32 %v2777, %v2701
      %v2802 = vmul.f32 %v2778, %v2703
      %v2803 = vmul.f32 %v2779, %v2644
      %v2804 = vmul.f32 %v2780, %v2646
      %v2805 = vmul.f32 %v2781, %v2707
      %v2806 = vmul.f32 %v2782, %v2709
      %v2807 = vmul.f32 %v2783, %v2648
      %v2808 = vmul.f32 %v2784, %v2650
      %v2809 = vmul.f32 %v2785, %v2711
      %v2810 = vmul.f32 %v2786, %v2713
      %v2811 = vadd.f32 %v2624, %v2787
      %v2812 = vadd.f32 %v2626, %v2788
      %v2813 = vadd.f32 %v2687, %v2789
      %v2814 = vadd.f32 %v2689, %v2790
      %v2815 = vadd.f32 %v2628, %v2791
      %v2816 = vadd.f32 %v2630, %v2792
      %v2817 = vadd.f32 %v2691, %v2793
      %v2818 = vadd.f32 %v2693, %v2794
      %v2819 = vadd.f32 %v2634, %v2795
      %v2820 = vadd.f32 %v2636, %v2796
      %v2821 = vadd.f32 %v2697, %v2797
      %v2822 = vadd.f32 %v2699, %v2798
      %v2823 = vadd.f32 %v2638, %v2799
      %v2824 = vadd.f32 %v2640, %v2800
      %v2825 = vadd.f32 %v2701, %v2801
      %v2826 = vadd.f32 %v2703, %v2802
      %v2827 = vadd.f32 %v2644, %v2803
      %v2828 = vadd.f32 %v2646, %v2804
      %v2829 = vadd.f32 %v2707, %v2805
      %v2830 = vadd.f32 %v2709, %v2806
      %v2831 = vadd.f32 %v2648, %v2807
      %v2832 = vadd.f32 %v2650, %v2808
      %v2833 = vadd.f32 %v2711, %v2809
      %v2834 = vadd.f32 %v2713, %v2810
      %v2835 = vmul.f32 %v2811, 0.7978846
      %v2836 = vmul.f32 %v2812, 0.7978846
      %v2837 = vmul.f32 %v2813, 0.7978846
      %v2838 = vmul.f32 %v2814, 0.7978846
      %v2839 = vmul.f32 %v2815, 0.7978846
      %v2840 = vmul.f32 %v2816, 0.7978846
      %v2841 = vmul.f32 %v2817, 0.7978846
      %v2842 = vmul.f32 %v2818, 0.7978846
      %v2843 = vmul.f32 %v2819, 0.7978846
      %v2844 = vmul.f32 %v2820, 0.7978846
      %v2845 = vmul.f32 %v2821, 0.7978846
      %v2846 = vmul.f32 %v2822, 0.7978846
      %v2847 = vmul.f32 %v2823, 0.7978846
      %v2848 = vmul.f32 %v2824, 0.7978846
      %v2849 = vmul.f32 %v2825, 0.7978846
      %v2850 = vmul.f32 %v2826, 0.7978846
      %v2851 = vmul.f32 %v2827, 0.7978846
      %v2852 = vmul.f32 %v2828, 0.7978846
      %v2853 = vmul.f32 %v2829, 0.7978846
      %v2854 = vmul.f32 %v2830, 0.7978846
      %v2855 = vmul.f32 %v2831, 0.7978846
      %v2856 = vmul.f32 %v2832, 0.7978846
      %v2857 = vmul.f32 %v2833, 0.7978846
      %v2858 = vmul.f32 %v2834, 0.7978846
      %v2859 = vtanh.pop %v2835
      %v2860 = vtanh.pop %v2836
      %v2861 = vtanh.pop %v2837
      %v2862 = vtanh.pop %v2838
      %v2863 = vtanh.pop %v2839
      %v2864 = vtanh.pop %v2840
      %v2865 = vtanh.pop %v2841
      %v2866 = vtanh.pop %v2842
      %v2867 = vtanh.pop %v2843
      %v2868 = vtanh.pop %v2844
      %v2869 = vtanh.pop %v2845
      %v2870 = vtanh.pop %v2846
      %v2871 = vtanh.pop %v2847
      %v2872 = vtanh.pop %v2848
      %v2873 = vtanh.pop %v2849
      %v2874 = vtanh.pop %v2850
      %v2875 = vtanh.pop %v2851
      %v2876 = vtanh.pop %v2852
      %v2877 = vtanh.pop %v2853
      %v2878 = vtanh.pop %v2854
      %v2879 = vtanh.pop %v2855
      %v2880 = vtanh.pop %v2856
      %v2881 = vtanh.pop %v2857
      %v2882 = vtanh.pop %v2858
      %v2883 = vadd.f32 %v2859, 1.0
      %v2884 = vadd.f32 %v2860, 1.0
      %v2885 = vadd.f32 %v2861, 1.0
      %v2886 = vadd.f32 %v2862, 1.0
      %v2887 = vadd.f32 %v2863, 1.0
      %v2888 = vadd.f32 %v2864, 1.0
      %v2889 = vadd.f32 %v2865, 1.0
      %v2890 = vadd.f32 %v2866, 1.0
      %v2891 = vadd.f32 %v2867, 1.0
      %v2892 = vadd.f32 %v2868, 1.0
      %v2893 = vadd.f32 %v2869, 1.0
      %v2894 = vadd.f32 %v2870, 1.0
      %v2895 = vadd.f32 %v2871, 1.0
      %v2896 = vadd.f32 %v2872, 1.0
      %v2897 = vadd.f32 %v2873, 1.0
      %v2898 = vadd.f32 %v2874, 1.0
      %v2899 = vadd.f32 %v2875, 1.0
      %v2900 = vadd.f32 %v2876, 1.0
      %v2901 = vadd.f32 %v2877, 1.0
      %v2902 = vadd.f32 %v2878, 1.0
      %v2903 = vadd.f32 %v2879, 1.0
      %v2904 = vadd.f32 %v2880, 1.0
      %v2905 = vadd.f32 %v2881, 1.0
      %v2906 = vadd.f32 %v2882, 1.0
      %v2907 = vmul.f32 %v2715, %v2883
      %v2908 = vmul.f32 %v2716, %v2884
      %v2909 = vmul.f32 %v2717, %v2885
      %v2910 = vmul.f32 %v2718, %v2886
      %v2911 = vmul.f32 %v2719, %v2887
      %v2912 = vmul.f32 %v2720, %v2888
      %v2913 = vmul.f32 %v2721, %v2889
      %v2914 = vmul.f32 %v2722, %v2890
      %v2915 = vmul.f32 %v2723, %v2891
      %v2916 = vmul.f32 %v2724, %v2892
      %v2917 = vmul.f32 %v2725, %v2893
      %v2918 = vmul.f32 %v2726, %v2894
      %v2919 = vmul.f32 %v2727, %v2895
      %v2920 = vmul.f32 %v2728, %v2896
      %v2921 = vmul.f32 %v2729, %v2897
      %v2922 = vmul.f32 %v2730, %v2898
      %v2923 = vmul.f32 %v2731, %v2899
      %v2924 = vmul.f32 %v2732, %v2900
      %v2925 = vmul.f32 %v2733, %v2901
      %v2926 = vmul.f32 %v2734, %v2902
      %v2927 = vmul.f32 %v2735, %v2903
      %v2928 = vmul.f32 %v2736, %v2904
      %v2929 = vmul.f32 %v2737, %v2905
      %v2930 = vmul.f32 %v2738, %v2906
      %v2931 = vld [vmem:[%s9] sm:$0xff]
      %v2932 = vld [vmem:[%s9 + $0x8] sm:$0xff]
      %v2933 = vld [vmem:[%s9 + $0x10] sm:$0xff]
      %v2934 = vld [vmem:[%s9 + $0x18] sm:$0xff]
      %v2935 = vld [vmem:[%s9 + $0x20] sm:$0xff]
      %v2936 = vld [vmem:[%s9 + $0x28] sm:$0xff]
      %v2937 = vld [vmem:[%s9 + $0x30] sm:$0xff]
      %v2938 = vld [vmem:[%s9 + $0x38] sm:$0xff]
      %v2939 = vld [vmem:[%s9 + $0x40] sm:$0xff]
      %v2940 = vld [vmem:[%s9 + $0x48] sm:$0xff]
      %v2941 = vld [vmem:[%s9 + $0x50] sm:$0xff]
      %v2942 = vld [vmem:[%s9 + $0x58] sm:$0xff]
      %v2943 = vld [vmem:[%s9 + $0x60] sm:$0xff]
      %v2944 = vld [vmem:[%s9 + $0x68] sm:$0xff]
      %v2945 = vld [vmem:[%s9 + $0x70] sm:$0xff]
      %v2946 = vld [vmem:[%s9 + $0x78] sm:$0xff]
      %v2947 = vld [vmem:[%s9 + $0x80] sm:$0xff]
      %v2948 = vld [vmem:[%s9 + $0x88] sm:$0xff]
      %v2949 = vld [vmem:[%s9 + $0x90] sm:$0xff]
      %v2950 = vld [vmem:[%s9 + $0x98] sm:$0xff]
      %v2951 = vld [vmem:[%s9 + $0xa0] sm:$0xff]
      %v2952 = vld [vmem:[%s9 + $0xa8] sm:$0xff]
      %v2953 = vld [vmem:[%s9 + $0xb0] sm:$0xff]
      %v2954 = vld [vmem:[%s9 + $0xb8] sm:$0xff]
      %v2955 = vld [vmem:[%s9 + $0xc0] sm:$0xff]
      %v2956 = vld [vmem:[%s9 + $0xc8] sm:$0xff]
      %v2957 = vld [vmem:[%s9 + $0xd0] sm:$0xff]
      %v2958 = vld [vmem:[%s9 + $0xd8] sm:$0xff]
      %v2959 = vld [vmem:[%s9 + $0xe0] sm:$0xff]
      %v2960 = vld [vmem:[%s9 + $0xe8] sm:$0xff]
      %v2961 = vld [vmem:[%s9 + $0xf0] sm:$0xff]
      %v2962 = vld [vmem:[%s9 + $0xf8] sm:$0xff]
      %v2963 = vld [vmem:[%s9 + $0x100] sm:$0xff]
      %v2964 = vld [vmem:[%s9 + $0x108] sm:$0xff]
      %v2965 = vld [vmem:[%s9 + $0x110] sm:$0xff]
      %v2966 = vld [vmem:[%s9 + $0x118] sm:$0xff]
      %v2967 = vld [vmem:[%s9 + $0x120] sm:$0xff]
      %v2968 = vld [vmem:[%s9 + $0x128] sm:$0xff]
      %v2969 = vld [vmem:[%s9 + $0x130] sm:$0xff]
      %v2970 = vld [vmem:[%s9 + $0x138] sm:$0xff]
      %v2971 = vld [vmem:[%s9 + $0x140] sm:$0xff]
      %v2972 = vld [vmem:[%s9 + $0x148] sm:$0xff]
      %v2973 = vld [vmem:[%s9 + $0x150] sm:$0xff]
      %v2974 = vld [vmem:[%s9 + $0x158] sm:$0xff]
      %v2975 = vld [vmem:[%s9 + $0x160] sm:$0xff]
      %v2976 = vld [vmem:[%s9 + $0x168] sm:$0xff]
      %v2977 = vld [vmem:[%s9 + $0x170] sm:$0xff]
      %v2978 = vld [vmem:[%s9 + $0x178] sm:$0xff]
      %v2979 = vld [vmem:[%s9 + $0x180] sm:$0xff]
      %v2980 = vld [vmem:[%s9 + $0x188] sm:$0xff]
      %v2981 = vld [vmem:[%s9 + $0x190] sm:$0xff]
      %v2982 = vld [vmem:[%s9 + $0x198] sm:$0xff]
      %v2983 = vld [vmem:[%s9 + $0x1a0] sm:$0xff]
      %v2984 = vld [vmem:[%s9 + $0x1a8] sm:$0xff]
      %v2985 = vld [vmem:[%s9 + $0x1b0] sm:$0xff]
      %v2986 = vld [vmem:[%s9 + $0x1b8] sm:$0xff]
      %v2987 = vld [vmem:[%s9 + $0x1c0] sm:$0xff]
      %v2988 = vld [vmem:[%s9 + $0x1c8] sm:$0xff]
      %v2989 = vld [vmem:[%s9 + $0x1d0] sm:$0xff]
      %v2990 = vld [vmem:[%s9 + $0x1d8] sm:$0xff]
      %v2991 = vld [vmem:[%s9 + $0x1e0] sm:$0xff]
      %v2992 = vld [vmem:[%s9 + $0x1e8] sm:$0xff]
      %v2993 = vld [vmem:[%s9 + $0x1f0] sm:$0xff]
      %v2994 = vld [vmem:[%s9 + $0x1f8] sm:$0xff]
      %v2995 = vpack.c.bf16 %v2911, %v2907
      %v2996 = vpack.c.bf16 %v2912, %v2908
      %v2997 = vpack.c.bf16 %v2913, %v2909
      %v2998 = vpack.c.bf16 %v2914, %v2910
      %v2999 = vpack.c.bf16 %v2919, %v2915
      %v3000 = vpack.c.bf16 %v2920, %v2916
      %v3001 = vpack.c.bf16 %v2921, %v2917
      %v3002 = vpack.c.bf16 %v2922, %v2918
      %v3003 = vpack.c.bf16 %v2927, %v2923
      %v3004 = vpack.c.bf16 %v2928, %v2924
      %v3005 = vpack.c.bf16 %v2929, %v2925
      %v3006 = vpack.c.bf16 %v2930, %v2926
      %v3007 = vld [vmem:[%s10] sm:$0x3]
      %v3009 = vlaneseq
      %v3010 = vshrl.u32 %v3009, 7
      %v3011 = vsub.s32 0, %v3010
      %v3012 = vrot.slane %v3007, %v3011
      %v3013 = vlaneseq
      %v3014 = vshrl.u32 %v3013, 7
      %v3015 = vsub.s32 1, %v3014
      %v3016 = vrot.slane %v3007, %v3015
      %v3083 = vunpack.c.l.b16 %v2931
      %v3084 = vunpack.c.h.b16 %v2931
      %v3085 = vunpack.c.l.b16 %v2932
      %v3086 = vunpack.c.h.b16 %v2932
      %v3087 = vunpack.c.l.b16 %v2933
      %v3088 = vunpack.c.h.b16 %v2933
      %v3089 = vunpack.c.l.b16 %v2934
      %v3090 = vunpack.c.h.b16 %v2934
      %v3091 = vunpack.c.l.b16 %v2935
      %v3092 = vunpack.c.h.b16 %v2935
      %v3093 = vunpack.c.l.b16 %v2936
      %v3094 = vunpack.c.h.b16 %v2936
      %v3095 = vunpack.c.l.b16 %v2937
      %v3096 = vunpack.c.h.b16 %v2937
      %v3097 = vunpack.c.l.b16 %v2938
      %v3098 = vunpack.c.h.b16 %v2938
      %v3099 = vunpack.c.l.b16 %v2939
      %v3100 = vunpack.c.h.b16 %v2939
      %v3101 = vunpack.c.l.b16 %v2940
      %v3102 = vunpack.c.h.b16 %v2940
      %v3103 = vunpack.c.l.b16 %v2941
      %v3104 = vunpack.c.h.b16 %v2941
      %v3105 = vunpack.c.l.b16 %v2942
      %v3106 = vunpack.c.h.b16 %v2942
      %v3107 = vunpack.c.l.b16 %v2943
      %v3108 = vunpack.c.h.b16 %v2943
      %v3109 = vunpack.c.l.b16 %v2944
      %v3110 = vunpack.c.h.b16 %v2944
      %v3111 = vunpack.c.l.b16 %v2945
      %v3112 = vunpack.c.h.b16 %v2945
      %v3113 = vunpack.c.l.b16 %v2946
      %v3114 = vunpack.c.h.b16 %v2946
      %v3115 = vunpack.c.l.b16 %v2947
      %v3116 = vunpack.c.h.b16 %v2947
      %v3117 = vunpack.c.l.b16 %v2948
      %v3118 = vunpack.c.h.b16 %v2948
      %v3119 = vunpack.c.l.b16 %v2949
      %v3120 = vunpack.c.h.b16 %v2949
      %v3121 = vunpack.c.l.b16 %v2950
      %v3122 = vunpack.c.h.b16 %v2950
      %v3123 = vunpack.c.l.b16 %v2951
      %v3124 = vunpack.c.h.b16 %v2951
      %v3125 = vunpack.c.l.b16 %v2952
      %v3126 = vunpack.c.h.b16 %v2952
      %v3127 = vunpack.c.l.b16 %v2953
      %v3128 = vunpack.c.h.b16 %v2953
      %v3129 = vunpack.c.l.b16 %v2954
      %v3130 = vunpack.c.h.b16 %v2954
      %v3131 = vunpack.c.l.b16 %v2955
      %v3132 = vunpack.c.h.b16 %v2955
      %v3133 = vunpack.c.l.b16 %v2956
      %v3134 = vunpack.c.h.b16 %v2956
      %v3135 = vunpack.c.l.b16 %v2957
      %v3136 = vunpack.c.h.b16 %v2957
      %v3137 = vunpack.c.l.b16 %v2958
      %v3138 = vunpack.c.h.b16 %v2958
      %v3139 = vunpack.c.l.b16 %v2959
      %v3140 = vunpack.c.h.b16 %v2959
      %v3141 = vunpack.c.l.b16 %v2960
      %v3142 = vunpack.c.h.b16 %v2960
      %v3143 = vunpack.c.l.b16 %v2961
      %v3144 = vunpack.c.h.b16 %v2961
      %v3145 = vunpack.c.l.b16 %v2962
      %v3146 = vunpack.c.h.b16 %v2962
      %v3147 = vunpack.c.l.b16 %v2963
      %v3148 = vunpack.c.h.b16 %v2963
      %v3149 = vunpack.c.l.b16 %v2964
      %v3150 = vunpack.c.h.b16 %v2964
      %v3151 = vunpack.c.l.b16 %v2965
      %v3152 = vunpack.c.h.b16 %v2965
      %v3153 = vunpack.c.l.b16 %v2966
      %v3154 = vunpack.c.h.b16 %v2966
      %v3155 = vunpack.c.l.b16 %v2967
      %v3156 = vunpack.c.h.b16 %v2967
      %v3157 = vunpack.c.l.b16 %v2968
      %v3158 = vunpack.c.h.b16 %v2968
      %v3159 = vunpack.c.l.b16 %v2969
      %v3160 = vunpack.c.h.b16 %v2969
      %v3161 = vunpack.c.l.b16 %v2970
      %v3162 = vunpack.c.h.b16 %v2970
      %v3163 = vunpack.c.l.b16 %v2971
      %v3164 = vunpack.c.h.b16 %v2971
      %v3165 = vunpack.c.l.b16 %v2972
      %v3166 = vunpack.c.h.b16 %v2972
      %v3167 = vunpack.c.l.b16 %v2973
      %v3168 = vunpack.c.h.b16 %v2973
      %v3169 = vunpack.c.l.b16 %v2974
      %v3170 = vunpack.c.h.b16 %v2974
      %v3171 = vunpack.c.l.b16 %v2975
      %v3172 = vunpack.c.h.b16 %v2975
      %v3173 = vunpack.c.l.b16 %v2976
      %v3174 = vunpack.c.h.b16 %v2976
      %v3175 = vunpack.c.l.b16 %v2977
      %v3176 = vunpack.c.h.b16 %v2977
      %v3177 = vunpack.c.l.b16 %v2978
      %v3178 = vunpack.c.h.b16 %v2978
      %v3179 = vunpack.c.l.b16 %v2979
      %v3180 = vunpack.c.h.b16 %v2979
      %v3181 = vunpack.c.l.b16 %v2980
      %v3182 = vunpack.c.h.b16 %v2980
      %v3183 = vunpack.c.l.b16 %v2981
      %v3184 = vunpack.c.h.b16 %v2981
      %v3185 = vunpack.c.l.b16 %v2982
      %v3186 = vunpack.c.h.b16 %v2982
      %v3187 = vunpack.c.l.b16 %v2983
      %v3188 = vunpack.c.h.b16 %v2983
      %v3189 = vunpack.c.l.b16 %v2984
      %v3190 = vunpack.c.h.b16 %v2984
      %v3191 = vunpack.c.l.b16 %v2985
      %v3192 = vunpack.c.h.b16 %v2985
      %v3193 = vunpack.c.l.b16 %v2986
      %v3194 = vunpack.c.h.b16 %v2986
      %v3195 = vunpack.c.l.b16 %v2987
      %v3196 = vunpack.c.h.b16 %v2987
      %v3197 = vunpack.c.l.b16 %v2988
      %v3198 = vunpack.c.h.b16 %v2988
      %v3199 = vunpack.c.l.b16 %v2989
      %v3200 = vunpack.c.h.b16 %v2989
      %v3201 = vunpack.c.l.b16 %v2990
      %v3202 = vunpack.c.h.b16 %v2990
      %v3203 = vunpack.c.l.b16 %v2991
      %v3204 = vunpack.c.h.b16 %v2991
      %v3205 = vunpack.c.l.b16 %v2992
      %v3206 = vunpack.c.h.b16 %v2992
      %v3207 = vunpack.c.l.b16 %v2993
      %v3208 = vunpack.c.h.b16 %v2993
      %v3209 = vunpack.c.l.b16 %v2994
      %v3210 = vunpack.c.h.b16 %v2994
      %v3211 = vpack.c.b16 %v3085, %v3083
      %v3212 = vpack.c.b16 %v3086, %v3084
      %v3213 = vpack.c.b16 %v3089, %v3087
      %v3214 = vpack.c.b16 %v3090, %v3088
      %v3215 = vpack.c.b16 %v3093, %v3091
      %v3216 = vpack.c.b16 %v3094, %v3092
      %v3217 = vpack.c.b16 %v3097, %v3095
      %v3218 = vpack.c.b16 %v3098, %v3096
      %v3219 = vpack.c.b16 %v3101, %v3099
      %v3220 = vpack.c.b16 %v3102, %v3100
      %v3221 = vpack.c.b16 %v3105, %v3103
      %v3222 = vpack.c.b16 %v3106, %v3104
      %v3223 = vpack.c.b16 %v3109, %v3107
      %v3224 = vpack.c.b16 %v3110, %v3108
      %v3225 = vpack.c.b16 %v3113, %v3111
      %v3226 = vpack.c.b16 %v3114, %v3112
      %v3227 = vpack.c.b16 %v3117, %v3115
      %v3228 = vpack.c.b16 %v3118, %v3116
      %v3229 = vpack.c.b16 %v3121, %v3119
      %v3230 = vpack.c.b16 %v3122, %v3120
      %v3231 = vpack.c.b16 %v3125, %v3123
      %v3232 = vpack.c.b16 %v3126, %v3124
      %v3233 = vpack.c.b16 %v3129, %v3127
      %v3234 = vpack.c.b16 %v3130, %v3128
      %v3235 = vpack.c.b16 %v3133, %v3131
      %v3236 = vpack.c.b16 %v3134, %v3132
      %v3237 = vpack.c.b16 %v3137, %v3135
      %v3238 = vpack.c.b16 %v3138, %v3136
      %v3239 = vpack.c.b16 %v3141, %v3139
      %v3240 = vpack.c.b16 %v3142, %v3140
      %v3241 = vpack.c.b16 %v3145, %v3143
      %v3242 = vpack.c.b16 %v3146, %v3144
      %v3243 = vpack.c.b16 %v3149, %v3147
      %v3244 = vpack.c.b16 %v3150, %v3148
      %v3245 = vpack.c.b16 %v3153, %v3151
      %v3246 = vpack.c.b16 %v3154, %v3152
      %v3247 = vpack.c.b16 %v3157, %v3155
      %v3248 = vpack.c.b16 %v3158, %v3156
      %v3249 = vpack.c.b16 %v3161, %v3159
      %v3250 = vpack.c.b16 %v3162, %v3160
      %v3251 = vpack.c.b16 %v3165, %v3163
      %v3252 = vpack.c.b16 %v3166, %v3164
      %v3253 = vpack.c.b16 %v3169, %v3167
      %v3254 = vpack.c.b16 %v3170, %v3168
      %v3255 = vpack.c.b16 %v3173, %v3171
      %v3256 = vpack.c.b16 %v3174, %v3172
      %v3257 = vpack.c.b16 %v3177, %v3175
      %v3258 = vpack.c.b16 %v3178, %v3176
      %v3259 = vpack.c.b16 %v3181, %v3179
      %v3260 = vpack.c.b16 %v3182, %v3180
      %v3261 = vpack.c.b16 %v3185, %v3183
      %v3262 = vpack.c.b16 %v3186, %v3184
      %v3263 = vpack.c.b16 %v3189, %v3187
      %v3264 = vpack.c.b16 %v3190, %v3188
      %v3265 = vpack.c.b16 %v3193, %v3191
      %v3266 = vpack.c.b16 %v3194, %v3192
      %v3267 = vpack.c.b16 %v3197, %v3195
      %v3268 = vpack.c.b16 %v3198, %v3196
      %v3269 = vpack.c.b16 %v3201, %v3199
      %v3270 = vpack.c.b16 %v3202, %v3200
      %v3271 = vpack.c.b16 %v3205, %v3203
      %v3272 = vpack.c.b16 %v3206, %v3204
      %v3273 = vpack.c.b16 %v3209, %v3207
      %v3274 = vpack.c.b16 %v3210, %v3208
      %3339 = vmatprep.subr.bf16.mxu0 %v3212
      %3340 = vmatpush1.bf16.msra.mxu0 %v3211
      %3341 = vmatprep.subr.bf16.mxu0 %v3214
      %3342 = vmatpush1.bf16.msra.mxu0 %v3213
      %3343 = vmatprep.subr.bf16.mxu0 %v3216
      %3344 = vmatpush1.bf16.msra.mxu0 %v3215
      %3345 = vmatprep.subr.bf16.mxu0 %v3218
      %3346 = vmatpush1.bf16.msra.mxu0 %v3217
      %3347 = vmatprep.subr.bf16.mxu0 %v3220
      %3348 = vmatpush1.bf16.msra.mxu0 %v3219
      %3349 = vmatprep.subr.bf16.mxu0 %v3222
      %3350 = vmatpush1.bf16.msra.mxu0 %v3221
      %3351 = vmatprep.subr.bf16.mxu0 %v3224
      %3352 = vmatpush1.bf16.msra.mxu0 %v3223
      %3353 = vmatprep.subr.bf16.mxu0 %v3226
      %3354 = vmatpush1.bf16.msra.mxu0 %v3225
      %3355 = vmatprep.subr.bf16.mxu0 %v3228
      %3356 = vmatpush1.bf16.msra.mxu0 %v3227
      %3357 = vmatprep.subr.bf16.mxu0 %v3230
      %3358 = vmatpush1.bf16.msra.mxu0 %v3229
      %3359 = vmatprep.subr.bf16.mxu0 %v3232
      %3360 = vmatpush1.bf16.msra.mxu0 %v3231
      %3361 = vmatprep.subr.bf16.mxu0 %v3234
      %3362 = vmatpush1.bf16.msra.mxu0 %v3233
      %3363 = vmatprep.subr.bf16.mxu0 %v3236
      %3364 = vmatpush1.bf16.msra.mxu0 %v3235
      %3365 = vmatprep.subr.bf16.mxu0 %v3238
      %3366 = vmatpush1.bf16.msra.mxu0 %v3237
      %3367 = vmatprep.subr.bf16.mxu0 %v3240
      %3368 = vmatpush1.bf16.msra.mxu0 %v3239
      %3369 = vmatprep.subr.bf16.mxu0 %v3242
      %3370 = vmatpush1.bf16.msra.mxu0 %v3241
      %3371 = vmatprep.mubr.bf16.mxu0 %v2996
      %3372 = vmatmul.mubr.bf16.gmra.mrb[0].mxu0 %v2995
      %v3373 = vpop.f32.mrb[0].mxu0
      %v3374 = vadd.f32 %v3012, %v3373
      %v3375 = vpop.f32.mrb[0].mxu0
      %v3376 = vadd.f32 %v3016, %v3375
      %v3377 = vpop.f32.mrb[0].mxu0
      %v3378 = vadd.f32 %v3012, %v3377
      %v3379 = vpop.f32.mrb[0].mxu0
      %v3380 = vadd.f32 %v3016, %v3379
      %3381 = vmatprep.mubr.bf16.mxu0 %v3000
      %3382 = vmatmul.mubr.bf16.gmra.mrb[0].mxu0 %v2999
      %v3383 = vpop.f32.mrb[0].mxu0
      %v3384 = vadd.f32 %v3012, %v3383
      %v3385 = vpop.f32.mrb[0].mxu0
      %v3386 = vadd.f32 %v3016, %v3385
      %v3387 = vpop.f32.mrb[0].mxu0
      %v3388 = vadd.f32 %v3012, %v3387
      %v3389 = vpop.f32.mrb[0].mxu0
      %v3390 = vadd.f32 %v3016, %v3389
      %3391 = vmatprep.mubr.bf16.mxu0 %v3004
      %3392 = vmatmul.mubr.bf16.gmra.mrb[0].mxu0 %v3003
      %v3393 = vpop.f32.mrb[0].mxu0
      %v3394 = vadd.f32 %v3012, %v3393
      %v3395 = vpop.f32.mrb[0].mxu0
      %v3396 = vadd.f32 %v3016, %v3395
      %v3397 = vpop.f32.mrb[0].mxu0
      %v3398 = vadd.f32 %v3012, %v3397
      %v3399 = vpop.f32.mrb[0].mxu0
      %v3400 = vadd.f32 %v3016, %v3399
      %3401 = vdwg.mxu0
      %3402 = vmatprep.subr.bf16.mxu0 %v3244
      %3403 = vmatpush1.bf16.msra.mxu0 %v3243
      %3404 = vmatprep.subr.bf16.mxu0 %v3246
      %3405 = vmatpush1.bf16.msra.mxu0 %v3245
      %3406 = vmatprep.subr.bf16.mxu0 %v3248
      %3407 = vmatpush1.bf16.msra.mxu0 %v3247
      %3408 = vmatprep.subr.bf16.mxu0 %v3250
      %3409 = vmatpush1.bf16.msra.mxu0 %v3249
      %3410 = vmatprep.subr.bf16.mxu0 %v3252
      %3411 = vmatpush1.bf16.msra.mxu0 %v3251
      %3412 = vmatprep.subr.bf16.mxu0 %v3254
      %3413 = vmatpush1.bf16.msra.mxu0 %v3253
      %3414 = vmatprep.subr.bf16.mxu0 %v3256
      %3415 = vmatpush1.bf16.msra.mxu0 %v3255
      %3416 = vmatprep.subr.bf16.mxu0 %v3258
      %3417 = vmatpush1.bf16.msra.mxu0 %v3257
      %3418 = vmatprep.subr.bf16.mxu0 %v3260
      %3419 = vmatpush1.bf16.msra.mxu0 %v3259
      %3420 = vmatprep.subr.bf16.mxu0 %v3262
      %3421 = vmatpush1.bf16.msra.mxu0 %v3261
      %3422 = vmatprep.subr.bf16.mxu0 %v3264
      %3423 = vmatpush1.bf16.msra.mxu0 %v3263
      %3424 = vmatprep.subr.bf16.mxu0 %v3266
      %3425 = vmatpush1.bf16.msra.mxu0 %v3265
      %3426 = vmatprep.subr.bf16.mxu0 %v3268
      %3427 = vmatpush1.bf16.msra.mxu0 %v3267
      %3428 = vmatprep.subr.bf16.mxu0 %v3270
      %3429 = vmatpush1.bf16.msra.mxu0 %v3269
      %3430 = vmatprep.subr.bf16.mxu0 %v3272
      %3431 = vmatpush1.bf16.msra.mxu0 %v3271
      %3432 = vmatprep.subr.bf16.mxu0 %v3274
      %3433 = vmatpush1.bf16.msra.mxu0 %v3273
      %3434 = vmatprep.mubr.bf16.mxu0 %v2998
      %3435 = vmatmul.mubr.bf16.gmra.mrb[0].mxu0 %v2997
      %v3436 = vpop.f32.mrb[0].mxu0
      %v3437 = vadd.f32 %v3374, %v3436
      %v3438 = vpop.f32.mrb[0].mxu0
      %v3439 = vadd.f32 %v3376, %v3438
      %v3440 = vpop.f32.mrb[0].mxu0
      %v3441 = vadd.f32 %v3378, %v3440
      %v3442 = vpop.f32.mrb[0].mxu0
      %v3443 = vadd.f32 %v3380, %v3442
      %3444 = vmatprep.mubr.bf16.mxu0 %v3002
      %3445 = vmatmul.mubr.bf16.gmra.mrb[0].mxu0 %v3001
      %v3446 = vpop.f32.mrb[0].mxu0
      %v3447 = vadd.f32 %v3384, %v3446
      %v3448 = vpop.f32.mrb[0].mxu0
      %v3449 = vadd.f32 %v3386, %v3448
      %v3450 = vpop.f32.mrb[0].mxu0
      %v3451 = vadd.f32 %v3388, %v3450
      %v3452 = vpop.f32.mrb[0].mxu0
      %v3453 = vadd.f32 %v3390, %v3452
      %3454 = vmatprep.mubr.bf16.mxu0 %v3006
      %3455 = vmatmul.mubr.bf16.gmra.mrb[0].mxu0 %v3005
      %v3456 = vpop.f32.mrb[0].mxu0
      %v3457 = vadd.f32 %v3394, %v3456
      %v3458 = vpop.f32.mrb[0].mxu0
      %v3459 = vadd.f32 %v3396, %v3458
      %v3460 = vpop.f32.mrb[0].mxu0
      %v3461 = vadd.f32 %v3398, %v3460
      %v3462 = vpop.f32.mrb[0].mxu0
      %v3463 = vadd.f32 %v3400, %v3462
      %3464 = vdwg.mxu0
      %v3465 = vadd.f32 %v2165, %v3437
      %v3466 = vadd.f32 %v2166, %v3439
      %v3467 = vadd.f32 %v2167, %v3441
      %v3468 = vadd.f32 %v2168, %v3443
      %v3469 = vadd.f32 %v2169, %v3447
      %v3470 = vadd.f32 %v2170, %v3449
      %v3471 = vadd.f32 %v2171, %v3451
      %v3472 = vadd.f32 %v2172, %v3453
      %v3473 = vadd.f32 %v2173, %v3457
      %v3474 = vadd.f32 %v2174, %v3459
      %v3475 = vadd.f32 %v2175, %v3461
      %v3476 = vadd.f32 %v2176, %v3463
      %v3477 = vld [vmem:[%s11] sm:$0x3]
      %v3478 = vld [vmem:[%s12] sm:$0x3]
      %v3479 = vadd.f32 %v3465, %v3466
      %3480 = vadd.xlane.f32.xlu0 %v3479
      %v3481 = vpop.xlane.xlu0 %3480
      %v3482 = vadd.f32 %v3467, %v3468
      %3483 = vadd.xlane.f32.xlu0 %v3482
      %v3484 = vpop.xlane.xlu0 %3483
      %v3485 = vadd.f32 %v3469, %v3470
      %3486 = vadd.xlane.f32.xlu0 %v3485
      %v3487 = vpop.xlane.xlu0 %3486
      %v3488 = vadd.f32 %v3471, %v3472
      %3489 = vadd.xlane.f32.xlu0 %v3488
      %v3490 = vpop.xlane.xlu0 %3489
      %v3491 = vadd.f32 %v3473, %v3474
      %3492 = vadd.xlane.f32.xlu0 %v3491
      %v3493 = vpop.xlane.xlu0 %3492
      %v3494 = vadd.f32 %v3475, %v3476
      %3495 = vadd.xlane.f32.xlu0 %v3494
      %v3496 = vpop.xlane.xlu0 %3495
      %v3497 = vmul.f32 %v3481, %v2052
      %v3498 = vmul.f32 %v3484, %v2052
      %v3499 = vmul.f32 %v3487, %v2052
      %v3500 = vmul.f32 %v3490, %v2052
      %v3501 = vmul.f32 %v3493, %v2052
      %v3502 = vmul.f32 %v3496, %v2052
      %v3503 = vsub.f32 %v3465, %v3497
      %v3504 = vsub.f32 %v3466, %v3497
      %v3505 = vsub.f32 %v3467, %v3498
      %v3506 = vsub.f32 %v3468, %v3498
      %v3507 = vsub.f32 %v3469, %v3499
      %v3508 = vsub.f32 %v3470, %v3499
      %v3509 = vsub.f32 %v3471, %v3500
      %v3510 = vsub.f32 %v3472, %v3500
      %v3511 = vsub.f32 %v3473, %v3501
      %v3512 = vsub.f32 %v3474, %v3501
      %v3513 = vsub.f32 %v3475, %v3502
      %v3514 = vsub.f32 %v3476, %v3502
      %v3515 = vmul.f32 %v3503, %v3503
      %v3516 = vmul.f32 %v3504, %v3504
      %v3517 = vmul.f32 %v3505, %v3505
      %v3518 = vmul.f32 %v3506, %v3506
      %v3519 = vmul.f32 %v3507, %v3507
      %v3520 = vmul.f32 %v3508, %v3508
      %v3521 = vmul.f32 %v3509, %v3509
      %v3522 = vmul.f32 %v3510, %v3510
      %v3523 = vmul.f32 %v3511, %v3511
      %v3524 = vmul.f32 %v3512, %v3512
      %v3525 = vmul.f32 %v3513, %v3513
      %v3526 = vmul.f32 %v3514, %v3514
      %v3527 = vadd.f32 %v3515, %v3516
      %3528 = vadd.xlane.f32.xlu0 %v3527
      %v3529 = vpop.xlane.xlu0 %3528
      %v3530 = vadd.f32 %v3517, %v3518
      %3531 = vadd.xlane.f32.xlu0 %v3530
      %v3532 = vpop.xlane.xlu0 %3531
      %v3533 = vadd.f32 %v3519, %v3520
      %3534 = vadd.xlane.f32.xlu0 %v3533
      %v3535 = vpop.xlane.xlu0 %3534
      %v3536 = vadd.f32 %v3521, %v3522
      %3537 = vadd.xlane.f32.xlu0 %v3536
      %v3538 = vpop.xlane.xlu0 %3537
      %v3539 = vadd.f32 %v3523, %v3524
      %3540 = vadd.xlane.f32.xlu0 %v3539
      %v3541 = vpop.xlane.xlu0 %3540
      %v3542 = vadd.f32 %v3525, %v3526
      %3543 = vadd.xlane.f32.xlu0 %v3542
      %v3544 = vpop.xlane.xlu0 %3543
      %v3545 = vmul.f32 %v3529, %v2052
      %v3546 = vmul.f32 %v3532, %v2052
      %v3547 = vmul.f32 %v3535, %v2052
      %v3548 = vmul.f32 %v3538, %v2052
      %v3549 = vmul.f32 %v3541, %v2052
      %v3550 = vmul.f32 %v3544, %v2052
      %v3551 = vadd.f32 %v3545, 1e-05
      %v3552 = vadd.f32 %v3546, 1e-05
      %v3553 = vadd.f32 %v3547, 1e-05
      %v3554 = vadd.f32 %v3548, 1e-05
      %v3555 = vadd.f32 %v3549, 1e-05
      %v3556 = vadd.f32 %v3550, 1e-05
      %v3557 = vrsqrt.pop %v3551
      %v3558 = vrsqrt.pop %v3552
      %v3559 = vrsqrt.pop %v3553
      %v3560 = vrsqrt.pop %v3554
      %v3561 = vrsqrt.pop %v3555
      %v3562 = vrsqrt.pop %v3556
      %v3563 = vmul.f32 %v3503, %v3557
      %v3564 = vmul.f32 %v3504, %v3557
      %v3565 = vmul.f32 %v3505, %v3558
      %v3566 = vmul.f32 %v3506, %v3558
      %v3567 = vmul.f32 %v3507, %v3559
      %v3568 = vmul.f32 %v3508, %v3559
      %v3569 = vmul.f32 %v3509, %v3560
      %v3570 = vmul.f32 %v3510, %v3560
      %v3571 = vmul.f32 %v3511, %v3561
      %v3572 = vmul.f32 %v3512, %v3561
      %v3573 = vmul.f32 %v3513, %v3562
      %v3574 = vmul.f32 %v3514, %v3562
      %v3576 = vlaneseq
      %v3577 = vshrl.u32 %v3576, 7
      %v3578 = vsub.s32 0, %v3577
      %v3579 = vrot.slane %v3477, %v3578
      %v3580 = vlaneseq
      %v3581 = vshrl.u32 %v3580, 7
      %v3582 = vsub.s32 1, %v3581
      %v3583 = vrot.slane %v3477, %v3582
      %v3586 = vmul.f32 %v3563, %v3579
      %v3587 = vmul.f32 %v3564, %v3583
      %v3588 = vmul.f32 %v3565, %v3579
      %v3589 = vmul.f32 %v3566, %v3583
      %v3590 = vmul.f32 %v3567, %v3579
      %v3591 = vmul.f32 %v3568, %v3583
      %v3592 = vmul.f32 %v3569, %v3579
      %v3593 = vmul.f32 %v3570, %v3583
      %v3594 = vmul.f32 %v3571, %v3579
      %v3595 = vmul.f32 %v3572, %v3583
      %v3596 = vmul.f32 %v3573, %v3579
      %v3597 = vmul.f32 %v3574, %v3583
      %v3599 = vlaneseq
      %v3600 = vshrl.u32 %v3599, 7
      %v3601 = vsub.s32 0, %v3600
      %v3602 = vrot.slane %v3478, %v3601
      %v3603 = vlaneseq
      %v3604 = vshrl.u32 %v3603, 7
      %v3605 = vsub.s32 1, %v3604
      %v3606 = vrot.slane %v3478, %v3605
      %v3609 = vadd.f32 %v3586, %v3602
      %v3610 = vadd.f32 %v3587, %v3606
      %v3611 = vadd.f32 %v3588, %v3602
      %v3612 = vadd.f32 %v3589, %v3606
      %v3613 = vadd.f32 %v3590, %v3602
      %v3614 = vadd.f32 %v3591, %v3606
      %v3615 = vadd.f32 %v3592, %v3602
      %v3616 = vadd.f32 %v3593, %v3606
      %v3617 = vadd.f32 %v3594, %v3602
      %v3618 = vadd.f32 %v3595, %v3606
      %v3619 = vadd.f32 %v3596, %v3602
      %v3620 = vadd.f32 %v3597, %v3606
      %3621 = vst [vmem:[%s440] sm:$0xff] %v3609
      %3622 = vst [vmem:[%s440 + $0x8] sm:$0xff] %v3610
      %3623 = vst [vmem:[%s440 + $0x10] sm:$0xff] %v3611
      %3624 = vst [vmem:[%s440 + $0x18] sm:$0xff] %v3612
      %3625 = vst [vmem:[%s440 + $0x20] sm:$0xff] %v3613
      %3626 = vst [vmem:[%s440 + $0x28] sm:$0xff] %v3614
      %3627 = vst [vmem:[%s440 + $0x30] sm:$0xff] %v3615
      %3628 = vst [vmem:[%s440 + $0x38] sm:$0xff] %v3616
      %3629 = vst [vmem:[%s440 + $0x40] sm:$0xff] %v3617
      %3630 = vst [vmem:[%s440 + $0x48] sm:$0xff] %v3618
      %3631 = vst [vmem:[%s440 + $0x50] sm:$0xff] %v3619
      %3632 = vst [vmem:[%s440 + $0x58] sm:$0xff] %v3620
      %p3633 = scmp.lt.s32.totalorder %s24, 1
      %s3634 = scalar_select %p3633, %s24, 1
      %s3635 = smul.addr %s3634, 12
      %s3636 = smul.addr %s3635, 8
      %s3637 = scalar_lea.vmem %s13, %s3636
      // Predicated region
      $region73: #{covid_wav2vec_forward.17} parent=71 // pred_check
        %p3638 = pneg %p320
      $region74: #{covid_wav2vec_forward.17} parent=71 // pred_check_branch
        %3640 = sbr.rel (%p3638) target = $region76
      $region75: #{covid_wav2vec_forward.17} parent=71 // pred_region
        _
      $region76: #{covid_wav2vec_forward.17} parent=71 // pred_fallthru
        _
    $region72: #{covid_wav2vec_forward.17} parent=5 // pred_fallthru
      _
    %p3641 = scmp.le.s32.totalorder 2, %s19
    // Predicated region
    $region77: #{covid_wav2vec_forward.17} parent=5 // pred_check
      %p3642 = pneg %p3641
    $region78: #{covid_wav2vec_forward.17} parent=5 // pred_check_branch
      %3644 = sbr.rel (%p3642) target = $region80
    $region79: #{covid_wav2vec_forward.17} parent=5 // pred_region
      %s3645 = ssub.s32 %s19, 2
      // Predicated region
      $region81: #{covid_wav2vec_forward.17} parent=79 // pred_check
        %p3646 = pneg %p326
      $region82: #{covid_wav2vec_forward.17} parent=79 // pred_check_branch
        %3648 = sbr.rel (%p3646) target = $region84
      $region83: #{covid_wav2vec_forward.17} parent=79 // pred_region
        %p3649 = scmp.lt.s32.totalorder %s25, 1
        %s3650 = scalar_select %p3649, %s25, 1
        %s3651 = smul.addr %s3650, 12
        %s3652 = smul.addr %s3651, 8
        %s3653 = scalar_lea.vmem %s13, %s3652
      $region84: #{covid_wav2vec_forward.17} parent=79 // pred_fallthru
        _
    $region80: #{covid_wav2vec_forward.17} parent=5 // pred_fallthru
      _
  $region6: #{covid_wav2vec_forward.17} parent=0 // loop_footer
    %s23 = sadd.s32 1, %s19
  $region7: #{covid_wav2vec_forward.17} parent=0 // loop_footer_branch
    %18 = sbr.rel target = $region3
  $region8: #{covid_wav2vec_forward.17} parent=0 // loop_exit
    _

</llo_original>
